<compile_context>
chip_gen: v7x
topology: tpu7x:2x2x1
jax: 0.10.0
libtpu: 0.0.40
codegen_flags: <defaults>
</compile_context>

<pallas_src>
import functools

import jax
import jax.numpy as jnp
from jax.experimental import pallas as pl
from jax.experimental.pallas import tpu as pltpu

H1, H2, H3, H4 = 2048, 512, 128, 32
H4_PAD = 128          # layer-4 output padded to a full lane width
LANE = 128
ROW_ALIGN = 16        # batch-tile row alignment (bf16 sublane packing safe)


def _round_up(x, m):
    return ((x + m - 1) // m) * m


def _leaky_relu(z, slope=0.1):
    # max(z, slope*z) == LeakyReLU(z) for 0 < slope < 1: one VALU op
    # instead of compare + select.
    return jnp.maximum(z, slope * z)


def _tpu_device_kind():
    try:
        return jax.devices()[0].device_kind.lower()
    except Exception:
        return ""


def _tpu_vmem_capacity(kind):
    try:
        return int(pltpu.get_tpu_info().vmem_capacity_bytes)
    except Exception:
        pass
    return (64 << 20) if "v7" in kind else (128 << 20)


def _use_bf16_epilogue(kind=None):
    # v5e (and other v5) have no bf16 VPU path; keep the f32 epilogue there.
    kind = _tpu_device_kind() if kind is None else kind
    return "v5" not in kind


def dqn_mlp_kernel(x_ref,
                   w1_ref, b1_ref,
                   w2_ref, b2_ref,
                   w3_ref, b3_ref,
                   w4_ref, b4_ref,
                   w5_ref, b5_ref,
                   o_ref, *, bf16_epilogue):
    # Weights: bf16 [in, out].  Biases: f32 [1, out].  Every matmul
    # accumulates in f32 on the MXU; the epilogue (bias add + LeakyReLU) runs
    # in bf16 on v6e/v7x and in f32 on v5.
    def layer(h, w_ref, b_ref, activate):
        z = jnp.dot(h, w_ref[...], preferred_element_type=jnp.float32)
        if bf16_epilogue:
            z = z.astype(jnp.bfloat16) + b_ref[...].astype(jnp.bfloat16)
            return _leaky_relu(z) if activate else z
        z = z + b_ref[...]
        if activate:
            z = _leaky_relu(z)
        return z.astype(jnp.bfloat16)

    h = x_ref[...].astype(jnp.bfloat16)
    h = layer(h, w1_ref, b1_ref, True)
    h = layer(h, w2_ref, b2_ref, True)
    h = layer(h, w3_ref, b3_ref, True)
    h = layer(h, w4_ref, b4_ref, True)
    out = layer(h, w5_ref, b5_ref, False)   # lane-dense padded output, bf16
    o_ref[...] = out.astype(o_ref.dtype)


def dqn_forward(x, params, output_dim, *, tile_b=None, bf16_epilogue=None):
    """x: [B, input_dim] float32.  params: bf16 transposed weights + f32 biases."""
    B, input_dim = x.shape
    out_pad = params["w5"].shape[1]          # padded to a multiple of 128

    kind = _tpu_device_kind()
    is_v7x = "v7" in kind
    if bf16_epilogue is None:
        bf16_epilogue = _use_bf16_epilogue(kind)
    vmem_cap = _tpu_vmem_capacity(kind)
    # Generation-aware max batch tile: the only per-step DMAs are the x / out
    # tiles (weights have constant block indices), so fat tiles amortize the
    # ~0.35us/step overhead.  Halved on v7x (64 MiB VMEM, 2 TCs).
    max_tile_b = 512 if is_v7x else 1024

    if tile_b is None:
        if is_v7x and B >= 2 * ROW_ALIGN:
            # Force >=2 grid steps so ("parallel",) shards across both v7x TCs.
            tile_b = _round_up(pl.cdiv(B, 2), ROW_ALIGN)
        else:
            tile_b = _round_up(B, ROW_ALIGN)
    tile_b = max(ROW_ALIGN, min(_round_up(int(tile_b), ROW_ALIGN), max_tile_b))

    Bp = _round_up(B, tile_b)
    if Bp != B:
        x = jnp.pad(x, ((0, Bp - B), (0, 0)))
    grid = (Bp // tile_b,)

    # Residency estimate (bytes) for the VMEM budget and the OOM guard.
    w_bytes = sum(int(v.size) * v.dtype.itemsize for v in params.values())
    io_bytes = 2 * tile_b * (input_dim * 4 + out_pad * 2)     # dbl-buffered x/out
    act_bytes = tile_b * (input_dim + H1 + H2 + H3 + H4_PAD + out_pad) * 6

    args = (x,
            params["w1"], params["b1"],
            params["w2"], params["b2"],
            params["w3"], params["b3"],
            params["w4"], params["b4"],
            params["w5"], params["b5"])

    def _build(single_buffer_weights):
        def wspec(shape):
            nblk = len(shape)
            kwargs = {}
            if single_buffer_weights:
                # Constant block index -> double-buffering only wastes VMEM.
                kwargs["pipeline_mode"] = pl.Buffered(1)
            return pl.BlockSpec(shape, lambda i: (0,) * nblk, **kwargs)

        in_specs = [pl.BlockSpec((tile_b, input_dim), lambda i: (i, 0))]
        for l in range(1, 6):
            in_specs.append(wspec(params[f"w{l}"].shape))
            in_specs.append(wspec(params[f"b{l}"].shape))
        out_spec = pl.BlockSpec((tile_b, out_pad), lambda i: (i, 0))

        buf_factor = 1 if single_buffer_weights else 2
        resident = buf_factor * w_bytes + io_bytes + act_bytes
        if resident > int(0.9 * vmem_cap):
            raise ValueError(
                f"weights + activations (~{resident >> 20} MiB) exceed the VMEM "
                f"budget ({vmem_cap >> 20} MiB); reduce tile_b / input_dim "
                "(see TODO(synk) on K-tiling layer 1).")
        vmem_limit = int(min(resident + (8 << 20), vmem_cap))

        return pl.pallas_call(
            functools.partial(dqn_mlp_kernel, bf16_epilogue=bf16_epilogue),
            out_shape=jax.ShapeDtypeStruct((Bp, out_pad), jnp.bfloat16),
            grid_spec=pltpu.PrefetchScalarGridSpec(
                num_scalar_prefetch=0,
                grid=grid,
                in_specs=in_specs,
                out_specs=out_spec,
            ),
            compiler_params=pltpu.CompilerParams(
                dimension_semantics=("parallel",),
                vmem_limit_bytes=vmem_limit,
            ),
        )

    try:
        out = _build(single_buffer_weights=True)(*args)
    except Exception:
        # Fallback if this jax build rejects pipeline_mode=pl.Buffered(1).
        out = _build(single_buffer_weights=False)(*args)

    return out[:B, :output_dim].astype(jnp.float32)


def init_params(key, input_dim, output_dim):
    """Mimics torch.nn.Linear default init (uniform +/- 1/sqrt(fan_in)).
    Weights stored transposed [in, out] in bf16; biases f32 [1, out].
    Layer 4 is padded 32->128 output columns and layer 5 is padded on both
    axes (128 input rows, output columns to a multiple of 128); all padding
    is zeros and numerically inert."""
    out_pad = _round_up(max(output_dim, 1), LANE)
    dims = [(input_dim, H1), (H1, H2), (H2, H3), (H3, H4), (H4, output_dim)]
    row_pad = [0, 0, 0, 0, H4_PAD - H4]
    col_pad = [0, 0, 0, H4_PAD - H4, out_pad - output_dim]

    params = {}
    for idx, (fan_in, fan_out) in enumerate(dims, start=1):
        key, kw, kb = jax.random.split(key, 3)
        bound = 1.0 / (fan_in ** 0.5)
        w = jax.random.uniform(kw, (fan_in, fan_out), jnp.float32,
                               minval=-bound, maxval=bound)
        b = jax.random.uniform(kb, (1, fan_out), jnp.float32,
                               minval=-bound, maxval=bound)
        rp, cp = row_pad[idx - 1], col_pad[idx - 1]
        if rp or cp:
            w = jnp.pad(w, ((0, rp), (0, cp)))
        if cp:
            b = jnp.pad(b, ((0, 0), (0, cp)))
        params[f"w{idx}"] = w.astype(jnp.bfloat16)
        params[f"b{idx}"] = b
    return params


def reference_forward(x, params, output_dim, *, bf16_epilogue):
    """Pure-JAX reference computing exactly the kernel's math."""
    h = x.astype(jnp.bfloat16)
    for i in range(1, 6):
        z = jnp.dot(h, params[f"w{i}"], preferred_element_type=jnp.float32)
        if bf16_epilogue:
            z = z.astype(jnp.bfloat16) + params[f"b{i}"].astype(jnp.bfloat16)
            h = _leaky_relu(z) if i < 5 else z
        else:
            z = z + params[f"b{i}"]
            if i < 5:
                z = _leaky_relu(z)
            h = z.astype(jnp.bfloat16)
    return h.astype(jnp.float32)[:, :output_dim]


if __name__ == "__main__":
    # Small shapes consistent with the DQN module (feature vector in,
    # 6 action Q-values out).
    batch = 8
    input_dim = 64
    output_dim = 6

    key = jax.random.PRNGKey(0)
    key, kx = jax.random.split(key)
    x = jax.random.normal(kx, (batch, input_dim), jnp.float32)
    params = init_params(key, input_dim, output_dim)

    bf16_epi = _use_bf16_epilogue()
    out = dqn_forward(x, params, output_dim, bf16_epilogue=bf16_epi)
    out = jax.block_until_ready(out)

    ref = reference_forward(x, params, output_dim, bf16_epilogue=bf16_epi)
    assert out.shape == (batch, output_dim)
    assert jnp.allclose(out, ref, rtol=1e-2, atol=1e-2), "mismatch vs JAX reference"

    print("KERNEL_OK")
</pallas_src>

<mosaic_0001>
module attributes {stable_mosaic.version = 11 : i64} {
  func.func @dqn_mlp_kernel(%arg0: i32, %arg1: memref<16x64xf32, #tpu.memory_space<vmem>>, %arg2: memref<64x2048xbf16, #tpu.memory_space<vmem>>, %arg3: memref<1x2048xf32, #tpu.memory_space<vmem>>, %arg4: memref<2048x512xbf16, #tpu.memory_space<vmem>>, %arg5: memref<1x512xf32, #tpu.memory_space<vmem>>, %arg6: memref<512x128xbf16, #tpu.memory_space<vmem>>, %arg7: memref<1x128xf32, #tpu.memory_space<vmem>>, %arg8: memref<128x128xbf16, #tpu.memory_space<vmem>>, %arg9: memref<1x128xf32, #tpu.memory_space<vmem>>, %arg10: memref<128x128xbf16, #tpu.memory_space<vmem>>, %arg11: memref<1x128xf32, #tpu.memory_space<vmem>>, %arg12: memref<16x128xbf16, #tpu.memory_space<vmem>>) attributes {dimension_semantics = [#tpu.dimension_semantics<parallel>], iteration_bounds = array<i64: 1>, scalar_prefetch = 0 : i64, scratch_operands = 0 : i64, tpu.core_type = #tpu.core_type<tc>, window_params = [{transform_indices = @transform_0, window_bounds = array<i64: 16, 64>}, {pipeline_mode = #tpu.pipeline_mode<synchronous>, transform_indices = @transform_1, window_bounds = array<i64: 64, 2048>}, {pipeline_mode = #tpu.pipeline_mode<synchronous>, transform_indices = @transform_2, window_bounds = array<i64: 1, 2048>}, {pipeline_mode = #tpu.pipeline_mode<synchronous>, transform_indices = @transform_3, window_bounds = array<i64: 2048, 512>}, {pipeline_mode = #tpu.pipeline_mode<synchronous>, transform_indices = @transform_4, window_bounds = array<i64: 1, 512>}, {pipeline_mode = #tpu.pipeline_mode<synchronous>, transform_indices = @transform_5, window_bounds = array<i64: 512, 128>}, {pipeline_mode = #tpu.pipeline_mode<synchronous>, transform_indices = @transform_6, window_bounds = array<i64: 1, 128>}, {pipeline_mode = #tpu.pipeline_mode<synchronous>, transform_indices = @transform_7, window_bounds = array<i64: 128, 128>}, {pipeline_mode = #tpu.pipeline_mode<synchronous>, transform_indices = @transform_8, window_bounds = array<i64: 1, 128>}, {pipeline_mode = #tpu.pipeline_mode<synchronous>, transform_indices = @transform_9, window_bounds = array<i64: 128, 128>}, {pipeline_mode = #tpu.pipeline_mode<synchronous>, transform_indices = @transform_10, window_bounds = array<i64: 1, 128>}, {transform_indices = @transform_11, window_bounds = array<i64: 16, 128>}]} {
    %c0 = arith.constant 0 : index
    %c0_0 = arith.constant 0 : index
    %0 = vector.load %arg1[%c0, %c0_0] : memref<16x64xf32, #tpu.memory_space<vmem>>, vector<16x64xf32>
    %1 = arith.truncf %0 : vector<16x64xf32> to vector<16x64xbf16>
    %c0_1 = arith.constant 0 : index
    %c0_2 = arith.constant 0 : index
    %2 = vector.load %arg2[%c0_1, %c0_2] : memref<64x2048xbf16, #tpu.memory_space<vmem>>, vector<64x2048xbf16>
    %cst = arith.constant dense<0.000000e+00> : vector<16x2048xf32>
    %3 = tpu.matmul %1, %2, %cst {dimension_numbers = #tpu.dot_dimension_numbers<[1], [0], [0], [1], [0, 0, 1, 1], [], []>} : vector<16x64xbf16>, vector<64x2048xbf16>, vector<16x2048xf32> -> vector<16x2048xf32>
    %4 = arith.truncf %3 : vector<16x2048xf32> to vector<16x2048xbf16>
    %c0_3 = arith.constant 0 : index
    %c0_4 = arith.constant 0 : index
    %5 = vector.load %arg3[%c0_3, %c0_4] : memref<1x2048xf32, #tpu.memory_space<vmem>>, vector<1x2048xf32>
    %6 = arith.truncf %5 : vector<1x2048xf32> to vector<1x2048xbf16>
    %7 = vector.broadcast %6 : vector<1x2048xbf16> to vector<16x2048xbf16>
    %8 = arith.addf %4, %7 : vector<16x2048xbf16>
    %cst_5 = arith.constant 1.000980e-01 : bf16
    %9 = vector.broadcast %cst_5 : bf16 to vector<16x2048xbf16>
    %10 = arith.mulf %9, %8 : vector<16x2048xbf16>
    %11 = arith.maximumf %8, %10 : vector<16x2048xbf16>
    %c0_6 = arith.constant 0 : index
    %c0_7 = arith.constant 0 : index
    %12 = vector.load %arg4[%c0_6, %c0_7] : memref<2048x512xbf16, #tpu.memory_space<vmem>>, vector<2048x512xbf16>
    %cst_8 = arith.constant dense<0.000000e+00> : vector<16x512xf32>
    %13 = tpu.matmul %11, %12, %cst_8 {dimension_numbers = #tpu.dot_dimension_numbers<[1], [0], [0], [1], [0, 0, 1, 1], [], []>} : vector<16x2048xbf16>, vector<2048x512xbf16>, vector<16x512xf32> -> vector<16x512xf32>
    %14 = arith.truncf %13 : vector<16x512xf32> to vector<16x512xbf16>
    %c0_9 = arith.constant 0 : index
    %c0_10 = arith.constant 0 : index
    %15 = vector.load %arg5[%c0_9, %c0_10] : memref<1x512xf32, #tpu.memory_space<vmem>>, vector<1x512xf32>
    %16 = arith.truncf %15 : vector<1x512xf32> to vector<1x512xbf16>
    %17 = vector.broadcast %16 : vector<1x512xbf16> to vector<16x512xbf16>
    %18 = arith.addf %14, %17 : vector<16x512xbf16>
    %cst_11 = arith.constant 1.000980e-01 : bf16
    %19 = vector.broadcast %cst_11 : bf16 to vector<16x512xbf16>
    %20 = arith.mulf %19, %18 : vector<16x512xbf16>
    %21 = arith.maximumf %18, %20 : vector<16x512xbf16>
    %c0_12 = arith.constant 0 : index
    %c0_13 = arith.constant 0 : index
    %22 = vector.load %arg6[%c0_12, %c0_13] : memref<512x128xbf16, #tpu.memory_space<vmem>>, vector<512x128xbf16>
    %cst_14 = arith.constant dense<0.000000e+00> : vector<16x128xf32>
    %23 = tpu.matmul %21, %22, %cst_14 {dimension_numbers = #tpu.dot_dimension_numbers<[1], [0], [0], [1], [0, 0, 1, 1], [], []>} : vector<16x512xbf16>, vector<512x128xbf16>, vector<16x128xf32> -> vector<16x128xf32>
    %24 = arith.truncf %23 : vector<16x128xf32> to vector<16x128xbf16>
    %c0_15 = arith.constant 0 : index
    %c0_16 = arith.constant 0 : index
    %25 = vector.load %arg7[%c0_15, %c0_16] : memref<1x128xf32, #tpu.memory_space<vmem>>, vector<1x128xf32>
    %26 = arith.truncf %25 : vector<1x128xf32> to vector<1x128xbf16>
    %27 = vector.broadcast %26 : vector<1x128xbf16> to vector<16x128xbf16>
    %28 = arith.addf %24, %27 : vector<16x128xbf16>
    %cst_17 = arith.constant 1.000980e-01 : bf16
    %29 = vector.broadcast %cst_17 : bf16 to vector<16x128xbf16>
    %30 = arith.mulf %29, %28 : vector<16x128xbf16>
    %31 = arith.maximumf %28, %30 : vector<16x128xbf16>
    %c0_18 = arith.constant 0 : index
    %c0_19 = arith.constant 0 : index
    %32 = vector.load %arg8[%c0_18, %c0_19] : memref<128x128xbf16, #tpu.memory_space<vmem>>, vector<128x128xbf16>
    %cst_20 = arith.constant dense<0.000000e+00> : vector<16x128xf32>
    %33 = tpu.matmul %31, %32, %cst_20 {dimension_numbers = #tpu.dot_dimension_numbers<[1], [0], [0], [1], [0, 0, 1, 1], [], []>} : vector<16x128xbf16>, vector<128x128xbf16>, vector<16x128xf32> -> vector<16x128xf32>
    %34 = arith.truncf %33 : vector<16x128xf32> to vector<16x128xbf16>
    %c0_21 = arith.constant 0 : index
    %c0_22 = arith.constant 0 : index
    %35 = vector.load %arg9[%c0_21, %c0_22] : memref<1x128xf32, #tpu.memory_space<vmem>>, vector<1x128xf32>
    %36 = arith.truncf %35 : vector<1x128xf32> to vector<1x128xbf16>
    %37 = vector.broadcast %36 : vector<1x128xbf16> to vector<16x128xbf16>
    %38 = arith.addf %34, %37 : vector<16x128xbf16>
    %cst_23 = arith.constant 1.000980e-01 : bf16
    %39 = vector.broadcast %cst_23 : bf16 to vector<16x128xbf16>
    %40 = arith.mulf %39, %38 : vector<16x128xbf16>
    %41 = arith.maximumf %38, %40 : vector<16x128xbf16>
    %c0_24 = arith.constant 0 : index
    %c0_25 = arith.constant 0 : index
    %42 = vector.load %arg10[%c0_24, %c0_25] : memref<128x128xbf16, #tpu.memory_space<vmem>>, vector<128x128xbf16>
    %cst_26 = arith.constant dense<0.000000e+00> : vector<16x128xf32>
    %43 = tpu.matmul %41, %42, %cst_26 {dimension_numbers = #tpu.dot_dimension_numbers<[1], [0], [0], [1], [0, 0, 1, 1], [], []>} : vector<16x128xbf16>, vector<128x128xbf16>, vector<16x128xf32> -> vector<16x128xf32>
    %44 = arith.truncf %43 : vector<16x128xf32> to vector<16x128xbf16>
    %c0_27 = arith.constant 0 : index
    %c0_28 = arith.constant 0 : index
    %45 = vector.load %arg11[%c0_27, %c0_28] : memref<1x128xf32, #tpu.memory_space<vmem>>, vector<1x128xf32>
    %46 = arith.truncf %45 : vector<1x128xf32> to vector<1x128xbf16>
    %47 = vector.broadcast %46 : vector<1x128xbf16> to vector<16x128xbf16>
    %48 = arith.addf %44, %47 : vector<16x128xbf16>
    %c0_29 = arith.constant 0 : index
    %c0_30 = arith.constant 0 : index
    %49 = vector.load %arg12[%c0_29, %c0_30] : memref<16x128xbf16, #tpu.memory_space<vmem>>, vector<16x128xbf16>
    tpu.vector_store %arg12[%c0_29, %c0_30], %48 {strides = array<i32>} : memref<16x128xbf16, #tpu.memory_space<vmem>>, vector<16x128xbf16>,
    return
  }
  func.func @transform_0(%arg0: i32) -> (i32, i32) {
    %c0_i32 = arith.constant 0 : i32
    %c0_i32_0 = arith.constant 0 : i32
    return %arg0, %c0_i32 : i32, i32
  }
  func.func @transform_1(%arg0: i32) -> (i32, i32) {
    %c0_i32 = arith.constant 0 : i32
    %c0_i32_0 = arith.constant 0 : i32
    %c0_i32_1 = arith.constant 0 : i32
    return %c0_i32, %c0_i32_0 : i32, i32
  }
  func.func @transform_2(%arg0: i32) -> (i32, i32) {
    %c0_i32 = arith.constant 0 : i32
    %c0_i32_0 = arith.constant 0 : i32
    %c0_i32_1 = arith.constant 0 : i32
    return %c0_i32, %c0_i32_0 : i32, i32
  }
  func.func @transform_3(%arg0: i32) -> (i32, i32) {
    %c0_i32 = arith.constant 0 : i32
    %c0_i32_0 = arith.constant 0 : i32
    %c0_i32_1 = arith.constant 0 : i32
    return %c0_i32, %c0_i32_0 : i32, i32
  }
  func.func @transform_4(%arg0: i32) -> (i32, i32) {
    %c0_i32 = arith.constant 0 : i32
    %c0_i32_0 = arith.constant 0 : i32
    %c0_i32_1 = arith.constant 0 : i32
    return %c0_i32, %c0_i32_0 : i32, i32
  }
  func.func @transform_5(%arg0: i32) -> (i32, i32) {
    %c0_i32 = arith.constant 0 : i32
    %c0_i32_0 = arith.constant 0 : i32
    %c0_i32_1 = arith.constant 0 : i32
    return %c0_i32, %c0_i32_0 : i32, i32
  }
  func.func @transform_6(%arg0: i32) -> (i32, i32) {
    %c0_i32 = arith.constant 0 : i32
    %c0_i32_0 = arith.constant 0 : i32
    %c0_i32_1 = arith.constant 0 : i32
    return %c0_i32, %c0_i32_0 : i32, i32
  }
  func.func @transform_7(%arg0: i32) -> (i32, i32) {
    %c0_i32 = arith.constant 0 : i32
    %c0_i32_0 = arith.constant 0 : i32
    %c0_i32_1 = arith.constant 0 : i32
    return %c0_i32, %c0_i32_0 : i32, i32
  }
  func.func @transform_8(%arg0: i32) -> (i32, i32) {
    %c0_i32 = arith.constant 0 : i32
    %c0_i32_0 = arith.constant 0 : i32
    %c0_i32_1 = arith.constant 0 : i32
    return %c0_i32, %c0_i32_0 : i32, i32
  }
  func.func @transform_9(%arg0: i32) -> (i32, i32) {
    %c0_i32 = arith.constant 0 : i32
    %c0_i32_0 = arith.constant 0 : i32
    %c0_i32_1 = arith.constant 0 : i32
    return %c0_i32, %c0_i32_0 : i32, i32
  }
  func.func @transform_10(%arg0: i32) -> (i32, i32) {
    %c0_i32 = arith.constant 0 : i32
    %c0_i32_0 = arith.constant 0 : i32
    %c0_i32_1 = arith.constant 0 : i32
    return %c0_i32, %c0_i32_0 : i32, i32
  }
  func.func @transform_11(%arg0: i32) -> (i32, i32) {
    %c0_i32 = arith.constant 0 : i32
    %c0_i32_0 = arith.constant 0 : i32
    return %arg0, %c0_i32 : i32, i32
  }
}

module attributes {stable_mosaic.version = 11 : i64} {
  func.func @dqn_mlp_kernel(%arg0: i32, %arg1: memref<16x64xf32, #tpu.memory_space<vmem>>, %arg2: memref<64x2048xbf16, #tpu.memory_space<vmem>>, %arg3: memref<1x2048xf32, #tpu.memory_space<vmem>>, %arg4: memref<2048x512xbf16, #tpu.memory_space<vmem>>, %arg5: memref<1x512xf32, #tpu.memory_space<vmem>>, %arg6: memref<512x128xbf16, #tpu.memory_space<vmem>>, %arg7: memref<1x128xf32, #tpu.memory_space<vmem>>, %arg8: memref<128x128xbf16, #tpu.memory_space<vmem>>, %arg9: memref<1x128xf32, #tpu.memory_space<vmem>>, %arg10: memref<128x128xbf16, #tpu.memory_space<vmem>>, %arg11: memref<1x128xf32, #tpu.memory_space<vmem>>, %arg12: memref<16x128xbf16, #tpu.memory_space<vmem>>) attributes {dimension_semantics = [#tpu.dimension_semantics<parallel>], iteration_bounds = array<i64: 1>, scalar_prefetch = 0 : i64, scratch_operands = 0 : i64, tpu.core_type = #tpu.core_type<tc>, window_params = [{transform_indices = @transform_0, window_bounds = array<i64: 16, 64>}, {pipeline_mode = #tpu.pipeline_mode<synchronous>, transform_indices = @transform_1, window_bounds = array<i64: 64, 2048>}, {pipeline_mode = #tpu.pipeline_mode<synchronous>, transform_indices = @transform_2, window_bounds = array<i64: 1, 2048>}, {pipeline_mode = #tpu.pipeline_mode<synchronous>, transform_indices = @transform_3, window_bounds = array<i64: 2048, 512>}, {pipeline_mode = #tpu.pipeline_mode<synchronous>, transform_indices = @transform_4, window_bounds = array<i64: 1, 512>}, {pipeline_mode = #tpu.pipeline_mode<synchronous>, transform_indices = @transform_5, window_bounds = array<i64: 512, 128>}, {pipeline_mode = #tpu.pipeline_mode<synchronous>, transform_indices = @transform_6, window_bounds = array<i64: 1, 128>}, {pipeline_mode = #tpu.pipeline_mode<synchronous>, transform_indices = @transform_7, window_bounds = array<i64: 128, 128>}, {pipeline_mode = #tpu.pipeline_mode<synchronous>, transform_indices = @transform_8, window_bounds = array<i64: 1, 128>}, {pipeline_mode = #tpu.pipeline_mode<synchronous>, transform_indices = @transform_9, window_bounds = array<i64: 128, 128>}, {pipeline_mode = #tpu.pipeline_mode<synchronous>, transform_indices = @transform_10, window_bounds = array<i64: 1, 128>}, {transform_indices = @transform_11, window_bounds = array<i64: 16, 128>}]} {
    %c0 = arith.constant 0 : index
    %c0_0 = arith.constant 0 : index
    %0 = vector.load %arg1[%c0, %c0_0] : memref<16x64xf32, #tpu.memory_space<vmem>>, vector<16x64xf32>
    %1 = arith.truncf %0 : vector<16x64xf32> to vector<16x64xbf16>
    %c0_1 = arith.constant 0 : index
    %c0_2 = arith.constant 0 : index
    %2 = vector.load %arg2[%c0_1, %c0_2] : memref<64x2048xbf16, #tpu.memory_space<vmem>>, vector<64x2048xbf16>
    %cst = arith.constant dense<0.000000e+00> : vector<16x2048xf32>
    %3 = tpu.matmul %1, %2, %cst {dimension_numbers = #tpu.dot_dimension_numbers<[1], [0], [0], [1], [0, 0, 1, 1], [], []>} : vector<16x64xbf16>, vector<64x2048xbf16>, vector<16x2048xf32> -> vector<16x2048xf32>
    %4 = arith.truncf %3 : vector<16x2048xf32> to vector<16x2048xbf16>
    %c0_3 = arith.constant 0 : index
    %c0_4 = arith.constant 0 : index
    %5 = vector.load %arg3[%c0_3, %c0_4] : memref<1x2048xf32, #tpu.memory_space<vmem>>, vector<1x2048xf32>
    %6 = arith.truncf %5 : vector<1x2048xf32> to vector<1x2048xbf16>
    %7 = vector.broadcast %6 : vector<1x2048xbf16> to vector<16x2048xbf16>
    %8 = arith.addf %4, %7 : vector<16x2048xbf16>
    %cst_5 = arith.constant 1.000980e-01 : bf16
    %9 = vector.broadcast %cst_5 : bf16 to vector<16x2048xbf16>
    %10 = arith.mulf %9, %8 : vector<16x2048xbf16>
    %11 = arith.maximumf %8, %10 : vector<16x2048xbf16>
    %c0_6 = arith.constant 0 : index
    %c0_7 = arith.constant 0 : index
    %12 = vector.load %arg4[%c0_6, %c0_7] : memref<2048x512xbf16, #tpu.memory_space<vmem>>, vector<2048x512xbf16>
    %cst_8 = arith.constant dense<0.000000e+00> : vector<16x512xf32>
    %13 = tpu.matmul %11, %12, %cst_8 {dimension_numbers = #tpu.dot_dimension_numbers<[1], [0], [0], [1], [0, 0, 1, 1], [], []>} : vector<16x2048xbf16>, vector<2048x512xbf16>, vector<16x512xf32> -> vector<16x512xf32>
    %14 = arith.truncf %13 : vector<16x512xf32> to vector<16x512xbf16>
    %c0_9 = arith.constant 0 : index
    %c0_10 = arith.constant 0 : index
    %15 = vector.load %arg5[%c0_9, %c0_10] : memref<1x512xf32, #tpu.memory_space<vmem>>, vector<1x512xf32>
    %16 = arith.truncf %15 : vector<1x512xf32> to vector<1x512xbf16>
    %17 = vector.broadcast %16 : vector<1x512xbf16> to vector<16x512xbf16>
    %18 = arith.addf %14, %17 : vector<16x512xbf16>
    %cst_11 = arith.constant 1.000980e-01 : bf16
    %19 = vector.broadcast %cst_11 : bf16 to vector<16x512xbf16>
    %20 = arith.mulf %19, %18 : vector<16x512xbf16>
    %21 = arith.maximumf %18, %20 : vector<16x512xbf16>
    %c0_12 = arith.constant 0 : index
    %c0_13 = arith.constant 0 : index
    %22 = vector.load %arg6[%c0_12, %c0_13] : memref<512x128xbf16, #tpu.memory_space<vmem>>, vector<512x128xbf16>
    %cst_14 = arith.constant dense<0.000000e+00> : vector<16x128xf32>
    %23 = tpu.matmul %21, %22, %cst_14 {dimension_numbers = #tpu.dot_dimension_numbers<[1], [0], [0], [1], [0, 0, 1, 1], [], []>} : vector<16x512xbf16>, vector<512x128xbf16>, vector<16x128xf32> -> vector<16x128xf32>
    %24 = arith.truncf %23 : vector<16x128xf32> to vector<16x128xbf16>
    %c0_15 = arith.constant 0 : index
    %c0_16 = arith.constant 0 : index
    %25 = vector.load %arg7[%c0_15, %c0_16] : memref<1x128xf32, #tpu.memory_space<vmem>>, vector<1x128xf32>
    %26 = arith.truncf %25 : vector<1x128xf32> to vector<1x128xbf16>
    %27 = vector.broadcast %26 : vector<1x128xbf16> to vector<16x128xbf16>
    %28 = arith.addf %24, %27 : vector<16x128xbf16>
    %cst_17 = arith.constant 1.000980e-01 : bf16
    %29 = vector.broadcast %cst_17 : bf16 to vector<16x128xbf16>
    %30 = arith.mulf %29, %28 : vector<16x128xbf16>
    %31 = arith.maximumf %28, %30 : vector<16x128xbf16>
    %c0_18 = arith.constant 0 : index
    %c0_19 = arith.constant 0 : index
    %32 = vector.load %arg8[%c0_18, %c0_19] : memref<128x128xbf16, #tpu.memory_space<vmem>>, vector<128x128xbf16>
    %cst_20 = arith.constant dense<0.000000e+00> : vector<16x128xf32>
    %33 = tpu.matmul %31, %32, %cst_20 {dimension_numbers = #tpu.dot_dimension_numbers<[1], [0], [0], [1], [0, 0, 1, 1], [], []>} : vector<16x128xbf16>, vector<128x128xbf16>, vector<16x128xf32> -> vector<16x128xf32>
    %34 = arith.truncf %33 : vector<16x128xf32> to vector<16x128xbf16>
    %c0_21 = arith.constant 0 : index
    %c0_22 = arith.constant 0 : index
    %35 = vector.load %arg9[%c0_21, %c0_22] : memref<1x128xf32, #tpu.memory_space<vmem>>, vector<1x128xf32>
    %36 = arith.truncf %35 : vector<1x128xf32> to vector<1x128xbf16>
    %37 = vector.broadcast %36 : vector<1x128xbf16> to vector<16x128xbf16>
    %38 = arith.addf %34, %37 : vector<16x128xbf16>
    %cst_23 = arith.constant 1.000980e-01 : bf16
    %39 = vector.broadcast %cst_23 : bf16 to vector<16x128xbf16>
    %40 = arith.mulf %39, %38 : vector<16x128xbf16>
    %41 = arith.maximumf %38, %40 : vector<16x128xbf16>
    %c0_24 = arith.constant 0 : index
    %c0_25 = arith.constant 0 : index
    %42 = vector.load %arg10[%c0_24, %c0_25] : memref<128x128xbf16, #tpu.memory_space<vmem>>, vector<128x128xbf16>
    %cst_26 = arith.constant dense<0.000000e+00> : vector<16x128xf32>
    %43 = tpu.matmul %41, %42, %cst_26 {dimension_numbers = #tpu.dot_dimension_numbers<[1], [0], [0], [1], [0, 0, 1, 1], [], []>} : vector<16x128xbf16>, vector<128x128xbf16>, vector<16x128xf32> -> vector<16x128xf32>
    %44 = arith.truncf %43 : vector<16x128xf32> to vector<16x128xbf16>
    %c0_27 = arith.constant 0 : index
    %c0_28 = arith.constant 0 : index
    %45 = vector.load %arg11[%c0_27, %c0_28] : memref<1x128xf32, #tpu.memory_space<vmem>>, vector<1x128xf32>
    %46 = arith.truncf %45 : vector<1x128xf32> to vector<1x128xbf16>
    %47 = vector.broadcast %46 : vector<1x128xbf16> to vector<16x128xbf16>
    %48 = arith.addf %44, %47 : vector<16x128xbf16>
    %c0_29 = arith.constant 0 : index
    %c0_30 = arith.constant 0 : index
    %49 = vector.load %arg12[%c0_29, %c0_30] : memref<16x128xbf16, #tpu.memory_space<vmem>>, vector<16x128xbf16>
    tpu.vector_store %arg12[%c0_29, %c0_30], %48 {strides = array<i32>} : memref<16x128xbf16, #tpu.memory_space<vmem>>, vector<16x128xbf16>,
    return
  }
  func.func @transform_0(%arg0: i32) -> (i32, i32) {
    %c0_i32 = arith.constant 0 : i32
    %c0_i32_0 = arith.constant 0 : i32
    return %arg0, %c0_i32 : i32, i32
  }
  func.func @transform_1(%arg0: i32) -> (i32, i32) {
    %c0_i32 = arith.constant 0 : i32
    %c0_i32_0 = arith.constant 0 : i32
    %c0_i32_1 = arith.constant 0 : i32
    return %c0_i32, %c0_i32_0 : i32, i32
  }
  func.func @transform_2(%arg0: i32) -> (i32, i32) {
    %c0_i32 = arith.constant 0 : i32
    %c0_i32_0 = arith.constant 0 : i32
    %c0_i32_1 = arith.constant 0 : i32
    return %c0_i32, %c0_i32_0 : i32, i32
  }
  func.func @transform_3(%arg0: i32) -> (i32, i32) {
    %c0_i32 = arith.constant 0 : i32
    %c0_i32_0 = arith.constant 0 : i32
    %c0_i32_1 = arith.constant 0 : i32
    return %c0_i32, %c0_i32_0 : i32, i32
  }
  func.func @transform_4(%arg0: i32) -> (i32, i32) {
    %c0_i32 = arith.constant 0 : i32
    %c0_i32_0 = arith.constant 0 : i32
    %c0_i32_1 = arith.constant 0 : i32
    return %c0_i32, %c0_i32_0 : i32, i32
  }
  func.func @transform_5(%arg0: i32) -> (i32, i32) {
    %c0_i32 = arith.constant 0 : i32
    %c0_i32_0 = arith.constant 0 : i32
    %c0_i32_1 = arith.constant 0 : i32
    return %c0_i32, %c0_i32_0 : i32, i32
  }
  func.func @transform_6(%arg0: i32) -> (i32, i32) {
    %c0_i32 = arith.constant 0 : i32
    %c0_i32_0 = arith.constant 0 : i32
    %c0_i32_1 = arith.constant 0 : i32
    return %c0_i32, %c0_i32_0 : i32, i32
  }
  func.func @transform_7(%arg0: i32) -> (i32, i32) {
    %c0_i32 = arith.constant 0 : i32
    %c0_i32_0 = arith.constant 0 : i32
    %c0_i32_1 = arith.constant 0 : i32
    return %c0_i32, %c0_i32_0 : i32, i32
  }
  func.func @transform_8(%arg0: i32) -> (i32, i32) {
    %c0_i32 = arith.constant 0 : i32
    %c0_i32_0 = arith.constant 0 : i32
    %c0_i32_1 = arith.constant 0 : i32
    return %c0_i32, %c0_i32_0 : i32, i32
  }
  func.func @transform_9(%arg0: i32) -> (i32, i32) {
    %c0_i32 = arith.constant 0 : i32
    %c0_i32_0 = arith.constant 0 : i32
    %c0_i32_1 = arith.constant 0 : i32
    return %c0_i32, %c0_i32_0 : i32, i32
  }
  func.func @transform_10(%arg0: i32) -> (i32, i32) {
    %c0_i32 = arith.constant 0 : i32
    %c0_i32_0 = arith.constant 0 : i32
    %c0_i32_1 = arith.constant 0 : i32
    return %c0_i32, %c0_i32_0 : i32, i32
  }
  func.func @transform_11(%arg0: i32) -> (i32, i32) {
    %c0_i32 = arith.constant 0 : i32
    %c0_i32_0 = arith.constant 0 : i32
    return %arg0, %c0_i32 : i32, i32
  }
}

</mosaic_0001>

<llo_original>
// kernel: tpu_custom_call.1
$region0: #{tpu_custom_call.1}
  #allocation0 [shape = 'u32[]', space=smem, size = 0x4, offset = 0x4, fixed_abs, tag = 'smem constant byte address 0x4 - core index']
  #allocation1 [shape = 'u32[144,128]{1,0:T(1,128)}', space=vmem, size = 0x12000, scoped, tag = 'internal scratch']
  %s0 = inlined_call_operand.hbm [shape: f32[16,64], index: 0, kind: input, shape index: {}]
  %s1 = inlined_call_operand.hbm [shape: bf16[64,2048], index: 1, kind: input, shape index: {}]
  %s2 = inlined_call_operand.hbm [shape: f32[1,2048], index: 2, kind: input, shape index: {}]
  %s3 = inlined_call_operand.hbm [shape: bf16[2048,512], index: 3, kind: input, shape index: {}]
  %s4 = inlined_call_operand.hbm [shape: f32[1,512], index: 4, kind: input, shape index: {}]
  %s5 = inlined_call_operand.hbm [shape: bf16[512,128], index: 5, kind: input, shape index: {}]
  %s6 = inlined_call_operand.hbm [shape: f32[1,128], index: 6, kind: input, shape index: {}]
  %s7 = inlined_call_operand.hbm [shape: bf16[128,128], index: 7, kind: input, shape index: {}]
  %s8 = inlined_call_operand.hbm [shape: f32[1,128], index: 8, kind: input, shape index: {}]
  %s9 = inlined_call_operand.hbm [shape: bf16[128,128], index: 9, kind: input, shape index: {}]
  %s10 = inlined_call_operand.hbm [shape: f32[1,128], index: 10, kind: input, shape index: {}]
  %s11 = inlined_call_operand.hbm [shape: bf16[16,128], index: 11, kind: output, shape index: {}]
  %s12 = sld [smem:[#allocation0]]
  $region98: #{tpu_custom_call.1} parent=0
    _
  %s14 = ssub.s32 1, %s12
  %s15 = scalar_select 0, %s14, %s12
  $region1: #{tpu_custom_call.1} parent=0
    #allocation2 [shape = 'u8[8192]{0}', space=vmem, size = 0x2000, scoped, tag = 'input window, operand 0, single buffered']
    #allocation3 [shape = 's32[1]{0}', space=sflag, size = 0x4, scoped, tag = 'scoped memory for tpu_custom_call.1']
    #allocation4 [shape = 's32[1]{0}', space=sflag, size = 0x4, scoped, tag = 'scoped memory for tpu_custom_call.1']
    #allocation5 [shape = 'u8[262144]{0}', space=vmem, size = 0x40000, scoped, tag = 'input window, operand 1, single buffered']
    #allocation6 [shape = 's32[1]{0}', space=sflag, size = 0x4, scoped, tag = 'scoped memory for tpu_custom_call.1']
    #allocation7 [shape = 'u8[8192]{0}', space=vmem, size = 0x2000, scoped, tag = 'input window, operand 2, single buffered']
    #allocation8 [shape = 'u8[2097152]{0}', space=vmem, size = 0x200000, scoped, tag = 'input window, operand 3, single buffered']
    #allocation9 [shape = 's32[1]{0}', space=sflag, size = 0x4, scoped, tag = 'scoped memory for tpu_custom_call.1']
    #allocation10 [shape = 'u8[2048]{0}', space=vmem, size = 0x800, scoped, tag = 'input window, operand 4, single buffered']
    #allocation11 [shape = 'u8[131072]{0}', space=vmem, size = 0x20000, scoped, tag = 'input window, operand 5, single buffered']
    #allocation12 [shape = 's32[1]{0}', space=sflag, size = 0x4, scoped, tag = 'scoped memory for tpu_custom_call.1']
    #allocation13 [shape = 'u8[512]{0}', space=vmem, size = 0x400, scoped, tag = 'input window, operand 6, single buffered']
    #allocation14 [shape = 'u8[32768]{0}', space=vmem, size = 0x8000, scoped, tag = 'input window, operand 7, single buffered']
    #allocation15 [shape = 's32[1]{0}', space=sflag, size = 0x4, scoped, tag = 'scoped memory for tpu_custom_call.1']
    #allocation16 [shape = 'u8[512]{0}', space=vmem, size = 0x400, scoped, tag = 'input window, operand 8, single buffered']
    #allocation17 [shape = 'u8[32768]{0}', space=vmem, size = 0x8000, scoped, tag = 'input window, operand 9, single buffered']
    #allocation18 [shape = 's32[1]{0}', space=sflag, size = 0x4, scoped, tag = 'scoped memory for tpu_custom_call.1']
    #allocation19 [shape = 'u8[512]{0}', space=vmem, size = 0x400, scoped, tag = 'input window, operand 10, single buffered']
    #allocation20 [shape = 'u8[4096]{0}', space=vmem, size = 0x1000, scoped, tag = 'output window, operand 0, single buffered']
    %16 = vsyncpa [#allocation3], 0
    %17 = vsyncpa [#allocation6], 0
    %18 = vsyncpa [#allocation9], 0
    %19 = vsyncpa [#allocation12], 0
    %20 = vsyncpa [#allocation15], 0
    %21 = vsyncpa [#allocation18], 0
    %22 = vsyncpa [#allocation4], 0
    // Predicated region
    $region2: #{tpu_custom_call.1} parent=1 // pred_check
      _
    $region3: #{tpu_custom_call.1} parent=1 // pred_check_branch
      %24 = sbr.rel (0) target = $region5
    $region4: #{tpu_custom_call.1} parent=1 // pred_region
      %s26 = ssub.s32 256, 256
      %27 = vsyncadd [#allocation3], %s26
      %s28 = sshll.u32 [#allocation2], 4
      %s29 = int_to_ptr.vmem [resolvable:$true] %s28
      %34 = dma.hbm_to_vmem [thread:$0]  %s0, 256, %s29, [#allocation3], 128, 128, 8
    $region5: #{tpu_custom_call.1} parent=1 // pred_fallthru
      _
    // Predicated region
    $region6: #{tpu_custom_call.1} parent=1 // pred_check
      _
    $region7: #{tpu_custom_call.1} parent=1 // pred_check_branch
      %36 = sbr.rel (0) target = $region9
    $region8: #{tpu_custom_call.1} parent=1 // pred_region
      %s38 = ssub.s32 8192, 8192
      %39 = vsyncadd [#allocation6], %s38
      %s40 = sshll.u32 [#allocation5], 4
      %s41 = int_to_ptr.vmem [resolvable:$true] %s40
      %46 = dma.hbm_to_vmem [thread:$0]  %s1, 8192, %s41, [#allocation6], 1024, 1024, 64
    $region9: #{tpu_custom_call.1} parent=1 // pred_fallthru
      _
    // Predicated region
    $region10: #{tpu_custom_call.1} parent=1 // pred_check
      _
    $region11: #{tpu_custom_call.1} parent=1 // pred_check_branch
      %48 = sbr.rel (0) target = $region13
    $region12: #{tpu_custom_call.1} parent=1 // pred_region
      %s50 = ssub.s32 256, 256
      %51 = vsyncadd [#allocation6], %s50
      %s53 = sshll.u32 [#allocation7], 4
      %s54 = int_to_ptr.vmem [resolvable:$true] %s53
      %56 = dma.hbm_to_vmem [thread:$0]  %s2, 256, %s54, [#allocation6]
    $region13: #{tpu_custom_call.1} parent=1 // pred_fallthru
      _
    // Predicated region
    $region14: #{tpu_custom_call.1} parent=1 // pred_check
      _
    $region15: #{tpu_custom_call.1} parent=1 // pred_check_branch
      %58 = sbr.rel (0) target = $region17
    $region16: #{tpu_custom_call.1} parent=1 // pred_region
      %s60 = ssub.s32 65536, 65536
      %61 = vsyncadd [#allocation9], %s60
      %s62 = sshll.u32 [#allocation8], 4
      %s63 = int_to_ptr.vmem [resolvable:$true] %s62
      %68 = dma.hbm_to_vmem [thread:$0]  %s3, 65536, %s63, [#allocation9], 256, 256, 16
    $region17: #{tpu_custom_call.1} parent=1 // pred_fallthru
      _
    // Predicated region
    $region18: #{tpu_custom_call.1} parent=1 // pred_check
      _
    $region19: #{tpu_custom_call.1} parent=1 // pred_check_branch
      %70 = sbr.rel (0) target = $region21
    $region20: #{tpu_custom_call.1} parent=1 // pred_region
      %s72 = ssub.s32 64, 64
      %73 = vsyncadd [#allocation9], %s72
      %s75 = sshll.u32 [#allocation10], 4
      %s76 = int_to_ptr.vmem [resolvable:$true] %s75
      %78 = dma.hbm_to_vmem [thread:$0]  %s4, 64, %s76, [#allocation9]
    $region21: #{tpu_custom_call.1} parent=1 // pred_fallthru
      _
    // Predicated region
    $region22: #{tpu_custom_call.1} parent=1 // pred_check
      _
    $region23: #{tpu_custom_call.1} parent=1 // pred_check_branch
      %80 = sbr.rel (0) target = $region25
    $region24: #{tpu_custom_call.1} parent=1 // pred_region
      %s82 = ssub.s32 4096, 4096
      %83 = vsyncadd [#allocation12], %s82
      %s84 = sshll.u32 [#allocation11], 4
      %s85 = int_to_ptr.vmem [resolvable:$true] %s84
      %90 = dma.hbm_to_vmem [thread:$0]  %s5, 4096, %s85, [#allocation12], 64, 64, 4
    $region25: #{tpu_custom_call.1} parent=1 // pred_fallthru
      _
    // Predicated region
    $region26: #{tpu_custom_call.1} parent=1 // pred_check
      _
    $region27: #{tpu_custom_call.1} parent=1 // pred_check_branch
      %92 = sbr.rel (0) target = $region29
    $region28: #{tpu_custom_call.1} parent=1 // pred_region
      %s94 = ssub.s32 16, 16
      %95 = vsyncadd [#allocation12], %s94
      %s97 = sshll.u32 [#allocation13], 4
      %s98 = int_to_ptr.vmem [resolvable:$true] %s97
      %100 = dma.hbm_to_vmem [thread:$0]  %s6, 16, %s98, [#allocation12]
    $region29: #{tpu_custom_call.1} parent=1 // pred_fallthru
      _
    // Predicated region
    $region30: #{tpu_custom_call.1} parent=1 // pred_check
      _
    $region31: #{tpu_custom_call.1} parent=1 // pred_check_branch
      %102 = sbr.rel (0) target = $region33
    $region32: #{tpu_custom_call.1} parent=1 // pred_region
      %s104 = ssub.s32 1024, 1024
      %105 = vsyncadd [#allocation15], %s104
      %s106 = sshll.u32 [#allocation14], 4
      %s107 = int_to_ptr.vmem [resolvable:$true] %s106
      %112 = dma.hbm_to_vmem [thread:$0]  %s7, 1024, %s107, [#allocation15], 64, 64, 4
    $region33: #{tpu_custom_call.1} parent=1 // pred_fallthru
      _
    // Predicated region
    $region34: #{tpu_custom_call.1} parent=1 // pred_check
      _
    $region35: #{tpu_custom_call.1} parent=1 // pred_check_branch
      %114 = sbr.rel (0) target = $region37
    $region36: #{tpu_custom_call.1} parent=1 // pred_region
      %s116 = ssub.s32 16, 16
      %117 = vsyncadd [#allocation15], %s116
      %s119 = sshll.u32 [#allocation16], 4
      %s120 = int_to_ptr.vmem [resolvable:$true] %s119
      %122 = dma.hbm_to_vmem [thread:$0]  %s8, 16, %s120, [#allocation15]
    $region37: #{tpu_custom_call.1} parent=1 // pred_fallthru
      _
    // Predicated region
    $region38: #{tpu_custom_call.1} parent=1 // pred_check
      _
    $region39: #{tpu_custom_call.1} parent=1 // pred_check_branch
      %124 = sbr.rel (0) target = $region41
    $region40: #{tpu_custom_call.1} parent=1 // pred_region
      %s126 = ssub.s32 1024, 1024
      %127 = vsyncadd [#allocation18], %s126
      %s128 = sshll.u32 [#allocation17], 4
      %s129 = int_to_ptr.vmem [resolvable:$true] %s128
      %134 = dma.hbm_to_vmem [thread:$0]  %s9, 1024, %s129, [#allocation18], 64, 64, 4
    $region41: #{tpu_custom_call.1} parent=1 // pred_fallthru
      _
    // Predicated region
    $region42: #{tpu_custom_call.1} parent=1 // pred_check
      _
    $region43: #{tpu_custom_call.1} parent=1 // pred_check_branch
      %136 = sbr.rel (0) target = $region45
    $region44: #{tpu_custom_call.1} parent=1 // pred_region
      %s138 = ssub.s32 16, 16
      %139 = vsyncadd [#allocation18], %s138
      %s141 = sshll.u32 [#allocation19], 4
      %s142 = int_to_ptr.vmem [resolvable:$true] %s141
      %144 = dma.hbm_to_vmem [thread:$0]  %s10, 16, %s142, [#allocation18]
    $region45: #{tpu_custom_call.1} parent=1 // pred_fallthru
      _
    // Predicated region
    $region46: #{tpu_custom_call.1} parent=1 // pred_check
      _
    $region47: #{tpu_custom_call.1} parent=1 // pred_check_branch
      %146 = sbr.rel (0) target = $region49
    $region48: #{tpu_custom_call.1} parent=1 // pred_region
      %147 = dma.done [#allocation3], 256
    $region49: #{tpu_custom_call.1} parent=1 // pred_fallthru
      _
    // Predicated region
    $region50: #{tpu_custom_call.1} parent=1 // pred_check
      _
    $region51: #{tpu_custom_call.1} parent=1 // pred_check_branch
      %149 = sbr.rel (0) target = $region53
    $region52: #{tpu_custom_call.1} parent=1 // pred_region
      %150 = dma.done [#allocation6], 8192
    $region53: #{tpu_custom_call.1} parent=1 // pred_fallthru
      _
    // Predicated region
    $region54: #{tpu_custom_call.1} parent=1 // pred_check
      _
    $region55: #{tpu_custom_call.1} parent=1 // pred_check_branch
      %152 = sbr.rel (0) target = $region57
    $region56: #{tpu_custom_call.1} parent=1 // pred_region
      %153 = dma.done [#allocation6], 256
    $region57: #{tpu_custom_call.1} parent=1 // pred_fallthru
      _
    // Predicated region
    $region58: #{tpu_custom_call.1} parent=1 // pred_check
      _
    $region59: #{tpu_custom_call.1} parent=1 // pred_check_branch
      %155 = sbr.rel (0) target = $region61
    $region60: #{tpu_custom_call.1} parent=1 // pred_region
      %156 = dma.done [#allocation9], 65536
    $region61: #{tpu_custom_call.1} parent=1 // pred_fallthru
      _
    // Predicated region
    $region62: #{tpu_custom_call.1} parent=1 // pred_check
      _
    $region63: #{tpu_custom_call.1} parent=1 // pred_check_branch
      %158 = sbr.rel (0) target = $region65
    $region64: #{tpu_custom_call.1} parent=1 // pred_region
      %159 = dma.done [#allocation9], 64
    $region65: #{tpu_custom_call.1} parent=1 // pred_fallthru
      _
    // Predicated region
    $region66: #{tpu_custom_call.1} parent=1 // pred_check
      _
    $region67: #{tpu_custom_call.1} parent=1 // pred_check_branch
      %161 = sbr.rel (0) target = $region69
    $region68: #{tpu_custom_call.1} parent=1 // pred_region
      %162 = dma.done [#allocation12], 4096
    $region69: #{tpu_custom_call.1} parent=1 // pred_fallthru
      _
    // Predicated region
    $region70: #{tpu_custom_call.1} parent=1 // pred_check
      _
    $region71: #{tpu_custom_call.1} parent=1 // pred_check_branch
      %164 = sbr.rel (0) target = $region73
    $region72: #{tpu_custom_call.1} parent=1 // pred_region
      %165 = dma.done [#allocation12], 16
    $region73: #{tpu_custom_call.1} parent=1 // pred_fallthru
      _
    // Predicated region
    $region74: #{tpu_custom_call.1} parent=1 // pred_check
      _
    $region75: #{tpu_custom_call.1} parent=1 // pred_check_branch
      %167 = sbr.rel (0) target = $region77
    $region76: #{tpu_custom_call.1} parent=1 // pred_region
      %168 = dma.done [#allocation15], 1024
    $region77: #{tpu_custom_call.1} parent=1 // pred_fallthru
      _
    // Predicated region
    $region78: #{tpu_custom_call.1} parent=1 // pred_check
      _
    $region79: #{tpu_custom_call.1} parent=1 // pred_check_branch
      %170 = sbr.rel (0) target = $region81
    $region80: #{tpu_custom_call.1} parent=1 // pred_region
      %171 = dma.done [#allocation15], 16
    $region81: #{tpu_custom_call.1} parent=1 // pred_fallthru
      _
    // Predicated region
    $region82: #{tpu_custom_call.1} parent=1 // pred_check
      _
    $region83: #{tpu_custom_call.1} parent=1 // pred_check_branch
      %173 = sbr.rel (0) target = $region85
    $region84: #{tpu_custom_call.1} parent=1 // pred_region
      %174 = dma.done [#allocation18], 1024
    $region85: #{tpu_custom_call.1} parent=1 // pred_fallthru
      _
    // Predicated region
    $region86: #{tpu_custom_call.1} parent=1 // pred_check
      _
    $region87: #{tpu_custom_call.1} parent=1 // pred_check_branch
      %176 = sbr.rel (0) target = $region89
    $region88: #{tpu_custom_call.1} parent=1 // pred_region
      %177 = dma.done [#allocation18], 16
    $region89: #{tpu_custom_call.1} parent=1 // pred_fallthru
      _
    %v180 = vld [vmem:[#allocation2] sm:$0xff]
    %v181 = vld [vmem:[#allocation2 + $0x8] sm:$0xff]
    %v182 = vpack.c.bf16 %v181, %v180
    %v183 = vld [vmem:[#allocation5] sm:$0xff]
    %v184 = vld [vmem:[#allocation5 + $0x8] sm:$0xff]
    %v185 = vld [vmem:[#allocation5 + $0x10] sm:$0xff]
    %v186 = vld [vmem:[#allocation5 + $0x18] sm:$0xff]
    %v187 = vld [vmem:[#allocation5 + $0x20] sm:$0xff]
    %v188 = vld [vmem:[#allocation5 + $0x28] sm:$0xff]
    %v189 = vld [vmem:[#allocation5 + $0x30] sm:$0xff]
    %v190 = vld [vmem:[#allocation5 + $0x38] sm:$0xff]
    %v191 = vld [vmem:[#allocation5 + $0x40] sm:$0xff]
    %v192 = vld [vmem:[#allocation5 + $0x48] sm:$0xff]
    %v193 = vld [vmem:[#allocation5 + $0x50] sm:$0xff]
    %v194 = vld [vmem:[#allocation5 + $0x58] sm:$0xff]
    %v195 = vld [vmem:[#allocation5 + $0x60] sm:$0xff]
    %v196 = vld [vmem:[#allocation5 + $0x68] sm:$0xff]
    %v197 = vld [vmem:[#allocation5 + $0x70] sm:$0xff]
    %v198 = vld [vmem:[#allocation5 + $0x78] sm:$0xff]
    %v199 = vld [vmem:[#allocation5 + $0x80] sm:$0xff]
    %v200 = vld [vmem:[#allocation5 + $0x88] sm:$0xff]
    %v201 = vld [vmem:[#allocation5 + $0x90] sm:$0xff]
    %v202 = vld [vmem:[#allocation5 + $0x98] sm:$0xff]
    %v203 = vld [vmem:[#allocation5 + $0xa0] sm:$0xff]
    %v204 = vld [vmem:[#allocation5 + $0xa8] sm:$0xff]
    %v205 = vld [vmem:[#allocation5 + $0xb0] sm:$0xff]
    %v206 = vld [vmem:[#allocation5 + $0xb8] sm:$0xff]
    %v207 = vld [vmem:[#allocation5 + $0xc0] sm:$0xff]
    %v208 = vld [vmem:[#allocation5 + $0xc8] sm:$0xff]
    %v209 = vld [vmem:[#allocation5 + $0xd0] sm:$0xff]
    %v210 = vld [vmem:[#allocation5 + $0xd8] sm:$0xff]
    %v211 = vld [vmem:[#allocation5 + $0xe0] sm:$0xff]
    %v212 = vld [vmem:[#allocation5 + $0xe8] sm:$0xff]
    %v213 = vld [vmem:[#allocation5 + $0xf0] sm:$0xff]
    %v214 = vld [vmem:[#allocation5 + $0xf8] sm:$0xff]
    %v215 = vld [vmem:[#allocation5 + $0x100] sm:$0xff]
    %v216 = vld [vmem:[#allocation5 + $0x108] sm:$0xff]
    %v217 = vld [vmem:[#allocation5 + $0x110] sm:$0xff]
    %v218 = vld [vmem:[#allocation5 + $0x118] sm:$0xff]
    %v219 = vld [vmem:[#allocation5 + $0x120] sm:$0xff]
    %v220 = vld [vmem:[#allocation5 + $0x128] sm:$0xff]
    %v221 = vld [vmem:[#allocation5 + $0x130] sm:$0xff]
    %v222 = vld [vmem:[#allocation5 + $0x138] sm:$0xff]
    %v223 = vld [vmem:[#allocation5 + $0x140] sm:$0xff]
    %v224 = vld [vmem:[#allocation5 + $0x148] sm:$0xff]
    %v225 = vld [vmem:[#allocation5 + $0x150] sm:$0xff]
    %v226 = vld [vmem:[#allocation5 + $0x158] sm:$0xff]
    %v227 = vld [vmem:[#allocation5 + $0x160] sm:$0xff]
    %v228 = vld [vmem:[#allocation5 + $0x168] sm:$0xff]
    %v229 = vld [vmem:[#allocation5 + $0x170] sm:$0xff]
    %v230 = vld [vmem:[#allocation5 + $0x178] sm:$0xff]
    %v231 = vld [vmem:[#allocation5 + $0x180] sm:$0xff]
    %v232 = vld [vmem:[#allocation5 + $0x188] sm:$0xff]
    %v233 = vld [vmem:[#allocation5 + $0x190] sm:$0xff]
    %v234 = vld [vmem:[#allocation5 + $0x198] sm:$0xff]
    %v235 = vld [vmem:[#allocation5 + $0x1a0] sm:$0xff]
    %v236 = vld [vmem:[#allocation5 + $0x1a8] sm:$0xff]
    %v237 = vld [vmem:[#allocation5 + $0x1b0] sm:$0xff]
    %v238 = vld [vmem:[#allocation5 + $0x1b8] sm:$0xff]
    %v239 = vld [vmem:[#allocation5 + $0x1c0] sm:$0xff]
    %v240 = vld [vmem:[#allocation5 + $0x1c8] sm:$0xff]
    %v241 = vld [vmem:[#allocation5 + $0x1d0] sm:$0xff]
    %v242 = vld [vmem:[#allocation5 + $0x1d8] sm:$0xff]
    %v243 = vld [vmem:[#allocation5 + $0x1e0] sm:$0xff]
    %v244 = vld [vmem:[#allocation5 + $0x1e8] sm:$0xff]
    %v245 = vld [vmem:[#allocation5 + $0x1f0] sm:$0xff]
    %v246 = vld [vmem:[#allocation5 + $0x1f8] sm:$0xff]
    %v311 = vunpack.c.l.b16 %v183
    %v312 = vunpack.c.h.b16 %v183
    %v313 = vunpack.c.l.b16 %v184
    %v314 = vunpack.c.h.b16 %v184
    %v315 = vunpack.c.l.b16 %v185
    %v316 = vunpack.c.h.b16 %v185
    %v317 = vunpack.c.l.b16 %v186
    %v318 = vunpack.c.h.b16 %v186
    %v319 = vunpack.c.l.b16 %v187
    %v320 = vunpack.c.h.b16 %v187
    %v321 = vunpack.c.l.b16 %v188
    %v322 = vunpack.c.h.b16 %v188
    %v323 = vunpack.c.l.b16 %v189
    %v324 = vunpack.c.h.b16 %v189
    %v325 = vunpack.c.l.b16 %v190
    %v326 = vunpack.c.h.b16 %v190
    %v327 = vunpack.c.l.b16 %v191
    %v328 = vunpack.c.h.b16 %v191
    %v329 = vunpack.c.l.b16 %v192
    %v330 = vunpack.c.h.b16 %v192
    %v331 = vunpack.c.l.b16 %v193
    %v332 = vunpack.c.h.b16 %v193
    %v333 = vunpack.c.l.b16 %v194
    %v334 = vunpack.c.h.b16 %v194
    %v335 = vunpack.c.l.b16 %v195
    %v336 = vunpack.c.h.b16 %v195
    %v337 = vunpack.c.l.b16 %v196
    %v338 = vunpack.c.h.b16 %v196
    %v339 = vunpack.c.l.b16 %v197
    %v340 = vunpack.c.h.b16 %v197
    %v341 = vunpack.c.l.b16 %v198
    %v342 = vunpack.c.h.b16 %v198
    %v343 = vunpack.c.l.b16 %v199
    %v344 = vunpack.c.h.b16 %v199
    %v345 = vunpack.c.l.b16 %v200
    %v346 = vunpack.c.h.b16 %v200
    %v347 = vunpack.c.l.b16 %v201
    %v348 = vunpack.c.h.b16 %v201
    %v349 = vunpack.c.l.b16 %v202
    %v350 = vunpack.c.h.b16 %v202
    %v351 = vunpack.c.l.b16 %v203
    %v352 = vunpack.c.h.b16 %v203
    %v353 = vunpack.c.l.b16 %v204
    %v354 = vunpack.c.h.b16 %v204
    %v355 = vunpack.c.l.b16 %v205
    %v356 = vunpack.c.h.b16 %v205
    %v357 = vunpack.c.l.b16 %v206
    %v358 = vunpack.c.h.b16 %v206
    %v359 = vunpack.c.l.b16 %v207
    %v360 = vunpack.c.h.b16 %v207
    %v361 = vunpack.c.l.b16 %v208
    %v362 = vunpack.c.h.b16 %v208
    %v363 = vunpack.c.l.b16 %v209
    %v364 = vunpack.c.h.b16 %v209
    %v365 = vunpack.c.l.b16 %v210
    %v366 = vunpack.c.h.b16 %v210
    %v367 = vunpack.c.l.b16 %v211
    %v368 = vunpack.c.h.b16 %v211
    %v369 = vunpack.c.l.b16 %v212
    %v370 = vunpack.c.h.b16 %v212
    %v371 = vunpack.c.l.b16 %v213
    %v372 = vunpack.c.h.b16 %v213
    %v373 = vunpack.c.l.b16 %v214
    %v374 = vunpack.c.h.b16 %v214
    %v375 = vunpack.c.l.b16 %v215
    %v376 = vunpack.c.h.b16 %v215
    %v377 = vunpack.c.l.b16 %v216
    %v378 = vunpack.c.h.b16 %v216
    %v379 = vunpack.c.l.b16 %v217
    %v380 = vunpack.c.h.b16 %v217
    %v381 = vunpack.c.l.b16 %v218
    %v382 = vunpack.c.h.b16 %v218
    %v383 = vunpack.c.l.b16 %v219
    %v384 = vunpack.c.h.b16 %v219
    %v385 = vunpack.c.l.b16 %v220
    %v386 = vunpack.c.h.b16 %v220
    %v387 = vunpack.c.l.b16 %v221
    %v388 = vunpack.c.h.b16 %v221
    %v389 = vunpack.c.l.b16 %v222
    %v390 = vunpack.c.h.b16 %v222
    %v391 = vunpack.c.l.b16 %v223
    %v392 = vunpack.c.h.b16 %v223
    %v393 = vunpack.c.l.b16 %v224
    %v394 = vunpack.c.h.b16 %v224
    %v395 = vunpack.c.l.b16 %v225
    %v396 = vunpack.c.h.b16 %v225
    %v397 = vunpack.c.l.b16 %v226
    %v398 = vunpack.c.h.b16 %v226
    %v399 = vunpack.c.l.b16 %v227
    %v400 = vunpack.c.h.b16 %v227
    %v401 = vunpack.c.l.b16 %v228
    %v402 = vunpack.c.h.b16 %v228
    %v403 = vunpack.c.l.b16 %v229
    %v404 = vunpack.c.h.b16 %v229
    %v405 = vunpack.c.l.b16 %v230
    %v406 = vunpack.c.h.b16 %v230
    %v407 = vunpack.c.l.b16 %v231
    %v408 = vunpack.c.h.b16 %v231
    %v409 = vunpack.c.l.b16 %v232
    %v410 = vunpack.c.h.b16 %v232
    %v411 = vunpack.c.l.b16 %v233
    %v412 = vunpack.c.h.b16 %v233
    %v413 = vunpack.c.l.b16 %v234
    %v414 = vunpack.c.h.b16 %v234
    %v415 = vunpack.c.l.b16 %v235
    %v416 = vunpack.c.h.b16 %v235
    %v417 = vunpack.c.l.b16 %v236
    %v418 = vunpack.c.h.b16 %v236
    %v419 = vunpack.c.l.b16 %v237
    %v420 = vunpack.c.h.b16 %v237
    %v421 = vunpack.c.l.b16 %v238
    %v422 = vunpack.c.h.b16 %v238
    %v423 = vunpack.c.l.b16 %v239
    %v424 = vunpack.c.h.b16 %v239
    %v425 = vunpack.c.l.b16 %v240
    %v426 = vunpack.c.h.b16 %v240
    %v427 = vunpack.c.l.b16 %v241
    %v428 = vunpack.c.h.b16 %v241
    %v429 = vunpack.c.l.b16 %v242
    %v430 = vunpack.c.h.b16 %v242
    %v431 = vunpack.c.l.b16 %v243
    %v432 = vunpack.c.h.b16 %v243
    %v433 = vunpack.c.l.b16 %v244
    %v434 = vunpack.c.h.b16 %v244
    %v435 = vunpack.c.l.b16 %v245
    %v436 = vunpack.c.h.b16 %v245
    %v437 = vunpack.c.l.b16 %v246
    %v438 = vunpack.c.h.b16 %v246
    %v439 = vpack.c.b16 %v327, %v311
    %v440 = vpack.c.b16 %v328, %v312
    %v441 = vpack.c.b16 %v329, %v313
    %v442 = vpack.c.b16 %v330, %v314
    %v443 = vpack.c.b16 %v331, %v315
    %v444 = vpack.c.b16 %v332, %v316
    %v445 = vpack.c.b16 %v333, %v317
    %v446 = vpack.c.b16 %v334, %v318
    %v447 = vpack.c.b16 %v335, %v319
    %v448 = vpack.c.b16 %v336, %v320
    %v449 = vpack.c.b16 %v337, %v321
    %v450 = vpack.c.b16 %v338, %v322
    %v451 = vpack.c.b16 %v339, %v323
    %v452 = vpack.c.b16 %v340, %v324
    %v453 = vpack.c.b16 %v341, %v325
    %v454 = vpack.c.b16 %v342, %v326
    %v455 = vpack.c.b16 %v359, %v343
    %v456 = vpack.c.b16 %v360, %v344
    %v457 = vpack.c.b16 %v361, %v345
    %v458 = vpack.c.b16 %v362, %v346
    %v459 = vpack.c.b16 %v363, %v347
    %v460 = vpack.c.b16 %v364, %v348
    %v461 = vpack.c.b16 %v365, %v349
    %v462 = vpack.c.b16 %v366, %v350
    %v463 = vpack.c.b16 %v367, %v351
    %v464 = vpack.c.b16 %v368, %v352
    %v465 = vpack.c.b16 %v369, %v353
    %v466 = vpack.c.b16 %v370, %v354
    %v467 = vpack.c.b16 %v371, %v355
    %v468 = vpack.c.b16 %v372, %v356
    %v469 = vpack.c.b16 %v373, %v357
    %v470 = vpack.c.b16 %v374, %v358
    %v471 = vpack.c.b16 %v391, %v375
    %v472 = vpack.c.b16 %v392, %v376
    %v473 = vpack.c.b16 %v393, %v377
    %v474 = vpack.c.b16 %v394, %v378
    %v475 = vpack.c.b16 %v395, %v379
    %v476 = vpack.c.b16 %v396, %v380
    %v477 = vpack.c.b16 %v397, %v381
    %v478 = vpack.c.b16 %v398, %v382
    %v479 = vpack.c.b16 %v399, %v383
    %v480 = vpack.c.b16 %v400, %v384
    %v481 = vpack.c.b16 %v401, %v385
    %v482 = vpack.c.b16 %v402, %v386
    %v483 = vpack.c.b16 %v403, %v387
    %v484 = vpack.c.b16 %v404, %v388
    %v485 = vpack.c.b16 %v405, %v389
    %v486 = vpack.c.b16 %v406, %v390
    %v487 = vpack.c.b16 %v423, %v407
    %v488 = vpack.c.b16 %v424, %v408
    %v489 = vpack.c.b16 %v425, %v409
    %v490 = vpack.c.b16 %v426, %v410
    %v491 = vpack.c.b16 %v427, %v411
    %v492 = vpack.c.b16 %v428, %v412
    %v493 = vpack.c.b16 %v429, %v413
    %v494 = vpack.c.b16 %v430, %v414
    %v495 = vpack.c.b16 %v431, %v415
    %v496 = vpack.c.b16 %v432, %v416
    %v497 = vpack.c.b16 %v433, %v417
    %v498 = vpack.c.b16 %v434, %v418
    %v499 = vpack.c.b16 %v435, %v419
    %v500 = vpack.c.b16 %v436, %v420
    %v501 = vpack.c.b16 %v437, %v421
    %v502 = vpack.c.b16 %v438, %v422
    %vm567 = vcmask 523264
    %v569 = vsel %vm567, %v182, 0
    %571 = vmatprep.subr.bf16.mxu0 %v440
    %572 = vmatpush1.bf16.msra.mxu0 %v439
    %573 = vmatprep.subr.bf16.mxu0 %v456
    %574 = vmatpush1.bf16.msra.mxu0 %v455
    %575 = vmatprep.subr.bf16.mxu0 %v472
    %576 = vmatpush1.bf16.msra.mxu0 %v471
    %577 = vmatprep.subr.bf16.mxu0 %v488
    %578 = vmatpush1.bf16.msra.mxu0 %v487
    %579 = vmatprep.subr.bf16.mxu0 0
    %580 = vmatpush1.bf16.msra.mxu0 0
    %581 = vmatprep.subr.bf16.mxu0 0
    %582 = vmatpush1.bf16.msra.mxu0 0
    %583 = vmatprep.subr.bf16.mxu0 0
    %584 = vmatpush1.bf16.msra.mxu0 0
    %585 = vmatprep.subr.bf16.mxu0 0
    %586 = vmatpush1.bf16.msra.mxu0 0
    %587 = vmatprep.subr.bf16.mxu0 0
    %588 = vmatpush1.bf16.msra.mxu0 0
    %589 = vmatprep.subr.bf16.mxu0 0
    %590 = vmatpush1.bf16.msra.mxu0 0
    %591 = vmatprep.subr.bf16.mxu0 0
    %592 = vmatpush1.bf16.msra.mxu0 0
    %593 = vmatprep.subr.bf16.mxu0 0
    %594 = vmatpush1.bf16.msra.mxu0 0
    %595 = vmatprep.subr.bf16.mxu0 0
    %596 = vmatpush1.bf16.msra.mxu0 0
    %597 = vmatprep.subr.bf16.mxu0 0
    %598 = vmatpush1.bf16.msra.mxu0 0
    %599 = vmatprep.subr.bf16.mxu0 0
    %600 = vmatpush1.bf16.msra.mxu0 0
    %601 = vmatprep.subr.bf16.mxu0 0
    %602 = vmatpush1.bf16.msra.mxu0 0
    %603 = vmatprep.mubr.bf16.mxu0 0
    %604 = vmatmul.mubr.bf16.gmra.mrb[0].mxu0 %v569
    %v605 = vpop.f32.mrb[0].mxu0
    %v606 = vadd.f32 0.0, %v605
    %v607 = vpop.f32.mrb[0].mxu0
    %v608 = vadd.f32 0.0, %v607
    %v609 = vpop.f32.mrb[0].mxu0
    %v610 = vadd.f32 0.0, %v609
    %v611 = vpop.f32.mrb[0].mxu0
    %v612 = vadd.f32 0.0, %v611
    %613 = vdwg.mxu0
    %614 = vmatprep.subr.bf16.mxu0 %v442
    %615 = vmatpush1.bf16.msra.mxu0 %v441
    %616 = vmatprep.subr.bf16.mxu0 %v458
    %617 = vmatpush1.bf16.msra.mxu0 %v457
    %618 = vmatprep.subr.bf16.mxu0 %v474
    %619 = vmatpush1.bf16.msra.mxu0 %v473
    %620 = vmatprep.subr.bf16.mxu0 %v490
    %621 = vmatpush1.bf16.msra.mxu0 %v489
    %622 = vmatprep.subr.bf16.mxu0 0
    %623 = vmatpush1.bf16.msra.mxu0 0
    %624 = vmatprep.subr.bf16.mxu0 0
    %625 = vmatpush1.bf16.msra.mxu0 0
    %626 = vmatprep.subr.bf16.mxu0 0
    %627 = vmatpush1.bf16.msra.mxu0 0
    %628 = vmatprep.subr.bf16.mxu0 0
    %629 = vmatpush1.bf16.msra.mxu0 0
    %630 = vmatprep.subr.bf16.mxu0 0
    %631 = vmatpush1.bf16.msra.mxu0 0
    %632 = vmatprep.subr.bf16.mxu0 0
    %633 = vmatpush1.bf16.msra.mxu0 0
    %634 = vmatprep.subr.bf16.mxu0 0
    %635 = vmatpush1.bf16.msra.mxu0 0
    %636 = vmatprep.subr.bf16.mxu0 0
    %637 = vmatpush1.bf16.msra.mxu0 0
    %638 = vmatprep.subr.bf16.mxu0 0
    %639 = vmatpush1.bf16.msra.mxu0 0
    %640 = vmatprep.subr.bf16.mxu0 0
    %641 = vmatpush1.bf16.msra.mxu0 0
    %642 = vmatprep.subr.bf16.mxu0 0
    %643 = vmatpush1.bf16.msra.mxu0 0
    %644 = vmatprep.subr.bf16.mxu0 0
    %645 = vmatpush1.bf16.msra.mxu0 0
    %646 = vmatprep.mubr.bf16.mxu0 0
    %647 = vmatmul.mubr.bf16.gmra.mrb[0].mxu0 %v569
    %v648 = vpop.f32.mrb[0].mxu0
    %v649 = vadd.f32 0.0, %v648
    %v650 = vpop.f32.mrb[0].mxu0
    %v651 = vadd.f32 0.0, %v650
    %v652 = vpop.f32.mrb[0].mxu0
    %v653 = vadd.f32 0.0, %v652
    %v654 = vpop.f32.mrb[0].mxu0
    %v655 = vadd.f32 0.0, %v654
    %656 = vdwg.mxu0
    %657 = vmatprep.subr.bf16.mxu0 %v444
    %658 = vmatpush1.bf16.msra.mxu0 %v443
    %659 = vmatprep.subr.bf16.mxu0 %v460
    %660 = vmatpush1.bf16.msra.mxu0 %v459
    %661 = vmatprep.subr.bf16.mxu0 %v476
    %662 = vmatpush1.bf16.msra.mxu0 %v475
    %663 = vmatprep.subr.bf16.mxu0 %v492
    %664 = vmatpush1.bf16.msra.mxu0 %v491
    %665 = vmatprep.subr.bf16.mxu0 0
    %666 = vmatpush1.bf16.msra.mxu0 0
    %667 = vmatprep.subr.bf16.mxu0 0
    %668 = vmatpush1.bf16.msra.mxu0 0
    %669 = vmatprep.subr.bf16.mxu0 0
    %670 = vmatpush1.bf16.msra.mxu0 0
    %671 = vmatprep.subr.bf16.mxu0 0
    %672 = vmatpush1.bf16.msra.mxu0 0
    %673 = vmatprep.subr.bf16.mxu0 0
    %674 = vmatpush1.bf16.msra.mxu0 0
    %675 = vmatprep.subr.bf16.mxu0 0
    %676 = vmatpush1.bf16.msra.mxu0 0
    %677 = vmatprep.subr.bf16.mxu0 0
    %678 = vmatpush1.bf16.msra.mxu0 0
    %679 = vmatprep.subr.bf16.mxu0 0
    %680 = vmatpush1.bf16.msra.mxu0 0
    %681 = vmatprep.subr.bf16.mxu0 0
    %682 = vmatpush1.bf16.msra.mxu0 0
    %683 = vmatprep.subr.bf16.mxu0 0
    %684 = vmatpush1.bf16.msra.mxu0 0
    %685 = vmatprep.subr.bf16.mxu0 0
    %686 = vmatpush1.bf16.msra.mxu0 0
    %687 = vmatprep.subr.bf16.mxu0 0
    %688 = vmatpush1.bf16.msra.mxu0 0
    %689 = vmatprep.mubr.bf16.mxu0 0
    %690 = vmatmul.mubr.bf16.gmra.mrb[0].mxu0 %v569
    %v691 = vpop.f32.mrb[0].mxu0
    %v692 = vadd.f32 0.0, %v691
    %v693 = vpop.f32.mrb[0].mxu0
    %v694 = vadd.f32 0.0, %v693
    %v695 = vpop.f32.mrb[0].mxu0
    %v696 = vadd.f32 0.0, %v695
    %v697 = vpop.f32.mrb[0].mxu0
    %v698 = vadd.f32 0.0, %v697
    %699 = vdwg.mxu0
    %700 = vmatprep.subr.bf16.mxu0 %v446
    %701 = vmatpush1.bf16.msra.mxu0 %v445
    %702 = vmatprep.subr.bf16.mxu0 %v462
    %703 = vmatpush1.bf16.msra.mxu0 %v461
    %704 = vmatprep.subr.bf16.mxu0 %v478
    %705 = vmatpush1.bf16.msra.mxu0 %v477
    %706 = vmatprep.subr.bf16.mxu0 %v494
    %707 = vmatpush1.bf16.msra.mxu0 %v493
    %708 = vmatprep.subr.bf16.mxu0 0
    %709 = vmatpush1.bf16.msra.mxu0 0
    %710 = vmatprep.subr.bf16.mxu0 0
    %711 = vmatpush1.bf16.msra.mxu0 0
    %712 = vmatprep.subr.bf16.mxu0 0
    %713 = vmatpush1.bf16.msra.mxu0 0
    %714 = vmatprep.subr.bf16.mxu0 0
    %715 = vmatpush1.bf16.msra.mxu0 0
    %716 = vmatprep.subr.bf16.mxu0 0
    %717 = vmatpush1.bf16.msra.mxu0 0
    %718 = vmatprep.subr.bf16.mxu0 0
    %719 = vmatpush1.bf16.msra.mxu0 0
    %720 = vmatprep.subr.bf16.mxu0 0
    %721 = vmatpush1.bf16.msra.mxu0 0
    %722 = vmatprep.subr.bf16.mxu0 0
    %723 = vmatpush1.bf16.msra.mxu0 0
    %724 = vmatprep.subr.bf16.mxu0 0
    %725 = vmatpush1.bf16.msra.mxu0 0
    %726 = vmatprep.subr.bf16.mxu0 0
    %727 = vmatpush1.bf16.msra.mxu0 0
    %728 = vmatprep.subr.bf16.mxu0 0
    %729 = vmatpush1.bf16.msra.mxu0 0
    %730 = vmatprep.subr.bf16.mxu0 0
    %731 = vmatpush1.bf16.msra.mxu0 0
    %732 = vmatprep.mubr.bf16.mxu0 0
    %733 = vmatmul.mubr.bf16.gmra.mrb[0].mxu0 %v569
    %v734 = vpop.f32.mrb[0].mxu0
    %v735 = vadd.f32 0.0, %v734
    %v736 = vpop.f32.mrb[0].mxu0
    %v737 = vadd.f32 0.0, %v736
    %v738 = vpop.f32.mrb[0].mxu0
    %v739 = vadd.f32 0.0, %v738
    %v740 = vpop.f32.mrb[0].mxu0
    %v741 = vadd.f32 0.0, %v740
    %742 = vdwg.mxu0
    %743 = vmatprep.subr.bf16.mxu0 %v448
    %744 = vmatpush1.bf16.msra.mxu0 %v447
    %745 = vmatprep.subr.bf16.mxu0 %v464
    %746 = vmatpush1.bf16.msra.mxu0 %v463
    %747 = vmatprep.subr.bf16.mxu0 %v480
    %748 = vmatpush1.bf16.msra.mxu0 %v479
    %749 = vmatprep.subr.bf16.mxu0 %v496
    %750 = vmatpush1.bf16.msra.mxu0 %v495
    %751 = vmatprep.subr.bf16.mxu0 0
    %752 = vmatpush1.bf16.msra.mxu0 0
    %753 = vmatprep.subr.bf16.mxu0 0
    %754 = vmatpush1.bf16.msra.mxu0 0
    %755 = vmatprep.subr.bf16.mxu0 0
    %756 = vmatpush1.bf16.msra.mxu0 0
    %757 = vmatprep.subr.bf16.mxu0 0
    %758 = vmatpush1.bf16.msra.mxu0 0
    %759 = vmatprep.subr.bf16.mxu0 0
    %760 = vmatpush1.bf16.msra.mxu0 0
    %761 = vmatprep.subr.bf16.mxu0 0
    %762 = vmatpush1.bf16.msra.mxu0 0
    %763 = vmatprep.subr.bf16.mxu0 0
    %764 = vmatpush1.bf16.msra.mxu0 0
    %765 = vmatprep.subr.bf16.mxu0 0
    %766 = vmatpush1.bf16.msra.mxu0 0
    %767 = vmatprep.subr.bf16.mxu0 0
    %768 = vmatpush1.bf16.msra.mxu0 0
    %769 = vmatprep.subr.bf16.mxu0 0
    %770 = vmatpush1.bf16.msra.mxu0 0
    %771 = vmatprep.subr.bf16.mxu0 0
    %772 = vmatpush1.bf16.msra.mxu0 0
    %773 = vmatprep.subr.bf16.mxu0 0
    %774 = vmatpush1.bf16.msra.mxu0 0
    %775 = vmatprep.mubr.bf16.mxu0 0
    %776 = vmatmul.mubr.bf16.gmra.mrb[0].mxu0 %v569
    %v777 = vpop.f32.mrb[0].mxu0
    %v778 = vadd.f32 0.0, %v777
    %v779 = vpop.f32.mrb[0].mxu0
    %v780 = vadd.f32 0.0, %v779
    %v781 = vpop.f32.mrb[0].mxu0
    %v782 = vadd.f32 0.0, %v781
    %v783 = vpop.f32.mrb[0].mxu0
    %v784 = vadd.f32 0.0, %v783
    %785 = vdwg.mxu0
    %786 = vmatprep.subr.bf16.mxu0 %v450
    %787 = vmatpush1.bf16.msra.mxu0 %v449
    %788 = vmatprep.subr.bf16.mxu0 %v466
    %789 = vmatpush1.bf16.msra.mxu0 %v465
    %790 = vmatprep.subr.bf16.mxu0 %v482
    %791 = vmatpush1.bf16.msra.mxu0 %v481
    %792 = vmatprep.subr.bf16.mxu0 %v498
    %793 = vmatpush1.bf16.msra.mxu0 %v497
    %794 = vmatprep.subr.bf16.mxu0 0
    %795 = vmatpush1.bf16.msra.mxu0 0
    %796 = vmatprep.subr.bf16.mxu0 0
    %797 = vmatpush1.bf16.msra.mxu0 0
    %798 = vmatprep.subr.bf16.mxu0 0
    %799 = vmatpush1.bf16.msra.mxu0 0
    %800 = vmatprep.subr.bf16.mxu0 0
    %801 = vmatpush1.bf16.msra.mxu0 0
    %802 = vmatprep.subr.bf16.mxu0 0
    %803 = vmatpush1.bf16.msra.mxu0 0
    %804 = vmatprep.subr.bf16.mxu0 0
    %805 = vmatpush1.bf16.msra.mxu0 0
    %806 = vmatprep.subr.bf16.mxu0 0
    %807 = vmatpush1.bf16.msra.mxu0 0
    %808 = vmatprep.subr.bf16.mxu0 0
    %809 = vmatpush1.bf16.msra.mxu0 0
    %810 = vmatprep.subr.bf16.mxu0 0
    %811 = vmatpush1.bf16.msra.mxu0 0
    %812 = vmatprep.subr.bf16.mxu0 0
    %813 = vmatpush1.bf16.msra.mxu0 0
    %814 = vmatprep.subr.bf16.mxu0 0
    %815 = vmatpush1.bf16.msra.mxu0 0
    %816 = vmatprep.subr.bf16.mxu0 0
    %817 = vmatpush1.bf16.msra.mxu0 0
    %818 = vmatprep.mubr.bf16.mxu0 0
    %819 = vmatmul.mubr.bf16.gmra.mrb[0].mxu0 %v569
    %v820 = vpop.f32.mrb[0].mxu0
    %v821 = vadd.f32 0.0, %v820
    %v822 = vpop.f32.mrb[0].mxu0
    %v823 = vadd.f32 0.0, %v822
    %v824 = vpop.f32.mrb[0].mxu0
    %v825 = vadd.f32 0.0, %v824
    %v826 = vpop.f32.mrb[0].mxu0
    %v827 = vadd.f32 0.0, %v826
    %828 = vdwg.mxu0
    %829 = vmatprep.subr.bf16.mxu0 %v452
    %830 = vmatpush1.bf16.msra.mxu0 %v451
    %831 = vmatprep.subr.bf16.mxu0 %v468
    %832 = vmatpush1.bf16.msra.mxu0 %v467
    %833 = vmatprep.subr.bf16.mxu0 %v484
    %834 = vmatpush1.bf16.msra.mxu0 %v483
    %835 = vmatprep.subr.bf16.mxu0 %v500
    %836 = vmatpush1.bf16.msra.mxu0 %v499
    %837 = vmatprep.subr.bf16.mxu0 0
    %838 = vmatpush1.bf16.msra.mxu0 0
    %839 = vmatprep.subr.bf16.mxu0 0
    %840 = vmatpush1.bf16.msra.mxu0 0
    %841 = vmatprep.subr.bf16.mxu0 0
    %842 = vmatpush1.bf16.msra.mxu0 0
    %843 = vmatprep.subr.bf16.mxu0 0
    %844 = vmatpush1.bf16.msra.mxu0 0
    %845 = vmatprep.subr.bf16.mxu0 0
    %846 = vmatpush1.bf16.msra.mxu0 0
    %847 = vmatprep.subr.bf16.mxu0 0
    %848 = vmatpush1.bf16.msra.mxu0 0
    %849 = vmatprep.subr.bf16.mxu0 0
    %850 = vmatpush1.bf16.msra.mxu0 0
    %851 = vmatprep.subr.bf16.mxu0 0
    %852 = vmatpush1.bf16.msra.mxu0 0
    %853 = vmatprep.subr.bf16.mxu0 0
    %854 = vmatpush1.bf16.msra.mxu0 0
    %855 = vmatprep.subr.bf16.mxu0 0
    %856 = vmatpush1.bf16.msra.mxu0 0
    %857 = vmatprep.subr.bf16.mxu0 0
    %858 = vmatpush1.bf16.msra.mxu0 0
    %859 = vmatprep.subr.bf16.mxu0 0
    %860 = vmatpush1.bf16.msra.mxu0 0
    %861 = vmatprep.mubr.bf16.mxu0 0
    %862 = vmatmul.mubr.bf16.gmra.mrb[0].mxu0 %v569
    %v863 = vpop.f32.mrb[0].mxu0
    %v864 = vadd.f32 0.0, %v863
    %v865 = vpop.f32.mrb[0].mxu0
    %v866 = vadd.f32 0.0, %v865
    %v867 = vpop.f32.mrb[0].mxu0
    %v868 = vadd.f32 0.0, %v867
    %v869 = vpop.f32.mrb[0].mxu0
    %v870 = vadd.f32 0.0, %v869
    %871 = vdwg.mxu0
    %872 = vmatprep.subr.bf16.mxu0 %v454
    %873 = vmatpush1.bf16.msra.mxu0 %v453
    %874 = vmatprep.subr.bf16.mxu0 %v470
    %875 = vmatpush1.bf16.msra.mxu0 %v469
    %876 = vmatprep.subr.bf16.mxu0 %v486
    %877 = vmatpush1.bf16.msra.mxu0 %v485
    %878 = vmatprep.subr.bf16.mxu0 %v502
    %879 = vmatpush1.bf16.msra.mxu0 %v501
    %880 = vmatprep.subr.bf16.mxu0 0
    %881 = vmatpush1.bf16.msra.mxu0 0
    %882 = vmatprep.subr.bf16.mxu0 0
    %883 = vmatpush1.bf16.msra.mxu0 0
    %884 = vmatprep.subr.bf16.mxu0 0
    %885 = vmatpush1.bf16.msra.mxu0 0
    %886 = vmatprep.subr.bf16.mxu0 0
    %887 = vmatpush1.bf16.msra.mxu0 0
    %888 = vmatprep.subr.bf16.mxu0 0
    %889 = vmatpush1.bf16.msra.mxu0 0
    %890 = vmatprep.subr.bf16.mxu0 0
    %891 = vmatpush1.bf16.msra.mxu0 0
    %892 = vmatprep.subr.bf16.mxu0 0
    %893 = vmatpush1.bf16.msra.mxu0 0
    %894 = vmatprep.subr.bf16.mxu0 0
    %895 = vmatpush1.bf16.msra.mxu0 0
    %896 = vmatprep.subr.bf16.mxu0 0
    %897 = vmatpush1.bf16.msra.mxu0 0
    %898 = vmatprep.subr.bf16.mxu0 0
    %899 = vmatpush1.bf16.msra.mxu0 0
    %900 = vmatprep.subr.bf16.mxu0 0
    %901 = vmatpush1.bf16.msra.mxu0 0
    %902 = vmatprep.subr.bf16.mxu0 0
    %903 = vmatpush1.bf16.msra.mxu0 0
    %904 = vmatprep.mubr.bf16.mxu0 0
    %905 = vmatmul.mubr.bf16.gmra.mrb[0].mxu0 %v569
    %v906 = vpop.f32.mrb[0].mxu0
    %v907 = vadd.f32 0.0, %v906
    %v908 = vpop.f32.mrb[0].mxu0
    %v909 = vadd.f32 0.0, %v908
    %v910 = vpop.f32.mrb[0].mxu0
    %v911 = vadd.f32 0.0, %v910
    %v912 = vpop.f32.mrb[0].mxu0
    %v913 = vadd.f32 0.0, %v912
    %914 = vdwg.mxu0
    %v915 = vpack.c.bf16 %v610, %v606
    %v916 = vpack.c.bf16 %v612, %v608
    %v917 = vpack.c.bf16 %v653, %v649
    %v918 = vpack.c.bf16 %v655, %v651
    %v919 = vpack.c.bf16 %v696, %v692
    %v920 = vpack.c.bf16 %v698, %v694
    %v921 = vpack.c.bf16 %v739, %v735
    %v922 = vpack.c.bf16 %v741, %v737
    %v923 = vpack.c.bf16 %v782, %v778
    %v924 = vpack.c.bf16 %v784, %v780
    %v925 = vpack.c.bf16 %v825, %v821
    %v926 = vpack.c.bf16 %v827, %v823
    %v927 = vpack.c.bf16 %v868, %v864
    %v928 = vpack.c.bf16 %v870, %v866
    %v929 = vpack.c.bf16 %v911, %v907
    %v930 = vpack.c.bf16 %v913, %v909
    %v931 = vld [vmem:[#allocation7] sm:$0xff]
    %v932 = vld [vmem:[#allocation7 + $0x8] sm:$0xff]
    %v935 = vlaneseq
    %v936 = vshrl.u32 %v935, 7
    %v937 = vsub.s32 0, %v936
    %v938 = vrot.slane %v931, %v937
    %v939 = vlaneseq
    %v940 = vshrl.u32 %v939, 7
    %v941 = vsub.s32 1, %v940
    %v942 = vrot.slane %v931, %v941
    %v943 = vlaneseq
    %v944 = vshrl.u32 %v943, 7
    %v945 = vsub.s32 2, %v944
    %v946 = vrot.slane %v931, %v945
    %v947 = vlaneseq
    %v948 = vshrl.u32 %v947, 7
    %v949 = vsub.s32 3, %v948
    %v950 = vrot.slane %v931, %v949
    %v951 = vlaneseq
    %v952 = vshrl.u32 %v951, 7
    %v953 = vsub.s32 4, %v952
    %v954 = vrot.slane %v931, %v953
    %v955 = vlaneseq
    %v956 = vshrl.u32 %v955, 7
    %v957 = vsub.s32 5, %v956
    %v958 = vrot.slane %v931, %v957
    %v959 = vlaneseq
    %v960 = vshrl.u32 %v959, 7
    %v961 = vsub.s32 6, %v960
    %v962 = vrot.slane %v931, %v961
    %v963 = vlaneseq
    %v964 = vshrl.u32 %v963, 7
    %v965 = vsub.s32 7, %v964
    %v966 = vrot.slane %v931, %v965
    %v967 = vlaneseq
    %v968 = vshrl.u32 %v967, 7
    %v969 = vsub.s32 0, %v968
    %v970 = vrot.slane %v932, %v969
    %v971 = vlaneseq
    %v972 = vshrl.u32 %v971, 7
    %v973 = vsub.s32 1, %v972
    %v974 = vrot.slane %v932, %v973
    %v975 = vlaneseq
    %v976 = vshrl.u32 %v975, 7
    %v977 = vsub.s32 2, %v976
    %v978 = vrot.slane %v932, %v977
    %v979 = vlaneseq
    %v980 = vshrl.u32 %v979, 7
    %v981 = vsub.s32 3, %v980
    %v982 = vrot.slane %v932, %v981
    %v983 = vlaneseq
    %v984 = vshrl.u32 %v983, 7
    %v985 = vsub.s32 4, %v984
    %v986 = vrot.slane %v932, %v985
    %v987 = vlaneseq
    %v988 = vshrl.u32 %v987, 7
    %v989 = vsub.s32 5, %v988
    %v990 = vrot.slane %v932, %v989
    %v991 = vlaneseq
    %v992 = vshrl.u32 %v991, 7
    %v993 = vsub.s32 6, %v992
    %v994 = vrot.slane %v932, %v993
    %v995 = vlaneseq
    %v996 = vshrl.u32 %v995, 7
    %v997 = vsub.s32 7, %v996
    %v998 = vrot.slane %v932, %v997
    %v1015 = vpack.c.bf16 %v938, %v938
    %v1016 = vpack.c.bf16 %v942, %v942
    %v1017 = vpack.c.bf16 %v946, %v946
    %v1018 = vpack.c.bf16 %v950, %v950
    %v1019 = vpack.c.bf16 %v954, %v954
    %v1020 = vpack.c.bf16 %v958, %v958
    %v1021 = vpack.c.bf16 %v962, %v962
    %v1022 = vpack.c.bf16 %v966, %v966
    %v1023 = vpack.c.bf16 %v970, %v970
    %v1024 = vpack.c.bf16 %v974, %v974
    %v1025 = vpack.c.bf16 %v978, %v978
    %v1026 = vpack.c.bf16 %v982, %v982
    %v1027 = vpack.c.bf16 %v986, %v986
    %v1028 = vpack.c.bf16 %v990, %v990
    %v1029 = vpack.c.bf16 %v994, %v994
    %v1030 = vpack.c.bf16 %v998, %v998
    %v1032 = vpack.i.b16 %v1015, %v1015
    %v1034 = vlaneseq
    %v1035 = vshrl.u32 %v1034, 7
    %v1036 = vsub.s32 0, %v1035
    %v1037 = vrot.slane %v1032, %v1036
    %v1039 = vpack.i.b16 %v1016, %v1016
    %v1041 = vlaneseq
    %v1042 = vshrl.u32 %v1041, 7
    %v1043 = vsub.s32 0, %v1042
    %v1044 = vrot.slane %v1039, %v1043
    %v1046 = vpack.i.b16 %v1017, %v1017
    %v1048 = vlaneseq
    %v1049 = vshrl.u32 %v1048, 7
    %v1050 = vsub.s32 0, %v1049
    %v1051 = vrot.slane %v1046, %v1050
    %v1053 = vpack.i.b16 %v1018, %v1018
    %v1055 = vlaneseq
    %v1056 = vshrl.u32 %v1055, 7
    %v1057 = vsub.s32 0, %v1056
    %v1058 = vrot.slane %v1053, %v1057
    %v1060 = vpack.i.b16 %v1019, %v1019
    %v1062 = vlaneseq
    %v1063 = vshrl.u32 %v1062, 7
    %v1064 = vsub.s32 0, %v1063
    %v1065 = vrot.slane %v1060, %v1064
    %v1067 = vpack.i.b16 %v1020, %v1020
    %v1069 = vlaneseq
    %v1070 = vshrl.u32 %v1069, 7
    %v1071 = vsub.s32 0, %v1070
    %v1072 = vrot.slane %v1067, %v1071
    %v1074 = vpack.i.b16 %v1021, %v1021
    %v1076 = vlaneseq
    %v1077 = vshrl.u32 %v1076, 7
    %v1078 = vsub.s32 0, %v1077
    %v1079 = vrot.slane %v1074, %v1078
    %v1081 = vpack.i.b16 %v1022, %v1022
    %v1083 = vlaneseq
    %v1084 = vshrl.u32 %v1083, 7
    %v1085 = vsub.s32 0, %v1084
    %v1086 = vrot.slane %v1081, %v1085
    %v1088 = vpack.i.b16 %v1023, %v1023
    %v1090 = vlaneseq
    %v1091 = vshrl.u32 %v1090, 7
    %v1092 = vsub.s32 0, %v1091
    %v1093 = vrot.slane %v1088, %v1092
    %v1095 = vpack.i.b16 %v1024, %v1024
    %v1097 = vlaneseq
    %v1098 = vshrl.u32 %v1097, 7
    %v1099 = vsub.s32 0, %v1098
    %v1100 = vrot.slane %v1095, %v1099
    %v1102 = vpack.i.b16 %v1025, %v1025
    %v1104 = vlaneseq
    %v1105 = vshrl.u32 %v1104, 7
    %v1106 = vsub.s32 0, %v1105
    %v1107 = vrot.slane %v1102, %v1106
    %v1109 = vpack.i.b16 %v1026, %v1026
    %v1111 = vlaneseq
    %v1112 = vshrl.u32 %v1111, 7
    %v1113 = vsub.s32 0, %v1112
    %v1114 = vrot.slane %v1109, %v1113
    %v1116 = vpack.i.b16 %v1027, %v1027
    %v1118 = vlaneseq
    %v1119 = vshrl.u32 %v1118, 7
    %v1120 = vsub.s32 0, %v1119
    %v1121 = vrot.slane %v1116, %v1120
    %v1123 = vpack.i.b16 %v1028, %v1028
    %v1125 = vlaneseq
    %v1126 = vshrl.u32 %v1125, 7
    %v1127 = vsub.s32 0, %v1126
    %v1128 = vrot.slane %v1123, %v1127
    %v1130 = vpack.i.b16 %v1029, %v1029
    %v1132 = vlaneseq
    %v1133 = vshrl.u32 %v1132, 7
    %v1134 = vsub.s32 0, %v1133
    %v1135 = vrot.slane %v1130, %v1134
    %v1137 = vpack.i.b16 %v1030, %v1030
    %v1139 = vlaneseq
    %v1140 = vshrl.u32 %v1139, 7
    %v1141 = vsub.s32 0, %v1140
    %v1142 = vrot.slane %v1137, %v1141
    %v1143 = vadd.bf16 %v915, %v1037
    %v1144 = vadd.bf16 %v916, %v1044
    %v1145 = vadd.bf16 %v917, %v1051
    %v1146 = vadd.bf16 %v918, %v1058
    %v1147 = vadd.bf16 %v919, %v1065
    %v1148 = vadd.bf16 %v920, %v1072
    %v1149 = vadd.bf16 %v921, %v1079
    %v1150 = vadd.bf16 %v922, %v1086
    %v1151 = vadd.bf16 %v923, %v1093
    %v1152 = vadd.bf16 %v924, %v1100
    %v1153 = vadd.bf16 %v925, %v1107
    %v1154 = vadd.bf16 %v926, %v1114
    %v1155 = vadd.bf16 %v927, %v1121
    %v1156 = vadd.bf16 %v928, %v1128
    %v1157 = vadd.bf16 %v929, %v1135
    %v1158 = vadd.bf16 %v930, %v1142
    %v1159 = vmul.bf16 %v1143, 1036860877
    %v1160 = vmul.bf16 %v1144, 1036860877
    %v1161 = vmul.bf16 %v1145, 1036860877
    %v1162 = vmul.bf16 %v1146, 1036860877
    %v1163 = vmul.bf16 %v1147, 1036860877
    %v1164 = vmul.bf16 %v1148, 1036860877
    %v1165 = vmul.bf16 %v1149, 1036860877
    %v1166 = vmul.bf16 %v1150, 1036860877
    %v1167 = vmul.bf16 %v1151, 1036860877
    %v1168 = vmul.bf16 %v1152, 1036860877
    %v1169 = vmul.bf16 %v1153, 1036860877
    %v1170 = vmul.bf16 %v1154, 1036860877
    %v1171 = vmul.bf16 %v1155, 1036860877
    %v1172 = vmul.bf16 %v1156, 1036860877
    %v1173 = vmul.bf16 %v1157, 1036860877
    %v1174 = vmul.bf16 %v1158, 1036860877
    %v1175 = vmax.bf16 %v1143, %v1159
    %v1176 = vmax.bf16 %v1144, %v1160
    %v1177 = vmax.bf16 %v1145, %v1161
    %v1178 = vmax.bf16 %v1146, %v1162
    %v1179 = vmax.bf16 %v1147, %v1163
    %v1180 = vmax.bf16 %v1148, %v1164
    %v1181 = vmax.bf16 %v1149, %v1165
    %v1182 = vmax.bf16 %v1150, %v1166
    %v1183 = vmax.bf16 %v1151, %v1167
    %v1184 = vmax.bf16 %v1152, %v1168
    %v1185 = vmax.bf16 %v1153, %v1169
    %v1186 = vmax.bf16 %v1154, %v1170
    %v1187 = vmax.bf16 %v1155, %v1171
    %v1188 = vmax.bf16 %v1156, %v1172
    %v1189 = vmax.bf16 %v1157, %v1173
    %v1190 = vmax.bf16 %v1158, %v1174
    %v1191 = vld [vmem:[#allocation8] sm:$0xff]
    %v1192 = vld [vmem:[#allocation8 + $0x8] sm:$0xff]
    %v1193 = vld [vmem:[#allocation8 + $0x10] sm:$0xff]
    %v1194 = vld [vmem:[#allocation8 + $0x18] sm:$0xff]
    %v1195 = vld [vmem:[#allocation8 + $0x20] sm:$0xff]
    %v1196 = vld [vmem:[#allocation8 + $0x28] sm:$0xff]
    %v1197 = vld [vmem:[#allocation8 + $0x30] sm:$0xff]
    %v1198 = vld [vmem:[#allocation8 + $0x38] sm:$0xff]
    %v1199 = vld [vmem:[#allocation8 + $0x40] sm:$0xff]
    %v1200 = vld [vmem:[#allocation8 + $0x48] sm:$0xff]
    %v1201 = vld [vmem:[#allocation8 + $0x50] sm:$0xff]
    %v1202 = vld [vmem:[#allocation8 + $0x58] sm:$0xff]
    %v1203 = vld [vmem:[#allocation8 + $0x60] sm:$0xff]
    %v1204 = vld [vmem:[#allocation8 + $0x68] sm:$0xff]
    %v1205 = vld [vmem:[#allocation8 + $0x70] sm:$0xff]
    %v1206 = vld [vmem:[#allocation8 + $0x78] sm:$0xff]
    %v1207 = vld [vmem:[#allocation8 + $0x80] sm:$0xff]
    %v1208 = vld [vmem:[#allocation8 + $0x88] sm:$0xff]
    %v1209 = vld [vmem:[#allocation8 + $0x90] sm:$0xff]
    %v1210 = vld [vmem:[#allocation8 + $0x98] sm:$0xff]
    %v1211 = vld [vmem:[#allocation8 + $0xa0] sm:$0xff]
    %v1212 = vld [vmem:[#allocation8 + $0xa8] sm:$0xff]
    %v1213 = vld [vmem:[#allocation8 + $0xb0] sm:$0xff]
    %v1214 = vld [vmem:[#allocation8 + $0xb8] sm:$0xff]
    %v1215 = vld [vmem:[#allocation8 + $0xc0] sm:$0xff]
    %v1216 = vld [vmem:[#allocation8 + $0xc8] sm:$0xff]
    %v1217 = vld [vmem:[#allocation8 + $0xd0] sm:$0xff]
    %v1218 = vld [vmem:[#allocation8 + $0xd8] sm:$0xff]
    %v1219 = vld [vmem:[#allocation8 + $0xe0] sm:$0xff]
    %v1220 = vld [vmem:[#allocation8 + $0xe8] sm:$0xff]
    %v1221 = vld [vmem:[#allocation8 + $0xf0] sm:$0xff]
    %v1222 = vld [vmem:[#allocation8 + $0xf8] sm:$0xff]
    %v1223 = vld [vmem:[#allocation8 + $0x100] sm:$0xff]
    %v1224 = vld [vmem:[#allocation8 + $0x108] sm:$0xff]
    %v1225 = vld [vmem:[#allocation8 + $0x110] sm:$0xff]
    %v1226 = vld [vmem:[#allocation8 + $0x118] sm:$0xff]
    %v1227 = vld [vmem:[#allocation8 + $0x120] sm:$0xff]
    %v1228 = vld [vmem:[#allocation8 + $0x128] sm:$0xff]
    %v1229 = vld [vmem:[#allocation8 + $0x130] sm:$0xff]
    %v1230 = vld [vmem:[#allocation8 + $0x138] sm:$0xff]
    %v1231 = vld [vmem:[#allocation8 + $0x140] sm:$0xff]
    %v1232 = vld [vmem:[#allocation8 + $0x148] sm:$0xff]
    %v1233 = vld [vmem:[#allocation8 + $0x150] sm:$0xff]
    %v1234 = vld [vmem:[#allocation8 + $0x158] sm:$0xff]
    %v1235 = vld [vmem:[#allocation8 + $0x160] sm:$0xff]
    %v1236 = vld [vmem:[#allocation8 + $0x168] sm:$0xff]
    %v1237 = vld [vmem:[#allocation8 + $0x170] sm:$0xff]
    %v1238 = vld [vmem:[#allocation8 + $0x178] sm:$0xff]
    %v1239 = vld [vmem:[#allocation8 + $0x180] sm:$0xff]
    %v1240 = vld [vmem:[#allocation8 + $0x188] sm:$0xff]
    %v1241 = vld [vmem:[#allocation8 + $0x190] sm:$0xff]
    %v1242 = vld [vmem:[#allocation8 + $0x198] sm:$0xff]
    %v1243 = vld [vmem:[#allocation8 + $0x1a0] sm:$0xff]
    %v1244 = vld [vmem:[#allocation8 + $0x1a8] sm:$0xff]
    %v1245 = vld [vmem:[#allocation8 + $0x1b0] sm:$0xff]
    %v1246 = vld [vmem:[#allocation8 + $0x1b8] sm:$0xff]
    %v1247 = vld [vmem:[#allocation8 + $0x1c0] sm:$0xff]
    %v1248 = vld [vmem:[#allocation8 + $0x1c8] sm:$0xff]
    %v1249 = vld [vmem:[#allocation8 + $0x1d0] sm:$0xff]
    %v1250 = vld [vmem:[#allocation8 + $0x1d8] sm:$0xff]
    %v1251 = vld [vmem:[#allocation8 + $0x1e0] sm:$0xff]
    %v1252 = vld [vmem:[#allocation8 + $0x1e8] sm:$0xff]
    %v1253 = vld [vmem:[#allocation8 + $0x1f0] sm:$0xff]
    %v1254 = vld [vmem:[#allocation8 + $0x1f8] sm:$0xff]
    %v1255 = vld [vmem:[#allocation8 + $0x200] sm:$0xff]
    %v1256 = vld [vmem:[#allocation8 + $0x208] sm:$0xff]
    %v1257 = vld [vmem:[#allocation8 + $0x210] sm:$0xff]
    %v1258 = vld [vmem:[#allocation8 + $0x218] sm:$0xff]
    %v1259 = vld [vmem:[#allocation8 + $0x220] sm:$0xff]
    %v1260 = vld [vmem:[#allocation8 + $0x228] sm:$0xff]
    %v1261 = vld [vmem:[#allocation8 + $0x230] sm:$0xff]
    %v1262 = vld [vmem:[#allocation8 + $0x238] sm:$0xff]
    %v1263 = vld [vmem:[#allocation8 + $0x240] sm:$0xff]
    %v1264 = vld [vmem:[#allocation8 + $0x248] sm:$0xff]
    %v1265 = vld [vmem:[#allocation8 + $0x250] sm:$0xff]
    %v1266 = vld [vmem:[#allocation8 + $0x258] sm:$0xff]
    %v1267 = vld [vmem:[#allocation8 + $0x260] sm:$0xff]
    %v1268 = vld [vmem:[#allocation8 + $0x268] sm:$0xff]
    %v1269 = vld [vmem:[#allocation8 + $0x270] sm:$0xff]
    %v1270 = vld [vmem:[#allocation8 + $0x278] sm:$0xff]
    %v1271 = vld [vmem:[#allocation8 + $0x280] sm:$0xff]
    %v1272 = vld [vmem:[#allocation8 + $0x288] sm:$0xff]
    %v1273 = vld [vmem:[#allocation8 + $0x290] sm:$0xff]
    %v1274 = vld [vmem:[#allocation8 + $0x298] sm:$0xff]
    %v1275 = vld [vmem:[#allocation8 + $0x2a0] sm:$0xff]
    %v1276 = vld [vmem:[#allocation8 + $0x2a8] sm:$0xff]
    %v1277 = vld [vmem:[#allocation8 + $0x2b0] sm:$0xff]
    %v1278 = vld [vmem:[#allocation8 + $0x2b8] sm:$0xff]
    %v1279 = vld [vmem:[#allocation8 + $0x2c0] sm:$0xff]
    %v1280 = vld [vmem:[#allocation8 + $0x2c8] sm:$0xff]
    %v1281 = vld [vmem:[#allocation8 + $0x2d0] sm:$0xff]
    %v1282 = vld [vmem:[#allocation8 + $0x2d8] sm:$0xff]
    %v1283 = vld [vmem:[#allocation8 + $0x2e0] sm:$0xff]
    %v1284 = vld [vmem:[#allocation8 + $0x2e8] sm:$0xff]
    %v1285 = vld [vmem:[#allocation8 + $0x2f0] sm:$0xff]
    %v1286 = vld [vmem:[#allocation8 + $0x2f8] sm:$0xff]
    %v1287 = vld [vmem:[#allocation8 + $0x300] sm:$0xff]
    %v1288 = vld [vmem:[#allocation8 + $0x308] sm:$0xff]
    %v1289 = vld [vmem:[#allocation8 + $0x310] sm:$0xff]
    %v1290 = vld [vmem:[#allocation8 + $0x318] sm:$0xff]
    %v1291 = vld [vmem:[#allocation8 + $0x320] sm:$0xff]
    %v1292 = vld [vmem:[#allocation8 + $0x328] sm:$0xff]
    %v1293 = vld [vmem:[#allocation8 + $0x330] sm:$0xff]
    %v1294 = vld [vmem:[#allocation8 + $0x338] sm:$0xff]
    %v1295 = vld [vmem:[#allocation8 + $0x340] sm:$0xff]
    %v1296 = vld [vmem:[#allocation8 + $0x348] sm:$0xff]
    %v1297 = vld [vmem:[#allocation8 + $0x350] sm:$0xff]
    %v1298 = vld [vmem:[#allocation8 + $0x358] sm:$0xff]
    %v1299 = vld [vmem:[#allocation8 + $0x360] sm:$0xff]
    %v1300 = vld [vmem:[#allocation8 + $0x368] sm:$0xff]
    %v1301 = vld [vmem:[#allocation8 + $0x370] sm:$0xff]
    %v1302 = vld [vmem:[#allocation8 + $0x378] sm:$0xff]
    %v1303 = vld [vmem:[#allocation8 + $0x380] sm:$0xff]
    %v1304 = vld [vmem:[#allocation8 + $0x388] sm:$0xff]
    %v1305 = vld [vmem:[#allocation8 + $0x390] sm:$0xff]
    %v1306 = vld [vmem:[#allocation8 + $0x398] sm:$0xff]
    %v1307 = vld [vmem:[#allocation8 + $0x3a0] sm:$0xff]
    %v1308 = vld [vmem:[#allocation8 + $0x3a8] sm:$0xff]
    %v1309 = vld [vmem:[#allocation8 + $0x3b0] sm:$0xff]
    %v1310 = vld [vmem:[#allocation8 + $0x3b8] sm:$0xff]
    %v1311 = vld [vmem:[#allocation8 + $0x3c0] sm:$0xff]
    %v1312 = vld [vmem:[#allocation8 + $0x3c8] sm:$0xff]
    %v1313 = vld [vmem:[#allocation8 + $0x3d0] sm:$0xff]
    %v1314 = vld [vmem:[#allocation8 + $0x3d8] sm:$0xff]
    %v1315 = vld [vmem:[#allocation8 + $0x3e0] sm:$0xff]
    %v1316 = vld [vmem:[#allocation8 + $0x3e8] sm:$0xff]
    %v1317 = vld [vmem:[#allocation8 + $0x3f0] sm:$0xff]
    %v1318 = vld [vmem:[#allocation8 + $0x3f8] sm:$0xff]
    %v1319 = vld [vmem:[#allocation8 + $0x400] sm:$0xff]
    %v1320 = vld [vmem:[#allocation8 + $0x408] sm:$0xff]
    %v1321 = vld [vmem:[#allocation8 + $0x410] sm:$0xff]
    %v1322 = vld [vmem:[#allocation8 + $0x418] sm:$0xff]
    %v1323 = vld [vmem:[#allocation8 + $0x420] sm:$0xff]
    %v1324 = vld [vmem:[#allocation8 + $0x428] sm:$0xff]
    %v1325 = vld [vmem:[#allocation8 + $0x430] sm:$0xff]
    %v1326 = vld [vmem:[#allocation8 + $0x438] sm:$0xff]
    %v1327 = vld [vmem:[#allocation8 + $0x440] sm:$0xff]
    %v1328 = vld [vmem:[#allocation8 + $0x448] sm:$0xff]
    %v1329 = vld [vmem:[#allocation8 + $0x450] sm:$0xff]
    %v1330 = vld [vmem:[#allocation8 + $0x458] sm:$0xff]
    %v1331 = vld [vmem:[#allocation8 + $0x460] sm:$0xff]
    %v1332 = vld [vmem:[#allocation8 + $0x468] sm:$0xff]
    %v1333 = vld [vmem:[#allocation8 + $0x470] sm:$0xff]
    %v1334 = vld [vmem:[#allocation8 + $0x478] sm:$0xff]
    %v1335 = vld [vmem:[#allocation8 + $0x480] sm:$0xff]
    %v1336 = vld [vmem:[#allocation8 + $0x488] sm:$0xff]
    %v1337 = vld [vmem:[#allocation8 + $0x490] sm:$0xff]
    %v1338 = vld [vmem:[#allocation8 + $0x498] sm:$0xff]
    %v1339 = vld [vmem:[#allocation8 + $0x4a0] sm:$0xff]
    %v1340 = vld [vmem:[#allocation8 + $0x4a8] sm:$0xff]
    %v1341 = vld [vmem:[#allocation8 + $0x4b0] sm:$0xff]
    %v1342 = vld [vmem:[#allocation8 + $0x4b8] sm:$0xff]
    %v1343 = vld [vmem:[#allocation8 + $0x4c0] sm:$0xff]
    %v1344 = vld [vmem:[#allocation8 + $0x4c8] sm:$0xff]
    %v1345 = vld [vmem:[#allocation8 + $0x4d0] sm:$0xff]
    %v1346 = vld [vmem:[#allocation8 + $0x4d8] sm:$0xff]
    %v1347 = vld [vmem:[#allocation8 + $0x4e0] sm:$0xff]
    %v1348 = vld [vmem:[#allocation8 + $0x4e8] sm:$0xff]
    %v1349 = vld [vmem:[#allocation8 + $0x4f0] sm:$0xff]
    %v1350 = vld [vmem:[#allocation8 + $0x4f8] sm:$0xff]
    %v1351 = vld [vmem:[#allocation8 + $0x500] sm:$0xff]
    %v1352 = vld [vmem:[#allocation8 + $0x508] sm:$0xff]
    %v1353 = vld [vmem:[#allocation8 + $0x510] sm:$0xff]
    %v1354 = vld [vmem:[#allocation8 + $0x518] sm:$0xff]
    %v1355 = vld [vmem:[#allocation8 + $0x520] sm:$0xff]
    %v1356 = vld [vmem:[#allocation8 + $0x528] sm:$0xff]
    %v1357 = vld [vmem:[#allocation8 + $0x530] sm:$0xff]
    %v1358 = vld [vmem:[#allocation8 + $0x538] sm:$0xff]
    %v1359 = vld [vmem:[#allocation8 + $0x540] sm:$0xff]
    %v1360 = vld [vmem:[#allocation8 + $0x548] sm:$0xff]
    %v1361 = vld [vmem:[#allocation8 + $0x550] sm:$0xff]
    %v1362 = vld [vmem:[#allocation8 + $0x558] sm:$0xff]
    %v1363 = vld [vmem:[#allocation8 + $0x560] sm:$0xff]
    %v1364 = vld [vmem:[#allocation8 + $0x568] sm:$0xff]
    %v1365 = vld [vmem:[#allocation8 + $0x570] sm:$0xff]
    %v1366 = vld [vmem:[#allocation8 + $0x578] sm:$0xff]
    %v1367 = vld [vmem:[#allocation8 + $0x580] sm:$0xff]
    %v1368 = vld [vmem:[#allocation8 + $0x588] sm:$0xff]
    %v1369 = vld [vmem:[#allocation8 + $0x590] sm:$0xff]
    %v1370 = vld [vmem:[#allocation8 + $0x598] sm:$0xff]
    %v1371 = vld [vmem:[#allocation8 + $0x5a0] sm:$0xff]
    %v1372 = vld [vmem:[#allocation8 + $0x5a8] sm:$0xff]
    %v1373 = vld [vmem:[#allocation8 + $0x5b0] sm:$0xff]
    %v1374 = vld [vmem:[#allocation8 + $0x5b8] sm:$0xff]
    %v1375 = vld [vmem:[#allocation8 + $0x5c0] sm:$0xff]
    %v1376 = vld [vmem:[#allocation8 + $0x5c8] sm:$0xff]
    %v1377 = vld [vmem:[#allocation8 + $0x5d0] sm:$0xff]
    %v1378 = vld [vmem:[#allocation8 + $0x5d8] sm:$0xff]
    %v1379 = vld [vmem:[#allocation8 + $0x5e0] sm:$0xff]
    %v1380 = vld [vmem:[#allocation8 + $0x5e8] sm:$0xff]
    %v1381 = vld [vmem:[#allocation8 + $0x5f0] sm:$0xff]
    %v1382 = vld [vmem:[#allocation8 + $0x5f8] sm:$0xff]
    %v1383 = vld [vmem:[#allocation8 + $0x600] sm:$0xff]
    %v1384 = vld [vmem:[#allocation8 + $0x608] sm:$0xff]
    %v1385 = vld [vmem:[#allocation8 + $0x610] sm:$0xff]
    %v1386 = vld [vmem:[#allocation8 + $0x618] sm:$0xff]
    %v1387 = vld [vmem:[#allocation8 + $0x620] sm:$0xff]
    %v1388 = vld [vmem:[#allocation8 + $0x628] sm:$0xff]
    %v1389 = vld [vmem:[#allocation8 + $0x630] sm:$0xff]
    %v1390 = vld [vmem:[#allocation8 + $0x638] sm:$0xff]
    %v1391 = vld [vmem:[#allocation8 + $0x640] sm:$0xff]
    %v1392 = vld [vmem:[#allocation8 + $0x648] sm:$0xff]
    %v1393 = vld [vmem:[#allocation8 + $0x650] sm:$0xff]
    %v1394 = vld [vmem:[#allocation8 + $0x658] sm:$0xff]
    %v1395 = vld [vmem:[#allocation8 + $0x660] sm:$0xff]
    %v1396 = vld [vmem:[#allocation8 + $0x668] sm:$0xff]
    %v1397 = vld [vmem:[#allocation8 + $0x670] sm:$0xff]
    %v1398 = vld [vmem:[#allocation8 + $0x678] sm:$0xff]
    %v1399 = vld [vmem:[#allocation8 + $0x680] sm:$0xff]
    %v1400 = vld [vmem:[#allocation8 + $0x688] sm:$0xff]
    %v1401 = vld [vmem:[#allocation8 + $0x690] sm:$0xff]
    %v1402 = vld [vmem:[#allocation8 + $0x698] sm:$0xff]
    %v1403 = vld [vmem:[#allocation8 + $0x6a0] sm:$0xff]
    %v1404 = vld [vmem:[#allocation8 + $0x6a8] sm:$0xff]
    %v1405 = vld [vmem:[#allocation8 + $0x6b0] sm:$0xff]
    %v1406 = vld [vmem:[#allocation8 + $0x6b8] sm:$0xff]
    %v1407 = vld [vmem:[#allocation8 + $0x6c0] sm:$0xff]
    %v1408 = vld [vmem:[#allocation8 + $0x6c8] sm:$0xff]
    %v1409 = vld [vmem:[#allocation8 + $0x6d0] sm:$0xff]
    %v1410 = vld [vmem:[#allocation8 + $0x6d8] sm:$0xff]
    %v1411 = vld [vmem:[#allocation8 + $0x6e0] sm:$0xff]
    %v1412 = vld [vmem:[#allocation8 + $0x6e8] sm:$0xff]
    %v1413 = vld [vmem:[#allocation8 + $0x6f0] sm:$0xff]
    %v1414 = vld [vmem:[#allocation8 + $0x6f8] sm:$0xff]
    %v1415 = vld [vmem:[#allocation8 + $0x700] sm:$0xff]
    %v1416 = vld [vmem:[#allocation8 + $0x708] sm:$0xff]
    %v1417 = vld [vmem:[#allocation8 + $0x710] sm:$0xff]
    %v1418 = vld [vmem:[#allocation8 + $0x718] sm:$0xff]
    %v1419 = vld [vmem:[#allocation8 + $0x720] sm:$0xff]
    %v1420 = vld [vmem:[#allocation8 + $0x728] sm:$0xff]
    %v1421 = vld [vmem:[#allocation8 + $0x730] sm:$0xff]
    %v1422 = vld [vmem:[#allocation8 + $0x738] sm:$0xff]
    %v1423 = vld [vmem:[#allocation8 + $0x740] sm:$0xff]
    %v1424 = vld [vmem:[#allocation8 + $0x748] sm:$0xff]
    %v1425 = vld [vmem:[#allocation8 + $0x750] sm:$0xff]
    %v1426 = vld [vmem:[#allocation8 + $0x758] sm:$0xff]
    %v1427 = vld [vmem:[#allocation8 + $0x760] sm:$0xff]
    %v1428 = vld [vmem:[#allocation8 + $0x768] sm:$0xff]
    %v1429 = vld [vmem:[#allocation8 + $0x770] sm:$0xff]
    %v1430 = vld [vmem:[#allocation8 + $0x778] sm:$0xff]
    %v1431 = vld [vmem:[#allocation8 + $0x780] sm:$0xff]
    %v1432 = vld [vmem:[#allocation8 + $0x788] sm:$0xff]
    %v1433 = vld [vmem:[#allocation8 + $0x790] sm:$0xff]
    %v1434 = vld [vmem:[#allocation8 + $0x798] sm:$0xff]
    %v1435 = vld [vmem:[#allocation8 + $0x7a0] sm:$0xff]
    %v1436 = vld [vmem:[#allocation8 + $0x7a8] sm:$0xff]
    %v1437 = vld [vmem:[#allocation8 + $0x7b0] sm:$0xff]
    %v1438 = vld [vmem:[#allocation8 + $0x7b8] sm:$0xff]
    %v1439 = vld [vmem:[#allocation8 + $0x7c0] sm:$0xff]
    %v1440 = vld [vmem:[#allocation8 + $0x7c8] sm:$0xff]
    %v1441 = vld [vmem:[#allocation8 + $0x7d0] sm:$0xff]
    %v1442 = vld [vmem:[#allocation8 + $0x7d8] sm:$0xff]
    %v1443 = vld [vmem:[#allocation8 + $0x7e0] sm:$0xff]
    %v1444 = vld [vmem:[#allocation8 + $0x7e8] sm:$0xff]
    %v1445 = vld [vmem:[#allocation8 + $0x7f0] sm:$0xff]
    %v1446 = vld [vmem:[#allocation8 + $0x7f8] sm:$0xff]
    %v1447 = vld [vmem:[#allocation8 + $0x800] sm:$0xff]
    %v1448 = vld [vmem:[#allocation8 + $0x808] sm:$0xff]
    %v1449 = vld [vmem:[#allocation8 + $0x810] sm:$0xff]
    %v1450 = vld [vmem:[#allocation8 + $0x818] sm:$0xff]
    %v1451 = vld [vmem:[#allocation8 + $0x820] sm:$0xff]
    %v1452 = vld [vmem:[#allocation8 + $0x828] sm:$0xff]
    %v1453 = vld [vmem:[#allocation8 + $0x830] sm:$0xff]
    %v1454 = vld [vmem:[#allocation8 + $0x838] sm:$0xff]
    %v1455 = vld [vmem:[#allocation8 + $0x840] sm:$0xff]
    %v1456 = vld [vmem:[#allocation8 + $0x848] sm:$0xff]
    %v1457 = vld [vmem:[#allocation8 + $0x850] sm:$0xff]
    %v1458 = vld [vmem:[#allocation8 + $0x858] sm:$0xff]
    %v1459 = vld [vmem:[#allocation8 + $0x860] sm:$0xff]
    %v1460 = vld [vmem:[#allocation8 + $0x868] sm:$0xff]
    %v1461 = vld [vmem:[#allocation8 + $0x870] sm:$0xff]
    %v1462 = vld [vmem:[#allocation8 + $0x878] sm:$0xff]
    %v1463 = vld [vmem:[#allocation8 + $0x880] sm:$0xff]
    %v1464 = vld [vmem:[#allocation8 + $0x888] sm:$0xff]
    %v1465 = vld [vmem:[#allocation8 + $0x890] sm:$0xff]
    %v1466 = vld [vmem:[#allocation8 + $0x898] sm:$0xff]
    %v1467 = vld [vmem:[#allocation8 + $0x8a0] sm:$0xff]
    %v1468 = vld [vmem:[#allocation8 + $0x8a8] sm:$0xff]
    %v1469 = vld [vmem:[#allocation8 + $0x8b0] sm:$0xff]
    %v1470 = vld [vmem:[#allocation8 + $0x8b8] sm:$0xff]
    %v1471 = vld [vmem:[#allocation8 + $0x8c0] sm:$0xff]
    %v1472 = vld [vmem:[#allocation8 + $0x8c8] sm:$0xff]
    %v1473 = vld [vmem:[#allocation8 + $0x8d0] sm:$0xff]
    %v1474 = vld [vmem:[#allocation8 + $0x8d8] sm:$0xff]
    %v1475 = vld [vmem:[#allocation8 + $0x8e0] sm:$0xff]
    %v1476 = vld [vmem:[#allocation8 + $0x8e8] sm:$0xff]
    %v1477 = vld [vmem:[#allocation8 + $0x8f0] sm:$0xff]
    %v1478 = vld [vmem:[#allocation8 + $0x8f8] sm:$0xff]
    %v1479 = vld [vmem:[#allocation8 + $0x900] sm:$0xff]
    %v1480 = vld [vmem:[#allocation8 + $0x908] sm:$0xff]
    %v1481 = vld [vmem:[#allocation8 + $0x910] sm:$0xff]
    %v1482 = vld [vmem:[#allocation8 + $0x918] sm:$0xff]
    %v1483 = vld [vmem:[#allocation8 + $0x920] sm:$0xff]
    %v1484 = vld [vmem:[#allocation8 + $0x928] sm:$0xff]
    %v1485 = vld [vmem:[#allocation8 + $0x930] sm:$0xff]
    %v1486 = vld [vmem:[#allocation8 + $0x938] sm:$0xff]
    %v1487 = vld [vmem:[#allocation8 + $0x940] sm:$0xff]
    %v1488 = vld [vmem:[#allocation8 + $0x948] sm:$0xff]
    %v1489 = vld [vmem:[#allocation8 + $0x950] sm:$0xff]
    %v1490 = vld [vmem:[#allocation8 + $0x958] sm:$0xff]
    %v1491 = vld [vmem:[#allocation8 + $0x960] sm:$0xff]
    %v1492 = vld [vmem:[#allocation8 + $0x968] sm:$0xff]
    %v1493 = vld [vmem:[#allocation8 + $0x970] sm:$0xff]
    %v1494 = vld [vmem:[#allocation8 + $0x978] sm:$0xff]
    %v1495 = vld [vmem:[#allocation8 + $0x980] sm:$0xff]
    %v1496 = vld [vmem:[#allocation8 + $0x988] sm:$0xff]
    %v1497 = vld [vmem:[#allocation8 + $0x990] sm:$0xff]
    %v1498 = vld [vmem:[#allocation8 + $0x998] sm:$0xff]
    %v1499 = vld [vmem:[#allocation8 + $0x9a0] sm:$0xff]
    %v1500 = vld [vmem:[#allocation8 + $0x9a8] sm:$0xff]
    %v1501 = vld [vmem:[#allocation8 + $0x9b0] sm:$0xff]
    %v1502 = vld [vmem:[#allocation8 + $0x9b8] sm:$0xff]
    %v1503 = vld [vmem:[#allocation8 + $0x9c0] sm:$0xff]
    %v1504 = vld [vmem:[#allocation8 + $0x9c8] sm:$0xff]
    %v1505 = vld [vmem:[#allocation8 + $0x9d0] sm:$0xff]
    %v1506 = vld [vmem:[#allocation8 + $0x9d8] sm:$0xff]
    %v1507 = vld [vmem:[#allocation8 + $0x9e0] sm:$0xff]
    %v1508 = vld [vmem:[#allocation8 + $0x9e8] sm:$0xff]
    %v1509 = vld [vmem:[#allocation8 + $0x9f0] sm:$0xff]
    %v1510 = vld [vmem:[#allocation8 + $0x9f8] sm:$0xff]
    %v1511 = vld [vmem:[#allocation8 + $0xa00] sm:$0xff]
    %v1512 = vld [vmem:[#allocation8 + $0xa08] sm:$0xff]
    %v1513 = vld [vmem:[#allocation8 + $0xa10] sm:$0xff]
    %v1514 = vld [vmem:[#allocation8 + $0xa18] sm:$0xff]
    %v1515 = vld [vmem:[#allocation8 + $0xa20] sm:$0xff]
    %v1516 = vld [vmem:[#allocation8 + $0xa28] sm:$0xff]
    %v1517 = vld [vmem:[#allocation8 + $0xa30] sm:$0xff]
    %v1518 = vld [vmem:[#allocation8 + $0xa38] sm:$0xff]
    %v1519 = vld [vmem:[#allocation8 + $0xa40] sm:$0xff]
    %v1520 = vld [vmem:[#allocation8 + $0xa48] sm:$0xff]
    %v1521 = vld [vmem:[#allocation8 + $0xa50] sm:$0xff]
    %v1522 = vld [vmem:[#allocation8 + $0xa58] sm:$0xff]
    %v1523 = vld [vmem:[#allocation8 + $0xa60] sm:$0xff]
    %v1524 = vld [vmem:[#allocation8 + $0xa68] sm:$0xff]
    %v1525 = vld [vmem:[#allocation8 + $0xa70] sm:$0xff]
    %v1526 = vld [vmem:[#allocation8 + $0xa78] sm:$0xff]
    %v1527 = vld [vmem:[#allocation8 + $0xa80] sm:$0xff]
    %v1528 = vld [vmem:[#allocation8 + $0xa88] sm:$0xff]
    %v1529 = vld [vmem:[#allocation8 + $0xa90] sm:$0xff]
    %v1530 = vld [vmem:[#allocation8 + $0xa98] sm:$0xff]
    %v1531 = vld [vmem:[#allocation8 + $0xaa0] sm:$0xff]
    %v1532 = vld [vmem:[#allocation8 + $0xaa8] sm:$0xff]
    %v1533 = vld [vmem:[#allocation8 + $0xab0] sm:$0xff]
    %v1534 = vld [vmem:[#allocation8 + $0xab8] sm:$0xff]
    %v1535 = vld [vmem:[#allocation8 + $0xac0] sm:$0xff]
    %v1536 = vld [vmem:[#allocation8 + $0xac8] sm:$0xff]
    %v1537 = vld [vmem:[#allocation8 + $0xad0] sm:$0xff]
    %v1538 = vld [vmem:[#allocation8 + $0xad8] sm:$0xff]
    %v1539 = vld [vmem:[#allocation8 + $0xae0] sm:$0xff]
    %v1540 = vld [vmem:[#allocation8 + $0xae8] sm:$0xff]
    %v1541 = vld [vmem:[#allocation8 + $0xaf0] sm:$0xff]
    %v1542 = vld [vmem:[#allocation8 + $0xaf8] sm:$0xff]
    %v1543 = vld [vmem:[#allocation8 + $0xb00] sm:$0xff]
    %v1544 = vld [vmem:[#allocation8 + $0xb08] sm:$0xff]
    %v1545 = vld [vmem:[#allocation8 + $0xb10] sm:$0xff]
    %v1546 = vld [vmem:[#allocation8 + $0xb18] sm:$0xff]
    %v1547 = vld [vmem:[#allocation8 + $0xb20] sm:$0xff]
    %v1548 = vld [vmem:[#allocation8 + $0xb28] sm:$0xff]
    %v1549 = vld [vmem:[#allocation8 + $0xb30] sm:$0xff]
    %v1550 = vld [vmem:[#allocation8 + $0xb38] sm:$0xff]
    %v1551 = vld [vmem:[#allocation8 + $0xb40] sm:$0xff]
    %v1552 = vld [vmem:[#allocation8 + $0xb48] sm:$0xff]
    %v1553 = vld [vmem:[#allocation8 + $0xb50] sm:$0xff]
    %v1554 = vld [vmem:[#allocation8 + $0xb58] sm:$0xff]
    %v1555 = vld [vmem:[#allocation8 + $0xb60] sm:$0xff]
    %v1556 = vld [vmem:[#allocation8 + $0xb68] sm:$0xff]
    %v1557 = vld [vmem:[#allocation8 + $0xb70] sm:$0xff]
    %v1558 = vld [vmem:[#allocation8 + $0xb78] sm:$0xff]
    %v1559 = vld [vmem:[#allocation8 + $0xb80] sm:$0xff]
    %v1560 = vld [vmem:[#allocation8 + $0xb88] sm:$0xff]
    %v1561 = vld [vmem:[#allocation8 + $0xb90] sm:$0xff]
    %v1562 = vld [vmem:[#allocation8 + $0xb98] sm:$0xff]
    %v1563 = vld [vmem:[#allocation8 + $0xba0] sm:$0xff]
    %v1564 = vld [vmem:[#allocation8 + $0xba8] sm:$0xff]
    %v1565 = vld [vmem:[#allocation8 + $0xbb0] sm:$0xff]
    %v1566 = vld [vmem:[#allocation8 + $0xbb8] sm:$0xff]
    %v1567 = vld [vmem:[#allocation8 + $0xbc0] sm:$0xff]
    %v1568 = vld [vmem:[#allocation8 + $0xbc8] sm:$0xff]
    %v1569 = vld [vmem:[#allocation8 + $0xbd0] sm:$0xff]
    %v1570 = vld [vmem:[#allocation8 + $0xbd8] sm:$0xff]
    %v1571 = vld [vmem:[#allocation8 + $0xbe0] sm:$0xff]
    %v1572 = vld [vmem:[#allocation8 + $0xbe8] sm:$0xff]
    %v1573 = vld [vmem:[#allocation8 + $0xbf0] sm:$0xff]
    %v1574 = vld [vmem:[#allocation8 + $0xbf8] sm:$0xff]
    %v1575 = vld [vmem:[#allocation8 + $0xc00] sm:$0xff]
    %v1576 = vld [vmem:[#allocation8 + $0xc08] sm:$0xff]
    %v1577 = vld [vmem:[#allocation8 + $0xc10] sm:$0xff]
    %v1578 = vld [vmem:[#allocation8 + $0xc18] sm:$0xff]
    %v1579 = vld [vmem:[#allocation8 + $0xc20] sm:$0xff]
    %v1580 = vld [vmem:[#allocation8 + $0xc28] sm:$0xff]
    %v1581 = vld [vmem:[#allocation8 + $0xc30] sm:$0xff]
    %v1582 = vld [vmem:[#allocation8 + $0xc38] sm:$0xff]
    %v1583 = vld [vmem:[#allocation8 + $0xc40] sm:$0xff]
    %v1584 = vld [vmem:[#allocation8 + $0xc48] sm:$0xff]
    %v1585 = vld [vmem:[#allocation8 + $0xc50] sm:$0xff]
    %v1586 = vld [vmem:[#allocation8 + $0xc58] sm:$0xff]
    %v1587 = vld [vmem:[#allocation8 + $0xc60] sm:$0xff]
    %v1588 = vld [vmem:[#allocation8 + $0xc68] sm:$0xff]
    %v1589 = vld [vmem:[#allocation8 + $0xc70] sm:$0xff]
    %v1590 = vld [vmem:[#allocation8 + $0xc78] sm:$0xff]
    %v1591 = vld [vmem:[#allocation8 + $0xc80] sm:$0xff]
    %v1592 = vld [vmem:[#allocation8 + $0xc88] sm:$0xff]
    %v1593 = vld [vmem:[#allocation8 + $0xc90] sm:$0xff]
    %v1594 = vld [vmem:[#allocation8 + $0xc98] sm:$0xff]
    %v1595 = vld [vmem:[#allocation8 + $0xca0] sm:$0xff]
    %v1596 = vld [vmem:[#allocation8 + $0xca8] sm:$0xff]
    %v1597 = vld [vmem:[#allocation8 + $0xcb0] sm:$0xff]
    %v1598 = vld [vmem:[#allocation8 + $0xcb8] sm:$0xff]
    %v1599 = vld [vmem:[#allocation8 + $0xcc0] sm:$0xff]
    %v1600 = vld [vmem:[#allocation8 + $0xcc8] sm:$0xff]
    %v1601 = vld [vmem:[#allocation8 + $0xcd0] sm:$0xff]
    %v1602 = vld [vmem:[#allocation8 + $0xcd8] sm:$0xff]
    %v1603 = vld [vmem:[#allocation8 + $0xce0] sm:$0xff]
    %v1604 = vld [vmem:[#allocation8 + $0xce8] sm:$0xff]
    %v1605 = vld [vmem:[#allocation8 + $0xcf0] sm:$0xff]
    %v1606 = vld [vmem:[#allocation8 + $0xcf8] sm:$0xff]
    %v1607 = vld [vmem:[#allocation8 + $0xd00] sm:$0xff]
    %v1608 = vld [vmem:[#allocation8 + $0xd08] sm:$0xff]
    %v1609 = vld [vmem:[#allocation8 + $0xd10] sm:$0xff]
    %v1610 = vld [vmem:[#allocation8 + $0xd18] sm:$0xff]
    %v1611 = vld [vmem:[#allocation8 + $0xd20] sm:$0xff]
    %v1612 = vld [vmem:[#allocation8 + $0xd28] sm:$0xff]
    %v1613 = vld [vmem:[#allocation8 + $0xd30] sm:$0xff]
    %v1614 = vld [vmem:[#allocation8 + $0xd38] sm:$0xff]
    %v1615 = vld [vmem:[#allocation8 + $0xd40] sm:$0xff]
    %v1616 = vld [vmem:[#allocation8 + $0xd48] sm:$0xff]
    %v1617 = vld [vmem:[#allocation8 + $0xd50] sm:$0xff]
    %v1618 = vld [vmem:[#allocation8 + $0xd58] sm:$0xff]
    %v1619 = vld [vmem:[#allocation8 + $0xd60] sm:$0xff]
    %v1620 = vld [vmem:[#allocation8 + $0xd68] sm:$0xff]
    %v1621 = vld [vmem:[#allocation8 + $0xd70] sm:$0xff]
    %v1622 = vld [vmem:[#allocation8 + $0xd78] sm:$0xff]
    %v1623 = vld [vmem:[#allocation8 + $0xd80] sm:$0xff]
    %v1624 = vld [vmem:[#allocation8 + $0xd88] sm:$0xff]
    %v1625 = vld [vmem:[#allocation8 + $0xd90] sm:$0xff]
    %v1626 = vld [vmem:[#allocation8 + $0xd98] sm:$0xff]
    %v1627 = vld [vmem:[#allocation8 + $0xda0] sm:$0xff]
    %v1628 = vld [vmem:[#allocation8 + $0xda8] sm:$0xff]
    %v1629 = vld [vmem:[#allocation8 + $0xdb0] sm:$0xff]
    %v1630 = vld [vmem:[#allocation8 + $0xdb8] sm:$0xff]
    %v1631 = vld [vmem:[#allocation8 + $0xdc0] sm:$0xff]
    %v1632 = vld [vmem:[#allocation8 + $0xdc8] sm:$0xff]
    %v1633 = vld [vmem:[#allocation8 + $0xdd0] sm:$0xff]
    %v1634 = vld [vmem:[#allocation8 + $0xdd8] sm:$0xff]
    %v1635 = vld [vmem:[#allocation8 + $0xde0] sm:$0xff]
    %v1636 = vld [vmem:[#allocation8 + $0xde8] sm:$0xff]
    %v1637 = vld [vmem:[#allocation8 + $0xdf0] sm:$0xff]
    %v1638 = vld [vmem:[#allocation8 + $0xdf8] sm:$0xff]
    %v1639 = vld [vmem:[#allocation8 + $0xe00] sm:$0xff]
    %v1640 = vld [vmem:[#allocation8 + $0xe08] sm:$0xff]
    %v1641 = vld [vmem:[#allocation8 + $0xe10] sm:$0xff]
    %v1642 = vld [vmem:[#allocation8 + $0xe18] sm:$0xff]
    %v1643 = vld [vmem:[#allocation8 + $0xe20] sm:$0xff]
    %v1644 = vld [vmem:[#allocation8 + $0xe28] sm:$0xff]
    %v1645 = vld [vmem:[#allocation8 + $0xe30] sm:$0xff]
    %v1646 = vld [vmem:[#allocation8 + $0xe38] sm:$0xff]
    %v1647 = vld [vmem:[#allocation8 + $0xe40] sm:$0xff]
    %v1648 = vld [vmem:[#allocation8 + $0xe48] sm:$0xff]
    %v1649 = vld [vmem:[#allocation8 + $0xe50] sm:$0xff]
    %v1650 = vld [vmem:[#allocation8 + $0xe58] sm:$0xff]
    %v1651 = vld [vmem:[#allocation8 + $0xe60] sm:$0xff]
    %v1652 = vld [vmem:[#allocation8 + $0xe68] sm:$0xff]
    %v1653 = vld [vmem:[#allocation8 + $0xe70] sm:$0xff]
    %v1654 = vld [vmem:[#allocation8 + $0xe78] sm:$0xff]
    %v1655 = vld [vmem:[#allocation8 + $0xe80] sm:$0xff]
    %v1656 = vld [vmem:[#allocation8 + $0xe88] sm:$0xff]
    %v1657 = vld [vmem:[#allocation8 + $0xe90] sm:$0xff]
    %v1658 = vld [vmem:[#allocation8 + $0xe98] sm:$0xff]
    %v1659 = vld [vmem:[#allocation8 + $0xea0] sm:$0xff]
    %v1660 = vld [vmem:[#allocation8 + $0xea8] sm:$0xff]
    %v1661 = vld [vmem:[#allocation8 + $0xeb0] sm:$0xff]
    %v1662 = vld [vmem:[#allocation8 + $0xeb8] sm:$0xff]
    %v1663 = vld [vmem:[#allocation8 + $0xec0] sm:$0xff]
    %v1664 = vld [vmem:[#allocation8 + $0xec8] sm:$0xff]
    %v1665 = vld [vmem:[#allocation8 + $0xed0] sm:$0xff]
    %v1666 = vld [vmem:[#allocation8 + $0xed8] sm:$0xff]
    %v1667 = vld [vmem:[#allocation8 + $0xee0] sm:$0xff]
    %v1668 = vld [vmem:[#allocation8 + $0xee8] sm:$0xff]
    %v1669 = vld [vmem:[#allocation8 + $0xef0] sm:$0xff]
    %v1670 = vld [vmem:[#allocation8 + $0xef8] sm:$0xff]
    %v1671 = vld [vmem:[#allocation8 + $0xf00] sm:$0xff]
    %v1672 = vld [vmem:[#allocation8 + $0xf08] sm:$0xff]
    %v1673 = vld [vmem:[#allocation8 + $0xf10] sm:$0xff]
    %v1674 = vld [vmem:[#allocation8 + $0xf18] sm:$0xff]
    %v1675 = vld [vmem:[#allocation8 + $0xf20] sm:$0xff]
    %v1676 = vld [vmem:[#allocation8 + $0xf28] sm:$0xff]
    %v1677 = vld [vmem:[#allocation8 + $0xf30] sm:$0xff]
    %v1678 = vld [vmem:[#allocation8 + $0xf38] sm:$0xff]
    %v1679 = vld [vmem:[#allocation8 + $0xf40] sm:$0xff]
    %v1680 = vld [vmem:[#allocation8 + $0xf48] sm:$0xff]
    %v1681 = vld [vmem:[#allocation8 + $0xf50] sm:$0xff]
    %v1682 = vld [vmem:[#allocation8 + $0xf58] sm:$0xff]
    %v1683 = vld [vmem:[#allocation8 + $0xf60] sm:$0xff]
    %v1684 = vld [vmem:[#allocation8 + $0xf68] sm:$0xff]
    %v1685 = vld [vmem:[#allocation8 + $0xf70] sm:$0xff]
    %v1686 = vld [vmem:[#allocation8 + $0xf78] sm:$0xff]
    %v1687 = vld [vmem:[#allocation8 + $0xf80] sm:$0xff]
    %v1688 = vld [vmem:[#allocation8 + $0xf88] sm:$0xff]
    %v1689 = vld [vmem:[#allocation8 + $0xf90] sm:$0xff]
    %v1690 = vld [vmem:[#allocation8 + $0xf98] sm:$0xff]
    %v1691 = vld [vmem:[#allocation8 + $0xfa0] sm:$0xff]
    %v1692 = vld [vmem:[#allocation8 + $0xfa8] sm:$0xff]
    %v1693 = vld [vmem:[#allocation8 + $0xfb0] sm:$0xff]
    %v1694 = vld [vmem:[#allocation8 + $0xfb8] sm:$0xff]
    %v1695 = vld [vmem:[#allocation8 + $0xfc0] sm:$0xff]
    %v1696 = vld [vmem:[#allocation8 + $0xfc8] sm:$0xff]
    %v1697 = vld [vmem:[#allocation8 + $0xfd0] sm:$0xff]
    %v1698 = vld [vmem:[#allocation8 + $0xfd8] sm:$0xff]
    %v1699 = vld [vmem:[#allocation8 + $0xfe0] sm:$0xff]
    %v1700 = vld [vmem:[#allocation8 + $0xfe8] sm:$0xff]
    %v1701 = vld [vmem:[#allocation8 + $0xff0] sm:$0xff]
    %v1702 = vld [vmem:[#allocation8 + $0xff8] sm:$0xff]
    %v2215 = vunpack.c.l.b16 %v1191
    %v2216 = vunpack.c.h.b16 %v1191
    %v2217 = vunpack.c.l.b16 %v1192
    %v2218 = vunpack.c.h.b16 %v1192
    %v2219 = vunpack.c.l.b16 %v1193
    %v2220 = vunpack.c.h.b16 %v1193
    %v2221 = vunpack.c.l.b16 %v1194
    %v2222 = vunpack.c.h.b16 %v1194
    %v2223 = vunpack.c.l.b16 %v1195
    %v2224 = vunpack.c.h.b16 %v1195
    %v2225 = vunpack.c.l.b16 %v1196
    %v2226 = vunpack.c.h.b16 %v1196
    %v2227 = vunpack.c.l.b16 %v1197
    %v2228 = vunpack.c.h.b16 %v1197
    %v2229 = vunpack.c.l.b16 %v1198
    %v2230 = vunpack.c.h.b16 %v1198
    %v2231 = vunpack.c.l.b16 %v1199
    %v2232 = vunpack.c.h.b16 %v1199
    %v2233 = vunpack.c.l.b16 %v1200
    %v2234 = vunpack.c.h.b16 %v1200
    %v2235 = vunpack.c.l.b16 %v1201
    %v2236 = vunpack.c.h.b16 %v1201
    %v2237 = vunpack.c.l.b16 %v1202
    %v2238 = vunpack.c.h.b16 %v1202
    %v2239 = vunpack.c.l.b16 %v1203
    %v2240 = vunpack.c.h.b16 %v1203
    %v2241 = vunpack.c.l.b16 %v1204
    %v2242 = vunpack.c.h.b16 %v1204
    %v2243 = vunpack.c.l.b16 %v1205
    %v2244 = vunpack.c.h.b16 %v1205
    %v2245 = vunpack.c.l.b16 %v1206
    %v2246 = vunpack.c.h.b16 %v1206
    %v2247 = vunpack.c.l.b16 %v1207
    %v2248 = vunpack.c.h.b16 %v1207
    %v2249 = vunpack.c.l.b16 %v1208
    %v2250 = vunpack.c.h.b16 %v1208
    %v2251 = vunpack.c.l.b16 %v1209
    %v2252 = vunpack.c.h.b16 %v1209
    %v2253 = vunpack.c.l.b16 %v1210
    %v2254 = vunpack.c.h.b16 %v1210
    %v2255 = vunpack.c.l.b16 %v1211
    %v2256 = vunpack.c.h.b16 %v1211
    %v2257 = vunpack.c.l.b16 %v1212
    %v2258 = vunpack.c.h.b16 %v1212
    %v2259 = vunpack.c.l.b16 %v1213
    %v2260 = vunpack.c.h.b16 %v1213
    %v2261 = vunpack.c.l.b16 %v1214
    %v2262 = vunpack.c.h.b16 %v1214
    %v2263 = vunpack.c.l.b16 %v1215
    %v2264 = vunpack.c.h.b16 %v1215
    %v2265 = vunpack.c.l.b16 %v1216
    %v2266 = vunpack.c.h.b16 %v1216
    %v2267 = vunpack.c.l.b16 %v1217
    %v2268 = vunpack.c.h.b16 %v1217
    %v2269 = vunpack.c.l.b16 %v1218
    %v2270 = vunpack.c.h.b16 %v1218
    %v2271 = vunpack.c.l.b16 %v1219
    %v2272 = vunpack.c.h.b16 %v1219
    %v2273 = vunpack.c.l.b16 %v1220
    %v2274 = vunpack.c.h.b16 %v1220
    %v2275 = vunpack.c.l.b16 %v1221
    %v2276 = vunpack.c.h.b16 %v1221
    %v2277 = vunpack.c.l.b16 %v1222
    %v2278 = vunpack.c.h.b16 %v1222
    %v2279 = vunpack.c.l.b16 %v1223
    %v2280 = vunpack.c.h.b16 %v1223
    %v2281 = vunpack.c.l.b16 %v1224
    %v2282 = vunpack.c.h.b16 %v1224
    %v2283 = vunpack.c.l.b16 %v1225
    %v2284 = vunpack.c.h.b16 %v1225
    %v2285 = vunpack.c.l.b16 %v1226
    %v2286 = vunpack.c.h.b16 %v1226
    %v2287 = vunpack.c.l.b16 %v1227
    %v2288 = vunpack.c.h.b16 %v1227
    %v2289 = vunpack.c.l.b16 %v1228
    %v2290 = vunpack.c.h.b16 %v1228
    %v2291 = vunpack.c.l.b16 %v1229
    %v2292 = vunpack.c.h.b16 %v1229
    %v2293 = vunpack.c.l.b16 %v1230
    %v2294 = vunpack.c.h.b16 %v1230
    %v2295 = vunpack.c.l.b16 %v1231
    %v2296 = vunpack.c.h.b16 %v1231
    %v2297 = vunpack.c.l.b16 %v1232
    %v2298 = vunpack.c.h.b16 %v1232
    %v2299 = vunpack.c.l.b16 %v1233
    %v2300 = vunpack.c.h.b16 %v1233
    %v2301 = vunpack.c.l.b16 %v1234
    %v2302 = vunpack.c.h.b16 %v1234
    %v2303 = vunpack.c.l.b16 %v1235
    %v2304 = vunpack.c.h.b16 %v1235
    %v2305 = vunpack.c.l.b16 %v1236
    %v2306 = vunpack.c.h.b16 %v1236
    %v2307 = vunpack.c.l.b16 %v1237
    %v2308 = vunpack.c.h.b16 %v1237
    %v2309 = vunpack.c.l.b16 %v1238
    %v2310 = vunpack.c.h.b16 %v1238
    %v2311 = vunpack.c.l.b16 %v1239
    %v2312 = vunpack.c.h.b16 %v1239
    %v2313 = vunpack.c.l.b16 %v1240
    %v2314 = vunpack.c.h.b16 %v1240
    %v2315 = vunpack.c.l.b16 %v1241
    %v2316 = vunpack.c.h.b16 %v1241
    %v2317 = vunpack.c.l.b16 %v1242
    %v2318 = vunpack.c.h.b16 %v1242
    %v2319 = vunpack.c.l.b16 %v1243
    %v2320 = vunpack.c.h.b16 %v1243
    %v2321 = vunpack.c.l.b16 %v1244
    %v2322 = vunpack.c.h.b16 %v1244
    %v2323 = vunpack.c.l.b16 %v1245
    %v2324 = vunpack.c.h.b16 %v1245
    %v2325 = vunpack.c.l.b16 %v1246
    %v2326 = vunpack.c.h.b16 %v1246
    %v2327 = vunpack.c.l.b16 %v1247
    %v2328 = vunpack.c.h.b16 %v1247
    %v2329 = vunpack.c.l.b16 %v1248
    %v2330 = vunpack.c.h.b16 %v1248
    %v2331 = vunpack.c.l.b16 %v1249
    %v2332 = vunpack.c.h.b16 %v1249
    %v2333 = vunpack.c.l.b16 %v1250
    %v2334 = vunpack.c.h.b16 %v1250
    %v2335 = vunpack.c.l.b16 %v1251
    %v2336 = vunpack.c.h.b16 %v1251
    %v2337 = vunpack.c.l.b16 %v1252
    %v2338 = vunpack.c.h.b16 %v1252
    %v2339 = vunpack.c.l.b16 %v1253
    %v2340 = vunpack.c.h.b16 %v1253
    %v2341 = vunpack.c.l.b16 %v1254
    %v2342 = vunpack.c.h.b16 %v1254
    %v2343 = vunpack.c.l.b16 %v1255
    %v2344 = vunpack.c.h.b16 %v1255
    %v2345 = vunpack.c.l.b16 %v1256
    %v2346 = vunpack.c.h.b16 %v1256
    %v2347 = vunpack.c.l.b16 %v1257
    %v2348 = vunpack.c.h.b16 %v1257
    %v2349 = vunpack.c.l.b16 %v1258
    %v2350 = vunpack.c.h.b16 %v1258
    %v2351 = vunpack.c.l.b16 %v1259
    %v2352 = vunpack.c.h.b16 %v1259
    %v2353 = vunpack.c.l.b16 %v1260
    %v2354 = vunpack.c.h.b16 %v1260
    %v2355 = vunpack.c.l.b16 %v1261
    %v2356 = vunpack.c.h.b16 %v1261
    %v2357 = vunpack.c.l.b16 %v1262
    %v2358 = vunpack.c.h.b16 %v1262
    %v2359 = vunpack.c.l.b16 %v1263
    %v2360 = vunpack.c.h.b16 %v1263
    %v2361 = vunpack.c.l.b16 %v1264
    %v2362 = vunpack.c.h.b16 %v1264
    %v2363 = vunpack.c.l.b16 %v1265
    %v2364 = vunpack.c.h.b16 %v1265
    %v2365 = vunpack.c.l.b16 %v1266
    %v2366 = vunpack.c.h.b16 %v1266
    %v2367 = vunpack.c.l.b16 %v1267
    %v2368 = vunpack.c.h.b16 %v1267
    %v2369 = vunpack.c.l.b16 %v1268
    %v2370 = vunpack.c.h.b16 %v1268
    %v2371 = vunpack.c.l.b16 %v1269
    %v2372 = vunpack.c.h.b16 %v1269
    %v2373 = vunpack.c.l.b16 %v1270
    %v2374 = vunpack.c.h.b16 %v1270
    %v2375 = vunpack.c.l.b16 %v1271
    %v2376 = vunpack.c.h.b16 %v1271
    %v2377 = vunpack.c.l.b16 %v1272
    %v2378 = vunpack.c.h.b16 %v1272
    %v2379 = vunpack.c.l.b16 %v1273
    %v2380 = vunpack.c.h.b16 %v1273
    %v2381 = vunpack.c.l.b16 %v1274
    %v2382 = vunpack.c.h.b16 %v1274
    %v2383 = vunpack.c.l.b16 %v1275
    %v2384 = vunpack.c.h.b16 %v1275
    %v2385 = vunpack.c.l.b16 %v1276
    %v2386 = vunpack.c.h.b16 %v1276
    %v2387 = vunpack.c.l.b16 %v1277
    %v2388 = vunpack.c.h.b16 %v1277
    %v2389 = vunpack.c.l.b16 %v1278
    %v2390 = vunpack.c.h.b16 %v1278
    %v2391 = vunpack.c.l.b16 %v1279
    %v2392 = vunpack.c.h.b16 %v1279
    %v2393 = vunpack.c.l.b16 %v1280
    %v2394 = vunpack.c.h.b16 %v1280
    %v2395 = vunpack.c.l.b16 %v1281
    %v2396 = vunpack.c.h.b16 %v1281
    %v2397 = vunpack.c.l.b16 %v1282
    %v2398 = vunpack.c.h.b16 %v1282
    %v2399 = vunpack.c.l.b16 %v1283
    %v2400 = vunpack.c.h.b16 %v1283
    %v2401 = vunpack.c.l.b16 %v1284
    %v2402 = vunpack.c.h.b16 %v1284
    %v2403 = vunpack.c.l.b16 %v1285
    %v2404 = vunpack.c.h.b16 %v1285
    %v2405 = vunpack.c.l.b16 %v1286
    %v2406 = vunpack.c.h.b16 %v1286
    %v2407 = vunpack.c.l.b16 %v1287
    %v2408 = vunpack.c.h.b16 %v1287
    %v2409 = vunpack.c.l.b16 %v1288
    %v2410 = vunpack.c.h.b16 %v1288
    %v2411 = vunpack.c.l.b16 %v1289
    %v2412 = vunpack.c.h.b16 %v1289
    %v2413 = vunpack.c.l.b16 %v1290
    %v2414 = vunpack.c.h.b16 %v1290
    %v2415 = vunpack.c.l.b16 %v1291
    %v2416 = vunpack.c.h.b16 %v1291
    %v2417 = vunpack.c.l.b16 %v1292
    %v2418 = vunpack.c.h.b16 %v1292
    %v2419 = vunpack.c.l.b16 %v1293
    %v2420 = vunpack.c.h.b16 %v1293
    %v2421 = vunpack.c.l.b16 %v1294
    %v2422 = vunpack.c.h.b16 %v1294
    %v2423 = vunpack.c.l.b16 %v1295
    %v2424 = vunpack.c.h.b16 %v1295
    %v2425 = vunpack.c.l.b16 %v1296
    %v2426 = vunpack.c.h.b16 %v1296
    %v2427 = vunpack.c.l.b16 %v1297
    %v2428 = vunpack.c.h.b16 %v1297
    %v2429 = vunpack.c.l.b16 %v1298
    %v2430 = vunpack.c.h.b16 %v1298
    %v2431 = vunpack.c.l.b16 %v1299
    %v2432 = vunpack.c.h.b16 %v1299
    %v2433 = vunpack.c.l.b16 %v1300
    %v2434 = vunpack.c.h.b16 %v1300
    %v2435 = vunpack.c.l.b16 %v1301
    %v2436 = vunpack.c.h.b16 %v1301
    %v2437 = vunpack.c.l.b16 %v1302
    %v2438 = vunpack.c.h.b16 %v1302
    %v2439 = vunpack.c.l.b16 %v1303
    %v2440 = vunpack.c.h.b16 %v1303
    %v2441 = vunpack.c.l.b16 %v1304
    %v2442 = vunpack.c.h.b16 %v1304
    %v2443 = vunpack.c.l.b16 %v1305
    %v2444 = vunpack.c.h.b16 %v1305
    %v2445 = vunpack.c.l.b16 %v1306
    %v2446 = vunpack.c.h.b16 %v1306
    %v2447 = vunpack.c.l.b16 %v1307
    %v2448 = vunpack.c.h.b16 %v1307
    %v2449 = vunpack.c.l.b16 %v1308
    %v2450 = vunpack.c.h.b16 %v1308
    %v2451 = vunpack.c.l.b16 %v1309
    %v2452 = vunpack.c.h.b16 %v1309
    %v2453 = vunpack.c.l.b16 %v1310
    %v2454 = vunpack.c.h.b16 %v1310
    %v2455 = vunpack.c.l.b16 %v1311
    %v2456 = vunpack.c.h.b16 %v1311
    %v2457 = vunpack.c.l.b16 %v1312
    %v2458 = vunpack.c.h.b16 %v1312
    %v2459 = vunpack.c.l.b16 %v1313
    %v2460 = vunpack.c.h.b16 %v1313
    %v2461 = vunpack.c.l.b16 %v1314
    %v2462 = vunpack.c.h.b16 %v1314
    %v2463 = vunpack.c.l.b16 %v1315
    %v2464 = vunpack.c.h.b16 %v1315
    %v2465 = vunpack.c.l.b16 %v1316
    %v2466 = vunpack.c.h.b16 %v1316
    %v2467 = vunpack.c.l.b16 %v1317
    %v2468 = vunpack.c.h.b16 %v1317
    %v2469 = vunpack.c.l.b16 %v1318
    %v2470 = vunpack.c.h.b16 %v1318
    %v2471 = vunpack.c.l.b16 %v1319
    %v2472 = vunpack.c.h.b16 %v1319
    %v2473 = vunpack.c.l.b16 %v1320
    %v2474 = vunpack.c.h.b16 %v1320
    %v2475 = vunpack.c.l.b16 %v1321
    %v2476 = vunpack.c.h.b16 %v1321
    %v2477 = vunpack.c.l.b16 %v1322
    %v2478 = vunpack.c.h.b16 %v1322
    %v2479 = vunpack.c.l.b16 %v1323
    %v2480 = vunpack.c.h.b16 %v1323
    %v2481 = vunpack.c.l.b16 %v1324
    %v2482 = vunpack.c.h.b16 %v1324
    %v2483 = vunpack.c.l.b16 %v1325
    %v2484 = vunpack.c.h.b16 %v1325
    %v2485 = vunpack.c.l.b16 %v1326
    %v2486 = vunpack.c.h.b16 %v1326
    %v2487 = vunpack.c.l.b16 %v1327
    %v2488 = vunpack.c.h.b16 %v1327
    %v2489 = vunpack.c.l.b16 %v1328
    %v2490 = vunpack.c.h.b16 %v1328
    %v2491 = vunpack.c.l.b16 %v1329
    %v2492 = vunpack.c.h.b16 %v1329
    %v2493 = vunpack.c.l.b16 %v1330
    %v2494 = vunpack.c.h.b16 %v1330
    %v2495 = vunpack.c.l.b16 %v1331
    %v2496 = vunpack.c.h.b16 %v1331
    %v2497 = vunpack.c.l.b16 %v1332
    %v2498 = vunpack.c.h.b16 %v1332
    %v2499 = vunpack.c.l.b16 %v1333
    %v2500 = vunpack.c.h.b16 %v1333
    %v2501 = vunpack.c.l.b16 %v1334
    %v2502 = vunpack.c.h.b16 %v1334
    %v2503 = vunpack.c.l.b16 %v1335
    %v2504 = vunpack.c.h.b16 %v1335
    %v2505 = vunpack.c.l.b16 %v1336
    %v2506 = vunpack.c.h.b16 %v1336
    %v2507 = vunpack.c.l.b16 %v1337
    %v2508 = vunpack.c.h.b16 %v1337
    %v2509 = vunpack.c.l.b16 %v1338
    %v2510 = vunpack.c.h.b16 %v1338
    %v2511 = vunpack.c.l.b16 %v1339
    %v2512 = vunpack.c.h.b16 %v1339
    %v2513 = vunpack.c.l.b16 %v1340
    %v2514 = vunpack.c.h.b16 %v1340
    %v2515 = vunpack.c.l.b16 %v1341
    %v2516 = vunpack.c.h.b16 %v1341
    %v2517 = vunpack.c.l.b16 %v1342
    %v2518 = vunpack.c.h.b16 %v1342
    %v2519 = vunpack.c.l.b16 %v1343
    %v2520 = vunpack.c.h.b16 %v1343
    %v2521 = vunpack.c.l.b16 %v1344
    %v2522 = vunpack.c.h.b16 %v1344
    %v2523 = vunpack.c.l.b16 %v1345
    %v2524 = vunpack.c.h.b16 %v1345
    %v2525 = vunpack.c.l.b16 %v1346
    %v2526 = vunpack.c.h.b16 %v1346
    %v2527 = vunpack.c.l.b16 %v1347
    %v2528 = vunpack.c.h.b16 %v1347
    %v2529 = vunpack.c.l.b16 %v1348
    %v2530 = vunpack.c.h.b16 %v1348
    %v2531 = vunpack.c.l.b16 %v1349
    %v2532 = vunpack.c.h.b16 %v1349
    %v2533 = vunpack.c.l.b16 %v1350
    %v2534 = vunpack.c.h.b16 %v1350
    %v2535 = vunpack.c.l.b16 %v1351
    %v2536 = vunpack.c.h.b16 %v1351
    %v2537 = vunpack.c.l.b16 %v1352
    %v2538 = vunpack.c.h.b16 %v1352
    %v2539 = vunpack.c.l.b16 %v1353
    %v2540 = vunpack.c.h.b16 %v1353
    %v2541 = vunpack.c.l.b16 %v1354
    %v2542 = vunpack.c.h.b16 %v1354
    %v2543 = vunpack.c.l.b16 %v1355
    %v2544 = vunpack.c.h.b16 %v1355
    %v2545 = vunpack.c.l.b16 %v1356
    %v2546 = vunpack.c.h.b16 %v1356
    %v2547 = vunpack.c.l.b16 %v1357
    %v2548 = vunpack.c.h.b16 %v1357
    %v2549 = vunpack.c.l.b16 %v1358
    %v2550 = vunpack.c.h.b16 %v1358
    %v2551 = vunpack.c.l.b16 %v1359
    %v2552 = vunpack.c.h.b16 %v1359
    %v2553 = vunpack.c.l.b16 %v1360
    %v2554 = vunpack.c.h.b16 %v1360
    %v2555 = vunpack.c.l.b16 %v1361
    %v2556 = vunpack.c.h.b16 %v1361
    %v2557 = vunpack.c.l.b16 %v1362
    %v2558 = vunpack.c.h.b16 %v1362
    %v2559 = vunpack.c.l.b16 %v1363
    %v2560 = vunpack.c.h.b16 %v1363
    %v2561 = vunpack.c.l.b16 %v1364
    %v2562 = vunpack.c.h.b16 %v1364
    %v2563 = vunpack.c.l.b16 %v1365
    %v2564 = vunpack.c.h.b16 %v1365
    %v2565 = vunpack.c.l.b16 %v1366
    %v2566 = vunpack.c.h.b16 %v1366
    %v2567 = vunpack.c.l.b16 %v1367
    %v2568 = vunpack.c.h.b16 %v1367
    %v2569 = vunpack.c.l.b16 %v1368
    %v2570 = vunpack.c.h.b16 %v1368
    %v2571 = vunpack.c.l.b16 %v1369
    %v2572 = vunpack.c.h.b16 %v1369
    %v2573 = vunpack.c.l.b16 %v1370
    %v2574 = vunpack.c.h.b16 %v1370
    %v2575 = vunpack.c.l.b16 %v1371
    %v2576 = vunpack.c.h.b16 %v1371
    %v2577 = vunpack.c.l.b16 %v1372
    %v2578 = vunpack.c.h.b16 %v1372
    %v2579 = vunpack.c.l.b16 %v1373
    %v2580 = vunpack.c.h.b16 %v1373
    %v2581 = vunpack.c.l.b16 %v1374
    %v2582 = vunpack.c.h.b16 %v1374
    %v2583 = vunpack.c.l.b16 %v1375
    %v2584 = vunpack.c.h.b16 %v1375
    %v2585 = vunpack.c.l.b16 %v1376
    %v2586 = vunpack.c.h.b16 %v1376
    %v2587 = vunpack.c.l.b16 %v1377
    %v2588 = vunpack.c.h.b16 %v1377
    %v2589 = vunpack.c.l.b16 %v1378
    %v2590 = vunpack.c.h.b16 %v1378
    %v2591 = vunpack.c.l.b16 %v1379
    %v2592 = vunpack.c.h.b16 %v1379
    %v2593 = vunpack.c.l.b16 %v1380
    %v2594 = vunpack.c.h.b16 %v1380
    %v2595 = vunpack.c.l.b16 %v1381
    %v2596 = vunpack.c.h.b16 %v1381
    %v2597 = vunpack.c.l.b16 %v1382
    %v2598 = vunpack.c.h.b16 %v1382
    %v2599 = vunpack.c.l.b16 %v1383
    %v2600 = vunpack.c.h.b16 %v1383
    %v2601 = vunpack.c.l.b16 %v1384
    %v2602 = vunpack.c.h.b16 %v1384
    %v2603 = vunpack.c.l.b16 %v1385
    %v2604 = vunpack.c.h.b16 %v1385
    %v2605 = vunpack.c.l.b16 %v1386
    %v2606 = vunpack.c.h.b16 %v1386
    %v2607 = vunpack.c.l.b16 %v1387
    %v2608 = vunpack.c.h.b16 %v1387
    %v2609 = vunpack.c.l.b16 %v1388
    %v2610 = vunpack.c.h.b16 %v1388
    %v2611 = vunpack.c.l.b16 %v1389
    %v2612 = vunpack.c.h.b16 %v1389
    %v2613 = vunpack.c.l.b16 %v1390
    %v2614 = vunpack.c.h.b16 %v1390
    %v2615 = vunpack.c.l.b16 %v1391
    %v2616 = vunpack.c.h.b16 %v1391
    %v2617 = vunpack.c.l.b16 %v1392
    %v2618 = vunpack.c.h.b16 %v1392
    %v2619 = vunpack.c.l.b16 %v1393
    %v2620 = vunpack.c.h.b16 %v1393
    %v2621 = vunpack.c.l.b16 %v1394
    %v2622 = vunpack.c.h.b16 %v1394
    %v2623 = vunpack.c.l.b16 %v1395
    %v2624 = vunpack.c.h.b16 %v1395
    %v2625 = vunpack.c.l.b16 %v1396
    %v2626 = vunpack.c.h.b16 %v1396
    %v2627 = vunpack.c.l.b16 %v1397
    %v2628 = vunpack.c.h.b16 %v1397
    %v2629 = vunpack.c.l.b16 %v1398
    %v2630 = vunpack.c.h.b16 %v1398
    %v2631 = vunpack.c.l.b16 %v1399
    %v2632 = vunpack.c.h.b16 %v1399
    %v2633 = vunpack.c.l.b16 %v1400
    %v2634 = vunpack.c.h.b16 %v1400
    %v2635 = vunpack.c.l.b16 %v1401
    %v2636 = vunpack.c.h.b16 %v1401
    %v2637 = vunpack.c.l.b16 %v1402
    %v2638 = vunpack.c.h.b16 %v1402
    %v2639 = vunpack.c.l.b16 %v1403
    %v2640 = vunpack.c.h.b16 %v1403
    %v2641 = vunpack.c.l.b16 %v1404
    %v2642 = vunpack.c.h.b16 %v1404
    %v2643 = vunpack.c.l.b16 %v1405
    %v2644 = vunpack.c.h.b16 %v1405
    %v2645 = vunpack.c.l.b16 %v1406
    %v2646 = vunpack.c.h.b16 %v1406
    %v2647 = vunpack.c.l.b16 %v1407
    %v2648 = vunpack.c.h.b16 %v1407
    %v2649 = vunpack.c.l.b16 %v1408
    %v2650 = vunpack.c.h.b16 %v1408
    %v2651 = vunpack.c.l.b16 %v1409
    %v2652 = vunpack.c.h.b16 %v1409
    %v2653 = vunpack.c.l.b16 %v1410
    %v2654 = vunpack.c.h.b16 %v1410
    %v2655 = vunpack.c.l.b16 %v1411
    %v2656 = vunpack.c.h.b16 %v1411
    %v2657 = vunpack.c.l.b16 %v1412
    %v2658 = vunpack.c.h.b16 %v1412
    %v2659 = vunpack.c.l.b16 %v1413
    %v2660 = vunpack.c.h.b16 %v1413
    %v2661 = vunpack.c.l.b16 %v1414
    %v2662 = vunpack.c.h.b16 %v1414
    %v2663 = vunpack.c.l.b16 %v1415
    %v2664 = vunpack.c.h.b16 %v1415
    %v2665 = vunpack.c.l.b16 %v1416
    %v2666 = vunpack.c.h.b16 %v1416
    %v2667 = vunpack.c.l.b16 %v1417
    %v2668 = vunpack.c.h.b16 %v1417
    %v2669 = vunpack.c.l.b16 %v1418
    %v2670 = vunpack.c.h.b16 %v1418
    %v2671 = vunpack.c.l.b16 %v1419
    %v2672 = vunpack.c.h.b16 %v1419
    %v2673 = vunpack.c.l.b16 %v1420
    %v2674 = vunpack.c.h.b16 %v1420
    %v2675 = vunpack.c.l.b16 %v1421
    %v2676 = vunpack.c.h.b16 %v1421
    %v2677 = vunpack.c.l.b16 %v1422
    %v2678 = vunpack.c.h.b16 %v1422
    %v2679 = vunpack.c.l.b16 %v1423
    %v2680 = vunpack.c.h.b16 %v1423
    %v2681 = vunpack.c.l.b16 %v1424
    %v2682 = vunpack.c.h.b16 %v1424
    %v2683 = vunpack.c.l.b16 %v1425
    %v2684 = vunpack.c.h.b16 %v1425
    %v2685 = vunpack.c.l.b16 %v1426
    %v2686 = vunpack.c.h.b16 %v1426
    %v2687 = vunpack.c.l.b16 %v1427
    %v2688 = vunpack.c.h.b16 %v1427
    %v2689 = vunpack.c.l.b16 %v1428
    %v2690 = vunpack.c.h.b16 %v1428
    %v2691 = vunpack.c.l.b16 %v1429
    %v2692 = vunpack.c.h.b16 %v1429
    %v2693 = vunpack.c.l.b16 %v1430
    %v2694 = vunpack.c.h.b16 %v1430
    %v2695 = vunpack.c.l.b16 %v1431
    %v2696 = vunpack.c.h.b16 %v1431
    %v2697 = vunpack.c.l.b16 %v1432
    %v2698 = vunpack.c.h.b16 %v1432
    %v2699 = vunpack.c.l.b16 %v1433
    %v2700 = vunpack.c.h.b16 %v1433
    %v2701 = vunpack.c.l.b16 %v1434
    %v2702 = vunpack.c.h.b16 %v1434
    %v2703 = vunpack.c.l.b16 %v1435
    %v2704 = vunpack.c.h.b16 %v1435
    %v2705 = vunpack.c.l.b16 %v1436
    %v2706 = vunpack.c.h.b16 %v1436
    %v2707 = vunpack.c.l.b16 %v1437
    %v2708 = vunpack.c.h.b16 %v1437
    %v2709 = vunpack.c.l.b16 %v1438
    %v2710 = vunpack.c.h.b16 %v1438
    %v2711 = vunpack.c.l.b16 %v1439
    %v2712 = vunpack.c.h.b16 %v1439
    %v2713 = vunpack.c.l.b16 %v1440
    %v2714 = vunpack.c.h.b16 %v1440
    %v2715 = vunpack.c.l.b16 %v1441
    %v2716 = vunpack.c.h.b16 %v1441
    %v2717 = vunpack.c.l.b16 %v1442
    %v2718 = vunpack.c.h.b16 %v1442
    %v2719 = vunpack.c.l.b16 %v1443
    %v2720 = vunpack.c.h.b16 %v1443
    %v2721 = vunpack.c.l.b16 %v1444
    %v2722 = vunpack.c.h.b16 %v1444
    %v2723 = vunpack.c.l.b16 %v1445
    %v2724 = vunpack.c.h.b16 %v1445
    %v2725 = vunpack.c.l.b16 %v1446
    %v2726 = vunpack.c.h.b16 %v1446
    %v2727 = vunpack.c.l.b16 %v1447
    %v2728 = vunpack.c.h.b16 %v1447
    %v2729 = vunpack.c.l.b16 %v1448
    %v2730 = vunpack.c.h.b16 %v1448
    %v2731 = vunpack.c.l.b16 %v1449
    %v2732 = vunpack.c.h.b16 %v1449
    %v2733 = vunpack.c.l.b16 %v1450
    %v2734 = vunpack.c.h.b16 %v1450
    %v2735 = vunpack.c.l.b16 %v1451
    %v2736 = vunpack.c.h.b16 %v1451
    %v2737 = vunpack.c.l.b16 %v1452
    %v2738 = vunpack.c.h.b16 %v1452
    %v2739 = vunpack.c.l.b16 %v1453
    %v2740 = vunpack.c.h.b16 %v1453
    %v2741 = vunpack.c.l.b16 %v1454
    %v2742 = vunpack.c.h.b16 %v1454
    %v2743 = vunpack.c.l.b16 %v1455
    %v2744 = vunpack.c.h.b16 %v1455
    %v2745 = vunpack.c.l.b16 %v1456
    %v2746 = vunpack.c.h.b16 %v1456
    %v2747 = vunpack.c.l.b16 %v1457
    %v2748 = vunpack.c.h.b16 %v1457
    %v2749 = vunpack.c.l.b16 %v1458
    %v2750 = vunpack.c.h.b16 %v1458
    %v2751 = vunpack.c.l.b16 %v1459
    %v2752 = vunpack.c.h.b16 %v1459
    %v2753 = vunpack.c.l.b16 %v1460
    %v2754 = vunpack.c.h.b16 %v1460
    %v2755 = vunpack.c.l.b16 %v1461
    %v2756 = vunpack.c.h.b16 %v1461
    %v2757 = vunpack.c.l.b16 %v1462
    %v2758 = vunpack.c.h.b16 %v1462
    %v2759 = vunpack.c.l.b16 %v1463
    %v2760 = vunpack.c.h.b16 %v1463
    %v2761 = vunpack.c.l.b16 %v1464
    %v2762 = vunpack.c.h.b16 %v1464
    %v2763 = vunpack.c.l.b16 %v1465
    %v2764 = vunpack.c.h.b16 %v1465
    %v2765 = vunpack.c.l.b16 %v1466
    %v2766 = vunpack.c.h.b16 %v1466
    %v2767 = vunpack.c.l.b16 %v1467
    %v2768 = vunpack.c.h.b16 %v1467
    %v2769 = vunpack.c.l.b16 %v1468
    %v2770 = vunpack.c.h.b16 %v1468
    %v2771 = vunpack.c.l.b16 %v1469
    %v2772 = vunpack.c.h.b16 %v1469
    %v2773 = vunpack.c.l.b16 %v1470
    %v2774 = vunpack.c.h.b16 %v1470
    %v2775 = vunpack.c.l.b16 %v1471
    %v2776 = vunpack.c.h.b16 %v1471
    %v2777 = vunpack.c.l.b16 %v1472
    %v2778 = vunpack.c.h.b16 %v1472
    %v2779 = vunpack.c.l.b16 %v1473
    %v2780 = vunpack.c.h.b16 %v1473
    %v2781 = vunpack.c.l.b16 %v1474
    %v2782 = vunpack.c.h.b16 %v1474
    %v2783 = vunpack.c.l.b16 %v1475
    %v2784 = vunpack.c.h.b16 %v1475
    %v2785 = vunpack.c.l.b16 %v1476
    %v2786 = vunpack.c.h.b16 %v1476
    %v2787 = vunpack.c.l.b16 %v1477
    %v2788 = vunpack.c.h.b16 %v1477
    %v2789 = vunpack.c.l.b16 %v1478
    %v2790 = vunpack.c.h.b16 %v1478
    %v2791 = vunpack.c.l.b16 %v1479
    %v2792 = vunpack.c.h.b16 %v1479
    %v2793 = vunpack.c.l.b16 %v1480
    %v2794 = vunpack.c.h.b16 %v1480
    %v2795 = vunpack.c.l.b16 %v1481
    %v2796 = vunpack.c.h.b16 %v1481
    %v2797 = vunpack.c.l.b16 %v1482
    %v2798 = vunpack.c.h.b16 %v1482
    %v2799 = vunpack.c.l.b16 %v1483
    %v2800 = vunpack.c.h.b16 %v1483
    %v2801 = vunpack.c.l.b16 %v1484
    %v2802 = vunpack.c.h.b16 %v1484
    %v2803 = vunpack.c.l.b16 %v1485
    %v2804 = vunpack.c.h.b16 %v1485
    %v2805 = vunpack.c.l.b16 %v1486
    %v2806 = vunpack.c.h.b16 %v1486
    %v2807 = vunpack.c.l.b16 %v1487
    %v2808 = vunpack.c.h.b16 %v1487
    %v2809 = vunpack.c.l.b16 %v1488
    %v2810 = vunpack.c.h.b16 %v1488
    %v2811 = vunpack.c.l.b16 %v1489
    %v2812 = vunpack.c.h.b16 %v1489
    %v2813 = vunpack.c.l.b16 %v1490
    %v2814 = vunpack.c.h.b16 %v1490
    %v2815 = vunpack.c.l.b16 %v1491
    %v2816 = vunpack.c.h.b16 %v1491
    %v2817 = vunpack.c.l.b16 %v1492
    %v2818 = vunpack.c.h.b16 %v1492
    %v2819 = vunpack.c.l.b16 %v1493
    %v2820 = vunpack.c.h.b16 %v1493
    %v2821 = vunpack.c.l.b16 %v1494
    %v2822 = vunpack.c.h.b16 %v1494
    %v2823 = vunpack.c.l.b16 %v1495
    %v2824 = vunpack.c.h.b16 %v1495
    %v2825 = vunpack.c.l.b16 %v1496
    %v2826 = vunpack.c.h.b16 %v1496
    %v2827 = vunpack.c.l.b16 %v1497
    %v2828 = vunpack.c.h.b16 %v1497
    %v2829 = vunpack.c.l.b16 %v1498
    %v2830 = vunpack.c.h.b16 %v1498
    %v2831 = vunpack.c.l.b16 %v1499
    %v2832 = vunpack.c.h.b16 %v1499
    %v2833 = vunpack.c.l.b16 %v1500
    %v2834 = vunpack.c.h.b16 %v1500
    %v2835 = vunpack.c.l.b16 %v1501
    %v2836 = vunpack.c.h.b16 %v1501
    %v2837 = vunpack.c.l.b16 %v1502
    %v2838 = vunpack.c.h.b16 %v1502
    %v2839 = vunpack.c.l.b16 %v1503
    %v2840 = vunpack.c.h.b16 %v1503
    %v2841 = vunpack.c.l.b16 %v1504
    %v2842 = vunpack.c.h.b16 %v1504
    %v2843 = vunpack.c.l.b16 %v1505
    %v2844 = vunpack.c.h.b16 %v1505
    %v2845 = vunpack.c.l.b16 %v1506
    %v2846 = vunpack.c.h.b16 %v1506
    %v2847 = vunpack.c.l.b16 %v1507
    %v2848 = vunpack.c.h.b16 %v1507
    %v2849 = vunpack.c.l.b16 %v1508
    %v2850 = vunpack.c.h.b16 %v1508
    %v2851 = vunpack.c.l.b16 %v1509
    %v2852 = vunpack.c.h.b16 %v1509
    %v2853 = vunpack.c.l.b16 %v1510
    %v2854 = vunpack.c.h.b16 %v1510
    %v2855 = vunpack.c.l.b16 %v1511
    %v2856 = vunpack.c.h.b16 %v1511
    %v2857 = vunpack.c.l.b16 %v1512
    %v2858 = vunpack.c.h.b16 %v1512
    %v2859 = vunpack.c.l.b16 %v1513
    %v2860 = vunpack.c.h.b16 %v1513
    %v2861 = vunpack.c.l.b16 %v1514
    %v2862 = vunpack.c.h.b16 %v1514
    %v2863 = vunpack.c.l.b16 %v1515
    %v2864 = vunpack.c.h.b16 %v1515
    %v2865 = vunpack.c.l.b16 %v1516
    %v2866 = vunpack.c.h.b16 %v1516
    %v2867 = vunpack.c.l.b16 %v1517
    %v2868 = vunpack.c.h.b16 %v1517
    %v2869 = vunpack.c.l.b16 %v1518
    %v2870 = vunpack.c.h.b16 %v1518
    %v2871 = vunpack.c.l.b16 %v1519
    %v2872 = vunpack.c.h.b16 %v1519
    %v2873 = vunpack.c.l.b16 %v1520
    %v2874 = vunpack.c.h.b16 %v1520
    %v2875 = vunpack.c.l.b16 %v1521
    %v2876 = vunpack.c.h.b16 %v1521
    %v2877 = vunpack.c.l.b16 %v1522
    %v2878 = vunpack.c.h.b16 %v1522
    %v2879 = vunpack.c.l.b16 %v1523
    %v2880 = vunpack.c.h.b16 %v1523
    %v2881 = vunpack.c.l.b16 %v1524
    %v2882 = vunpack.c.h.b16 %v1524
    %v2883 = vunpack.c.l.b16 %v1525
    %v2884 = vunpack.c.h.b16 %v1525
    %v2885 = vunpack.c.l.b16 %v1526
    %v2886 = vunpack.c.h.b16 %v1526
    %v2887 = vunpack.c.l.b16 %v1527
    %v2888 = vunpack.c.h.b16 %v1527
    %v2889 = vunpack.c.l.b16 %v1528
    %v2890 = vunpack.c.h.b16 %v1528
    %v2891 = vunpack.c.l.b16 %v1529
    %v2892 = vunpack.c.h.b16 %v1529
    %v2893 = vunpack.c.l.b16 %v1530
    %v2894 = vunpack.c.h.b16 %v1530
    %v2895 = vunpack.c.l.b16 %v1531
    %v2896 = vunpack.c.h.b16 %v1531
    %v2897 = vunpack.c.l.b16 %v1532
    %v2898 = vunpack.c.h.b16 %v1532
    %v2899 = vunpack.c.l.b16 %v1533
    %v2900 = vunpack.c.h.b16 %v1533
    %v2901 = vunpack.c.l.b16 %v1534
    %v2902 = vunpack.c.h.b16 %v1534
    %v2903 = vunpack.c.l.b16 %v1535
    %v2904 = vunpack.c.h.b16 %v1535
    %v2905 = vunpack.c.l.b16 %v1536
    %v2906 = vunpack.c.h.b16 %v1536
    %v2907 = vunpack.c.l.b16 %v1537
    %v2908 = vunpack.c.h.b16 %v1537
    %v2909 = vunpack.c.l.b16 %v1538
    %v2910 = vunpack.c.h.b16 %v1538
    %v2911 = vunpack.c.l.b16 %v1539
    %v2912 = vunpack.c.h.b16 %v1539
    %v2913 = vunpack.c.l.b16 %v1540
    %v2914 = vunpack.c.h.b16 %v1540
    %v2915 = vunpack.c.l.b16 %v1541
    %v2916 = vunpack.c.h.b16 %v1541
    %v2917 = vunpack.c.l.b16 %v1542
    %v2918 = vunpack.c.h.b16 %v1542
    %v2919 = vunpack.c.l.b16 %v1543
    %v2920 = vunpack.c.h.b16 %v1543
    %v2921 = vunpack.c.l.b16 %v1544
    %v2922 = vunpack.c.h.b16 %v1544
    %v2923 = vunpack.c.l.b16 %v1545
    %v2924 = vunpack.c.h.b16 %v1545
    %v2925 = vunpack.c.l.b16 %v1546
    %v2926 = vunpack.c.h.b16 %v1546
    %v2927 = vunpack.c.l.b16 %v1547
    %v2928 = vunpack.c.h.b16 %v1547
    %v2929 = vunpack.c.l.b16 %v1548
    %v2930 = vunpack.c.h.b16 %v1548
    %v2931 = vunpack.c.l.b16 %v1549
    %v2932 = vunpack.c.h.b16 %v1549
    %v2933 = vunpack.c.l.b16 %v1550
    %v2934 = vunpack.c.h.b16 %v1550
    %v2935 = vunpack.c.l.b16 %v1551
    %v2936 = vunpack.c.h.b16 %v1551
    %v2937 = vunpack.c.l.b16 %v1552
    %v2938 = vunpack.c.h.b16 %v1552
    %v2939 = vunpack.c.l.b16 %v1553
    %v2940 = vunpack.c.h.b16 %v1553
    %v2941 = vunpack.c.l.b16 %v1554
    %v2942 = vunpack.c.h.b16 %v1554
    %v2943 = vunpack.c.l.b16 %v1555
    %v2944 = vunpack.c.h.b16 %v1555
    %v2945 = vunpack.c.l.b16 %v1556
    %v2946 = vunpack.c.h.b16 %v1556
    %v2947 = vunpack.c.l.b16 %v1557
    %v2948 = vunpack.c.h.b16 %v1557
    %v2949 = vunpack.c.l.b16 %v1558
    %v2950 = vunpack.c.h.b16 %v1558
    %v2951 = vunpack.c.l.b16 %v1559
    %v2952 = vunpack.c.h.b16 %v1559
    %v2953 = vunpack.c.l.b16 %v1560
    %v2954 = vunpack.c.h.b16 %v1560
    %v2955 = vunpack.c.l.b16 %v1561
    %v2956 = vunpack.c.h.b16 %v1561
    %v2957 = vunpack.c.l.b16 %v1562
    %v2958 = vunpack.c.h.b16 %v1562
    %v2959 = vunpack.c.l.b16 %v1563
    %v2960 = vunpack.c.h.b16 %v1563
    %v2961 = vunpack.c.l.b16 %v1564
    %v2962 = vunpack.c.h.b16 %v1564
    %v2963 = vunpack.c.l.b16 %v1565
    %v2964 = vunpack.c.h.b16 %v1565
    %v2965 = vunpack.c.l.b16 %v1566
    %v2966 = vunpack.c.h.b16 %v1566
    %v2967 = vunpack.c.l.b16 %v1567
    %v2968 = vunpack.c.h.b16 %v1567
    %v2969 = vunpack.c.l.b16 %v1568
    %v2970 = vunpack.c.h.b16 %v1568
    %v2971 = vunpack.c.l.b16 %v1569
    %v2972 = vunpack.c.h.b16 %v1569
    %v2973 = vunpack.c.l.b16 %v1570
    %v2974 = vunpack.c.h.b16 %v1570
    %v2975 = vunpack.c.l.b16 %v1571
    %v2976 = vunpack.c.h.b16 %v1571
    %v2977 = vunpack.c.l.b16 %v1572
    %v2978 = vunpack.c.h.b16 %v1572
    %v2979 = vunpack.c.l.b16 %v1573
    %v2980 = vunpack.c.h.b16 %v1573
    %v2981 = vunpack.c.l.b16 %v1574
    %v2982 = vunpack.c.h.b16 %v1574
    %v2983 = vunpack.c.l.b16 %v1575
    %v2984 = vunpack.c.h.b16 %v1575
    %v2985 = vunpack.c.l.b16 %v1576
    %v2986 = vunpack.c.h.b16 %v1576
    %v2987 = vunpack.c.l.b16 %v1577
    %v2988 = vunpack.c.h.b16 %v1577
    %v2989 = vunpack.c.l.b16 %v1578
    %v2990 = vunpack.c.h.b16 %v1578
    %v2991 = vunpack.c.l.b16 %v1579
    %v2992 = vunpack.c.h.b16 %v1579
    %v2993 = vunpack.c.l.b16 %v1580
    %v2994 = vunpack.c.h.b16 %v1580
    %v2995 = vunpack.c.l.b16 %v1581
    %v2996 = vunpack.c.h.b16 %v1581
    %v2997 = vunpack.c.l.b16 %v1582
    %v2998 = vunpack.c.h.b16 %v1582
    %v2999 = vunpack.c.l.b16 %v1583
    %v3000 = vunpack.c.h.b16 %v1583
    %v3001 = vunpack.c.l.b16 %v1584
    %v3002 = vunpack.c.h.b16 %v1584
    %v3003 = vunpack.c.l.b16 %v1585
    %v3004 = vunpack.c.h.b16 %v1585
    %v3005 = vunpack.c.l.b16 %v1586
    %v3006 = vunpack.c.h.b16 %v1586
    %v3007 = vunpack.c.l.b16 %v1587
    %v3008 = vunpack.c.h.b16 %v1587
    %v3009 = vunpack.c.l.b16 %v1588
    %v3010 = vunpack.c.h.b16 %v1588
    %v3011 = vunpack.c.l.b16 %v1589
    %v3012 = vunpack.c.h.b16 %v1589
    %v3013 = vunpack.c.l.b16 %v1590
    %v3014 = vunpack.c.h.b16 %v1590
    %v3015 = vunpack.c.l.b16 %v1591
    %v3016 = vunpack.c.h.b16 %v1591
    %v3017 = vunpack.c.l.b16 %v1592
    %v3018 = vunpack.c.h.b16 %v1592
    %v3019 = vunpack.c.l.b16 %v1593
    %v3020 = vunpack.c.h.b16 %v1593
    %v3021 = vunpack.c.l.b16 %v1594
    %v3022 = vunpack.c.h.b16 %v1594
    %v3023 = vunpack.c.l.b16 %v1595
    %v3024 = vunpack.c.h.b16 %v1595
    %v3025 = vunpack.c.l.b16 %v1596
    %v3026 = vunpack.c.h.b16 %v1596
    %v3027 = vunpack.c.l.b16 %v1597
    %v3028 = vunpack.c.h.b16 %v1597
    %v3029 = vunpack.c.l.b16 %v1598
    %v3030 = vunpack.c.h.b16 %v1598
    %v3031 = vunpack.c.l.b16 %v1599
    %v3032 = vunpack.c.h.b16 %v1599
    %v3033 = vunpack.c.l.b16 %v1600
    %v3034 = vunpack.c.h.b16 %v1600
    %v3035 = vunpack.c.l.b16 %v1601
    %v3036 = vunpack.c.h.b16 %v1601
    %v3037 = vunpack.c.l.b16 %v1602
    %v3038 = vunpack.c.h.b16 %v1602
    %v3039 = vunpack.c.l.b16 %v1603
    %v3040 = vunpack.c.h.b16 %v1603
    %v3041 = vunpack.c.l.b16 %v1604
    %v3042 = vunpack.c.h.b16 %v1604
    %v3043 = vunpack.c.l.b16 %v1605
    %v3044 = vunpack.c.h.b16 %v1605
    %v3045 = vunpack.c.l.b16 %v1606
    %v3046 = vunpack.c.h.b16 %v1606
    %v3047 = vunpack.c.l.b16 %v1607
    %v3048 = vunpack.c.h.b16 %v1607
    %v3049 = vunpack.c.l.b16 %v1608
    %v3050 = vunpack.c.h.b16 %v1608
    %v3051 = vunpack.c.l.b16 %v1609
    %v3052 = vunpack.c.h.b16 %v1609
    %v3053 = vunpack.c.l.b16 %v1610
    %v3054 = vunpack.c.h.b16 %v1610
    %v3055 = vunpack.c.l.b16 %v1611
    %v3056 = vunpack.c.h.b16 %v1611
    %v3057 = vunpack.c.l.b16 %v1612
    %v3058 = vunpack.c.h.b16 %v1612
    %v3059 = vunpack.c.l.b16 %v1613
    %v3060 = vunpack.c.h.b16 %v1613
    %v3061 = vunpack.c.l.b16 %v1614
    %v3062 = vunpack.c.h.b16 %v1614
    %v3063 = vunpack.c.l.b16 %v1615
    %v3064 = vunpack.c.h.b16 %v1615
    %v3065 = vunpack.c.l.b16 %v1616
    %v3066 = vunpack.c.h.b16 %v1616
    %v3067 = vunpack.c.l.b16 %v1617
    %v3068 = vunpack.c.h.b16 %v1617
    %v3069 = vunpack.c.l.b16 %v1618
    %v3070 = vunpack.c.h.b16 %v1618
    %v3071 = vunpack.c.l.b16 %v1619
    %v3072 = vunpack.c.h.b16 %v1619
    %v3073 = vunpack.c.l.b16 %v1620
    %v3074 = vunpack.c.h.b16 %v1620
    %v3075 = vunpack.c.l.b16 %v1621
    %v3076 = vunpack.c.h.b16 %v1621
    %v3077 = vunpack.c.l.b16 %v1622
    %v3078 = vunpack.c.h.b16 %v1622
    %v3079 = vunpack.c.l.b16 %v1623
    %v3080 = vunpack.c.h.b16 %v1623
    %v3081 = vunpack.c.l.b16 %v1624
    %v3082 = vunpack.c.h.b16 %v1624
    %v3083 = vunpack.c.l.b16 %v1625
    %v3084 = vunpack.c.h.b16 %v1625
    %v3085 = vunpack.c.l.b16 %v1626
    %v3086 = vunpack.c.h.b16 %v1626
    %v3087 = vunpack.c.l.b16 %v1627
    %v3088 = vunpack.c.h.b16 %v1627
    %v3089 = vunpack.c.l.b16 %v1628
    %v3090 = vunpack.c.h.b16 %v1628
    %v3091 = vunpack.c.l.b16 %v1629
    %v3092 = vunpack.c.h.b16 %v1629
    %v3093 = vunpack.c.l.b16 %v1630
    %v3094 = vunpack.c.h.b16 %v1630
    %v3095 = vunpack.c.l.b16 %v1631
    %v3096 = vunpack.c.h.b16 %v1631
    %v3097 = vunpack.c.l.b16 %v1632
    %v3098 = vunpack.c.h.b16 %v1632
    %v3099 = vunpack.c.l.b16 %v1633
    %v3100 = vunpack.c.h.b16 %v1633
    %v3101 = vunpack.c.l.b16 %v1634
    %v3102 = vunpack.c.h.b16 %v1634
    %v3103 = vunpack.c.l.b16 %v1635
    %v3104 = vunpack.c.h.b16 %v1635
    %v3105 = vunpack.c.l.b16 %v1636
    %v3106 = vunpack.c.h.b16 %v1636
    %v3107 = vunpack.c.l.b16 %v1637
    %v3108 = vunpack.c.h.b16 %v1637
    %v3109 = vunpack.c.l.b16 %v1638
    %v3110 = vunpack.c.h.b16 %v1638
    %v3111 = vunpack.c.l.b16 %v1639
    %v3112 = vunpack.c.h.b16 %v1639
    %v3113 = vunpack.c.l.b16 %v1640
    %v3114 = vunpack.c.h.b16 %v1640
    %v3115 = vunpack.c.l.b16 %v1641
    %v3116 = vunpack.c.h.b16 %v1641
    %v3117 = vunpack.c.l.b16 %v1642
    %v3118 = vunpack.c.h.b16 %v1642
    %v3119 = vunpack.c.l.b16 %v1643
    %v3120 = vunpack.c.h.b16 %v1643
    %v3121 = vunpack.c.l.b16 %v1644
    %v3122 = vunpack.c.h.b16 %v1644
    %v3123 = vunpack.c.l.b16 %v1645
    %v3124 = vunpack.c.h.b16 %v1645
    %v3125 = vunpack.c.l.b16 %v1646
    %v3126 = vunpack.c.h.b16 %v1646
    %v3127 = vunpack.c.l.b16 %v1647
    %v3128 = vunpack.c.h.b16 %v1647
    %v3129 = vunpack.c.l.b16 %v1648
    %v3130 = vunpack.c.h.b16 %v1648
    %v3131 = vunpack.c.l.b16 %v1649
    %v3132 = vunpack.c.h.b16 %v1649
    %v3133 = vunpack.c.l.b16 %v1650
    %v3134 = vunpack.c.h.b16 %v1650
    %v3135 = vunpack.c.l.b16 %v1651
    %v3136 = vunpack.c.h.b16 %v1651
    %v3137 = vunpack.c.l.b16 %v1652
    %v3138 = vunpack.c.h.b16 %v1652
    %v3139 = vunpack.c.l.b16 %v1653
    %v3140 = vunpack.c.h.b16 %v1653
    %v3141 = vunpack.c.l.b16 %v1654
    %v3142 = vunpack.c.h.b16 %v1654
    %v3143 = vunpack.c.l.b16 %v1655
    %v3144 = vunpack.c.h.b16 %v1655
    %v3145 = vunpack.c.l.b16 %v1656
    %v3146 = vunpack.c.h.b16 %v1656
    %v3147 = vunpack.c.l.b16 %v1657
    %v3148 = vunpack.c.h.b16 %v1657
    %v3149 = vunpack.c.l.b16 %v1658
    %v3150 = vunpack.c.h.b16 %v1658
    %v3151 = vunpack.c.l.b16 %v1659
    %v3152 = vunpack.c.h.b16 %v1659
    %v3153 = vunpack.c.l.b16 %v1660
    %v3154 = vunpack.c.h.b16 %v1660
    %v3155 = vunpack.c.l.b16 %v1661
    %v3156 = vunpack.c.h.b16 %v1661
    %v3157 = vunpack.c.l.b16 %v1662
    %v3158 = vunpack.c.h.b16 %v1662
    %v3159 = vunpack.c.l.b16 %v1663
    %v3160 = vunpack.c.h.b16 %v1663
    %v3161 = vunpack.c.l.b16 %v1664
    %v3162 = vunpack.c.h.b16 %v1664
    %v3163 = vunpack.c.l.b16 %v1665
    %v3164 = vunpack.c.h.b16 %v1665
    %v3165 = vunpack.c.l.b16 %v1666
    %v3166 = vunpack.c.h.b16 %v1666
    %v3167 = vunpack.c.l.b16 %v1667
    %v3168 = vunpack.c.h.b16 %v1667
    %v3169 = vunpack.c.l.b16 %v1668
    %v3170 = vunpack.c.h.b16 %v1668
    %v3171 = vunpack.c.l.b16 %v1669
    %v3172 = vunpack.c.h.b16 %v1669
    %v3173 = vunpack.c.l.b16 %v1670
    %v3174 = vunpack.c.h.b16 %v1670
    %v3175 = vunpack.c.l.b16 %v1671
    %v3176 = vunpack.c.h.b16 %v1671
    %v3177 = vunpack.c.l.b16 %v1672
    %v3178 = vunpack.c.h.b16 %v1672
    %v3179 = vunpack.c.l.b16 %v1673
    %v3180 = vunpack.c.h.b16 %v1673
    %v3181 = vunpack.c.l.b16 %v1674
    %v3182 = vunpack.c.h.b16 %v1674
    %v3183 = vunpack.c.l.b16 %v1675
    %v3184 = vunpack.c.h.b16 %v1675
    %v3185 = vunpack.c.l.b16 %v1676
    %v3186 = vunpack.c.h.b16 %v1676
    %v3187 = vunpack.c.l.b16 %v1677
    %v3188 = vunpack.c.h.b16 %v1677
    %v3189 = vunpack.c.l.b16 %v1678
    %v3190 = vunpack.c.h.b16 %v1678
    %v3191 = vunpack.c.l.b16 %v1679
    %v3192 = vunpack.c.h.b16 %v1679
    %v3193 = vunpack.c.l.b16 %v1680
    %v3194 = vunpack.c.h.b16 %v1680
    %v3195 = vunpack.c.l.b16 %v1681
    %v3196 = vunpack.c.h.b16 %v1681
    %v3197 = vunpack.c.l.b16 %v1682
    %v3198 = vunpack.c.h.b16 %v1682
    %v3199 = vunpack.c.l.b16 %v1683
    %v3200 = vunpack.c.h.b16 %v1683
    %v3201 = vunpack.c.l.b16 %v1684
    %v3202 = vunpack.c.h.b16 %v1684
    %v3203 = vunpack.c.l.b16 %v1685
    %v3204 = vunpack.c.h.b16 %v1685
    %v3205 = vunpack.c.l.b16 %v1686
    %v3206 = vunpack.c.h.b16 %v1686
    %v3207 = vunpack.c.l.b16 %v1687
    %v3208 = vunpack.c.h.b16 %v1687
    %v3209 = vunpack.c.l.b16 %v1688
    %v3210 = vunpack.c.h.b16 %v1688
    %v3211 = vunpack.c.l.b16 %v1689
    %v3212 = vunpack.c.h.b16 %v1689
    %v3213 = vunpack.c.l.b16 %v1690
    %v3214 = vunpack.c.h.b16 %v1690
    %v3215 = vunpack.c.l.b16 %v1691
    %v3216 = vunpack.c.h.b16 %v1691
    %v3217 = vunpack.c.l.b16 %v1692
    %v3218 = vunpack.c.h.b16 %v1692
    %v3219 = vunpack.c.l.b16 %v1693
    %v3220 = vunpack.c.h.b16 %v1693
    %v3221 = vunpack.c.l.b16 %v1694
    %v3222 = vunpack.c.h.b16 %v1694
    %v3223 = vunpack.c.l.b16 %v1695
    %v3224 = vunpack.c.h.b16 %v1695
    %v3225 = vunpack.c.l.b16 %v1696
    %v3226 = vunpack.c.h.b16 %v1696
    %v3227 = vunpack.c.l.b16 %v1697
    %v3228 = vunpack.c.h.b16 %v1697
    %v3229 = vunpack.c.l.b16 %v1698
    %v3230 = vunpack.c.h.b16 %v1698
    %v3231 = vunpack.c.l.b16 %v1699
    %v3232 = vunpack.c.h.b16 %v1699
    %v3233 = vunpack.c.l.b16 %v1700
    %v3234 = vunpack.c.h.b16 %v1700
    %v3235 = vunpack.c.l.b16 %v1701
    %v3236 = vunpack.c.h.b16 %v1701
    %v3237 = vunpack.c.l.b16 %v1702
    %v3238 = vunpack.c.h.b16 %v1702
    %v3239 = vpack.c.b16 %v2219, %v2215
    %v3240 = vpack.c.b16 %v2220, %v2216
    %v3241 = vpack.c.b16 %v2221, %v2217
    %v3242 = vpack.c.b16 %v2222, %v2218
    %v3243 = vpack.c.b16 %v2227, %v2223
    %v3244 = vpack.c.b16 %v2228, %v2224
    %v3245 = vpack.c.b16 %v2229, %v2225
    %v3246 = vpack.c.b16 %v2230, %v2226
    %v3247 = vpack.c.b16 %v2235, %v2231
    %v3248 = vpack.c.b16 %v2236, %v2232
    %v3249 = vpack.c.b16 %v2237, %v2233
    %v3250 = vpack.c.b16 %v2238, %v2234
    %v3251 = vpack.c.b16 %v2243, %v2239
    %v3252 = vpack.c.b16 %v2244, %v2240
    %v3253 = vpack.c.b16 %v2245, %v2241
    %v3254 = vpack.c.b16 %v2246, %v2242
    %v3255 = vpack.c.b16 %v2251, %v2247
    %v3256 = vpack.c.b16 %v2252, %v2248
    %v3257 = vpack.c.b16 %v2253, %v2249
    %v3258 = vpack.c.b16 %v2254, %v2250
    %v3259 = vpack.c.b16 %v2259, %v2255
    %v3260 = vpack.c.b16 %v2260, %v2256
    %v3261 = vpack.c.b16 %v2261, %v2257
    %v3262 = vpack.c.b16 %v2262, %v2258
    %v3263 = vpack.c.b16 %v2267, %v2263
    %v3264 = vpack.c.b16 %v2268, %v2264
    %v3265 = vpack.c.b16 %v2269, %v2265
    %v3266 = vpack.c.b16 %v2270, %v2266
    %v3267 = vpack.c.b16 %v2275, %v2271
    %v3268 = vpack.c.b16 %v2276, %v2272
    %v3269 = vpack.c.b16 %v2277, %v2273
    %v3270 = vpack.c.b16 %v2278, %v2274
    %v3271 = vpack.c.b16 %v2283, %v2279
    %v3272 = vpack.c.b16 %v2284, %v2280
    %v3273 = vpack.c.b16 %v2285, %v2281
    %v3274 = vpack.c.b16 %v2286, %v2282
    %v3275 = vpack.c.b16 %v2291, %v2287
    %v3276 = vpack.c.b16 %v2292, %v2288
    %v3277 = vpack.c.b16 %v2293, %v2289
    %v3278 = vpack.c.b16 %v2294, %v2290
    %v3279 = vpack.c.b16 %v2299, %v2295
    %v3280 = vpack.c.b16 %v2300, %v2296
    %v3281 = vpack.c.b16 %v2301, %v2297
    %v3282 = vpack.c.b16 %v2302, %v2298
    %v3283 = vpack.c.b16 %v2307, %v2303
    %v3284 = vpack.c.b16 %v2308, %v2304
    %v3285 = vpack.c.b16 %v2309, %v2305
    %v3286 = vpack.c.b16 %v2310, %v2306
    %v3287 = vpack.c.b16 %v2315, %v2311
    %v3288 = vpack.c.b16 %v2316, %v2312
    %v3289 = vpack.c.b16 %v2317, %v2313
    %v3290 = vpack.c.b16 %v2318, %v2314
    %v3291 = vpack.c.b16 %v2323, %v2319
    %v3292 = vpack.c.b16 %v2324, %v2320
    %v3293 = vpack.c.b16 %v2325, %v2321
    %v3294 = vpack.c.b16 %v2326, %v2322
    %v3295 = vpack.c.b16 %v2331, %v2327
    %v3296 = vpack.c.b16 %v2332, %v2328
    %v3297 = vpack.c.b16 %v2333, %v2329
    %v3298 = vpack.c.b16 %v2334, %v2330
    %v3299 = vpack.c.b16 %v2339, %v2335
    %v3300 = vpack.c.b16 %v2340, %v2336
    %v3301 = vpack.c.b16 %v2341, %v2337
    %v3302 = vpack.c.b16 %v2342, %v2338
    %v3303 = vpack.c.b16 %v2347, %v2343
    %v3304 = vpack.c.b16 %v2348, %v2344
    %v3305 = vpack.c.b16 %v2349, %v2345
    %v3306 = vpack.c.b16 %v2350, %v2346
    %v3307 = vpack.c.b16 %v2355, %v2351
    %v3308 = vpack.c.b16 %v2356, %v2352
    %v3309 = vpack.c.b16 %v2357, %v2353
    %v3310 = vpack.c.b16 %v2358, %v2354
    %v3311 = vpack.c.b16 %v2363, %v2359
    %v3312 = vpack.c.b16 %v2364, %v2360
    %v3313 = vpack.c.b16 %v2365, %v2361
    %v3314 = vpack.c.b16 %v2366, %v2362
    %v3315 = vpack.c.b16 %v2371, %v2367
    %v3316 = vpack.c.b16 %v2372, %v2368
    %v3317 = vpack.c.b16 %v2373, %v2369
    %v3318 = vpack.c.b16 %v2374, %v2370
    %v3319 = vpack.c.b16 %v2379, %v2375
    %v3320 = vpack.c.b16 %v2380, %v2376
    %v3321 = vpack.c.b16 %v2381, %v2377
    %v3322 = vpack.c.b16 %v2382, %v2378
    %v3323 = vpack.c.b16 %v2387, %v2383
    %v3324 = vpack.c.b16 %v2388, %v2384
    %v3325 = vpack.c.b16 %v2389, %v2385
    %v3326 = vpack.c.b16 %v2390, %v2386
    %v3327 = vpack.c.b16 %v2395, %v2391
    %v3328 = vpack.c.b16 %v2396, %v2392
    %v3329 = vpack.c.b16 %v2397, %v2393
    %v3330 = vpack.c.b16 %v2398, %v2394
    %v3331 = vpack.c.b16 %v2403, %v2399
    %v3332 = vpack.c.b16 %v2404, %v2400
    %v3333 = vpack.c.b16 %v2405, %v2401
    %v3334 = vpack.c.b16 %v2406, %v2402
    %v3335 = vpack.c.b16 %v2411, %v2407
    %v3336 = vpack.c.b16 %v2412, %v2408
    %v3337 = vpack.c.b16 %v2413, %v2409
    %v3338 = vpack.c.b16 %v2414, %v2410
    %v3339 = vpack.c.b16 %v2419, %v2415
    %v3340 = vpack.c.b16 %v2420, %v2416
    %v3341 = vpack.c.b16 %v2421, %v2417
    %v3342 = vpack.c.b16 %v2422, %v2418
    %v3343 = vpack.c.b16 %v2427, %v2423
    %v3344 = vpack.c.b16 %v2428, %v2424
    %v3345 = vpack.c.b16 %v2429, %v2425
    %v3346 = vpack.c.b16 %v2430, %v2426
    %v3347 = vpack.c.b16 %v2435, %v2431
    %v3348 = vpack.c.b16 %v2436, %v2432
    %v3349 = vpack.c.b16 %v2437, %v2433
    %v3350 = vpack.c.b16 %v2438, %v2434
    %v3351 = vpack.c.b16 %v2443, %v2439
    %v3352 = vpack.c.b16 %v2444, %v2440
    %v3353 = vpack.c.b16 %v2445, %v2441
    %v3354 = vpack.c.b16 %v2446, %v2442
    %v3355 = vpack.c.b16 %v2451, %v2447
    %v3356 = vpack.c.b16 %v2452, %v2448
    %v3357 = vpack.c.b16 %v2453, %v2449
    %v3358 = vpack.c.b16 %v2454, %v2450
    %v3359 = vpack.c.b16 %v2459, %v2455
    %v3360 = vpack.c.b16 %v2460, %v2456
    %v3361 = vpack.c.b16 %v2461, %v2457
    %v3362 = vpack.c.b16 %v2462, %v2458
    %v3363 = vpack.c.b16 %v2467, %v2463
    %v3364 = vpack.c.b16 %v2468, %v2464
    %v3365 = vpack.c.b16 %v2469, %v2465
    %v3366 = vpack.c.b16 %v2470, %v2466
    %v3367 = vpack.c.b16 %v2475, %v2471
    %v3368 = vpack.c.b16 %v2476, %v2472
    %v3369 = vpack.c.b16 %v2477, %v2473
    %v3370 = vpack.c.b16 %v2478, %v2474
    %v3371 = vpack.c.b16 %v2483, %v2479
    %v3372 = vpack.c.b16 %v2484, %v2480
    %v3373 = vpack.c.b16 %v2485, %v2481
    %v3374 = vpack.c.b16 %v2486, %v2482
    %v3375 = vpack.c.b16 %v2491, %v2487
    %v3376 = vpack.c.b16 %v2492, %v2488
    %v3377 = vpack.c.b16 %v2493, %v2489
    %v3378 = vpack.c.b16 %v2494, %v2490
    %v3379 = vpack.c.b16 %v2499, %v2495
    %v3380 = vpack.c.b16 %v2500, %v2496
    %v3381 = vpack.c.b16 %v2501, %v2497
    %v3382 = vpack.c.b16 %v2502, %v2498
    %v3383 = vpack.c.b16 %v2507, %v2503
    %v3384 = vpack.c.b16 %v2508, %v2504
    %v3385 = vpack.c.b16 %v2509, %v2505
    %v3386 = vpack.c.b16 %v2510, %v2506
    %v3387 = vpack.c.b16 %v2515, %v2511
    %v3388 = vpack.c.b16 %v2516, %v2512
    %v3389 = vpack.c.b16 %v2517, %v2513
    %v3390 = vpack.c.b16 %v2518, %v2514
    %v3391 = vpack.c.b16 %v2523, %v2519
    %v3392 = vpack.c.b16 %v2524, %v2520
    %v3393 = vpack.c.b16 %v2525, %v2521
    %v3394 = vpack.c.b16 %v2526, %v2522
    %v3395 = vpack.c.b16 %v2531, %v2527
    %v3396 = vpack.c.b16 %v2532, %v2528
    %v3397 = vpack.c.b16 %v2533, %v2529
    %v3398 = vpack.c.b16 %v2534, %v2530
    %v3399 = vpack.c.b16 %v2539, %v2535
    %v3400 = vpack.c.b16 %v2540, %v2536
    %v3401 = vpack.c.b16 %v2541, %v2537
    %v3402 = vpack.c.b16 %v2542, %v2538
    %v3403 = vpack.c.b16 %v2547, %v2543
    %v3404 = vpack.c.b16 %v2548, %v2544
    %v3405 = vpack.c.b16 %v2549, %v2545
    %v3406 = vpack.c.b16 %v2550, %v2546
    %v3407 = vpack.c.b16 %v2555, %v2551
    %v3408 = vpack.c.b16 %v2556, %v2552
    %v3409 = vpack.c.b16 %v2557, %v2553
    %v3410 = vpack.c.b16 %v2558, %v2554
    %v3411 = vpack.c.b16 %v2563, %v2559
    %v3412 = vpack.c.b16 %v2564, %v2560
    %v3413 = vpack.c.b16 %v2565, %v2561
    %v3414 = vpack.c.b16 %v2566, %v2562
    %v3415 = vpack.c.b16 %v2571, %v2567
    %v3416 = vpack.c.b16 %v2572, %v2568
    %v3417 = vpack.c.b16 %v2573, %v2569
    %v3418 = vpack.c.b16 %v2574, %v2570
    %v3419 = vpack.c.b16 %v2579, %v2575
    %v3420 = vpack.c.b16 %v2580, %v2576
    %v3421 = vpack.c.b16 %v2581, %v2577
    %v3422 = vpack.c.b16 %v2582, %v2578
    %v3423 = vpack.c.b16 %v2587, %v2583
    %v3424 = vpack.c.b16 %v2588, %v2584
    %v3425 = vpack.c.b16 %v2589, %v2585
    %v3426 = vpack.c.b16 %v2590, %v2586
    %v3427 = vpack.c.b16 %v2595, %v2591
    %v3428 = vpack.c.b16 %v2596, %v2592
    %v3429 = vpack.c.b16 %v2597, %v2593
    %v3430 = vpack.c.b16 %v2598, %v2594
    %v3431 = vpack.c.b16 %v2603, %v2599
    %v3432 = vpack.c.b16 %v2604, %v2600
    %v3433 = vpack.c.b16 %v2605, %v2601
    %v3434 = vpack.c.b16 %v2606, %v2602
    %v3435 = vpack.c.b16 %v2611, %v2607
    %v3436 = vpack.c.b16 %v2612, %v2608
    %v3437 = vpack.c.b16 %v2613, %v2609
    %v3438 = vpack.c.b16 %v2614, %v2610
    %v3439 = vpack.c.b16 %v2619, %v2615
    %v3440 = vpack.c.b16 %v2620, %v2616
    %v3441 = vpack.c.b16 %v2621, %v2617
    %v3442 = vpack.c.b16 %v2622, %v2618
    %v3443 = vpack.c.b16 %v2627, %v2623
    %v3444 = vpack.c.b16 %v2628, %v2624
    %v3445 = vpack.c.b16 %v2629, %v2625
    %v3446 = vpack.c.b16 %v2630, %v2626
    %v3447 = vpack.c.b16 %v2635, %v2631
    %v3448 = vpack.c.b16 %v2636, %v2632
    %v3449 = vpack.c.b16 %v2637, %v2633
    %v3450 = vpack.c.b16 %v2638, %v2634
    %v3451 = vpack.c.b16 %v2643, %v2639
    %v3452 = vpack.c.b16 %v2644, %v2640
    %v3453 = vpack.c.b16 %v2645, %v2641
    %v3454 = vpack.c.b16 %v2646, %v2642
    %v3455 = vpack.c.b16 %v2651, %v2647
    %v3456 = vpack.c.b16 %v2652, %v2648
    %v3457 = vpack.c.b16 %v2653, %v2649
    %v3458 = vpack.c.b16 %v2654, %v2650
    %v3459 = vpack.c.b16 %v2659, %v2655
    %v3460 = vpack.c.b16 %v2660, %v2656
    %v3461 = vpack.c.b16 %v2661, %v2657
    %v3462 = vpack.c.b16 %v2662, %v2658
    %v3463 = vpack.c.b16 %v2667, %v2663
    %v3464 = vpack.c.b16 %v2668, %v2664
    %v3465 = vpack.c.b16 %v2669, %v2665
    %v3466 = vpack.c.b16 %v2670, %v2666
    %v3467 = vpack.c.b16 %v2675, %v2671
    %v3468 = vpack.c.b16 %v2676, %v2672
    %v3469 = vpack.c.b16 %v2677, %v2673
    %v3470 = vpack.c.b16 %v2678, %v2674
    %v3471 = vpack.c.b16 %v2683, %v2679
    %v3472 = vpack.c.b16 %v2684, %v2680
    %v3473 = vpack.c.b16 %v2685, %v2681
    %v3474 = vpack.c.b16 %v2686, %v2682
    %v3475 = vpack.c.b16 %v2691, %v2687
    %v3476 = vpack.c.b16 %v2692, %v2688
    %v3477 = vpack.c.b16 %v2693, %v2689
    %v3478 = vpack.c.b16 %v2694, %v2690
    %v3479 = vpack.c.b16 %v2699, %v2695
    %v3480 = vpack.c.b16 %v2700, %v2696
    %v3481 = vpack.c.b16 %v2701, %v2697
    %v3482 = vpack.c.b16 %v2702, %v2698
    %v3483 = vpack.c.b16 %v2707, %v2703
    %v3484 = vpack.c.b16 %v2708, %v2704
    %v3485 = vpack.c.b16 %v2709, %v2705
    %v3486 = vpack.c.b16 %v2710, %v2706
    %v3487 = vpack.c.b16 %v2715, %v2711
    %v3488 = vpack.c.b16 %v2716, %v2712
    %v3489 = vpack.c.b16 %v2717, %v2713
    %v3490 = vpack.c.b16 %v2718, %v2714
    %v3491 = vpack.c.b16 %v2723, %v2719
    %v3492 = vpack.c.b16 %v2724, %v2720
    %v3493 = vpack.c.b16 %v2725, %v2721
    %v3494 = vpack.c.b16 %v2726, %v2722
    %v3495 = vpack.c.b16 %v2731, %v2727
    %v3496 = vpack.c.b16 %v2732, %v2728
    %v3497 = vpack.c.b16 %v2733, %v2729
    %v3498 = vpack.c.b16 %v2734, %v2730
    %v3499 = vpack.c.b16 %v2739, %v2735
    %v3500 = vpack.c.b16 %v2740, %v2736
    %v3501 = vpack.c.b16 %v2741, %v2737
    %v3502 = vpack.c.b16 %v2742, %v2738
    %v3503 = vpack.c.b16 %v2747, %v2743
    %v3504 = vpack.c.b16 %v2748, %v2744
    %v3505 = vpack.c.b16 %v2749, %v2745
    %v3506 = vpack.c.b16 %v2750, %v2746
    %v3507 = vpack.c.b16 %v2755, %v2751
    %v3508 = vpack.c.b16 %v2756, %v2752
    %v3509 = vpack.c.b16 %v2757, %v2753
    %v3510 = vpack.c.b16 %v2758, %v2754
    %v3511 = vpack.c.b16 %v2763, %v2759
    %v3512 = vpack.c.b16 %v2764, %v2760
    %v3513 = vpack.c.b16 %v2765, %v2761
    %v3514 = vpack.c.b16 %v2766, %v2762
    %v3515 = vpack.c.b16 %v2771, %v2767
    %v3516 = vpack.c.b16 %v2772, %v2768
    %v3517 = vpack.c.b16 %v2773, %v2769
    %v3518 = vpack.c.b16 %v2774, %v2770
    %v3519 = vpack.c.b16 %v2779, %v2775
    %v3520 = vpack.c.b16 %v2780, %v2776
    %v3521 = vpack.c.b16 %v2781, %v2777
    %v3522 = vpack.c.b16 %v2782, %v2778
    %v3523 = vpack.c.b16 %v2787, %v2783
    %v3524 = vpack.c.b16 %v2788, %v2784
    %v3525 = vpack.c.b16 %v2789, %v2785
    %v3526 = vpack.c.b16 %v2790, %v2786
    %v3527 = vpack.c.b16 %v2795, %v2791
    %v3528 = vpack.c.b16 %v2796, %v2792
    %v3529 = vpack.c.b16 %v2797, %v2793
    %v3530 = vpack.c.b16 %v2798, %v2794
    %v3531 = vpack.c.b16 %v2803, %v2799
    %v3532 = vpack.c.b16 %v2804, %v2800
    %v3533 = vpack.c.b16 %v2805, %v2801
    %v3534 = vpack.c.b16 %v2806, %v2802
    %v3535 = vpack.c.b16 %v2811, %v2807
    %v3536 = vpack.c.b16 %v2812, %v2808
    %v3537 = vpack.c.b16 %v2813, %v2809
    %v3538 = vpack.c.b16 %v2814, %v2810
    %v3539 = vpack.c.b16 %v2819, %v2815
    %v3540 = vpack.c.b16 %v2820, %v2816
    %v3541 = vpack.c.b16 %v2821, %v2817
    %v3542 = vpack.c.b16 %v2822, %v2818
    %v3543 = vpack.c.b16 %v2827, %v2823
    %v3544 = vpack.c.b16 %v2828, %v2824
    %v3545 = vpack.c.b16 %v2829, %v2825
    %v3546 = vpack.c.b16 %v2830, %v2826
    %v3547 = vpack.c.b16 %v2835, %v2831
    %v3548 = vpack.c.b16 %v2836, %v2832
    %v3549 = vpack.c.b16 %v2837, %v2833
    %v3550 = vpack.c.b16 %v2838, %v2834
    %v3551 = vpack.c.b16 %v2843, %v2839
    %v3552 = vpack.c.b16 %v2844, %v2840
    %v3553 = vpack.c.b16 %v2845, %v2841
    %v3554 = vpack.c.b16 %v2846, %v2842
    %v3555 = vpack.c.b16 %v2851, %v2847
    %v3556 = vpack.c.b16 %v2852, %v2848
    %v3557 = vpack.c.b16 %v2853, %v2849
    %v3558 = vpack.c.b16 %v2854, %v2850
    %v3559 = vpack.c.b16 %v2859, %v2855
    %v3560 = vpack.c.b16 %v2860, %v2856
    %v3561 = vpack.c.b16 %v2861, %v2857
    %v3562 = vpack.c.b16 %v2862, %v2858
    %v3563 = vpack.c.b16 %v2867, %v2863
    %v3564 = vpack.c.b16 %v2868, %v2864
    %v3565 = vpack.c.b16 %v2869, %v2865
    %v3566 = vpack.c.b16 %v2870, %v2866
    %v3567 = vpack.c.b16 %v2875, %v2871
    %v3568 = vpack.c.b16 %v2876, %v2872
    %v3569 = vpack.c.b16 %v2877, %v2873
    %v3570 = vpack.c.b16 %v2878, %v2874
    %v3571 = vpack.c.b16 %v2883, %v2879
    %v3572 = vpack.c.b16 %v2884, %v2880
    %v3573 = vpack.c.b16 %v2885, %v2881
    %v3574 = vpack.c.b16 %v2886, %v2882
    %v3575 = vpack.c.b16 %v2891, %v2887
    %v3576 = vpack.c.b16 %v2892, %v2888
    %v3577 = vpack.c.b16 %v2893, %v2889
    %v3578 = vpack.c.b16 %v2894, %v2890
    %v3579 = vpack.c.b16 %v2899, %v2895
    %v3580 = vpack.c.b16 %v2900, %v2896
    %v3581 = vpack.c.b16 %v2901, %v2897
    %v3582 = vpack.c.b16 %v2902, %v2898
    %v3583 = vpack.c.b16 %v2907, %v2903
    %v3584 = vpack.c.b16 %v2908, %v2904
    %v3585 = vpack.c.b16 %v2909, %v2905
    %v3586 = vpack.c.b16 %v2910, %v2906
    %v3587 = vpack.c.b16 %v2915, %v2911
    %v3588 = vpack.c.b16 %v2916, %v2912
    %v3589 = vpack.c.b16 %v2917, %v2913
    %v3590 = vpack.c.b16 %v2918, %v2914
    %v3591 = vpack.c.b16 %v2923, %v2919
    %v3592 = vpack.c.b16 %v2924, %v2920
    %v3593 = vpack.c.b16 %v2925, %v2921
    %v3594 = vpack.c.b16 %v2926, %v2922
    %v3595 = vpack.c.b16 %v2931, %v2927
    %v3596 = vpack.c.b16 %v2932, %v2928
    %v3597 = vpack.c.b16 %v2933, %v2929
    %v3598 = vpack.c.b16 %v2934, %v2930
    %v3599 = vpack.c.b16 %v2939, %v2935
    %v3600 = vpack.c.b16 %v2940, %v2936
    %v3601 = vpack.c.b16 %v2941, %v2937
    %v3602 = vpack.c.b16 %v2942, %v2938
    %v3603 = vpack.c.b16 %v2947, %v2943
    %v3604 = vpack.c.b16 %v2948, %v2944
    %v3605 = vpack.c.b16 %v2949, %v2945
    %v3606 = vpack.c.b16 %v2950, %v2946
    %v3607 = vpack.c.b16 %v2955, %v2951
    %v3608 = vpack.c.b16 %v2956, %v2952
    %v3609 = vpack.c.b16 %v2957, %v2953
    %v3610 = vpack.c.b16 %v2958, %v2954
    %v3611 = vpack.c.b16 %v2963, %v2959
    %v3612 = vpack.c.b16 %v2964, %v2960
    %v3613 = vpack.c.b16 %v2965, %v2961
    %v3614 = vpack.c.b16 %v2966, %v2962
    %v3615 = vpack.c.b16 %v2971, %v2967
    %v3616 = vpack.c.b16 %v2972, %v2968
    %v3617 = vpack.c.b16 %v2973, %v2969
    %v3618 = vpack.c.b16 %v2974, %v2970
    %v3619 = vpack.c.b16 %v2979, %v2975
    %v3620 = vpack.c.b16 %v2980, %v2976
    %v3621 = vpack.c.b16 %v2981, %v2977
    %v3622 = vpack.c.b16 %v2982, %v2978
    %v3623 = vpack.c.b16 %v2987, %v2983
    %v3624 = vpack.c.b16 %v2988, %v2984
    %v3625 = vpack.c.b16 %v2989, %v2985
    %v3626 = vpack.c.b16 %v2990, %v2986
    %v3627 = vpack.c.b16 %v2995, %v2991
    %v3628 = vpack.c.b16 %v2996, %v2992
    %v3629 = vpack.c.b16 %v2997, %v2993
    %v3630 = vpack.c.b16 %v2998, %v2994
    %v3631 = vpack.c.b16 %v3003, %v2999
    %v3632 = vpack.c.b16 %v3004, %v3000
    %v3633 = vpack.c.b16 %v3005, %v3001
    %v3634 = vpack.c.b16 %v3006, %v3002
    %v3635 = vpack.c.b16 %v3011, %v3007
    %v3636 = vpack.c.b16 %v3012, %v3008
    %v3637 = vpack.c.b16 %v3013, %v3009
    %v3638 = vpack.c.b16 %v3014, %v3010
    %v3639 = vpack.c.b16 %v3019, %v3015
    %v3640 = vpack.c.b16 %v3020, %v3016
    %v3641 = vpack.c.b16 %v3021, %v3017
    %v3642 = vpack.c.b16 %v3022, %v3018
    %v3643 = vpack.c.b16 %v3027, %v3023
    %v3644 = vpack.c.b16 %v3028, %v3024
    %v3645 = vpack.c.b16 %v3029, %v3025
    %v3646 = vpack.c.b16 %v3030, %v3026
    %v3647 = vpack.c.b16 %v3035, %v3031
    %v3648 = vpack.c.b16 %v3036, %v3032
    %v3649 = vpack.c.b16 %v3037, %v3033
    %v3650 = vpack.c.b16 %v3038, %v3034
    %v3651 = vpack.c.b16 %v3043, %v3039
    %v3652 = vpack.c.b16 %v3044, %v3040
    %v3653 = vpack.c.b16 %v3045, %v3041
    %v3654 = vpack.c.b16 %v3046, %v3042
    %v3655 = vpack.c.b16 %v3051, %v3047
    %v3656 = vpack.c.b16 %v3052, %v3048
    %v3657 = vpack.c.b16 %v3053, %v3049
    %v3658 = vpack.c.b16 %v3054, %v3050
    %v3659 = vpack.c.b16 %v3059, %v3055
    %v3660 = vpack.c.b16 %v3060, %v3056
    %v3661 = vpack.c.b16 %v3061, %v3057
    %v3662 = vpack.c.b16 %v3062, %v3058
    %v3663 = vpack.c.b16 %v3067, %v3063
    %v3664 = vpack.c.b16 %v3068, %v3064
    %v3665 = vpack.c.b16 %v3069, %v3065
    %v3666 = vpack.c.b16 %v3070, %v3066
    %v3667 = vpack.c.b16 %v3075, %v3071
    %v3668 = vpack.c.b16 %v3076, %v3072
    %v3669 = vpack.c.b16 %v3077, %v3073
    %v3670 = vpack.c.b16 %v3078, %v3074
    %v3671 = vpack.c.b16 %v3083, %v3079
    %v3672 = vpack.c.b16 %v3084, %v3080
    %v3673 = vpack.c.b16 %v3085, %v3081
    %v3674 = vpack.c.b16 %v3086, %v3082
    %v3675 = vpack.c.b16 %v3091, %v3087
    %v3676 = vpack.c.b16 %v3092, %v3088
    %v3677 = vpack.c.b16 %v3093, %v3089
    %v3678 = vpack.c.b16 %v3094, %v3090
    %v3679 = vpack.c.b16 %v3099, %v3095
    %v3680 = vpack.c.b16 %v3100, %v3096
    %v3681 = vpack.c.b16 %v3101, %v3097
    %v3682 = vpack.c.b16 %v3102, %v3098
    %v3683 = vpack.c.b16 %v3107, %v3103
    %v3684 = vpack.c.b16 %v3108, %v3104
    %v3685 = vpack.c.b16 %v3109, %v3105
    %v3686 = vpack.c.b16 %v3110, %v3106
    %v3687 = vpack.c.b16 %v3115, %v3111
    %v3688 = vpack.c.b16 %v3116, %v3112
    %v3689 = vpack.c.b16 %v3117, %v3113
    %v3690 = vpack.c.b16 %v3118, %v3114
    %v3691 = vpack.c.b16 %v3123, %v3119
    %v3692 = vpack.c.b16 %v3124, %v3120
    %v3693 = vpack.c.b16 %v3125, %v3121
    %v3694 = vpack.c.b16 %v3126, %v3122
    %v3695 = vpack.c.b16 %v3131, %v3127
    %v3696 = vpack.c.b16 %v3132, %v3128
    %v3697 = vpack.c.b16 %v3133, %v3129
    %v3698 = vpack.c.b16 %v3134, %v3130
    %v3699 = vpack.c.b16 %v3139, %v3135
    %v3700 = vpack.c.b16 %v3140, %v3136
    %v3701 = vpack.c.b16 %v3141, %v3137
    %v3702 = vpack.c.b16 %v3142, %v3138
    %v3703 = vpack.c.b16 %v3147, %v3143
    %v3704 = vpack.c.b16 %v3148, %v3144
    %v3705 = vpack.c.b16 %v3149, %v3145
    %v3706 = vpack.c.b16 %v3150, %v3146
    %v3707 = vpack.c.b16 %v3155, %v3151
    %v3708 = vpack.c.b16 %v3156, %v3152
    %v3709 = vpack.c.b16 %v3157, %v3153
    %v3710 = vpack.c.b16 %v3158, %v3154
    %v3711 = vpack.c.b16 %v3163, %v3159
    %v3712 = vpack.c.b16 %v3164, %v3160
    %v3713 = vpack.c.b16 %v3165, %v3161
    %v3714 = vpack.c.b16 %v3166, %v3162
    %v3715 = vpack.c.b16 %v3171, %v3167
    %v3716 = vpack.c.b16 %v3172, %v3168
    %v3717 = vpack.c.b16 %v3173, %v3169
    %v3718 = vpack.c.b16 %v3174, %v3170
    %v3719 = vpack.c.b16 %v3179, %v3175
    %v3720 = vpack.c.b16 %v3180, %v3176
    %v3721 = vpack.c.b16 %v3181, %v3177
    %v3722 = vpack.c.b16 %v3182, %v3178
    %v3723 = vpack.c.b16 %v3187, %v3183
    %v3724 = vpack.c.b16 %v3188, %v3184
    %v3725 = vpack.c.b16 %v3189, %v3185
    %v3726 = vpack.c.b16 %v3190, %v3186
    %v3727 = vpack.c.b16 %v3195, %v3191
    %v3728 = vpack.c.b16 %v3196, %v3192
    %v3729 = vpack.c.b16 %v3197, %v3193
    %v3730 = vpack.c.b16 %v3198, %v3194
    %v3731 = vpack.c.b16 %v3203, %v3199
    %v3732 = vpack.c.b16 %v3204, %v3200
    %v3733 = vpack.c.b16 %v3205, %v3201
    %v3734 = vpack.c.b16 %v3206, %v3202
    %v3735 = vpack.c.b16 %v3211, %v3207
    %v3736 = vpack.c.b16 %v3212, %v3208
    %v3737 = vpack.c.b16 %v3213, %v3209
    %v3738 = vpack.c.b16 %v3214, %v3210
    %v3739 = vpack.c.b16 %v3219, %v3215
    %v3740 = vpack.c.b16 %v3220, %v3216
    %v3741 = vpack.c.b16 %v3221, %v3217
    %v3742 = vpack.c.b16 %v3222, %v3218
    %v3743 = vpack.c.b16 %v3227, %v3223
    %v3744 = vpack.c.b16 %v3228, %v3224
    %v3745 = vpack.c.b16 %v3229, %v3225
    %v3746 = vpack.c.b16 %v3230, %v3226
    %v3747 = vpack.c.b16 %v3235, %v3231
    %v3748 = vpack.c.b16 %v3236, %v3232
    %v3749 = vpack.c.b16 %v3237, %v3233
    %v3750 = vpack.c.b16 %v3238, %v3234
    %4263 = vmatprep.subr.bf16.mxu0 %v3240
    %4264 = vmatpush1.bf16.msra.mxu0 %v3239
    %4265 = vmatprep.subr.bf16.mxu0 %v3244
    %4266 = vmatpush1.bf16.msra.mxu0 %v3243
    %4267 = vmatprep.subr.bf16.mxu0 %v3248
    %4268 = vmatpush1.bf16.msra.mxu0 %v3247
    %4269 = vmatprep.subr.bf16.mxu0 %v3252
    %4270 = vmatpush1.bf16.msra.mxu0 %v3251
    %4271 = vmatprep.subr.bf16.mxu0 %v3256
    %4272 = vmatpush1.bf16.msra.mxu0 %v3255
    %4273 = vmatprep.subr.bf16.mxu0 %v3260
    %4274 = vmatpush1.bf16.msra.mxu0 %v3259
    %4275 = vmatprep.subr.bf16.mxu0 %v3264
    %4276 = vmatpush1.bf16.msra.mxu0 %v3263
    %4277 = vmatprep.subr.bf16.mxu0 %v3268
    %4278 = vmatpush1.bf16.msra.mxu0 %v3267
    %4279 = vmatprep.subr.bf16.mxu0 %v3272
    %4280 = vmatpush1.bf16.msra.mxu0 %v3271
    %4281 = vmatprep.subr.bf16.mxu0 %v3276
    %4282 = vmatpush1.bf16.msra.mxu0 %v3275
    %4283 = vmatprep.subr.bf16.mxu0 %v3280
    %4284 = vmatpush1.bf16.msra.mxu0 %v3279
    %4285 = vmatprep.subr.bf16.mxu0 %v3284
    %4286 = vmatpush1.bf16.msra.mxu0 %v3283
    %4287 = vmatprep.subr.bf16.mxu0 %v3288
    %4288 = vmatpush1.bf16.msra.mxu0 %v3287
    %4289 = vmatprep.subr.bf16.mxu0 %v3292
    %4290 = vmatpush1.bf16.msra.mxu0 %v3291
    %4291 = vmatprep.subr.bf16.mxu0 %v3296
    %4292 = vmatpush1.bf16.msra.mxu0 %v3295
    %4293 = vmatprep.subr.bf16.mxu0 %v3300
    %4294 = vmatpush1.bf16.msra.mxu0 %v3299
    %4295 = vmatprep.mubr.bf16.mxu0 %v1176
    %4296 = vmatmul.mubr.bf16.gmra.mrb[0].mxu0 %v1175
    %v4297 = vpop.f32.mrb[0].mxu0
    %v4298 = vadd.f32 0.0, %v4297
    %v4299 = vpop.f32.mrb[0].mxu0
    %v4300 = vadd.f32 0.0, %v4299
    %v4301 = vpop.f32.mrb[0].mxu0
    %v4302 = vadd.f32 0.0, %v4301
    %v4303 = vpop.f32.mrb[0].mxu0
    %v4304 = vadd.f32 0.0, %v4303
    %4305 = vdwg.mxu0
    %4306 = vmatprep.subr.bf16.mxu0 %v3304
    %4307 = vmatpush1.bf16.msra.mxu0 %v3303
    %4308 = vmatprep.subr.bf16.mxu0 %v3308
    %4309 = vmatpush1.bf16.msra.mxu0 %v3307
    %4310 = vmatprep.subr.bf16.mxu0 %v3312
    %4311 = vmatpush1.bf16.msra.mxu0 %v3311
    %4312 = vmatprep.subr.bf16.mxu0 %v3316
    %4313 = vmatpush1.bf16.msra.mxu0 %v3315
    %4314 = vmatprep.subr.bf16.mxu0 %v3320
    %4315 = vmatpush1.bf16.msra.mxu0 %v3319
    %4316 = vmatprep.subr.bf16.mxu0 %v3324
    %4317 = vmatpush1.bf16.msra.mxu0 %v3323
    %4318 = vmatprep.subr.bf16.mxu0 %v3328
    %4319 = vmatpush1.bf16.msra.mxu0 %v3327
    %4320 = vmatprep.subr.bf16.mxu0 %v3332
    %4321 = vmatpush1.bf16.msra.mxu0 %v3331
    %4322 = vmatprep.subr.bf16.mxu0 %v3336
    %4323 = vmatpush1.bf16.msra.mxu0 %v3335
    %4324 = vmatprep.subr.bf16.mxu0 %v3340
    %4325 = vmatpush1.bf16.msra.mxu0 %v3339
    %4326 = vmatprep.subr.bf16.mxu0 %v3344
    %4327 = vmatpush1.bf16.msra.mxu0 %v3343
    %4328 = vmatprep.subr.bf16.mxu0 %v3348
    %4329 = vmatpush1.bf16.msra.mxu0 %v3347
    %4330 = vmatprep.subr.bf16.mxu0 %v3352
    %4331 = vmatpush1.bf16.msra.mxu0 %v3351
    %4332 = vmatprep.subr.bf16.mxu0 %v3356
    %4333 = vmatpush1.bf16.msra.mxu0 %v3355
    %4334 = vmatprep.subr.bf16.mxu0 %v3360
    %4335 = vmatpush1.bf16.msra.mxu0 %v3359
    %4336 = vmatprep.subr.bf16.mxu0 %v3364
    %4337 = vmatpush1.bf16.msra.mxu0 %v3363
    %4338 = vmatprep.mubr.bf16.mxu0 %v1178
    %4339 = vmatmul.mubr.bf16.gmra.mrb[0].mxu0 %v1177
    %v4340 = vpop.f32.mrb[0].mxu0
    %v4341 = vadd.f32 %v4298, %v4340
    %v4342 = vpop.f32.mrb[0].mxu0
    %v4343 = vadd.f32 %v4300, %v4342
    %v4344 = vpop.f32.mrb[0].mxu0
    %v4345 = vadd.f32 %v4302, %v4344
    %v4346 = vpop.f32.mrb[0].mxu0
    %v4347 = vadd.f32 %v4304, %v4346
    %4348 = vdwg.mxu0
    %4349 = vmatprep.subr.bf16.mxu0 %v3368
    %4350 = vmatpush1.bf16.msra.mxu0 %v3367
    %4351 = vmatprep.subr.bf16.mxu0 %v3372
    %4352 = vmatpush1.bf16.msra.mxu0 %v3371
    %4353 = vmatprep.subr.bf16.mxu0 %v3376
    %4354 = vmatpush1.bf16.msra.mxu0 %v3375
    %4355 = vmatprep.subr.bf16.mxu0 %v3380
    %4356 = vmatpush1.bf16.msra.mxu0 %v3379
    %4357 = vmatprep.subr.bf16.mxu0 %v3384
    %4358 = vmatpush1.bf16.msra.mxu0 %v3383
    %4359 = vmatprep.subr.bf16.mxu0 %v3388
    %4360 = vmatpush1.bf16.msra.mxu0 %v3387
    %4361 = vmatprep.subr.bf16.mxu0 %v3392
    %4362 = vmatpush1.bf16.msra.mxu0 %v3391
    %4363 = vmatprep.subr.bf16.mxu0 %v3396
    %4364 = vmatpush1.bf16.msra.mxu0 %v3395
    %4365 = vmatprep.subr.bf16.mxu0 %v3400
    %4366 = vmatpush1.bf16.msra.mxu0 %v3399
    %4367 = vmatprep.subr.bf16.mxu0 %v3404
    %4368 = vmatpush1.bf16.msra.mxu0 %v3403
    %4369 = vmatprep.subr.bf16.mxu0 %v3408
    %4370 = vmatpush1.bf16.msra.mxu0 %v3407
    %4371 = vmatprep.subr.bf16.mxu0 %v3412
    %4372 = vmatpush1.bf16.msra.mxu0 %v3411
    %4373 = vmatprep.subr.bf16.mxu0 %v3416
    %4374 = vmatpush1.bf16.msra.mxu0 %v3415
    %4375 = vmatprep.subr.bf16.mxu0 %v3420
    %4376 = vmatpush1.bf16.msra.mxu0 %v3419
    %4377 = vmatprep.subr.bf16.mxu0 %v3424
    %4378 = vmatpush1.bf16.msra.mxu0 %v3423
    %4379 = vmatprep.subr.bf16.mxu0 %v3428
    %4380 = vmatpush1.bf16.msra.mxu0 %v3427
    %4381 = vmatprep.mubr.bf16.mxu0 %v1180
    %4382 = vmatmul.mubr.bf16.gmra.mrb[0].mxu0 %v1179
    %v4383 = vpop.f32.mrb[0].mxu0
    %v4384 = vadd.f32 %v4341, %v4383
    %v4385 = vpop.f32.mrb[0].mxu0
    %v4386 = vadd.f32 %v4343, %v4385
    %v4387 = vpop.f32.mrb[0].mxu0
    %v4388 = vadd.f32 %v4345, %v4387
    %v4389 = vpop.f32.mrb[0].mxu0
    %v4390 = vadd.f32 %v4347, %v4389
    %4391 = vdwg.mxu0
    %4392 = vmatprep.subr.bf16.mxu0 %v3432
    %4393 = vmatpush1.bf16.msra.mxu0 %v3431
    %4394 = vmatprep.subr.bf16.mxu0 %v3436
    %4395 = vmatpush1.bf16.msra.mxu0 %v3435
    %4396 = vmatprep.subr.bf16.mxu0 %v3440
    %4397 = vmatpush1.bf16.msra.mxu0 %v3439
    %4398 = vmatprep.subr.bf16.mxu0 %v3444
    %4399 = vmatpush1.bf16.msra.mxu0 %v3443
    %4400 = vmatprep.subr.bf16.mxu0 %v3448
    %4401 = vmatpush1.bf16.msra.mxu0 %v3447
    %4402 = vmatprep.subr.bf16.mxu0 %v3452
    %4403 = vmatpush1.bf16.msra.mxu0 %v3451
    %4404 = vmatprep.subr.bf16.mxu0 %v3456
    %4405 = vmatpush1.bf16.msra.mxu0 %v3455
    %4406 = vmatprep.subr.bf16.mxu0 %v3460
    %4407 = vmatpush1.bf16.msra.mxu0 %v3459
    %4408 = vmatprep.subr.bf16.mxu0 %v3464
    %4409 = vmatpush1.bf16.msra.mxu0 %v3463
    %4410 = vmatprep.subr.bf16.mxu0 %v3468
    %4411 = vmatpush1.bf16.msra.mxu0 %v3467
    %4412 = vmatprep.subr.bf16.mxu0 %v3472
    %4413 = vmatpush1.bf16.msra.mxu0 %v3471
    %4414 = vmatprep.subr.bf16.mxu0 %v3476
    %4415 = vmatpush1.bf16.msra.mxu0 %v3475
    %4416 = vmatprep.subr.bf16.mxu0 %v3480
    %4417 = vmatpush1.bf16.msra.mxu0 %v3479
    %4418 = vmatprep.subr.bf16.mxu0 %v3484
    %4419 = vmatpush1.bf16.msra.mxu0 %v3483
    %4420 = vmatprep.subr.bf16.mxu0 %v3488
    %4421 = vmatpush1.bf16.msra.mxu0 %v3487
    %4422 = vmatprep.subr.bf16.mxu0 %v3492
    %4423 = vmatpush1.bf16.msra.mxu0 %v3491
    %4424 = vmatprep.mubr.bf16.mxu0 %v1182
    %4425 = vmatmul.mubr.bf16.gmra.mrb[0].mxu0 %v1181
    %v4426 = vpop.f32.mrb[0].mxu0
    %v4427 = vadd.f32 %v4384, %v4426
    %v4428 = vpop.f32.mrb[0].mxu0
    %v4429 = vadd.f32 %v4386, %v4428
    %v4430 = vpop.f32.mrb[0].mxu0
    %v4431 = vadd.f32 %v4388, %v4430
    %v4432 = vpop.f32.mrb[0].mxu0
    %v4433 = vadd.f32 %v4390, %v4432
    %4434 = vdwg.mxu0
    %4435 = vmatprep.subr.bf16.mxu0 %v3496
    %4436 = vmatpush1.bf16.msra.mxu0 %v3495
    %4437 = vmatprep.subr.bf16.mxu0 %v3500
    %4438 = vmatpush1.bf16.msra.mxu0 %v3499
    %4439 = vmatprep.subr.bf16.mxu0 %v3504
    %4440 = vmatpush1.bf16.msra.mxu0 %v3503
    %4441 = vmatprep.subr.bf16.mxu0 %v3508
    %4442 = vmatpush1.bf16.msra.mxu0 %v3507
    %4443 = vmatprep.subr.bf16.mxu0 %v3512
    %4444 = vmatpush1.bf16.msra.mxu0 %v3511
    %4445 = vmatprep.subr.bf16.mxu0 %v3516
    %4446 = vmatpush1.bf16.msra.mxu0 %v3515
    %4447 = vmatprep.subr.bf16.mxu0 %v3520
    %4448 = vmatpush1.bf16.msra.mxu0 %v3519
    %4449 = vmatprep.subr.bf16.mxu0 %v3524
    %4450 = vmatpush1.bf16.msra.mxu0 %v3523
    %4451 = vmatprep.subr.bf16.mxu0 %v3528
    %4452 = vmatpush1.bf16.msra.mxu0 %v3527
    %4453 = vmatprep.subr.bf16.mxu0 %v3532
    %4454 = vmatpush1.bf16.msra.mxu0 %v3531
    %4455 = vmatprep.subr.bf16.mxu0 %v3536
    %4456 = vmatpush1.bf16.msra.mxu0 %v3535
    %4457 = vmatprep.subr.bf16.mxu0 %v3540
    %4458 = vmatpush1.bf16.msra.mxu0 %v3539
    %4459 = vmatprep.subr.bf16.mxu0 %v3544
    %4460 = vmatpush1.bf16.msra.mxu0 %v3543
    %4461 = vmatprep.subr.bf16.mxu0 %v3548
    %4462 = vmatpush1.bf16.msra.mxu0 %v3547
    %4463 = vmatprep.subr.bf16.mxu0 %v3552
    %4464 = vmatpush1.bf16.msra.mxu0 %v3551
    %4465 = vmatprep.subr.bf16.mxu0 %v3556
    %4466 = vmatpush1.bf16.msra.mxu0 %v3555
    %4467 = vmatprep.mubr.bf16.mxu0 %v1184
    %4468 = vmatmul.mubr.bf16.gmra.mrb[0].mxu0 %v1183
    %v4469 = vpop.f32.mrb[0].mxu0
    %v4470 = vadd.f32 %v4427, %v4469
    %v4471 = vpop.f32.mrb[0].mxu0
    %v4472 = vadd.f32 %v4429, %v4471
    %v4473 = vpop.f32.mrb[0].mxu0
    %v4474 = vadd.f32 %v4431, %v4473
    %v4475 = vpop.f32.mrb[0].mxu0
    %v4476 = vadd.f32 %v4433, %v4475
    %4477 = vdwg.mxu0
    %4478 = vmatprep.subr.bf16.mxu0 %v3560
    %4479 = vmatpush1.bf16.msra.mxu0 %v3559
    %4480 = vmatprep.subr.bf16.mxu0 %v3564
    %4481 = vmatpush1.bf16.msra.mxu0 %v3563
    %4482 = vmatprep.subr.bf16.mxu0 %v3568
    %4483 = vmatpush1.bf16.msra.mxu0 %v3567
    %4484 = vmatprep.subr.bf16.mxu0 %v3572
    %4485 = vmatpush1.bf16.msra.mxu0 %v3571
    %4486 = vmatprep.subr.bf16.mxu0 %v3576
    %4487 = vmatpush1.bf16.msra.mxu0 %v3575
    %4488 = vmatprep.subr.bf16.mxu0 %v3580
    %4489 = vmatpush1.bf16.msra.mxu0 %v3579
    %4490 = vmatprep.subr.bf16.mxu0 %v3584
    %4491 = vmatpush1.bf16.msra.mxu0 %v3583
    %4492 = vmatprep.subr.bf16.mxu0 %v3588
    %4493 = vmatpush1.bf16.msra.mxu0 %v3587
    %4494 = vmatprep.subr.bf16.mxu0 %v3592
    %4495 = vmatpush1.bf16.msra.mxu0 %v3591
    %4496 = vmatprep.subr.bf16.mxu0 %v3596
    %4497 = vmatpush1.bf16.msra.mxu0 %v3595
    %4498 = vmatprep.subr.bf16.mxu0 %v3600
    %4499 = vmatpush1.bf16.msra.mxu0 %v3599
    %4500 = vmatprep.subr.bf16.mxu0 %v3604
    %4501 = vmatpush1.bf16.msra.mxu0 %v3603
    %4502 = vmatprep.subr.bf16.mxu0 %v3608
    %4503 = vmatpush1.bf16.msra.mxu0 %v3607
    %4504 = vmatprep.subr.bf16.mxu0 %v3612
    %4505 = vmatpush1.bf16.msra.mxu0 %v3611
    %4506 = vmatprep.subr.bf16.mxu0 %v3616
    %4507 = vmatpush1.bf16.msra.mxu0 %v3615
    %4508 = vmatprep.subr.bf16.mxu0 %v3620
    %4509 = vmatpush1.bf16.msra.mxu0 %v3619
    %4510 = vmatprep.mubr.bf16.mxu0 %v1186
    %4511 = vmatmul.mubr.bf16.gmra.mrb[0].mxu0 %v1185
    %v4512 = vpop.f32.mrb[0].mxu0
    %v4513 = vadd.f32 %v4470, %v4512
    %v4514 = vpop.f32.mrb[0].mxu0
    %v4515 = vadd.f32 %v4472, %v4514
    %v4516 = vpop.f32.mrb[0].mxu0
    %v4517 = vadd.f32 %v4474, %v4516
    %v4518 = vpop.f32.mrb[0].mxu0
    %v4519 = vadd.f32 %v4476, %v4518
    %4520 = vdwg.mxu0
    %4521 = vmatprep.subr.bf16.mxu0 %v3624
    %4522 = vmatpush1.bf16.msra.mxu0 %v3623
    %4523 = vmatprep.subr.bf16.mxu0 %v3628
    %4524 = vmatpush1.bf16.msra.mxu0 %v3627
    %4525 = vmatprep.subr.bf16.mxu0 %v3632
    %4526 = vmatpush1.bf16.msra.mxu0 %v3631
    %4527 = vmatprep.subr.bf16.mxu0 %v3636
    %4528 = vmatpush1.bf16.msra.mxu0 %v3635
    %4529 = vmatprep.subr.bf16.mxu0 %v3640
    %4530 = vmatpush1.bf16.msra.mxu0 %v3639
    %4531 = vmatprep.subr.bf16.mxu0 %v3644
    %4532 = vmatpush1.bf16.msra.mxu0 %v3643
    %4533 = vmatprep.subr.bf16.mxu0 %v3648
    %4534 = vmatpush1.bf16.msra.mxu0 %v3647
    %4535 = vmatprep.subr.bf16.mxu0 %v3652
    %4536 = vmatpush1.bf16.msra.mxu0 %v3651
    %4537 = vmatprep.subr.bf16.mxu0 %v3656
    %4538 = vmatpush1.bf16.msra.mxu0 %v3655
    %4539 = vmatprep.subr.bf16.mxu0 %v3660
    %4540 = vmatpush1.bf16.msra.mxu0 %v3659
    %4541 = vmatprep.subr.bf16.mxu0 %v3664
    %4542 = vmatpush1.bf16.msra.mxu0 %v3663
    %4543 = vmatprep.subr.bf16.mxu0 %v3668
    %4544 = vmatpush1.bf16.msra.mxu0 %v3667
    %4545 = vmatprep.subr.bf16.mxu0 %v3672
    %4546 = vmatpush1.bf16.msra.mxu0 %v3671
    %4547 = vmatprep.subr.bf16.mxu0 %v3676
    %4548 = vmatpush1.bf16.msra.mxu0 %v3675
    %4549 = vmatprep.subr.bf16.mxu0 %v3680
    %4550 = vmatpush1.bf16.msra.mxu0 %v3679
    %4551 = vmatprep.subr.bf16.mxu0 %v3684
    %4552 = vmatpush1.bf16.msra.mxu0 %v3683
    %4553 = vmatprep.mubr.bf16.mxu0 %v1188
    %4554 = vmatmul.mubr.bf16.gmra.mrb[0].mxu0 %v1187
    %v4555 = vpop.f32.mrb[0].mxu0
    %v4556 = vadd.f32 %v4513, %v4555
    %v4557 = vpop.f32.mrb[0].mxu0
    %v4558 = vadd.f32 %v4515, %v4557
    %v4559 = vpop.f32.mrb[0].mxu0
    %v4560 = vadd.f32 %v4517, %v4559
    %v4561 = vpop.f32.mrb[0].mxu0
    %v4562 = vadd.f32 %v4519, %v4561
    %4563 = vdwg.mxu0
    %4564 = vmatprep.subr.bf16.mxu0 %v3688
    %4565 = vmatpush1.bf16.msra.mxu0 %v3687
    %4566 = vmatprep.subr.bf16.mxu0 %v3692
    %4567 = vmatpush1.bf16.msra.mxu0 %v3691
    %4568 = vmatprep.subr.bf16.mxu0 %v3696
    %4569 = vmatpush1.bf16.msra.mxu0 %v3695
    %4570 = vmatprep.subr.bf16.mxu0 %v3700
    %4571 = vmatpush1.bf16.msra.mxu0 %v3699
    %4572 = vmatprep.subr.bf16.mxu0 %v3704
    %4573 = vmatpush1.bf16.msra.mxu0 %v3703
    %4574 = vmatprep.subr.bf16.mxu0 %v3708
    %4575 = vmatpush1.bf16.msra.mxu0 %v3707
    %4576 = vmatprep.subr.bf16.mxu0 %v3712
    %4577 = vmatpush1.bf16.msra.mxu0 %v3711
    %4578 = vmatprep.subr.bf16.mxu0 %v3716
    %4579 = vmatpush1.bf16.msra.mxu0 %v3715
    %4580 = vmatprep.subr.bf16.mxu0 %v3720
    %4581 = vmatpush1.bf16.msra.mxu0 %v3719
    %4582 = vmatprep.subr.bf16.mxu0 %v3724
    %4583 = vmatpush1.bf16.msra.mxu0 %v3723
    %4584 = vmatprep.subr.bf16.mxu0 %v3728
    %4585 = vmatpush1.bf16.msra.mxu0 %v3727
    %4586 = vmatprep.subr.bf16.mxu0 %v3732
    %4587 = vmatpush1.bf16.msra.mxu0 %v3731
    %4588 = vmatprep.subr.bf16.mxu0 %v3736
    %4589 = vmatpush1.bf16.msra.mxu0 %v3735
    %4590 = vmatprep.subr.bf16.mxu0 %v3740
    %4591 = vmatpush1.bf16.msra.mxu0 %v3739
    %4592 = vmatprep.subr.bf16.mxu0 %v3744
    %4593 = vmatpush1.bf16.msra.mxu0 %v3743
    %4594 = vmatprep.subr.bf16.mxu0 %v3748
    %4595 = vmatpush1.bf16.msra.mxu0 %v3747
    %4596 = vmatprep.mubr.bf16.mxu0 %v1190
    %4597 = vmatmul.mubr.bf16.gmra.mrb[0].mxu0 %v1189
    %v4598 = vpop.f32.mrb[0].mxu0
    %v4599 = vadd.f32 %v4556, %v4598
    %v4600 = vpop.f32.mrb[0].mxu0
    %v4601 = vadd.f32 %v4558, %v4600
    %v4602 = vpop.f32.mrb[0].mxu0
    %v4603 = vadd.f32 %v4560, %v4602
    %v4604 = vpop.f32.mrb[0].mxu0
    %v4605 = vadd.f32 %v4562, %v4604
    %4606 = vdwg.mxu0
    %4607 = vmatprep.subr.bf16.mxu0 %v3242
    %4608 = vmatpush1.bf16.msra.mxu0 %v3241
    %4609 = vmatprep.subr.bf16.mxu0 %v3246
    %4610 = vmatpush1.bf16.msra.mxu0 %v3245
    %4611 = vmatprep.subr.bf16.mxu0 %v3250
    %4612 = vmatpush1.bf16.msra.mxu0 %v3249
    %4613 = vmatprep.subr.bf16.mxu0 %v3254
    %4614 = vmatpush1.bf16.msra.mxu0 %v3253
    %4615 = vmatprep.subr.bf16.mxu0 %v3258
    %4616 = vmatpush1.bf16.msra.mxu0 %v3257
    %4617 = vmatprep.subr.bf16.mxu0 %v3262
    %4618 = vmatpush1.bf16.msra.mxu0 %v3261
    %4619 = vmatprep.subr.bf16.mxu0 %v3266
    %4620 = vmatpush1.bf16.msra.mxu0 %v3265
    %4621 = vmatprep.subr.bf16.mxu0 %v3270
    %4622 = vmatpush1.bf16.msra.mxu0 %v3269
    %4623 = vmatprep.subr.bf16.mxu0 %v3274
    %4624 = vmatpush1.bf16.msra.mxu0 %v3273
    %4625 = vmatprep.subr.bf16.mxu0 %v3278
    %4626 = vmatpush1.bf16.msra.mxu0 %v3277
    %4627 = vmatprep.subr.bf16.mxu0 %v3282
    %4628 = vmatpush1.bf16.msra.mxu0 %v3281
    %4629 = vmatprep.subr.bf16.mxu0 %v3286
    %4630 = vmatpush1.bf16.msra.mxu0 %v3285
    %4631 = vmatprep.subr.bf16.mxu0 %v3290
    %4632 = vmatpush1.bf16.msra.mxu0 %v3289
    %4633 = vmatprep.subr.bf16.mxu0 %v3294
    %4634 = vmatpush1.bf16.msra.mxu0 %v3293
    %4635 = vmatprep.subr.bf16.mxu0 %v3298
    %4636 = vmatpush1.bf16.msra.mxu0 %v3297
    %4637 = vmatprep.subr.bf16.mxu0 %v3302
    %4638 = vmatpush1.bf16.msra.mxu0 %v3301
    %4639 = vmatprep.mubr.bf16.mxu0 %v1176
    %4640 = vmatmul.mubr.bf16.gmra.mrb[0].mxu0 %v1175
    %v4641 = vpop.f32.mrb[0].mxu0
    %v4642 = vadd.f32 0.0, %v4641
    %v4643 = vpop.f32.mrb[0].mxu0
    %v4644 = vadd.f32 0.0, %v4643
    %v4645 = vpop.f32.mrb[0].mxu0
    %v4646 = vadd.f32 0.0, %v4645
    %v4647 = vpop.f32.mrb[0].mxu0
    %v4648 = vadd.f32 0.0, %v4647
    %4649 = vdwg.mxu0
    %4650 = vmatprep.subr.bf16.mxu0 %v3306
    %4651 = vmatpush1.bf16.msra.mxu0 %v3305
    %4652 = vmatprep.subr.bf16.mxu0 %v3310
    %4653 = vmatpush1.bf16.msra.mxu0 %v3309
    %4654 = vmatprep.subr.bf16.mxu0 %v3314
    %4655 = vmatpush1.bf16.msra.mxu0 %v3313
    %4656 = vmatprep.subr.bf16.mxu0 %v3318
    %4657 = vmatpush1.bf16.msra.mxu0 %v3317
    %4658 = vmatprep.subr.bf16.mxu0 %v3322
    %4659 = vmatpush1.bf16.msra.mxu0 %v3321
    %4660 = vmatprep.subr.bf16.mxu0 %v3326
    %4661 = vmatpush1.bf16.msra.mxu0 %v3325
    %4662 = vmatprep.subr.bf16.mxu0 %v3330
    %4663 = vmatpush1.bf16.msra.mxu0 %v3329
    %4664 = vmatprep.subr.bf16.mxu0 %v3334
    %4665 = vmatpush1.bf16.msra.mxu0 %v3333
    %4666 = vmatprep.subr.bf16.mxu0 %v3338
    %4667 = vmatpush1.bf16.msra.mxu0 %v3337
    %4668 = vmatprep.subr.bf16.mxu0 %v3342
    %4669 = vmatpush1.bf16.msra.mxu0 %v3341
    %4670 = vmatprep.subr.bf16.mxu0 %v3346
    %4671 = vmatpush1.bf16.msra.mxu0 %v3345
    %4672 = vmatprep.subr.bf16.mxu0 %v3350
    %4673 = vmatpush1.bf16.msra.mxu0 %v3349
    %4674 = vmatprep.subr.bf16.mxu0 %v3354
    %4675 = vmatpush1.bf16.msra.mxu0 %v3353
    %4676 = vmatprep.subr.bf16.mxu0 %v3358
    %4677 = vmatpush1.bf16.msra.mxu0 %v3357
    %4678 = vmatprep.subr.bf16.mxu0 %v3362
    %4679 = vmatpush1.bf16.msra.mxu0 %v3361
    %4680 = vmatprep.subr.bf16.mxu0 %v3366
    %4681 = vmatpush1.bf16.msra.mxu0 %v3365
    %4682 = vmatprep.mubr.bf16.mxu0 %v1178
    %4683 = vmatmul.mubr.bf16.gmra.mrb[0].mxu0 %v1177
    %v4684 = vpop.f32.mrb[0].mxu0
    %v4685 = vadd.f32 %v4642, %v4684
    %v4686 = vpop.f32.mrb[0].mxu0
    %v4687 = vadd.f32 %v4644, %v4686
    %v4688 = vpop.f32.mrb[0].mxu0
    %v4689 = vadd.f32 %v4646, %v4688
    %v4690 = vpop.f32.mrb[0].mxu0
    %v4691 = vadd.f32 %v4648, %v4690
    %4692 = vdwg.mxu0
    %4693 = vmatprep.subr.bf16.mxu0 %v3370
    %4694 = vmatpush1.bf16.msra.mxu0 %v3369
    %4695 = vmatprep.subr.bf16.mxu0 %v3374
    %4696 = vmatpush1.bf16.msra.mxu0 %v3373
    %4697 = vmatprep.subr.bf16.mxu0 %v3378
    %4698 = vmatpush1.bf16.msra.mxu0 %v3377
    %4699 = vmatprep.subr.bf16.mxu0 %v3382
    %4700 = vmatpush1.bf16.msra.mxu0 %v3381
    %4701 = vmatprep.subr.bf16.mxu0 %v3386
    %4702 = vmatpush1.bf16.msra.mxu0 %v3385
    %4703 = vmatprep.subr.bf16.mxu0 %v3390
    %4704 = vmatpush1.bf16.msra.mxu0 %v3389
    %4705 = vmatprep.subr.bf16.mxu0 %v3394
    %4706 = vmatpush1.bf16.msra.mxu0 %v3393
    %4707 = vmatprep.subr.bf16.mxu0 %v3398
    %4708 = vmatpush1.bf16.msra.mxu0 %v3397
    %4709 = vmatprep.subr.bf16.mxu0 %v3402
    %4710 = vmatpush1.bf16.msra.mxu0 %v3401
    %4711 = vmatprep.subr.bf16.mxu0 %v3406
    %4712 = vmatpush1.bf16.msra.mxu0 %v3405
    %4713 = vmatprep.subr.bf16.mxu0 %v3410
    %4714 = vmatpush1.bf16.msra.mxu0 %v3409
    %4715 = vmatprep.subr.bf16.mxu0 %v3414
    %4716 = vmatpush1.bf16.msra.mxu0 %v3413
    %4717 = vmatprep.subr.bf16.mxu0 %v3418
    %4718 = vmatpush1.bf16.msra.mxu0 %v3417
    %4719 = vmatprep.subr.bf16.mxu0 %v3422
    %4720 = vmatpush1.bf16.msra.mxu0 %v3421
    %4721 = vmatprep.subr.bf16.mxu0 %v3426
    %4722 = vmatpush1.bf16.msra.mxu0 %v3425
    %4723 = vmatprep.subr.bf16.mxu0 %v3430
    %4724 = vmatpush1.bf16.msra.mxu0 %v3429
    %4725 = vmatprep.mubr.bf16.mxu0 %v1180
    %4726 = vmatmul.mubr.bf16.gmra.mrb[0].mxu0 %v1179
    %v4727 = vpop.f32.mrb[0].mxu0
    %v4728 = vadd.f32 %v4685, %v4727
    %v4729 = vpop.f32.mrb[0].mxu0
    %v4730 = vadd.f32 %v4687, %v4729
    %v4731 = vpop.f32.mrb[0].mxu0
    %v4732 = vadd.f32 %v4689, %v4731
    %v4733 = vpop.f32.mrb[0].mxu0
    %v4734 = vadd.f32 %v4691, %v4733
    %4735 = vdwg.mxu0
    %4736 = vmatprep.subr.bf16.mxu0 %v3434
    %4737 = vmatpush1.bf16.msra.mxu0 %v3433
    %4738 = vmatprep.subr.bf16.mxu0 %v3438
    %4739 = vmatpush1.bf16.msra.mxu0 %v3437
    %4740 = vmatprep.subr.bf16.mxu0 %v3442
    %4741 = vmatpush1.bf16.msra.mxu0 %v3441
    %4742 = vmatprep.subr.bf16.mxu0 %v3446
    %4743 = vmatpush1.bf16.msra.mxu0 %v3445
    %4744 = vmatprep.subr.bf16.mxu0 %v3450
    %4745 = vmatpush1.bf16.msra.mxu0 %v3449
    %4746 = vmatprep.subr.bf16.mxu0 %v3454
    %4747 = vmatpush1.bf16.msra.mxu0 %v3453
    %4748 = vmatprep.subr.bf16.mxu0 %v3458
    %4749 = vmatpush1.bf16.msra.mxu0 %v3457
    %4750 = vmatprep.subr.bf16.mxu0 %v3462
    %4751 = vmatpush1.bf16.msra.mxu0 %v3461
    %4752 = vmatprep.subr.bf16.mxu0 %v3466
    %4753 = vmatpush1.bf16.msra.mxu0 %v3465
    %4754 = vmatprep.subr.bf16.mxu0 %v3470
    %4755 = vmatpush1.bf16.msra.mxu0 %v3469
    %4756 = vmatprep.subr.bf16.mxu0 %v3474
    %4757 = vmatpush1.bf16.msra.mxu0 %v3473
    %4758 = vmatprep.subr.bf16.mxu0 %v3478
    %4759 = vmatpush1.bf16.msra.mxu0 %v3477
    %4760 = vmatprep.subr.bf16.mxu0 %v3482
    %4761 = vmatpush1.bf16.msra.mxu0 %v3481
    %4762 = vmatprep.subr.bf16.mxu0 %v3486
    %4763 = vmatpush1.bf16.msra.mxu0 %v3485
    %4764 = vmatprep.subr.bf16.mxu0 %v3490
    %4765 = vmatpush1.bf16.msra.mxu0 %v3489
    %4766 = vmatprep.subr.bf16.mxu0 %v3494
    %4767 = vmatpush1.bf16.msra.mxu0 %v3493
    %4768 = vmatprep.mubr.bf16.mxu0 %v1182
    %4769 = vmatmul.mubr.bf16.gmra.mrb[0].mxu0 %v1181
    %v4770 = vpop.f32.mrb[0].mxu0
    %v4771 = vadd.f32 %v4728, %v4770
    %v4772 = vpop.f32.mrb[0].mxu0
    %v4773 = vadd.f32 %v4730, %v4772
    %v4774 = vpop.f32.mrb[0].mxu0
    %v4775 = vadd.f32 %v4732, %v4774
    %v4776 = vpop.f32.mrb[0].mxu0
    %v4777 = vadd.f32 %v4734, %v4776
    %4778 = vdwg.mxu0
    %4779 = vmatprep.subr.bf16.mxu0 %v3498
    %4780 = vmatpush1.bf16.msra.mxu0 %v3497
    %4781 = vmatprep.subr.bf16.mxu0 %v3502
    %4782 = vmatpush1.bf16.msra.mxu0 %v3501
    %4783 = vmatprep.subr.bf16.mxu0 %v3506
    %4784 = vmatpush1.bf16.msra.mxu0 %v3505
    %4785 = vmatprep.subr.bf16.mxu0 %v3510
    %4786 = vmatpush1.bf16.msra.mxu0 %v3509
    %4787 = vmatprep.subr.bf16.mxu0 %v3514
    %4788 = vmatpush1.bf16.msra.mxu0 %v3513
    %4789 = vmatprep.subr.bf16.mxu0 %v3518
    %4790 = vmatpush1.bf16.msra.mxu0 %v3517
    %4791 = vmatprep.subr.bf16.mxu0 %v3522
    %4792 = vmatpush1.bf16.msra.mxu0 %v3521
    %4793 = vmatprep.subr.bf16.mxu0 %v3526
    %4794 = vmatpush1.bf16.msra.mxu0 %v3525
    %4795 = vmatprep.subr.bf16.mxu0 %v3530
    %4796 = vmatpush1.bf16.msra.mxu0 %v3529
    %4797 = vmatprep.subr.bf16.mxu0 %v3534
    %4798 = vmatpush1.bf16.msra.mxu0 %v3533
    %4799 = vmatprep.subr.bf16.mxu0 %v3538
    %4800 = vmatpush1.bf16.msra.mxu0 %v3537
    %4801 = vmatprep.subr.bf16.mxu0 %v3542
    %4802 = vmatpush1.bf16.msra.mxu0 %v3541
    %4803 = vmatprep.subr.bf16.mxu0 %v3546
    %4804 = vmatpush1.bf16.msra.mxu0 %v3545
    %4805 = vmatprep.subr.bf16.mxu0 %v3550
    %4806 = vmatpush1.bf16.msra.mxu0 %v3549
    %4807 = vmatprep.subr.bf16.mxu0 %v3554
    %4808 = vmatpush1.bf16.msra.mxu0 %v3553
    %4809 = vmatprep.subr.bf16.mxu0 %v3558
    %4810 = vmatpush1.bf16.msra.mxu0 %v3557
    %4811 = vmatprep.mubr.bf16.mxu0 %v1184
    %4812 = vmatmul.mubr.bf16.gmra.mrb[0].mxu0 %v1183
    %v4813 = vpop.f32.mrb[0].mxu0
    %v4814 = vadd.f32 %v4771, %v4813
    %v4815 = vpop.f32.mrb[0].mxu0
    %v4816 = vadd.f32 %v4773, %v4815
    %v4817 = vpop.f32.mrb[0].mxu0
    %v4818 = vadd.f32 %v4775, %v4817
    %v4819 = vpop.f32.mrb[0].mxu0
    %v4820 = vadd.f32 %v4777, %v4819
    %4821 = vdwg.mxu0
    %4822 = vmatprep.subr.bf16.mxu0 %v3562
    %4823 = vmatpush1.bf16.msra.mxu0 %v3561
    %4824 = vmatprep.subr.bf16.mxu0 %v3566
    %4825 = vmatpush1.bf16.msra.mxu0 %v3565
    %4826 = vmatprep.subr.bf16.mxu0 %v3570
    %4827 = vmatpush1.bf16.msra.mxu0 %v3569
    %4828 = vmatprep.subr.bf16.mxu0 %v3574
    %4829 = vmatpush1.bf16.msra.mxu0 %v3573
    %4830 = vmatprep.subr.bf16.mxu0 %v3578
    %4831 = vmatpush1.bf16.msra.mxu0 %v3577
    %4832 = vmatprep.subr.bf16.mxu0 %v3582
    %4833 = vmatpush1.bf16.msra.mxu0 %v3581
    %4834 = vmatprep.subr.bf16.mxu0 %v3586
    %4835 = vmatpush1.bf16.msra.mxu0 %v3585
    %4836 = vmatprep.subr.bf16.mxu0 %v3590
    %4837 = vmatpush1.bf16.msra.mxu0 %v3589
    %4838 = vmatprep.subr.bf16.mxu0 %v3594
    %4839 = vmatpush1.bf16.msra.mxu0 %v3593
    %4840 = vmatprep.subr.bf16.mxu0 %v3598
    %4841 = vmatpush1.bf16.msra.mxu0 %v3597
    %4842 = vmatprep.subr.bf16.mxu0 %v3602
    %4843 = vmatpush1.bf16.msra.mxu0 %v3601
    %4844 = vmatprep.subr.bf16.mxu0 %v3606
    %4845 = vmatpush1.bf16.msra.mxu0 %v3605
    %4846 = vmatprep.subr.bf16.mxu0 %v3610
    %4847 = vmatpush1.bf16.msra.mxu0 %v3609
    %4848 = vmatprep.subr.bf16.mxu0 %v3614
    %4849 = vmatpush1.bf16.msra.mxu0 %v3613
    %4850 = vmatprep.subr.bf16.mxu0 %v3618
    %4851 = vmatpush1.bf16.msra.mxu0 %v3617
    %4852 = vmatprep.subr.bf16.mxu0 %v3622
    %4853 = vmatpush1.bf16.msra.mxu0 %v3621
    %4854 = vmatprep.mubr.bf16.mxu0 %v1186
    %4855 = vmatmul.mubr.bf16.gmra.mrb[0].mxu0 %v1185
    %v4856 = vpop.f32.mrb[0].mxu0
    %v4857 = vadd.f32 %v4814, %v4856
    %v4858 = vpop.f32.mrb[0].mxu0
    %v4859 = vadd.f32 %v4816, %v4858
    %v4860 = vpop.f32.mrb[0].mxu0
    %v4861 = vadd.f32 %v4818, %v4860
    %v4862 = vpop.f32.mrb[0].mxu0
    %v4863 = vadd.f32 %v4820, %v4862
    %4864 = vdwg.mxu0
    %4865 = vmatprep.subr.bf16.mxu0 %v3626
    %4866 = vmatpush1.bf16.msra.mxu0 %v3625
    %4867 = vmatprep.subr.bf16.mxu0 %v3630
    %4868 = vmatpush1.bf16.msra.mxu0 %v3629
    %4869 = vmatprep.subr.bf16.mxu0 %v3634
    %4870 = vmatpush1.bf16.msra.mxu0 %v3633
    %4871 = vmatprep.subr.bf16.mxu0 %v3638
    %4872 = vmatpush1.bf16.msra.mxu0 %v3637
    %4873 = vmatprep.subr.bf16.mxu0 %v3642
    %4874 = vmatpush1.bf16.msra.mxu0 %v3641
    %4875 = vmatprep.subr.bf16.mxu0 %v3646
    %4876 = vmatpush1.bf16.msra.mxu0 %v3645
    %4877 = vmatprep.subr.bf16.mxu0 %v3650
    %4878 = vmatpush1.bf16.msra.mxu0 %v3649
    %4879 = vmatprep.subr.bf16.mxu0 %v3654
    %4880 = vmatpush1.bf16.msra.mxu0 %v3653
    %4881 = vmatprep.subr.bf16.mxu0 %v3658
    %4882 = vmatpush1.bf16.msra.mxu0 %v3657
    %4883 = vmatprep.subr.bf16.mxu0 %v3662
    %4884 = vmatpush1.bf16.msra.mxu0 %v3661
    %4885 = vmatprep.subr.bf16.mxu0 %v3666
    %4886 = vmatpush1.bf16.msra.mxu0 %v3665
    %4887 = vmatprep.subr.bf16.mxu0 %v3670
    %4888 = vmatpush1.bf16.msra.mxu0 %v3669
    %4889 = vmatprep.subr.bf16.mxu0 %v3674
    %4890 = vmatpush1.bf16.msra.mxu0 %v3673
    %4891 = vmatprep.subr.bf16.mxu0 %v3678
    %4892 = vmatpush1.bf16.msra.mxu0 %v3677
    %4893 = vmatprep.subr.bf16.mxu0 %v3682
    %4894 = vmatpush1.bf16.msra.mxu0 %v3681
    %4895 = vmatprep.subr.bf16.mxu0 %v3686
    %4896 = vmatpush1.bf16.msra.mxu0 %v3685
    %4897 = vmatprep.mubr.bf16.mxu0 %v1188
    %4898 = vmatmul.mubr.bf16.gmra.mrb[0].mxu0 %v1187
    %v4899 = vpop.f32.mrb[0].mxu0
    %v4900 = vadd.f32 %v4857, %v4899
    %v4901 = vpop.f32.mrb[0].mxu0
    %v4902 = vadd.f32 %v4859, %v4901
    %v4903 = vpop.f32.mrb[0].mxu0
    %v4904 = vadd.f32 %v4861, %v4903
    %v4905 = vpop.f32.mrb[0].mxu0
    %v4906 = vadd.f32 %v4863, %v4905
    %4907 = vdwg.mxu0
    %4908 = vmatprep.subr.bf16.mxu0 %v3690
    %4909 = vmatpush1.bf16.msra.mxu0 %v3689
    %4910 = vmatprep.subr.bf16.mxu0 %v3694
    %4911 = vmatpush1.bf16.msra.mxu0 %v3693
    %4912 = vmatprep.subr.bf16.mxu0 %v3698
    %4913 = vmatpush1.bf16.msra.mxu0 %v3697
    %4914 = vmatprep.subr.bf16.mxu0 %v3702
    %4915 = vmatpush1.bf16.msra.mxu0 %v3701
    %4916 = vmatprep.subr.bf16.mxu0 %v3706
    %4917 = vmatpush1.bf16.msra.mxu0 %v3705
    %4918 = vmatprep.subr.bf16.mxu0 %v3710
    %4919 = vmatpush1.bf16.msra.mxu0 %v3709
    %4920 = vmatprep.subr.bf16.mxu0 %v3714
    %4921 = vmatpush1.bf16.msra.mxu0 %v3713
    %4922 = vmatprep.subr.bf16.mxu0 %v3718
    %4923 = vmatpush1.bf16.msra.mxu0 %v3717
    %4924 = vmatprep.subr.bf16.mxu0 %v3722
    %4925 = vmatpush1.bf16.msra.mxu0 %v3721
    %4926 = vmatprep.subr.bf16.mxu0 %v3726
    %4927 = vmatpush1.bf16.msra.mxu0 %v3725
    %4928 = vmatprep.subr.bf16.mxu0 %v3730
    %4929 = vmatpush1.bf16.msra.mxu0 %v3729
    %4930 = vmatprep.subr.bf16.mxu0 %v3734
    %4931 = vmatpush1.bf16.msra.mxu0 %v3733
    %4932 = vmatprep.subr.bf16.mxu0 %v3738
    %4933 = vmatpush1.bf16.msra.mxu0 %v3737
    %4934 = vmatprep.subr.bf16.mxu0 %v3742
    %4935 = vmatpush1.bf16.msra.mxu0 %v3741
    %4936 = vmatprep.subr.bf16.mxu0 %v3746
    %4937 = vmatpush1.bf16.msra.mxu0 %v3745
    %4938 = vmatprep.subr.bf16.mxu0 %v3750
    %4939 = vmatpush1.bf16.msra.mxu0 %v3749
    %4940 = vmatprep.mubr.bf16.mxu0 %v1190
    %4941 = vmatmul.mubr.bf16.gmra.mrb[0].mxu0 %v1189
    %v4942 = vpop.f32.mrb[0].mxu0
    %v4943 = vadd.f32 %v4900, %v4942
    %v4944 = vpop.f32.mrb[0].mxu0
    %v4945 = vadd.f32 %v4902, %v4944
    %v4946 = vpop.f32.mrb[0].mxu0
    %v4947 = vadd.f32 %v4904, %v4946
    %v4948 = vpop.f32.mrb[0].mxu0
    %v4949 = vadd.f32 %v4906, %v4948
    %4950 = vdwg.mxu0
    %v4951 = vpack.c.bf16 %v4603, %v4599
    %v4952 = vpack.c.bf16 %v4605, %v4601
    %v4953 = vpack.c.bf16 %v4947, %v4943
    %v4954 = vpack.c.bf16 %v4949, %v4945
    %v4955 = vld [vmem:[#allocation10] sm:$0xf]
    %v4957 = vlaneseq
    %v4958 = vshrl.u32 %v4957, 7
    %v4959 = vsub.s32 0, %v4958
    %v4960 = vrot.slane %v4955, %v4959
    %v4961 = vlaneseq
    %v4962 = vshrl.u32 %v4961, 7
    %v4963 = vsub.s32 1, %v4962
    %v4964 = vrot.slane %v4955, %v4963
    %v4965 = vlaneseq
    %v4966 = vshrl.u32 %v4965, 7
    %v4967 = vsub.s32 2, %v4966
    %v4968 = vrot.slane %v4955, %v4967
    %v4969 = vlaneseq
    %v4970 = vshrl.u32 %v4969, 7
    %v4971 = vsub.s32 3, %v4970
    %v4972 = vrot.slane %v4955, %v4971
    %v4977 = vpack.c.bf16 %v4960, %v4960
    %v4978 = vpack.c.bf16 %v4964, %v4964
    %v4979 = vpack.c.bf16 %v4968, %v4968
    %v4980 = vpack.c.bf16 %v4972, %v4972
    %v4982 = vpack.i.b16 %v4977, %v4977
    %v4984 = vlaneseq
    %v4985 = vshrl.u32 %v4984, 7
    %v4986 = vsub.s32 0, %v4985
    %v4987 = vrot.slane %v4982, %v4986
    %v4989 = vpack.i.b16 %v4978, %v4978
    %v4991 = vlaneseq
    %v4992 = vshrl.u32 %v4991, 7
    %v4993 = vsub.s32 0, %v4992
    %v4994 = vrot.slane %v4989, %v4993
    %v4996 = vpack.i.b16 %v4979, %v4979
    %v4998 = vlaneseq
    %v4999 = vshrl.u32 %v4998, 7
    %v5000 = vsub.s32 0, %v4999
    %v5001 = vrot.slane %v4996, %v5000
    %v5003 = vpack.i.b16 %v4980, %v4980
    %v5005 = vlaneseq
    %v5006 = vshrl.u32 %v5005, 7
    %v5007 = vsub.s32 0, %v5006
    %v5008 = vrot.slane %v5003, %v5007
    %v5009 = vadd.bf16 %v4951, %v4987
    %v5010 = vadd.bf16 %v4952, %v4994
    %v5011 = vadd.bf16 %v4953, %v5001
    %v5012 = vadd.bf16 %v4954, %v5008
    %v5013 = vmul.bf16 %v5009, 1036860877
    %v5014 = vmul.bf16 %v5010, 1036860877
    %v5015 = vmul.bf16 %v5011, 1036860877
    %v5016 = vmul.bf16 %v5012, 1036860877
    %v5017 = vmax.bf16 %v5009, %v5013
    %v5018 = vmax.bf16 %v5010, %v5014
    %v5019 = vmax.bf16 %v5011, %v5015
    %v5020 = vmax.bf16 %v5012, %v5016
    %v5021 = vld [vmem:[#allocation11] sm:$0xf]
    %v5022 = vld [vmem:[#allocation11 + $0x4] sm:$0xf]
    %v5023 = vld [vmem:[#allocation11 + $0x8] sm:$0xf]
    %v5024 = vld [vmem:[#allocation11 + $0xc] sm:$0xf]
    %v5025 = vld [vmem:[#allocation11 + $0x10] sm:$0xf]
    %v5026 = vld [vmem:[#allocation11 + $0x14] sm:$0xf]
    %v5027 = vld [vmem:[#allocation11 + $0x18] sm:$0xf]
    %v5028 = vld [vmem:[#allocation11 + $0x1c] sm:$0xf]
    %v5029 = vld [vmem:[#allocation11 + $0x20] sm:$0xf]
    %v5030 = vld [vmem:[#allocation11 + $0x24] sm:$0xf]
    %v5031 = vld [vmem:[#allocation11 + $0x28] sm:$0xf]
    %v5032 = vld [vmem:[#allocation11 + $0x2c] sm:$0xf]
    %v5033 = vld [vmem:[#allocation11 + $0x30] sm:$0xf]
    %v5034 = vld [vmem:[#allocation11 + $0x34] sm:$0xf]
    %v5035 = vld [vmem:[#allocation11 + $0x38] sm:$0xf]
    %v5036 = vld [vmem:[#allocation11 + $0x3c] sm:$0xf]
    %v5037 = vld [vmem:[#allocation11 + $0x40] sm:$0xf]
    %v5038 = vld [vmem:[#allocation11 + $0x44] sm:$0xf]
    %v5039 = vld [vmem:[#allocation11 + $0x48] sm:$0xf]
    %v5040 = vld [vmem:[#allocation11 + $0x4c] sm:$0xf]
    %v5041 = vld [vmem:[#allocation11 + $0x50] sm:$0xf]
    %v5042 = vld [vmem:[#allocation11 + $0x54] sm:$0xf]
    %v5043 = vld [vmem:[#allocation11 + $0x58] sm:$0xf]
    %v5044 = vld [vmem:[#allocation11 + $0x5c] sm:$0xf]
    %v5045 = vld [vmem:[#allocation11 + $0x60] sm:$0xf]
    %v5046 = vld [vmem:[#allocation11 + $0x64] sm:$0xf]
    %v5047 = vld [vmem:[#allocation11 + $0x68] sm:$0xf]
    %v5048 = vld [vmem:[#allocation11 + $0x6c] sm:$0xf]
    %v5049 = vld [vmem:[#allocation11 + $0x70] sm:$0xf]
    %v5050 = vld [vmem:[#allocation11 + $0x74] sm:$0xf]
    %v5051 = vld [vmem:[#allocation11 + $0x78] sm:$0xf]
    %v5052 = vld [vmem:[#allocation11 + $0x7c] sm:$0xf]
    %v5053 = vld [vmem:[#allocation11 + $0x80] sm:$0xf]
    %v5054 = vld [vmem:[#allocation11 + $0x84] sm:$0xf]
    %v5055 = vld [vmem:[#allocation11 + $0x88] sm:$0xf]
    %v5056 = vld [vmem:[#allocation11 + $0x8c] sm:$0xf]
    %v5057 = vld [vmem:[#allocation11 + $0x90] sm:$0xf]
    %v5058 = vld [vmem:[#allocation11 + $0x94] sm:$0xf]
    %v5059 = vld [vmem:[#allocation11 + $0x98] sm:$0xf]
    %v5060 = vld [vmem:[#allocation11 + $0x9c] sm:$0xf]
    %v5061 = vld [vmem:[#allocation11 + $0xa0] sm:$0xf]
    %v5062 = vld [vmem:[#allocation11 + $0xa4] sm:$0xf]
    %v5063 = vld [vmem:[#allocation11 + $0xa8] sm:$0xf]
    %v5064 = vld [vmem:[#allocation11 + $0xac] sm:$0xf]
    %v5065 = vld [vmem:[#allocation11 + $0xb0] sm:$0xf]
    %v5066 = vld [vmem:[#allocation11 + $0xb4] sm:$0xf]
    %v5067 = vld [vmem:[#allocation11 + $0xb8] sm:$0xf]
    %v5068 = vld [vmem:[#allocation11 + $0xbc] sm:$0xf]
    %v5069 = vld [vmem:[#allocation11 + $0xc0] sm:$0xf]
    %v5070 = vld [vmem:[#allocation11 + $0xc4] sm:$0xf]
    %v5071 = vld [vmem:[#allocation11 + $0xc8] sm:$0xf]
    %v5072 = vld [vmem:[#allocation11 + $0xcc] sm:$0xf]
    %v5073 = vld [vmem:[#allocation11 + $0xd0] sm:$0xf]
    %v5074 = vld [vmem:[#allocation11 + $0xd4] sm:$0xf]
    %v5075 = vld [vmem:[#allocation11 + $0xd8] sm:$0xf]
    %v5076 = vld [vmem:[#allocation11 + $0xdc] sm:$0xf]
    %v5077 = vld [vmem:[#allocation11 + $0xe0] sm:$0xf]
    %v5078 = vld [vmem:[#allocation11 + $0xe4] sm:$0xf]
    %v5079 = vld [vmem:[#allocation11 + $0xe8] sm:$0xf]
    %v5080 = vld [vmem:[#allocation11 + $0xec] sm:$0xf]
    %v5081 = vld [vmem:[#allocation11 + $0xf0] sm:$0xf]
    %v5082 = vld [vmem:[#allocation11 + $0xf4] sm:$0xf]
    %v5083 = vld [vmem:[#allocation11 + $0xf8] sm:$0xf]
    %v5084 = vld [vmem:[#allocation11 + $0xfc] sm:$0xf]
    %v5149 = vunpack.c.l.b16 %v5021
    %v5150 = vunpack.c.l.b16 %v5022
    %v5151 = vunpack.c.l.b16 %v5023
    %v5152 = vunpack.c.l.b16 %v5024
    %v5153 = vunpack.c.l.b16 %v5025
    %v5154 = vunpack.c.l.b16 %v5026
    %v5155 = vunpack.c.l.b16 %v5027
    %v5156 = vunpack.c.l.b16 %v5028
    %v5157 = vunpack.c.l.b16 %v5029
    %v5158 = vunpack.c.l.b16 %v5030
    %v5159 = vunpack.c.l.b16 %v5031
    %v5160 = vunpack.c.l.b16 %v5032
    %v5161 = vunpack.c.l.b16 %v5033
    %v5162 = vunpack.c.l.b16 %v5034
    %v5163 = vunpack.c.l.b16 %v5035
    %v5164 = vunpack.c.l.b16 %v5036
    %v5165 = vunpack.c.l.b16 %v5037
    %v5166 = vunpack.c.l.b16 %v5038
    %v5167 = vunpack.c.l.b16 %v5039
    %v5168 = vunpack.c.l.b16 %v5040
    %v5169 = vunpack.c.l.b16 %v5041
    %v5170 = vunpack.c.l.b16 %v5042
    %v5171 = vunpack.c.l.b16 %v5043
    %v5172 = vunpack.c.l.b16 %v5044
    %v5173 = vunpack.c.l.b16 %v5045
    %v5174 = vunpack.c.l.b16 %v5046
    %v5175 = vunpack.c.l.b16 %v5047
    %v5176 = vunpack.c.l.b16 %v5048
    %v5177 = vunpack.c.l.b16 %v5049
    %v5178 = vunpack.c.l.b16 %v5050
    %v5179 = vunpack.c.l.b16 %v5051
    %v5180 = vunpack.c.l.b16 %v5052
    %v5181 = vunpack.c.l.b16 %v5053
    %v5182 = vunpack.c.l.b16 %v5054
    %v5183 = vunpack.c.l.b16 %v5055
    %v5184 = vunpack.c.l.b16 %v5056
    %v5185 = vunpack.c.l.b16 %v5057
    %v5186 = vunpack.c.l.b16 %v5058
    %v5187 = vunpack.c.l.b16 %v5059
    %v5188 = vunpack.c.l.b16 %v5060
    %v5189 = vunpack.c.l.b16 %v5061
    %v5190 = vunpack.c.l.b16 %v5062
    %v5191 = vunpack.c.l.b16 %v5063
    %v5192 = vunpack.c.l.b16 %v5064
    %v5193 = vunpack.c.l.b16 %v5065
    %v5194 = vunpack.c.l.b16 %v5066
    %v5195 = vunpack.c.l.b16 %v5067
    %v5196 = vunpack.c.l.b16 %v5068
    %v5197 = vunpack.c.l.b16 %v5069
    %v5198 = vunpack.c.l.b16 %v5070
    %v5199 = vunpack.c.l.b16 %v5071
    %v5200 = vunpack.c.l.b16 %v5072
    %v5201 = vunpack.c.l.b16 %v5073
    %v5202 = vunpack.c.l.b16 %v5074
    %v5203 = vunpack.c.l.b16 %v5075
    %v5204 = vunpack.c.l.b16 %v5076
    %v5205 = vunpack.c.l.b16 %v5077
    %v5206 = vunpack.c.l.b16 %v5078
    %v5207 = vunpack.c.l.b16 %v5079
    %v5208 = vunpack.c.l.b16 %v5080
    %v5209 = vunpack.c.l.b16 %v5081
    %v5210 = vunpack.c.l.b16 %v5082
    %v5211 = vunpack.c.l.b16 %v5083
    %v5212 = vunpack.c.l.b16 %v5084
    %v5213 = vpack.c.b16 %v5150, %v5149
    %v5214 = vpack.c.b16 %v5152, %v5151
    %v5215 = vpack.c.b16 %v5154, %v5153
    %v5216 = vpack.c.b16 %v5156, %v5155
    %v5217 = vpack.c.b16 %v5158, %v5157
    %v5218 = vpack.c.b16 %v5160, %v5159
    %v5219 = vpack.c.b16 %v5162, %v5161
    %v5220 = vpack.c.b16 %v5164, %v5163
    %v5221 = vpack.c.b16 %v5166, %v5165
    %v5222 = vpack.c.b16 %v5168, %v5167
    %v5223 = vpack.c.b16 %v5170, %v5169
    %v5224 = vpack.c.b16 %v5172, %v5171
    %v5225 = vpack.c.b16 %v5174, %v5173
    %v5226 = vpack.c.b16 %v5176, %v5175
    %v5227 = vpack.c.b16 %v5178, %v5177
    %v5228 = vpack.c.b16 %v5180, %v5179
    %v5229 = vpack.c.b16 %v5182, %v5181
    %v5230 = vpack.c.b16 %v5184, %v5183
    %v5231 = vpack.c.b16 %v5186, %v5185
    %v5232 = vpack.c.b16 %v5188, %v5187
    %v5233 = vpack.c.b16 %v5190, %v5189
    %v5234 = vpack.c.b16 %v5192, %v5191
    %v5235 = vpack.c.b16 %v5194, %v5193
    %v5236 = vpack.c.b16 %v5196, %v5195
    %v5237 = vpack.c.b16 %v5198, %v5197
    %v5238 = vpack.c.b16 %v5200, %v5199
    %v5239 = vpack.c.b16 %v5202, %v5201
    %v5240 = vpack.c.b16 %v5204, %v5203
    %v5241 = vpack.c.b16 %v5206, %v5205
    %v5242 = vpack.c.b16 %v5208, %v5207
    %v5243 = vpack.c.b16 %v5210, %v5209
    %v5244 = vpack.c.b16 %v5212, %v5211
    %5277 = vmatprep.subr.bf16.mxu0 0
    %5278 = vmatpush1.bf16.msra.mxu0 %v5213
    %5279 = vmatprep.subr.bf16.mxu0 0
    %5280 = vmatpush1.bf16.msra.mxu0 %v5214
    %5281 = vmatprep.subr.bf16.mxu0 0
    %5282 = vmatpush1.bf16.msra.mxu0 %v5215
    %5283 = vmatprep.subr.bf16.mxu0 0
    %5284 = vmatpush1.bf16.msra.mxu0 %v5216
    %5285 = vmatprep.subr.bf16.mxu0 0
    %5286 = vmatpush1.bf16.msra.mxu0 %v5217
    %5287 = vmatprep.subr.bf16.mxu0 0
    %5288 = vmatpush1.bf16.msra.mxu0 %v5218
    %5289 = vmatprep.subr.bf16.mxu0 0
    %5290 = vmatpush1.bf16.msra.mxu0 %v5219
    %5291 = vmatprep.subr.bf16.mxu0 0
    %5292 = vmatpush1.bf16.msra.mxu0 %v5220
    %5293 = vmatprep.subr.bf16.mxu0 0
    %5294 = vmatpush1.bf16.msra.mxu0 %v5221
    %5295 = vmatprep.subr.bf16.mxu0 0
    %5296 = vmatpush1.bf16.msra.mxu0 %v5222
    %5297 = vmatprep.subr.bf16.mxu0 0
    %5298 = vmatpush1.bf16.msra.mxu0 %v5223
    %5299 = vmatprep.subr.bf16.mxu0 0
    %5300 = vmatpush1.bf16.msra.mxu0 %v5224
    %5301 = vmatprep.subr.bf16.mxu0 0
    %5302 = vmatpush1.bf16.msra.mxu0 %v5225
    %5303 = vmatprep.subr.bf16.mxu0 0
    %5304 = vmatpush1.bf16.msra.mxu0 %v5226
    %5305 = vmatprep.subr.bf16.mxu0 0
    %5306 = vmatpush1.bf16.msra.mxu0 %v5227
    %5307 = vmatprep.subr.bf16.mxu0 0
    %5308 = vmatpush1.bf16.msra.mxu0 %v5228
    %5309 = vmatprep.mubr.bf16.mxu0 %v5018
    %5310 = vmatmul.mubr.bf16.gmra.mrb[0].mxu0 %v5017
    %v5311 = vpop.f32.mrb[0].mxu0
    %v5312 = vadd.f32 0.0, %v5311
    %v5313 = vpop.f32.mrb[0].mxu0
    %v5314 = vpop.f32.mrb[0].mxu0
    %v5315 = vadd.f32 0.0, %v5314
    %v5316 = vpop.f32.mrb[0].mxu0
    %5317 = vdwg.mxu0
    %5318 = vmatprep.subr.bf16.mxu0 0
    %5319 = vmatpush1.bf16.msra.mxu0 %v5229
    %5320 = vmatprep.subr.bf16.mxu0 0
    %5321 = vmatpush1.bf16.msra.mxu0 %v5230
    %5322 = vmatprep.subr.bf16.mxu0 0
    %5323 = vmatpush1.bf16.msra.mxu0 %v5231
    %5324 = vmatprep.subr.bf16.mxu0 0
    %5325 = vmatpush1.bf16.msra.mxu0 %v5232
    %5326 = vmatprep.subr.bf16.mxu0 0
    %5327 = vmatpush1.bf16.msra.mxu0 %v5233
    %5328 = vmatprep.subr.bf16.mxu0 0
    %5329 = vmatpush1.bf16.msra.mxu0 %v5234
    %5330 = vmatprep.subr.bf16.mxu0 0
    %5331 = vmatpush1.bf16.msra.mxu0 %v5235
    %5332 = vmatprep.subr.bf16.mxu0 0
    %5333 = vmatpush1.bf16.msra.mxu0 %v5236
    %5334 = vmatprep.subr.bf16.mxu0 0
    %5335 = vmatpush1.bf16.msra.mxu0 %v5237
    %5336 = vmatprep.subr.bf16.mxu0 0
    %5337 = vmatpush1.bf16.msra.mxu0 %v5238
    %5338 = vmatprep.subr.bf16.mxu0 0
    %5339 = vmatpush1.bf16.msra.mxu0 %v5239
    %5340 = vmatprep.subr.bf16.mxu0 0
    %5341 = vmatpush1.bf16.msra.mxu0 %v5240
    %5342 = vmatprep.subr.bf16.mxu0 0
    %5343 = vmatpush1.bf16.msra.mxu0 %v5241
    %5344 = vmatprep.subr.bf16.mxu0 0
    %5345 = vmatpush1.bf16.msra.mxu0 %v5242
    %5346 = vmatprep.subr.bf16.mxu0 0
    %5347 = vmatpush1.bf16.msra.mxu0 %v5243
    %5348 = vmatprep.subr.bf16.mxu0 0
    %5349 = vmatpush1.bf16.msra.mxu0 %v5244
    %5350 = vmatprep.mubr.bf16.mxu0 %v5020
    %5351 = vmatmul.mubr.bf16.gmra.mrb[0].mxu0 %v5019
    %v5352 = vpop.f32.mrb[0].mxu0
    %v5353 = vadd.f32 %v5312, %v5352
    %v5354 = vpop.f32.mrb[0].mxu0
    %v5355 = vpop.f32.mrb[0].mxu0
    %v5356 = vadd.f32 %v5315, %v5355
    %v5357 = vpop.f32.mrb[0].mxu0
    %5358 = vdwg.mxu0
    %v5359 = vpack.c.bf16 %v5356, %v5353
    %v5360 = vld [vmem:[#allocation13] sm:$0x1]
    %v5361 = vpack.c.bf16 %v5360, %v5360
    %v5363 = vpack.i.b16 %v5361, %v5361
    %v5365 = vlaneseq
    %v5366 = vshrl.u32 %v5365, 7
    %v5367 = vsub.s32 0, %v5366
    %v5368 = vrot.slane %v5363, %v5367
    %v5369 = vadd.bf16 %v5359, %v5368
    %v5370 = vmul.bf16 %v5369, 1036860877
    %v5371 = vmax.bf16 %v5369, %v5370
    %v5372 = vld [vmem:[#allocation14] sm:$0xf]
    %v5373 = vld [vmem:[#allocation14 + $0x4] sm:$0xf]
    %v5374 = vld [vmem:[#allocation14 + $0x8] sm:$0xf]
    %v5375 = vld [vmem:[#allocation14 + $0xc] sm:$0xf]
    %v5376 = vld [vmem:[#allocation14 + $0x10] sm:$0xf]
    %v5377 = vld [vmem:[#allocation14 + $0x14] sm:$0xf]
    %v5378 = vld [vmem:[#allocation14 + $0x18] sm:$0xf]
    %v5379 = vld [vmem:[#allocation14 + $0x1c] sm:$0xf]
    %v5380 = vld [vmem:[#allocation14 + $0x20] sm:$0xf]
    %v5381 = vld [vmem:[#allocation14 + $0x24] sm:$0xf]
    %v5382 = vld [vmem:[#allocation14 + $0x28] sm:$0xf]
    %v5383 = vld [vmem:[#allocation14 + $0x2c] sm:$0xf]
    %v5384 = vld [vmem:[#allocation14 + $0x30] sm:$0xf]
    %v5385 = vld [vmem:[#allocation14 + $0x34] sm:$0xf]
    %v5386 = vld [vmem:[#allocation14 + $0x38] sm:$0xf]
    %v5387 = vld [vmem:[#allocation14 + $0x3c] sm:$0xf]
    %v5404 = vunpack.c.l.b16 %v5372
    %v5405 = vunpack.c.l.b16 %v5373
    %v5406 = vunpack.c.l.b16 %v5374
    %v5407 = vunpack.c.l.b16 %v5375
    %v5408 = vunpack.c.l.b16 %v5376
    %v5409 = vunpack.c.l.b16 %v5377
    %v5410 = vunpack.c.l.b16 %v5378
    %v5411 = vunpack.c.l.b16 %v5379
    %v5412 = vunpack.c.l.b16 %v5380
    %v5413 = vunpack.c.l.b16 %v5381
    %v5414 = vunpack.c.l.b16 %v5382
    %v5415 = vunpack.c.l.b16 %v5383
    %v5416 = vunpack.c.l.b16 %v5384
    %v5417 = vunpack.c.l.b16 %v5385
    %v5418 = vunpack.c.l.b16 %v5386
    %v5419 = vunpack.c.l.b16 %v5387
    %v5420 = vpack.c.b16 %v5405, %v5404
    %v5421 = vpack.c.b16 %v5407, %v5406
    %v5422 = vpack.c.b16 %v5409, %v5408
    %v5423 = vpack.c.b16 %v5411, %v5410
    %v5424 = vpack.c.b16 %v5413, %v5412
    %v5425 = vpack.c.b16 %v5415, %v5414
    %v5426 = vpack.c.b16 %v5417, %v5416
    %v5427 = vpack.c.b16 %v5419, %v5418
    %5436 = vmatprep.subr.bf16.mxu0 0
    %5437 = vmatpush1.bf16.msra.mxu0 %v5420
    %5438 = vmatprep.subr.bf16.mxu0 0
    %5439 = vmatpush1.bf16.msra.mxu0 %v5421
    %5440 = vmatprep.subr.bf16.mxu0 0
    %5441 = vmatpush1.bf16.msra.mxu0 %v5422
    %5442 = vmatprep.subr.bf16.mxu0 0
    %5443 = vmatpush1.bf16.msra.mxu0 %v5423
    %5444 = vmatprep.subr.bf16.mxu0 0
    %5445 = vmatpush1.bf16.msra.mxu0 %v5424
    %5446 = vmatprep.subr.bf16.mxu0 0
    %5447 = vmatpush1.bf16.msra.mxu0 %v5425
    %5448 = vmatprep.subr.bf16.mxu0 0
    %5449 = vmatpush1.bf16.msra.mxu0 %v5426
    %5450 = vmatprep.subr.bf16.mxu0 0
    %5451 = vmatpush1.bf16.msra.mxu0 %v5427
    %5452 = vmatprep.subr.bf16.mxu0 0
    %5453 = vmatpush1.bf16.msra.mxu0 0
    %5454 = vmatprep.subr.bf16.mxu0 0
    %5455 = vmatpush1.bf16.msra.mxu0 0
    %5456 = vmatprep.subr.bf16.mxu0 0
    %5457 = vmatpush1.bf16.msra.mxu0 0
    %5458 = vmatprep.subr.bf16.mxu0 0
    %5459 = vmatpush1.bf16.msra.mxu0 0
    %5460 = vmatprep.subr.bf16.mxu0 0
    %5461 = vmatpush1.bf16.msra.mxu0 0
    %5462 = vmatprep.subr.bf16.mxu0 0
    %5463 = vmatpush1.bf16.msra.mxu0 0
    %5464 = vmatprep.subr.bf16.mxu0 0
    %5465 = vmatpush1.bf16.msra.mxu0 0
    %5466 = vmatprep.subr.bf16.mxu0 0
    %5467 = vmatpush1.bf16.msra.mxu0 0
    %5468 = vmatprep.mubr.bf16.mxu0 0
    %5469 = vmatmul.mubr.bf16.gmra.mrb[0].mxu0 %v5371
    %v5470 = vpop.f32.mrb[0].mxu0
    %v5471 = vadd.f32 0.0, %v5470
    %v5472 = vpop.f32.mrb[0].mxu0
    %v5473 = vpop.f32.mrb[0].mxu0
    %v5474 = vadd.f32 0.0, %v5473
    %v5475 = vpop.f32.mrb[0].mxu0
    %5476 = vdwg.mxu0
    %v5477 = vpack.c.bf16 %v5474, %v5471
    %v5478 = vld [vmem:[#allocation16] sm:$0x1]
    %v5479 = vpack.c.bf16 %v5478, %v5478
    %v5481 = vpack.i.b16 %v5479, %v5479
    %v5483 = vlaneseq
    %v5484 = vshrl.u32 %v5483, 7
    %v5485 = vsub.s32 0, %v5484
    %v5486 = vrot.slane %v5481, %v5485
    %v5487 = vadd.bf16 %v5477, %v5486
    %v5488 = vmul.bf16 %v5487, 1036860877
    %v5489 = vmax.bf16 %v5487, %v5488
    %v5490 = vld [vmem:[#allocation17] sm:$0xf]
    %v5491 = vld [vmem:[#allocation17 + $0x4] sm:$0xf]
    %v5492 = vld [vmem:[#allocation17 + $0x8] sm:$0xf]
    %v5493 = vld [vmem:[#allocation17 + $0xc] sm:$0xf]
    %v5494 = vld [vmem:[#allocation17 + $0x10] sm:$0xf]
    %v5495 = vld [vmem:[#allocation17 + $0x14] sm:$0xf]
    %v5496 = vld [vmem:[#allocation17 + $0x18] sm:$0xf]
    %v5497 = vld [vmem:[#allocation17 + $0x1c] sm:$0xf]
    %v5498 = vld [vmem:[#allocation17 + $0x20] sm:$0xf]
    %v5499 = vld [vmem:[#allocation17 + $0x24] sm:$0xf]
    %v5500 = vld [vmem:[#allocation17 + $0x28] sm:$0xf]
    %v5501 = vld [vmem:[#allocation17 + $0x2c] sm:$0xf]
    %v5502 = vld [vmem:[#allocation17 + $0x30] sm:$0xf]
    %v5503 = vld [vmem:[#allocation17 + $0x34] sm:$0xf]
    %v5504 = vld [vmem:[#allocation17 + $0x38] sm:$0xf]
    %v5505 = vld [vmem:[#allocation17 + $0x3c] sm:$0xf]
    %v5522 = vunpack.c.l.b16 %v5490
    %v5523 = vunpack.c.l.b16 %v5491
    %v5524 = vunpack.c.l.b16 %v5492
    %v5525 = vunpack.c.l.b16 %v5493
    %v5526 = vunpack.c.l.b16 %v5494
    %v5527 = vunpack.c.l.b16 %v5495
    %v5528 = vunpack.c.l.b16 %v5496
    %v5529 = vunpack.c.l.b16 %v5497
    %v5530 = vunpack.c.l.b16 %v5498
    %v5531 = vunpack.c.l.b16 %v5499
    %v5532 = vunpack.c.l.b16 %v5500
    %v5533 = vunpack.c.l.b16 %v5501
    %v5534 = vunpack.c.l.b16 %v5502
    %v5535 = vunpack.c.l.b16 %v5503
    %v5536 = vunpack.c.l.b16 %v5504
    %v5537 = vunpack.c.l.b16 %v5505
    %v5538 = vpack.c.b16 %v5523, %v5522
    %v5539 = vpack.c.b16 %v5525, %v5524
    %v5540 = vpack.c.b16 %v5527, %v5526
    %v5541 = vpack.c.b16 %v5529, %v5528
    %v5542 = vpack.c.b16 %v5531, %v5530
    %v5543 = vpack.c.b16 %v5533, %v5532
    %v5544 = vpack.c.b16 %v5535, %v5534
    %v5545 = vpack.c.b16 %v5537, %v5536
    %5554 = vmatprep.subr.bf16.mxu0 0
    %5555 = vmatpush1.bf16.msra.mxu0 %v5538
    %5556 = vmatprep.subr.bf16.mxu0 0
    %5557 = vmatpush1.bf16.msra.mxu0 %v5539
    %5558 = vmatprep.subr.bf16.mxu0 0
    %5559 = vmatpush1.bf16.msra.mxu0 %v5540
    %5560 = vmatprep.subr.bf16.mxu0 0
    %5561 = vmatpush1.bf16.msra.mxu0 %v5541
    %5562 = vmatprep.subr.bf16.mxu0 0
    %5563 = vmatpush1.bf16.msra.mxu0 %v5542
    %5564 = vmatprep.subr.bf16.mxu0 0
    %5565 = vmatpush1.bf16.msra.mxu0 %v5543
    %5566 = vmatprep.subr.bf16.mxu0 0
    %5567 = vmatpush1.bf16.msra.mxu0 %v5544
    %5568 = vmatprep.subr.bf16.mxu0 0
    %5569 = vmatpush1.bf16.msra.mxu0 %v5545
    %5570 = vmatprep.subr.bf16.mxu0 0
    %5571 = vmatpush1.bf16.msra.mxu0 0
    %5572 = vmatprep.subr.bf16.mxu0 0
    %5573 = vmatpush1.bf16.msra.mxu0 0
    %5574 = vmatprep.subr.bf16.mxu0 0
    %5575 = vmatpush1.bf16.msra.mxu0 0
    %5576 = vmatprep.subr.bf16.mxu0 0
    %5577 = vmatpush1.bf16.msra.mxu0 0
    %5578 = vmatprep.subr.bf16.mxu0 0
    %5579 = vmatpush1.bf16.msra.mxu0 0
    %5580 = vmatprep.subr.bf16.mxu0 0
    %5581 = vmatpush1.bf16.msra.mxu0 0
    %5582 = vmatprep.subr.bf16.mxu0 0
    %5583 = vmatpush1.bf16.msra.mxu0 0
    %5584 = vmatprep.subr.bf16.mxu0 0
    %5585 = vmatpush1.bf16.msra.mxu0 0
    %5586 = vmatprep.mubr.bf16.mxu0 0
    %5587 = vmatmul.mubr.bf16.gmra.mrb[0].mxu0 %v5489
    %v5588 = vpop.f32.mrb[0].mxu0
    %v5589 = vadd.f32 0.0, %v5588
    %v5590 = vpop.f32.mrb[0].mxu0
    %v5591 = vpop.f32.mrb[0].mxu0
    %v5592 = vadd.f32 0.0, %v5591
    %v5593 = vpop.f32.mrb[0].mxu0
    %5594 = vdwg.mxu0
    %v5595 = vpack.c.bf16 %v5592, %v5589
    %v5596 = vld [vmem:[#allocation19] sm:$0x1]
    %v5597 = vpack.c.bf16 %v5596, %v5596
    %v5599 = vpack.i.b16 %v5597, %v5597
    %v5601 = vlaneseq
    %v5602 = vshrl.u32 %v5601, 7
    %v5603 = vsub.s32 0, %v5602
    %v5604 = vrot.slane %v5599, %v5603
    %v5605 = vadd.bf16 %v5595, %v5604
    %v5607 = vunpack.c.l.b16 %v5605
    %v5608 = vunpack.c.h.b16 %v5605
    %v5609 = vpack.c.b16 %v5607, %v5607
    %v5610 = vpack.c.b16 %v5608, %v5608
    %5613 = vst [vmem:[#allocation20] sm:$0xf] %v5609
    %5614 = vst [vmem:[#allocation20 + $0x4] sm:$0xf] %v5610
    // Predicated region
    $region90: #{tpu_custom_call.1} parent=1 // pred_check
      _
    $region91: #{tpu_custom_call.1} parent=1 // pred_check_branch
      %5616 = sbr.rel (0) target = $region93
    $region92: #{tpu_custom_call.1} parent=1 // pred_region
      %s5618 = ssub.s32 128, 128
      %5619 = vsyncadd [#allocation4], %s5618
      %s5620 = sshll.u32 [#allocation20], 4
      %s5621 = int_to_ptr.vmem [resolvable:$true] %s5620
      %5626 = dma.vmem_to_hbm [thread:$0]  %s5621, 128, %s11, [#allocation4], 64, 64, 4
    $region93: #{tpu_custom_call.1} parent=1 // pred_fallthru
      _
    // Predicated region
    $region94: #{tpu_custom_call.1} parent=1 // pred_check
      _
    $region95: #{tpu_custom_call.1} parent=1 // pred_check_branch
      %5628 = sbr.rel (0) target = $region97
    $region96: #{tpu_custom_call.1} parent=1 // pred_region
      %5629 = dma.done [#allocation4], 128
    $region97: #{tpu_custom_call.1} parent=1 // pred_fallthru
      _
    %5630 = vsyncpa [#allocation3], 1
    %5631 = vsyncpa [#allocation6], 1
    %5632 = vsyncpa [#allocation9], 1
    %5633 = vsyncpa [#allocation12], 1
    %5634 = vsyncpa [#allocation15], 1
    %5635 = vsyncpa [#allocation18], 1
    %5636 = vsyncpa [#allocation4], 1

// kernel: tpu_custom_call.1
$region0: #{tpu_custom_call.1}
  #allocation0 [shape = 'u32[]', space=smem, size = 0x4, offset = 0x4, fixed_abs, tag = 'smem constant byte address 0x4 - core index']
  #allocation1 [shape = 'u32[144,128]{1,0:T(1,128)}', space=vmem, size = 0x12000, scoped, tag = 'internal scratch']
  %s0 = inlined_call_operand.hbm [shape: f32[16,64], index: 0, kind: input, shape index: {}]
  %s1 = inlined_call_operand.hbm [shape: bf16[64,2048], index: 1, kind: input, shape index: {}]
  %s2 = inlined_call_operand.hbm [shape: f32[1,2048], index: 2, kind: input, shape index: {}]
  %s3 = inlined_call_operand.hbm [shape: bf16[2048,512], index: 3, kind: input, shape index: {}]
  %s4 = inlined_call_operand.hbm [shape: f32[1,512], index: 4, kind: input, shape index: {}]
  %s5 = inlined_call_operand.hbm [shape: bf16[512,128], index: 5, kind: input, shape index: {}]
  %s6 = inlined_call_operand.hbm [shape: f32[1,128], index: 6, kind: input, shape index: {}]
  %s7 = inlined_call_operand.hbm [shape: bf16[128,128], index: 7, kind: input, shape index: {}]
  %s8 = inlined_call_operand.hbm [shape: f32[1,128], index: 8, kind: input, shape index: {}]
  %s9 = inlined_call_operand.hbm [shape: bf16[128,128], index: 9, kind: input, shape index: {}]
  %s10 = inlined_call_operand.hbm [shape: f32[1,128], index: 10, kind: input, shape index: {}]
  %s11 = inlined_call_operand.hbm [shape: bf16[16,128], index: 11, kind: output, shape index: {}]
  %s12 = sld [smem:[#allocation0]]
  $region98: #{tpu_custom_call.1} parent=0
    _
  %s14 = ssub.s32 1, %s12
  %s15 = scalar_select 0, %s14, %s12
  $region1: #{tpu_custom_call.1} parent=0
    #allocation2 [shape = 'u8[8192]{0}', space=vmem, size = 0x2000, scoped, tag = 'input window, operand 0, single buffered']
    #allocation3 [shape = 's32[1]{0}', space=sflag, size = 0x4, scoped, tag = 'scoped memory for tpu_custom_call.1']
    #allocation4 [shape = 's32[1]{0}', space=sflag, size = 0x4, scoped, tag = 'scoped memory for tpu_custom_call.1']
    #allocation5 [shape = 'u8[262144]{0}', space=vmem, size = 0x40000, scoped, tag = 'input window, operand 1, single buffered']
    #allocation6 [shape = 's32[1]{0}', space=sflag, size = 0x4, scoped, tag = 'scoped memory for tpu_custom_call.1']
    #allocation7 [shape = 'u8[8192]{0}', space=vmem, size = 0x2000, scoped, tag = 'input window, operand 2, single buffered']
    #allocation8 [shape = 'u8[2097152]{0}', space=vmem, size = 0x200000, scoped, tag = 'input window, operand 3, single buffered']
    #allocation9 [shape = 's32[1]{0}', space=sflag, size = 0x4, scoped, tag = 'scoped memory for tpu_custom_call.1']
    #allocation10 [shape = 'u8[2048]{0}', space=vmem, size = 0x800, scoped, tag = 'input window, operand 4, single buffered']
    #allocation11 [shape = 'u8[131072]{0}', space=vmem, size = 0x20000, scoped, tag = 'input window, operand 5, single buffered']
    #allocation12 [shape = 's32[1]{0}', space=sflag, size = 0x4, scoped, tag = 'scoped memory for tpu_custom_call.1']
    #allocation13 [shape = 'u8[512]{0}', space=vmem, size = 0x400, scoped, tag = 'input window, operand 6, single buffered']
    #allocation14 [shape = 'u8[32768]{0}', space=vmem, size = 0x8000, scoped, tag = 'input window, operand 7, single buffered']
    #allocation15 [shape = 's32[1]{0}', space=sflag, size = 0x4, scoped, tag = 'scoped memory for tpu_custom_call.1']
    #allocation16 [shape = 'u8[512]{0}', space=vmem, size = 0x400, scoped, tag = 'input window, operand 8, single buffered']
    #allocation17 [shape = 'u8[32768]{0}', space=vmem, size = 0x8000, scoped, tag = 'input window, operand 9, single buffered']
    #allocation18 [shape = 's32[1]{0}', space=sflag, size = 0x4, scoped, tag = 'scoped memory for tpu_custom_call.1']
    #allocation19 [shape = 'u8[512]{0}', space=vmem, size = 0x400, scoped, tag = 'input window, operand 10, single buffered']
    #allocation20 [shape = 'u8[4096]{0}', space=vmem, size = 0x1000, scoped, tag = 'output window, operand 0, single buffered']
    %16 = vsyncpa [#allocation3], 0
    %17 = vsyncpa [#allocation6], 0
    %18 = vsyncpa [#allocation9], 0
    %19 = vsyncpa [#allocation12], 0
    %20 = vsyncpa [#allocation15], 0
    %21 = vsyncpa [#allocation18], 0
    %22 = vsyncpa [#allocation4], 0
    // Predicated region
    $region2: #{tpu_custom_call.1} parent=1 // pred_check
      _
    $region3: #{tpu_custom_call.1} parent=1 // pred_check_branch
      %24 = sbr.rel (0) target = $region5
    $region4: #{tpu_custom_call.1} parent=1 // pred_region
      %s26 = ssub.s32 256, 256
      %27 = vsyncadd [#allocation3], %s26
      %s28 = sshll.u32 [#allocation2], 4
      %s29 = int_to_ptr.vmem [resolvable:$true] %s28
      %34 = dma.hbm_to_vmem [thread:$0]  %s0, 256, %s29, [#allocation3], 128, 128, 8
    $region5: #{tpu_custom_call.1} parent=1 // pred_fallthru
      _
    // Predicated region
    $region6: #{tpu_custom_call.1} parent=1 // pred_check
      _
    $region7: #{tpu_custom_call.1} parent=1 // pred_check_branch
      %36 = sbr.rel (0) target = $region9
    $region8: #{tpu_custom_call.1} parent=1 // pred_region
      %s38 = ssub.s32 8192, 8192
      %39 = vsyncadd [#allocation6], %s38
      %s40 = sshll.u32 [#allocation5], 4
      %s41 = int_to_ptr.vmem [resolvable:$true] %s40
      %46 = dma.hbm_to_vmem [thread:$0]  %s1, 8192, %s41, [#allocation6], 1024, 1024, 64
    $region9: #{tpu_custom_call.1} parent=1 // pred_fallthru
      _
    // Predicated region
    $region10: #{tpu_custom_call.1} parent=1 // pred_check
      _
    $region11: #{tpu_custom_call.1} parent=1 // pred_check_branch
      %48 = sbr.rel (0) target = $region13
    $region12: #{tpu_custom_call.1} parent=1 // pred_region
      %s50 = ssub.s32 256, 256
      %51 = vsyncadd [#allocation6], %s50
      %s53 = sshll.u32 [#allocation7], 4
      %s54 = int_to_ptr.vmem [resolvable:$true] %s53
      %56 = dma.hbm_to_vmem [thread:$0]  %s2, 256, %s54, [#allocation6]
    $region13: #{tpu_custom_call.1} parent=1 // pred_fallthru
      _
    // Predicated region
    $region14: #{tpu_custom_call.1} parent=1 // pred_check
      _
    $region15: #{tpu_custom_call.1} parent=1 // pred_check_branch
      %58 = sbr.rel (0) target = $region17
    $region16: #{tpu_custom_call.1} parent=1 // pred_region
      %s60 = ssub.s32 65536, 65536
      %61 = vsyncadd [#allocation9], %s60
      %s62 = sshll.u32 [#allocation8], 4
      %s63 = int_to_ptr.vmem [resolvable:$true] %s62
      %68 = dma.hbm_to_vmem [thread:$0]  %s3, 65536, %s63, [#allocation9], 256, 256, 16
    $region17: #{tpu_custom_call.1} parent=1 // pred_fallthru
      _
    // Predicated region
    $region18: #{tpu_custom_call.1} parent=1 // pred_check
      _
    $region19: #{tpu_custom_call.1} parent=1 // pred_check_branch
      %70 = sbr.rel (0) target = $region21
    $region20: #{tpu_custom_call.1} parent=1 // pred_region
      %s72 = ssub.s32 64, 64
      %73 = vsyncadd [#allocation9], %s72
      %s75 = sshll.u32 [#allocation10], 4
      %s76 = int_to_ptr.vmem [resolvable:$true] %s75
      %78 = dma.hbm_to_vmem [thread:$0]  %s4, 64, %s76, [#allocation9]
    $region21: #{tpu_custom_call.1} parent=1 // pred_fallthru
      _
    // Predicated region
    $region22: #{tpu_custom_call.1} parent=1 // pred_check
      _
    $region23: #{tpu_custom_call.1} parent=1 // pred_check_branch
      %80 = sbr.rel (0) target = $region25
    $region24: #{tpu_custom_call.1} parent=1 // pred_region
      %s82 = ssub.s32 4096, 4096
      %83 = vsyncadd [#allocation12], %s82
      %s84 = sshll.u32 [#allocation11], 4
      %s85 = int_to_ptr.vmem [resolvable:$true] %s84
      %90 = dma.hbm_to_vmem [thread:$0]  %s5, 4096, %s85, [#allocation12], 64, 64, 4
    $region25: #{tpu_custom_call.1} parent=1 // pred_fallthru
      _
    // Predicated region
    $region26: #{tpu_custom_call.1} parent=1 // pred_check
      _
    $region27: #{tpu_custom_call.1} parent=1 // pred_check_branch
      %92 = sbr.rel (0) target = $region29
    $region28: #{tpu_custom_call.1} parent=1 // pred_region
      %s94 = ssub.s32 16, 16
      %95 = vsyncadd [#allocation12], %s94
      %s97 = sshll.u32 [#allocation13], 4
      %s98 = int_to_ptr.vmem [resolvable:$true] %s97
      %100 = dma.hbm_to_vmem [thread:$0]  %s6, 16, %s98, [#allocation12]
    $region29: #{tpu_custom_call.1} parent=1 // pred_fallthru
      _
    // Predicated region
    $region30: #{tpu_custom_call.1} parent=1 // pred_check
      _
    $region31: #{tpu_custom_call.1} parent=1 // pred_check_branch
      %102 = sbr.rel (0) target = $region33
    $region32: #{tpu_custom_call.1} parent=1 // pred_region
      %s104 = ssub.s32 1024, 1024
      %105 = vsyncadd [#allocation15], %s104
      %s106 = sshll.u32 [#allocation14], 4
      %s107 = int_to_ptr.vmem [resolvable:$true] %s106
      %112 = dma.hbm_to_vmem [thread:$0]  %s7, 1024, %s107, [#allocation15], 64, 64, 4
    $region33: #{tpu_custom_call.1} parent=1 // pred_fallthru
      _
    // Predicated region
    $region34: #{tpu_custom_call.1} parent=1 // pred_check
      _
    $region35: #{tpu_custom_call.1} parent=1 // pred_check_branch
      %114 = sbr.rel (0) target = $region37
    $region36: #{tpu_custom_call.1} parent=1 // pred_region
      %s116 = ssub.s32 16, 16
      %117 = vsyncadd [#allocation15], %s116
      %s119 = sshll.u32 [#allocation16], 4
      %s120 = int_to_ptr.vmem [resolvable:$true] %s119
      %122 = dma.hbm_to_vmem [thread:$0]  %s8, 16, %s120, [#allocation15]
    $region37: #{tpu_custom_call.1} parent=1 // pred_fallthru
      _
    // Predicated region
    $region38: #{tpu_custom_call.1} parent=1 // pred_check
      _
    $region39: #{tpu_custom_call.1} parent=1 // pred_check_branch
      %124 = sbr.rel (0) target = $region41
    $region40: #{tpu_custom_call.1} parent=1 // pred_region
      %s126 = ssub.s32 1024, 1024
      %127 = vsyncadd [#allocation18], %s126
      %s128 = sshll.u32 [#allocation17], 4
      %s129 = int_to_ptr.vmem [resolvable:$true] %s128
      %134 = dma.hbm_to_vmem [thread:$0]  %s9, 1024, %s129, [#allocation18], 64, 64, 4
    $region41: #{tpu_custom_call.1} parent=1 // pred_fallthru
      _
    // Predicated region
    $region42: #{tpu_custom_call.1} parent=1 // pred_check
      _
    $region43: #{tpu_custom_call.1} parent=1 // pred_check_branch
      %136 = sbr.rel (0) target = $region45
    $region44: #{tpu_custom_call.1} parent=1 // pred_region
      %s138 = ssub.s32 16, 16
      %139 = vsyncadd [#allocation18], %s138
      %s141 = sshll.u32 [#allocation19], 4
      %s142 = int_to_ptr.vmem [resolvable:$true] %s141
      %144 = dma.hbm_to_vmem [thread:$0]  %s10, 16, %s142, [#allocation18]
    $region45: #{tpu_custom_call.1} parent=1 // pred_fallthru
      _
    // Predicated region
    $region46: #{tpu_custom_call.1} parent=1 // pred_check
      _
    $region47: #{tpu_custom_call.1} parent=1 // pred_check_branch
      %146 = sbr.rel (0) target = $region49
    $region48: #{tpu_custom_call.1} parent=1 // pred_region
      %147 = dma.done [#allocation3], 256
    $region49: #{tpu_custom_call.1} parent=1 // pred_fallthru
      _
    // Predicated region
    $region50: #{tpu_custom_call.1} parent=1 // pred_check
      _
    $region51: #{tpu_custom_call.1} parent=1 // pred_check_branch
      %149 = sbr.rel (0) target = $region53
    $region52: #{tpu_custom_call.1} parent=1 // pred_region
      %150 = dma.done [#allocation6], 8192
    $region53: #{tpu_custom_call.1} parent=1 // pred_fallthru
      _
    // Predicated region
    $region54: #{tpu_custom_call.1} parent=1 // pred_check
      _
    $region55: #{tpu_custom_call.1} parent=1 // pred_check_branch
      %152 = sbr.rel (0) target = $region57
    $region56: #{tpu_custom_call.1} parent=1 // pred_region
      %153 = dma.done [#allocation6], 256
    $region57: #{tpu_custom_call.1} parent=1 // pred_fallthru
      _
    // Predicated region
    $region58: #{tpu_custom_call.1} parent=1 // pred_check
      _
    $region59: #{tpu_custom_call.1} parent=1 // pred_check_branch
      %155 = sbr.rel (0) target = $region61
    $region60: #{tpu_custom_call.1} parent=1 // pred_region
      %156 = dma.done [#allocation9], 65536
    $region61: #{tpu_custom_call.1} parent=1 // pred_fallthru
      _
    // Predicated region
    $region62: #{tpu_custom_call.1} parent=1 // pred_check
      _
    $region63: #{tpu_custom_call.1} parent=1 // pred_check_branch
      %158 = sbr.rel (0) target = $region65
    $region64: #{tpu_custom_call.1} parent=1 // pred_region
      %159 = dma.done [#allocation9], 64
    $region65: #{tpu_custom_call.1} parent=1 // pred_fallthru
      _
    // Predicated region
    $region66: #{tpu_custom_call.1} parent=1 // pred_check
      _
    $region67: #{tpu_custom_call.1} parent=1 // pred_check_branch
      %161 = sbr.rel (0) target = $region69
    $region68: #{tpu_custom_call.1} parent=1 // pred_region
      %162 = dma.done [#allocation12], 4096
    $region69: #{tpu_custom_call.1} parent=1 // pred_fallthru
      _
    // Predicated region
    $region70: #{tpu_custom_call.1} parent=1 // pred_check
      _
    $region71: #{tpu_custom_call.1} parent=1 // pred_check_branch
      %164 = sbr.rel (0) target = $region73
    $region72: #{tpu_custom_call.1} parent=1 // pred_region
      %165 = dma.done [#allocation12], 16
    $region73: #{tpu_custom_call.1} parent=1 // pred_fallthru
      _
    // Predicated region
    $region74: #{tpu_custom_call.1} parent=1 // pred_check
      _
    $region75: #{tpu_custom_call.1} parent=1 // pred_check_branch
      %167 = sbr.rel (0) target = $region77
    $region76: #{tpu_custom_call.1} parent=1 // pred_region
      %168 = dma.done [#allocation15], 1024
    $region77: #{tpu_custom_call.1} parent=1 // pred_fallthru
      _
    // Predicated region
    $region78: #{tpu_custom_call.1} parent=1 // pred_check
      _
    $region79: #{tpu_custom_call.1} parent=1 // pred_check_branch
      %170 = sbr.rel (0) target = $region81
    $region80: #{tpu_custom_call.1} parent=1 // pred_region
      %171 = dma.done [#allocation15], 16
    $region81: #{tpu_custom_call.1} parent=1 // pred_fallthru
      _
    // Predicated region
    $region82: #{tpu_custom_call.1} parent=1 // pred_check
      _
    $region83: #{tpu_custom_call.1} parent=1 // pred_check_branch
      %173 = sbr.rel (0) target = $region85
    $region84: #{tpu_custom_call.1} parent=1 // pred_region
      %174 = dma.done [#allocation18], 1024
    $region85: #{tpu_custom_call.1} parent=1 // pred_fallthru
      _
    // Predicated region
    $region86: #{tpu_custom_call.1} parent=1 // pred_check
      _
    $region87: #{tpu_custom_call.1} parent=1 // pred_check_branch
      %176 = sbr.rel (0) target = $region89
    $region88: #{tpu_custom_call.1} parent=1 // pred_region
      %177 = dma.done [#allocation18], 16
    $region89: #{tpu_custom_call.1} parent=1 // pred_fallthru
      _
    %v180 = vld [vmem:[#allocation2] sm:$0xff]
    %v181 = vld [vmem:[#allocation2 + $0x8] sm:$0xff]
    %v182 = vpack.c.bf16 %v181, %v180
    %v183 = vld [vmem:[#allocation5] sm:$0xff]
    %v184 = vld [vmem:[#allocation5 + $0x8] sm:$0xff]
    %v185 = vld [vmem:[#allocation5 + $0x10] sm:$0xff]
    %v186 = vld [vmem:[#allocation5 + $0x18] sm:$0xff]
    %v187 = vld [vmem:[#allocation5 + $0x20] sm:$0xff]
    %v188 = vld [vmem:[#allocation5 + $0x28] sm:$0xff]
    %v189 = vld [vmem:[#allocation5 + $0x30] sm:$0xff]
    %v190 = vld [vmem:[#allocation5 + $0x38] sm:$0xff]
    %v191 = vld [vmem:[#allocation5 + $0x40] sm:$0xff]
    %v192 = vld [vmem:[#allocation5 + $0x48] sm:$0xff]
    %v193 = vld [vmem:[#allocation5 + $0x50] sm:$0xff]
    %v194 = vld [vmem:[#allocation5 + $0x58] sm:$0xff]
    %v195 = vld [vmem:[#allocation5 + $0x60] sm:$0xff]
    %v196 = vld [vmem:[#allocation5 + $0x68] sm:$0xff]
    %v197 = vld [vmem:[#allocation5 + $0x70] sm:$0xff]
    %v198 = vld [vmem:[#allocation5 + $0x78] sm:$0xff]
    %v199 = vld [vmem:[#allocation5 + $0x80] sm:$0xff]
    %v200 = vld [vmem:[#allocation5 + $0x88] sm:$0xff]
    %v201 = vld [vmem:[#allocation5 + $0x90] sm:$0xff]
    %v202 = vld [vmem:[#allocation5 + $0x98] sm:$0xff]
    %v203 = vld [vmem:[#allocation5 + $0xa0] sm:$0xff]
    %v204 = vld [vmem:[#allocation5 + $0xa8] sm:$0xff]
    %v205 = vld [vmem:[#allocation5 + $0xb0] sm:$0xff]
    %v206 = vld [vmem:[#allocation5 + $0xb8] sm:$0xff]
    %v207 = vld [vmem:[#allocation5 + $0xc0] sm:$0xff]
    %v208 = vld [vmem:[#allocation5 + $0xc8] sm:$0xff]
    %v209 = vld [vmem:[#allocation5 + $0xd0] sm:$0xff]
    %v210 = vld [vmem:[#allocation5 + $0xd8] sm:$0xff]
    %v211 = vld [vmem:[#allocation5 + $0xe0] sm:$0xff]
    %v212 = vld [vmem:[#allocation5 + $0xe8] sm:$0xff]
    %v213 = vld [vmem:[#allocation5 + $0xf0] sm:$0xff]
    %v214 = vld [vmem:[#allocation5 + $0xf8] sm:$0xff]
    %v215 = vld [vmem:[#allocation5 + $0x100] sm:$0xff]
    %v216 = vld [vmem:[#allocation5 + $0x108] sm:$0xff]
    %v217 = vld [vmem:[#allocation5 + $0x110] sm:$0xff]
    %v218 = vld [vmem:[#allocation5 + $0x118] sm:$0xff]
    %v219 = vld [vmem:[#allocation5 + $0x120] sm:$0xff]
    %v220 = vld [vmem:[#allocation5 + $0x128] sm:$0xff]
    %v221 = vld [vmem:[#allocation5 + $0x130] sm:$0xff]
    %v222 = vld [vmem:[#allocation5 + $0x138] sm:$0xff]
    %v223 = vld [vmem:[#allocation5 + $0x140] sm:$0xff]
    %v224 = vld [vmem:[#allocation5 + $0x148] sm:$0xff]
    %v225 = vld [vmem:[#allocation5 + $0x150] sm:$0xff]
    %v226 = vld [vmem:[#allocation5 + $0x158] sm:$0xff]
    %v227 = vld [vmem:[#allocation5 + $0x160] sm:$0xff]
    %v228 = vld [vmem:[#allocation5 + $0x168] sm:$0xff]
    %v229 = vld [vmem:[#allocation5 + $0x170] sm:$0xff]
    %v230 = vld [vmem:[#allocation5 + $0x178] sm:$0xff]
    %v231 = vld [vmem:[#allocation5 + $0x180] sm:$0xff]
    %v232 = vld [vmem:[#allocation5 + $0x188] sm:$0xff]
    %v233 = vld [vmem:[#allocation5 + $0x190] sm:$0xff]
    %v234 = vld [vmem:[#allocation5 + $0x198] sm:$0xff]
    %v235 = vld [vmem:[#allocation5 + $0x1a0] sm:$0xff]
    %v236 = vld [vmem:[#allocation5 + $0x1a8] sm:$0xff]
    %v237 = vld [vmem:[#allocation5 + $0x1b0] sm:$0xff]
    %v238 = vld [vmem:[#allocation5 + $0x1b8] sm:$0xff]
    %v239 = vld [vmem:[#allocation5 + $0x1c0] sm:$0xff]
    %v240 = vld [vmem:[#allocation5 + $0x1c8] sm:$0xff]
    %v241 = vld [vmem:[#allocation5 + $0x1d0] sm:$0xff]
    %v242 = vld [vmem:[#allocation5 + $0x1d8] sm:$0xff]
    %v243 = vld [vmem:[#allocation5 + $0x1e0] sm:$0xff]
    %v244 = vld [vmem:[#allocation5 + $0x1e8] sm:$0xff]
    %v245 = vld [vmem:[#allocation5 + $0x1f0] sm:$0xff]
    %v246 = vld [vmem:[#allocation5 + $0x1f8] sm:$0xff]
    %v311 = vunpack.c.l.b16 %v183
    %v312 = vunpack.c.h.b16 %v183
    %v313 = vunpack.c.l.b16 %v184
    %v314 = vunpack.c.h.b16 %v184
    %v315 = vunpack.c.l.b16 %v185
    %v316 = vunpack.c.h.b16 %v185
    %v317 = vunpack.c.l.b16 %v186
    %v318 = vunpack.c.h.b16 %v186
    %v319 = vunpack.c.l.b16 %v187
    %v320 = vunpack.c.h.b16 %v187
    %v321 = vunpack.c.l.b16 %v188
    %v322 = vunpack.c.h.b16 %v188
    %v323 = vunpack.c.l.b16 %v189
    %v324 = vunpack.c.h.b16 %v189
    %v325 = vunpack.c.l.b16 %v190
    %v326 = vunpack.c.h.b16 %v190
    %v327 = vunpack.c.l.b16 %v191
    %v328 = vunpack.c.h.b16 %v191
    %v329 = vunpack.c.l.b16 %v192
    %v330 = vunpack.c.h.b16 %v192
    %v331 = vunpack.c.l.b16 %v193
    %v332 = vunpack.c.h.b16 %v193
    %v333 = vunpack.c.l.b16 %v194
    %v334 = vunpack.c.h.b16 %v194
    %v335 = vunpack.c.l.b16 %v195
    %v336 = vunpack.c.h.b16 %v195
    %v337 = vunpack.c.l.b16 %v196
    %v338 = vunpack.c.h.b16 %v196
    %v339 = vunpack.c.l.b16 %v197
    %v340 = vunpack.c.h.b16 %v197
    %v341 = vunpack.c.l.b16 %v198
    %v342 = vunpack.c.h.b16 %v198
    %v343 = vunpack.c.l.b16 %v199
    %v344 = vunpack.c.h.b16 %v199
    %v345 = vunpack.c.l.b16 %v200
    %v346 = vunpack.c.h.b16 %v200
    %v347 = vunpack.c.l.b16 %v201
    %v348 = vunpack.c.h.b16 %v201
    %v349 = vunpack.c.l.b16 %v202
    %v350 = vunpack.c.h.b16 %v202
    %v351 = vunpack.c.l.b16 %v203
    %v352 = vunpack.c.h.b16 %v203
    %v353 = vunpack.c.l.b16 %v204
    %v354 = vunpack.c.h.b16 %v204
    %v355 = vunpack.c.l.b16 %v205
    %v356 = vunpack.c.h.b16 %v205
    %v357 = vunpack.c.l.b16 %v206
    %v358 = vunpack.c.h.b16 %v206
    %v359 = vunpack.c.l.b16 %v207
    %v360 = vunpack.c.h.b16 %v207
    %v361 = vunpack.c.l.b16 %v208
    %v362 = vunpack.c.h.b16 %v208
    %v363 = vunpack.c.l.b16 %v209
    %v364 = vunpack.c.h.b16 %v209
    %v365 = vunpack.c.l.b16 %v210
    %v366 = vunpack.c.h.b16 %v210
    %v367 = vunpack.c.l.b16 %v211
    %v368 = vunpack.c.h.b16 %v211
    %v369 = vunpack.c.l.b16 %v212
    %v370 = vunpack.c.h.b16 %v212
    %v371 = vunpack.c.l.b16 %v213
    %v372 = vunpack.c.h.b16 %v213
    %v373 = vunpack.c.l.b16 %v214
    %v374 = vunpack.c.h.b16 %v214
    %v375 = vunpack.c.l.b16 %v215
    %v376 = vunpack.c.h.b16 %v215
    %v377 = vunpack.c.l.b16 %v216
    %v378 = vunpack.c.h.b16 %v216
    %v379 = vunpack.c.l.b16 %v217
    %v380 = vunpack.c.h.b16 %v217
    %v381 = vunpack.c.l.b16 %v218
    %v382 = vunpack.c.h.b16 %v218
    %v383 = vunpack.c.l.b16 %v219
    %v384 = vunpack.c.h.b16 %v219
    %v385 = vunpack.c.l.b16 %v220
    %v386 = vunpack.c.h.b16 %v220
    %v387 = vunpack.c.l.b16 %v221
    %v388 = vunpack.c.h.b16 %v221
    %v389 = vunpack.c.l.b16 %v222
    %v390 = vunpack.c.h.b16 %v222
    %v391 = vunpack.c.l.b16 %v223
    %v392 = vunpack.c.h.b16 %v223
    %v393 = vunpack.c.l.b16 %v224
    %v394 = vunpack.c.h.b16 %v224
    %v395 = vunpack.c.l.b16 %v225
    %v396 = vunpack.c.h.b16 %v225
    %v397 = vunpack.c.l.b16 %v226
    %v398 = vunpack.c.h.b16 %v226
    %v399 = vunpack.c.l.b16 %v227
    %v400 = vunpack.c.h.b16 %v227
    %v401 = vunpack.c.l.b16 %v228
    %v402 = vunpack.c.h.b16 %v228
    %v403 = vunpack.c.l.b16 %v229
    %v404 = vunpack.c.h.b16 %v229
    %v405 = vunpack.c.l.b16 %v230
    %v406 = vunpack.c.h.b16 %v230
    %v407 = vunpack.c.l.b16 %v231
    %v408 = vunpack.c.h.b16 %v231
    %v409 = vunpack.c.l.b16 %v232
    %v410 = vunpack.c.h.b16 %v232
    %v411 = vunpack.c.l.b16 %v233
    %v412 = vunpack.c.h.b16 %v233
    %v413 = vunpack.c.l.b16 %v234
    %v414 = vunpack.c.h.b16 %v234
    %v415 = vunpack.c.l.b16 %v235
    %v416 = vunpack.c.h.b16 %v235
    %v417 = vunpack.c.l.b16 %v236
    %v418 = vunpack.c.h.b16 %v236
    %v419 = vunpack.c.l.b16 %v237
    %v420 = vunpack.c.h.b16 %v237
    %v421 = vunpack.c.l.b16 %v238
    %v422 = vunpack.c.h.b16 %v238
    %v423 = vunpack.c.l.b16 %v239
    %v424 = vunpack.c.h.b16 %v239
    %v425 = vunpack.c.l.b16 %v240
    %v426 = vunpack.c.h.b16 %v240
    %v427 = vunpack.c.l.b16 %v241
    %v428 = vunpack.c.h.b16 %v241
    %v429 = vunpack.c.l.b16 %v242
    %v430 = vunpack.c.h.b16 %v242
    %v431 = vunpack.c.l.b16 %v243
    %v432 = vunpack.c.h.b16 %v243
    %v433 = vunpack.c.l.b16 %v244
    %v434 = vunpack.c.h.b16 %v244
    %v435 = vunpack.c.l.b16 %v245
    %v436 = vunpack.c.h.b16 %v245
    %v437 = vunpack.c.l.b16 %v246
    %v438 = vunpack.c.h.b16 %v246
    %v439 = vpack.c.b16 %v327, %v311
    %v440 = vpack.c.b16 %v328, %v312
    %v441 = vpack.c.b16 %v329, %v313
    %v442 = vpack.c.b16 %v330, %v314
    %v443 = vpack.c.b16 %v331, %v315
    %v444 = vpack.c.b16 %v332, %v316
    %v445 = vpack.c.b16 %v333, %v317
    %v446 = vpack.c.b16 %v334, %v318
    %v447 = vpack.c.b16 %v335, %v319
    %v448 = vpack.c.b16 %v336, %v320
    %v449 = vpack.c.b16 %v337, %v321
    %v450 = vpack.c.b16 %v338, %v322
    %v451 = vpack.c.b16 %v339, %v323
    %v452 = vpack.c.b16 %v340, %v324
    %v453 = vpack.c.b16 %v341, %v325
    %v454 = vpack.c.b16 %v342, %v326
    %v455 = vpack.c.b16 %v359, %v343
    %v456 = vpack.c.b16 %v360, %v344
    %v457 = vpack.c.b16 %v361, %v345
    %v458 = vpack.c.b16 %v362, %v346
    %v459 = vpack.c.b16 %v363, %v347
    %v460 = vpack.c.b16 %v364, %v348
    %v461 = vpack.c.b16 %v365, %v349
    %v462 = vpack.c.b16 %v366, %v350
    %v463 = vpack.c.b16 %v367, %v351
    %v464 = vpack.c.b16 %v368, %v352
    %v465 = vpack.c.b16 %v369, %v353
    %v466 = vpack.c.b16 %v370, %v354
    %v467 = vpack.c.b16 %v371, %v355
    %v468 = vpack.c.b16 %v372, %v356
    %v469 = vpack.c.b16 %v373, %v357
    %v470 = vpack.c.b16 %v374, %v358
    %v471 = vpack.c.b16 %v391, %v375
    %v472 = vpack.c.b16 %v392, %v376
    %v473 = vpack.c.b16 %v393, %v377
    %v474 = vpack.c.b16 %v394, %v378
    %v475 = vpack.c.b16 %v395, %v379
    %v476 = vpack.c.b16 %v396, %v380
    %v477 = vpack.c.b16 %v397, %v381
    %v478 = vpack.c.b16 %v398, %v382
    %v479 = vpack.c.b16 %v399, %v383
    %v480 = vpack.c.b16 %v400, %v384
    %v481 = vpack.c.b16 %v401, %v385
    %v482 = vpack.c.b16 %v402, %v386
    %v483 = vpack.c.b16 %v403, %v387
    %v484 = vpack.c.b16 %v404, %v388
    %v485 = vpack.c.b16 %v405, %v389
    %v486 = vpack.c.b16 %v406, %v390
    %v487 = vpack.c.b16 %v423, %v407
    %v488 = vpack.c.b16 %v424, %v408
    %v489 = vpack.c.b16 %v425, %v409
    %v490 = vpack.c.b16 %v426, %v410
    %v491 = vpack.c.b16 %v427, %v411
    %v492 = vpack.c.b16 %v428, %v412
    %v493 = vpack.c.b16 %v429, %v413
    %v494 = vpack.c.b16 %v430, %v414
    %v495 = vpack.c.b16 %v431, %v415
    %v496 = vpack.c.b16 %v432, %v416
    %v497 = vpack.c.b16 %v433, %v417
    %v498 = vpack.c.b16 %v434, %v418
    %v499 = vpack.c.b16 %v435, %v419
    %v500 = vpack.c.b16 %v436, %v420
    %v501 = vpack.c.b16 %v437, %v421
    %v502 = vpack.c.b16 %v438, %v422
    %vm567 = vcmask 523264
    %v569 = vsel %vm567, %v182, 0
    %571 = vmatprep.subr.bf16.mxu0 %v440
    %572 = vmatpush1.bf16.msra.mxu0 %v439
    %573 = vmatprep.subr.bf16.mxu0 %v456
    %574 = vmatpush1.bf16.msra.mxu0 %v455
    %575 = vmatprep.subr.bf16.mxu0 %v472
    %576 = vmatpush1.bf16.msra.mxu0 %v471
    %577 = vmatprep.subr.bf16.mxu0 %v488
    %578 = vmatpush1.bf16.msra.mxu0 %v487
    %579 = vmatprep.subr.bf16.mxu0 0
    %580 = vmatpush1.bf16.msra.mxu0 0
    %581 = vmatprep.subr.bf16.mxu0 0
    %582 = vmatpush1.bf16.msra.mxu0 0
    %583 = vmatprep.subr.bf16.mxu0 0
    %584 = vmatpush1.bf16.msra.mxu0 0
    %585 = vmatprep.subr.bf16.mxu0 0
    %586 = vmatpush1.bf16.msra.mxu0 0
    %587 = vmatprep.subr.bf16.mxu0 0
    %588 = vmatpush1.bf16.msra.mxu0 0
    %589 = vmatprep.subr.bf16.mxu0 0
    %590 = vmatpush1.bf16.msra.mxu0 0
    %591 = vmatprep.subr.bf16.mxu0 0
    %592 = vmatpush1.bf16.msra.mxu0 0
    %593 = vmatprep.subr.bf16.mxu0 0
    %594 = vmatpush1.bf16.msra.mxu0 0
    %595 = vmatprep.subr.bf16.mxu0 0
    %596 = vmatpush1.bf16.msra.mxu0 0
    %597 = vmatprep.subr.bf16.mxu0 0
    %598 = vmatpush1.bf16.msra.mxu0 0
    %599 = vmatprep.subr.bf16.mxu0 0
    %600 = vmatpush1.bf16.msra.mxu0 0
    %601 = vmatprep.subr.bf16.mxu0 0
    %602 = vmatpush1.bf16.msra.mxu0 0
    %603 = vmatprep.mubr.bf16.mxu0 0
    %604 = vmatmul.mubr.bf16.gmra.mrb[0].mxu0 %v569
    %v605 = vpop.f32.mrb[0].mxu0
    %v606 = vadd.f32 0.0, %v605
    %v607 = vpop.f32.mrb[0].mxu0
    %v608 = vadd.f32 0.0, %v607
    %v609 = vpop.f32.mrb[0].mxu0
    %v610 = vadd.f32 0.0, %v609
    %v611 = vpop.f32.mrb[0].mxu0
    %v612 = vadd.f32 0.0, %v611
    %613 = vdwg.mxu0
    %614 = vmatprep.subr.bf16.mxu0 %v442
    %615 = vmatpush1.bf16.msra.mxu0 %v441
    %616 = vmatprep.subr.bf16.mxu0 %v458
    %617 = vmatpush1.bf16.msra.mxu0 %v457
    %618 = vmatprep.subr.bf16.mxu0 %v474
    %619 = vmatpush1.bf16.msra.mxu0 %v473
    %620 = vmatprep.subr.bf16.mxu0 %v490
    %621 = vmatpush1.bf16.msra.mxu0 %v489
    %622 = vmatprep.subr.bf16.mxu0 0
    %623 = vmatpush1.bf16.msra.mxu0 0
    %624 = vmatprep.subr.bf16.mxu0 0
    %625 = vmatpush1.bf16.msra.mxu0 0
    %626 = vmatprep.subr.bf16.mxu0 0
    %627 = vmatpush1.bf16.msra.mxu0 0
    %628 = vmatprep.subr.bf16.mxu0 0
    %629 = vmatpush1.bf16.msra.mxu0 0
    %630 = vmatprep.subr.bf16.mxu0 0
    %631 = vmatpush1.bf16.msra.mxu0 0
    %632 = vmatprep.subr.bf16.mxu0 0
    %633 = vmatpush1.bf16.msra.mxu0 0
    %634 = vmatprep.subr.bf16.mxu0 0
    %635 = vmatpush1.bf16.msra.mxu0 0
    %636 = vmatprep.subr.bf16.mxu0 0
    %637 = vmatpush1.bf16.msra.mxu0 0
    %638 = vmatprep.subr.bf16.mxu0 0
    %639 = vmatpush1.bf16.msra.mxu0 0
    %640 = vmatprep.subr.bf16.mxu0 0
    %641 = vmatpush1.bf16.msra.mxu0 0
    %642 = vmatprep.subr.bf16.mxu0 0
    %643 = vmatpush1.bf16.msra.mxu0 0
    %644 = vmatprep.subr.bf16.mxu0 0
    %645 = vmatpush1.bf16.msra.mxu0 0
    %646 = vmatprep.mubr.bf16.mxu0 0
    %647 = vmatmul.mubr.bf16.gmra.mrb[0].mxu0 %v569
    %v648 = vpop.f32.mrb[0].mxu0
    %v649 = vadd.f32 0.0, %v648
    %v650 = vpop.f32.mrb[0].mxu0
    %v651 = vadd.f32 0.0, %v650
    %v652 = vpop.f32.mrb[0].mxu0
    %v653 = vadd.f32 0.0, %v652
    %v654 = vpop.f32.mrb[0].mxu0
    %v655 = vadd.f32 0.0, %v654
    %656 = vdwg.mxu0
    %657 = vmatprep.subr.bf16.mxu0 %v444
    %658 = vmatpush1.bf16.msra.mxu0 %v443
    %659 = vmatprep.subr.bf16.mxu0 %v460
    %660 = vmatpush1.bf16.msra.mxu0 %v459
    %661 = vmatprep.subr.bf16.mxu0 %v476
    %662 = vmatpush1.bf16.msra.mxu0 %v475
    %663 = vmatprep.subr.bf16.mxu0 %v492
    %664 = vmatpush1.bf16.msra.mxu0 %v491
    %665 = vmatprep.subr.bf16.mxu0 0
    %666 = vmatpush1.bf16.msra.mxu0 0
    %667 = vmatprep.subr.bf16.mxu0 0
    %668 = vmatpush1.bf16.msra.mxu0 0
    %669 = vmatprep.subr.bf16.mxu0 0
    %670 = vmatpush1.bf16.msra.mxu0 0
    %671 = vmatprep.subr.bf16.mxu0 0
    %672 = vmatpush1.bf16.msra.mxu0 0
    %673 = vmatprep.subr.bf16.mxu0 0
    %674 = vmatpush1.bf16.msra.mxu0 0
    %675 = vmatprep.subr.bf16.mxu0 0
    %676 = vmatpush1.bf16.msra.mxu0 0
    %677 = vmatprep.subr.bf16.mxu0 0
    %678 = vmatpush1.bf16.msra.mxu0 0
    %679 = vmatprep.subr.bf16.mxu0 0
    %680 = vmatpush1.bf16.msra.mxu0 0
    %681 = vmatprep.subr.bf16.mxu0 0
    %682 = vmatpush1.bf16.msra.mxu0 0
    %683 = vmatprep.subr.bf16.mxu0 0
    %684 = vmatpush1.bf16.msra.mxu0 0
    %685 = vmatprep.subr.bf16.mxu0 0
    %686 = vmatpush1.bf16.msra.mxu0 0
    %687 = vmatprep.subr.bf16.mxu0 0
    %688 = vmatpush1.bf16.msra.mxu0 0
    %689 = vmatprep.mubr.bf16.mxu0 0
    %690 = vmatmul.mubr.bf16.gmra.mrb[0].mxu0 %v569
    %v691 = vpop.f32.mrb[0].mxu0
    %v692 = vadd.f32 0.0, %v691
    %v693 = vpop.f32.mrb[0].mxu0
    %v694 = vadd.f32 0.0, %v693
    %v695 = vpop.f32.mrb[0].mxu0
    %v696 = vadd.f32 0.0, %v695
    %v697 = vpop.f32.mrb[0].mxu0
    %v698 = vadd.f32 0.0, %v697
    %699 = vdwg.mxu0
    %700 = vmatprep.subr.bf16.mxu0 %v446
    %701 = vmatpush1.bf16.msra.mxu0 %v445
    %702 = vmatprep.subr.bf16.mxu0 %v462
    %703 = vmatpush1.bf16.msra.mxu0 %v461
    %704 = vmatprep.subr.bf16.mxu0 %v478
    %705 = vmatpush1.bf16.msra.mxu0 %v477
    %706 = vmatprep.subr.bf16.mxu0 %v494
    %707 = vmatpush1.bf16.msra.mxu0 %v493
    %708 = vmatprep.subr.bf16.mxu0 0
    %709 = vmatpush1.bf16.msra.mxu0 0
    %710 = vmatprep.subr.bf16.mxu0 0
    %711 = vmatpush1.bf16.msra.mxu0 0
    %712 = vmatprep.subr.bf16.mxu0 0
    %713 = vmatpush1.bf16.msra.mxu0 0
    %714 = vmatprep.subr.bf16.mxu0 0
    %715 = vmatpush1.bf16.msra.mxu0 0
    %716 = vmatprep.subr.bf16.mxu0 0
    %717 = vmatpush1.bf16.msra.mxu0 0
    %718 = vmatprep.subr.bf16.mxu0 0
    %719 = vmatpush1.bf16.msra.mxu0 0
    %720 = vmatprep.subr.bf16.mxu0 0
    %721 = vmatpush1.bf16.msra.mxu0 0
    %722 = vmatprep.subr.bf16.mxu0 0
    %723 = vmatpush1.bf16.msra.mxu0 0
    %724 = vmatprep.subr.bf16.mxu0 0
    %725 = vmatpush1.bf16.msra.mxu0 0
    %726 = vmatprep.subr.bf16.mxu0 0
    %727 = vmatpush1.bf16.msra.mxu0 0
    %728 = vmatprep.subr.bf16.mxu0 0
    %729 = vmatpush1.bf16.msra.mxu0 0
    %730 = vmatprep.subr.bf16.mxu0 0
    %731 = vmatpush1.bf16.msra.mxu0 0
    %732 = vmatprep.mubr.bf16.mxu0 0
    %733 = vmatmul.mubr.bf16.gmra.mrb[0].mxu0 %v569
    %v734 = vpop.f32.mrb[0].mxu0
    %v735 = vadd.f32 0.0, %v734
    %v736 = vpop.f32.mrb[0].mxu0
    %v737 = vadd.f32 0.0, %v736
    %v738 = vpop.f32.mrb[0].mxu0
    %v739 = vadd.f32 0.0, %v738
    %v740 = vpop.f32.mrb[0].mxu0
    %v741 = vadd.f32 0.0, %v740
    %742 = vdwg.mxu0
    %743 = vmatprep.subr.bf16.mxu0 %v448
    %744 = vmatpush1.bf16.msra.mxu0 %v447
    %745 = vmatprep.subr.bf16.mxu0 %v464
    %746 = vmatpush1.bf16.msra.mxu0 %v463
    %747 = vmatprep.subr.bf16.mxu0 %v480
    %748 = vmatpush1.bf16.msra.mxu0 %v479
    %749 = vmatprep.subr.bf16.mxu0 %v496
    %750 = vmatpush1.bf16.msra.mxu0 %v495
    %751 = vmatprep.subr.bf16.mxu0 0
    %752 = vmatpush1.bf16.msra.mxu0 0
    %753 = vmatprep.subr.bf16.mxu0 0
    %754 = vmatpush1.bf16.msra.mxu0 0
    %755 = vmatprep.subr.bf16.mxu0 0
    %756 = vmatpush1.bf16.msra.mxu0 0
    %757 = vmatprep.subr.bf16.mxu0 0
    %758 = vmatpush1.bf16.msra.mxu0 0
    %759 = vmatprep.subr.bf16.mxu0 0
    %760 = vmatpush1.bf16.msra.mxu0 0
    %761 = vmatprep.subr.bf16.mxu0 0
    %762 = vmatpush1.bf16.msra.mxu0 0
    %763 = vmatprep.subr.bf16.mxu0 0
    %764 = vmatpush1.bf16.msra.mxu0 0
    %765 = vmatprep.subr.bf16.mxu0 0
    %766 = vmatpush1.bf16.msra.mxu0 0
    %767 = vmatprep.subr.bf16.mxu0 0
    %768 = vmatpush1.bf16.msra.mxu0 0
    %769 = vmatprep.subr.bf16.mxu0 0
    %770 = vmatpush1.bf16.msra.mxu0 0
    %771 = vmatprep.subr.bf16.mxu0 0
    %772 = vmatpush1.bf16.msra.mxu0 0
    %773 = vmatprep.subr.bf16.mxu0 0
    %774 = vmatpush1.bf16.msra.mxu0 0
    %775 = vmatprep.mubr.bf16.mxu0 0
    %776 = vmatmul.mubr.bf16.gmra.mrb[0].mxu0 %v569
    %v777 = vpop.f32.mrb[0].mxu0
    %v778 = vadd.f32 0.0, %v777
    %v779 = vpop.f32.mrb[0].mxu0
    %v780 = vadd.f32 0.0, %v779
    %v781 = vpop.f32.mrb[0].mxu0
    %v782 = vadd.f32 0.0, %v781
    %v783 = vpop.f32.mrb[0].mxu0
    %v784 = vadd.f32 0.0, %v783
    %785 = vdwg.mxu0
    %786 = vmatprep.subr.bf16.mxu0 %v450
    %787 = vmatpush1.bf16.msra.mxu0 %v449
    %788 = vmatprep.subr.bf16.mxu0 %v466
    %789 = vmatpush1.bf16.msra.mxu0 %v465
    %790 = vmatprep.subr.bf16.mxu0 %v482
    %791 = vmatpush1.bf16.msra.mxu0 %v481
    %792 = vmatprep.subr.bf16.mxu0 %v498
    %793 = vmatpush1.bf16.msra.mxu0 %v497
    %794 = vmatprep.subr.bf16.mxu0 0
    %795 = vmatpush1.bf16.msra.mxu0 0
    %796 = vmatprep.subr.bf16.mxu0 0
    %797 = vmatpush1.bf16.msra.mxu0 0
    %798 = vmatprep.subr.bf16.mxu0 0
    %799 = vmatpush1.bf16.msra.mxu0 0
    %800 = vmatprep.subr.bf16.mxu0 0
    %801 = vmatpush1.bf16.msra.mxu0 0
    %802 = vmatprep.subr.bf16.mxu0 0
    %803 = vmatpush1.bf16.msra.mxu0 0
    %804 = vmatprep.subr.bf16.mxu0 0
    %805 = vmatpush1.bf16.msra.mxu0 0
    %806 = vmatprep.subr.bf16.mxu0 0
    %807 = vmatpush1.bf16.msra.mxu0 0
    %808 = vmatprep.subr.bf16.mxu0 0
    %809 = vmatpush1.bf16.msra.mxu0 0
    %810 = vmatprep.subr.bf16.mxu0 0
    %811 = vmatpush1.bf16.msra.mxu0 0
    %812 = vmatprep.subr.bf16.mxu0 0
    %813 = vmatpush1.bf16.msra.mxu0 0
    %814 = vmatprep.subr.bf16.mxu0 0
    %815 = vmatpush1.bf16.msra.mxu0 0
    %816 = vmatprep.subr.bf16.mxu0 0
    %817 = vmatpush1.bf16.msra.mxu0 0
    %818 = vmatprep.mubr.bf16.mxu0 0
    %819 = vmatmul.mubr.bf16.gmra.mrb[0].mxu0 %v569
    %v820 = vpop.f32.mrb[0].mxu0
    %v821 = vadd.f32 0.0, %v820
    %v822 = vpop.f32.mrb[0].mxu0
    %v823 = vadd.f32 0.0, %v822
    %v824 = vpop.f32.mrb[0].mxu0
    %v825 = vadd.f32 0.0, %v824
    %v826 = vpop.f32.mrb[0].mxu0
    %v827 = vadd.f32 0.0, %v826
    %828 = vdwg.mxu0
    %829 = vmatprep.subr.bf16.mxu0 %v452
    %830 = vmatpush1.bf16.msra.mxu0 %v451
    %831 = vmatprep.subr.bf16.mxu0 %v468
    %832 = vmatpush1.bf16.msra.mxu0 %v467
    %833 = vmatprep.subr.bf16.mxu0 %v484
    %834 = vmatpush1.bf16.msra.mxu0 %v483
    %835 = vmatprep.subr.bf16.mxu0 %v500
    %836 = vmatpush1.bf16.msra.mxu0 %v499
    %837 = vmatprep.subr.bf16.mxu0 0
    %838 = vmatpush1.bf16.msra.mxu0 0
    %839 = vmatprep.subr.bf16.mxu0 0
    %840 = vmatpush1.bf16.msra.mxu0 0
    %841 = vmatprep.subr.bf16.mxu0 0
    %842 = vmatpush1.bf16.msra.mxu0 0
    %843 = vmatprep.subr.bf16.mxu0 0
    %844 = vmatpush1.bf16.msra.mxu0 0
    %845 = vmatprep.subr.bf16.mxu0 0
    %846 = vmatpush1.bf16.msra.mxu0 0
    %847 = vmatprep.subr.bf16.mxu0 0
    %848 = vmatpush1.bf16.msra.mxu0 0
    %849 = vmatprep.subr.bf16.mxu0 0
    %850 = vmatpush1.bf16.msra.mxu0 0
    %851 = vmatprep.subr.bf16.mxu0 0
    %852 = vmatpush1.bf16.msra.mxu0 0
    %853 = vmatprep.subr.bf16.mxu0 0
    %854 = vmatpush1.bf16.msra.mxu0 0
    %855 = vmatprep.subr.bf16.mxu0 0
    %856 = vmatpush1.bf16.msra.mxu0 0
    %857 = vmatprep.subr.bf16.mxu0 0
    %858 = vmatpush1.bf16.msra.mxu0 0
    %859 = vmatprep.subr.bf16.mxu0 0
    %860 = vmatpush1.bf16.msra.mxu0 0
    %861 = vmatprep.mubr.bf16.mxu0 0
    %862 = vmatmul.mubr.bf16.gmra.mrb[0].mxu0 %v569
    %v863 = vpop.f32.mrb[0].mxu0
    %v864 = vadd.f32 0.0, %v863
    %v865 = vpop.f32.mrb[0].mxu0
    %v866 = vadd.f32 0.0, %v865
    %v867 = vpop.f32.mrb[0].mxu0
    %v868 = vadd.f32 0.0, %v867
    %v869 = vpop.f32.mrb[0].mxu0
    %v870 = vadd.f32 0.0, %v869
    %871 = vdwg.mxu0
    %872 = vmatprep.subr.bf16.mxu0 %v454
    %873 = vmatpush1.bf16.msra.mxu0 %v453
    %874 = vmatprep.subr.bf16.mxu0 %v470
    %875 = vmatpush1.bf16.msra.mxu0 %v469
    %876 = vmatprep.subr.bf16.mxu0 %v486
    %877 = vmatpush1.bf16.msra.mxu0 %v485
    %878 = vmatprep.subr.bf16.mxu0 %v502
    %879 = vmatpush1.bf16.msra.mxu0 %v501
    %880 = vmatprep.subr.bf16.mxu0 0
    %881 = vmatpush1.bf16.msra.mxu0 0
    %882 = vmatprep.subr.bf16.mxu0 0
    %883 = vmatpush1.bf16.msra.mxu0 0
    %884 = vmatprep.subr.bf16.mxu0 0
    %885 = vmatpush1.bf16.msra.mxu0 0
    %886 = vmatprep.subr.bf16.mxu0 0
    %887 = vmatpush1.bf16.msra.mxu0 0
    %888 = vmatprep.subr.bf16.mxu0 0
    %889 = vmatpush1.bf16.msra.mxu0 0
    %890 = vmatprep.subr.bf16.mxu0 0
    %891 = vmatpush1.bf16.msra.mxu0 0
    %892 = vmatprep.subr.bf16.mxu0 0
    %893 = vmatpush1.bf16.msra.mxu0 0
    %894 = vmatprep.subr.bf16.mxu0 0
    %895 = vmatpush1.bf16.msra.mxu0 0
    %896 = vmatprep.subr.bf16.mxu0 0
    %897 = vmatpush1.bf16.msra.mxu0 0
    %898 = vmatprep.subr.bf16.mxu0 0
    %899 = vmatpush1.bf16.msra.mxu0 0
    %900 = vmatprep.subr.bf16.mxu0 0
    %901 = vmatpush1.bf16.msra.mxu0 0
    %902 = vmatprep.subr.bf16.mxu0 0
    %903 = vmatpush1.bf16.msra.mxu0 0
    %904 = vmatprep.mubr.bf16.mxu0 0
    %905 = vmatmul.mubr.bf16.gmra.mrb[0].mxu0 %v569
    %v906 = vpop.f32.mrb[0].mxu0
    %v907 = vadd.f32 0.0, %v906
    %v908 = vpop.f32.mrb[0].mxu0
    %v909 = vadd.f32 0.0, %v908
    %v910 = vpop.f32.mrb[0].mxu0
    %v911 = vadd.f32 0.0, %v910
    %v912 = vpop.f32.mrb[0].mxu0
    %v913 = vadd.f32 0.0, %v912
    %914 = vdwg.mxu0
    %v915 = vpack.c.bf16 %v610, %v606
    %v916 = vpack.c.bf16 %v612, %v608
    %v917 = vpack.c.bf16 %v653, %v649
    %v918 = vpack.c.bf16 %v655, %v651
    %v919 = vpack.c.bf16 %v696, %v692
    %v920 = vpack.c.bf16 %v698, %v694
    %v921 = vpack.c.bf16 %v739, %v735
    %v922 = vpack.c.bf16 %v741, %v737
    %v923 = vpack.c.bf16 %v782, %v778
    %v924 = vpack.c.bf16 %v784, %v780
    %v925 = vpack.c.bf16 %v825, %v821
    %v926 = vpack.c.bf16 %v827, %v823
    %v927 = vpack.c.bf16 %v868, %v864
    %v928 = vpack.c.bf16 %v870, %v866
    %v929 = vpack.c.bf16 %v911, %v907
    %v930 = vpack.c.bf16 %v913, %v909
    %v931 = vld [vmem:[#allocation7] sm:$0xff]
    %v932 = vld [vmem:[#allocation7 + $0x8] sm:$0xff]
    %v935 = vlaneseq
    %v936 = vshrl.u32 %v935, 7
    %v937 = vsub.s32 0, %v936
    %v938 = vrot.slane %v931, %v937
    %v939 = vlaneseq
    %v940 = vshrl.u32 %v939, 7
    %v941 = vsub.s32 1, %v940
    %v942 = vrot.slane %v931, %v941
    %v943 = vlaneseq
    %v944 = vshrl.u32 %v943, 7
    %v945 = vsub.s32 2, %v944
    %v946 = vrot.slane %v931, %v945
    %v947 = vlaneseq
    %v948 = vshrl.u32 %v947, 7
    %v949 = vsub.s32 3, %v948
    %v950 = vrot.slane %v931, %v949
    %v951 = vlaneseq
    %v952 = vshrl.u32 %v951, 7
    %v953 = vsub.s32 4, %v952
    %v954 = vrot.slane %v931, %v953
    %v955 = vlaneseq
    %v956 = vshrl.u32 %v955, 7
    %v957 = vsub.s32 5, %v956
    %v958 = vrot.slane %v931, %v957
    %v959 = vlaneseq
    %v960 = vshrl.u32 %v959, 7
    %v961 = vsub.s32 6, %v960
    %v962 = vrot.slane %v931, %v961
    %v963 = vlaneseq
    %v964 = vshrl.u32 %v963, 7
    %v965 = vsub.s32 7, %v964
    %v966 = vrot.slane %v931, %v965
    %v967 = vlaneseq
    %v968 = vshrl.u32 %v967, 7
    %v969 = vsub.s32 0, %v968
    %v970 = vrot.slane %v932, %v969
    %v971 = vlaneseq
    %v972 = vshrl.u32 %v971, 7
    %v973 = vsub.s32 1, %v972
    %v974 = vrot.slane %v932, %v973
    %v975 = vlaneseq
    %v976 = vshrl.u32 %v975, 7
    %v977 = vsub.s32 2, %v976
    %v978 = vrot.slane %v932, %v977
    %v979 = vlaneseq
    %v980 = vshrl.u32 %v979, 7
    %v981 = vsub.s32 3, %v980
    %v982 = vrot.slane %v932, %v981
    %v983 = vlaneseq
    %v984 = vshrl.u32 %v983, 7
    %v985 = vsub.s32 4, %v984
    %v986 = vrot.slane %v932, %v985
    %v987 = vlaneseq
    %v988 = vshrl.u32 %v987, 7
    %v989 = vsub.s32 5, %v988
    %v990 = vrot.slane %v932, %v989
    %v991 = vlaneseq
    %v992 = vshrl.u32 %v991, 7
    %v993 = vsub.s32 6, %v992
    %v994 = vrot.slane %v932, %v993
    %v995 = vlaneseq
    %v996 = vshrl.u32 %v995, 7
    %v997 = vsub.s32 7, %v996
    %v998 = vrot.slane %v932, %v997
    %v1015 = vpack.c.bf16 %v938, %v938
    %v1016 = vpack.c.bf16 %v942, %v942
    %v1017 = vpack.c.bf16 %v946, %v946
    %v1018 = vpack.c.bf16 %v950, %v950
    %v1019 = vpack.c.bf16 %v954, %v954
    %v1020 = vpack.c.bf16 %v958, %v958
    %v1021 = vpack.c.bf16 %v962, %v962
    %v1022 = vpack.c.bf16 %v966, %v966
    %v1023 = vpack.c.bf16 %v970, %v970
    %v1024 = vpack.c.bf16 %v974, %v974
    %v1025 = vpack.c.bf16 %v978, %v978
    %v1026 = vpack.c.bf16 %v982, %v982
    %v1027 = vpack.c.bf16 %v986, %v986
    %v1028 = vpack.c.bf16 %v990, %v990
    %v1029 = vpack.c.bf16 %v994, %v994
    %v1030 = vpack.c.bf16 %v998, %v998
    %v1032 = vpack.i.b16 %v1015, %v1015
    %v1034 = vlaneseq
    %v1035 = vshrl.u32 %v1034, 7
    %v1036 = vsub.s32 0, %v1035
    %v1037 = vrot.slane %v1032, %v1036
    %v1039 = vpack.i.b16 %v1016, %v1016
    %v1041 = vlaneseq
    %v1042 = vshrl.u32 %v1041, 7
    %v1043 = vsub.s32 0, %v1042
    %v1044 = vrot.slane %v1039, %v1043
    %v1046 = vpack.i.b16 %v1017, %v1017
    %v1048 = vlaneseq
    %v1049 = vshrl.u32 %v1048, 7
    %v1050 = vsub.s32 0, %v1049
    %v1051 = vrot.slane %v1046, %v1050
    %v1053 = vpack.i.b16 %v1018, %v1018
    %v1055 = vlaneseq
    %v1056 = vshrl.u32 %v1055, 7
    %v1057 = vsub.s32 0, %v1056
    %v1058 = vrot.slane %v1053, %v1057
    %v1060 = vpack.i.b16 %v1019, %v1019
    %v1062 = vlaneseq
    %v1063 = vshrl.u32 %v1062, 7
    %v1064 = vsub.s32 0, %v1063
    %v1065 = vrot.slane %v1060, %v1064
    %v1067 = vpack.i.b16 %v1020, %v1020
    %v1069 = vlaneseq
    %v1070 = vshrl.u32 %v1069, 7
    %v1071 = vsub.s32 0, %v1070
    %v1072 = vrot.slane %v1067, %v1071
    %v1074 = vpack.i.b16 %v1021, %v1021
    %v1076 = vlaneseq
    %v1077 = vshrl.u32 %v1076, 7
    %v1078 = vsub.s32 0, %v1077
    %v1079 = vrot.slane %v1074, %v1078
    %v1081 = vpack.i.b16 %v1022, %v1022
    %v1083 = vlaneseq
    %v1084 = vshrl.u32 %v1083, 7
    %v1085 = vsub.s32 0, %v1084
    %v1086 = vrot.slane %v1081, %v1085
    %v1088 = vpack.i.b16 %v1023, %v1023
    %v1090 = vlaneseq
    %v1091 = vshrl.u32 %v1090, 7
    %v1092 = vsub.s32 0, %v1091
    %v1093 = vrot.slane %v1088, %v1092
    %v1095 = vpack.i.b16 %v1024, %v1024
    %v1097 = vlaneseq
    %v1098 = vshrl.u32 %v1097, 7
    %v1099 = vsub.s32 0, %v1098
    %v1100 = vrot.slane %v1095, %v1099
    %v1102 = vpack.i.b16 %v1025, %v1025
    %v1104 = vlaneseq
    %v1105 = vshrl.u32 %v1104, 7
    %v1106 = vsub.s32 0, %v1105
    %v1107 = vrot.slane %v1102, %v1106
    %v1109 = vpack.i.b16 %v1026, %v1026
    %v1111 = vlaneseq
    %v1112 = vshrl.u32 %v1111, 7
    %v1113 = vsub.s32 0, %v1112
    %v1114 = vrot.slane %v1109, %v1113
    %v1116 = vpack.i.b16 %v1027, %v1027
    %v1118 = vlaneseq
    %v1119 = vshrl.u32 %v1118, 7
    %v1120 = vsub.s32 0, %v1119
    %v1121 = vrot.slane %v1116, %v1120
    %v1123 = vpack.i.b16 %v1028, %v1028
    %v1125 = vlaneseq
    %v1126 = vshrl.u32 %v1125, 7
    %v1127 = vsub.s32 0, %v1126
    %v1128 = vrot.slane %v1123, %v1127
    %v1130 = vpack.i.b16 %v1029, %v1029
    %v1132 = vlaneseq
    %v1133 = vshrl.u32 %v1132, 7
    %v1134 = vsub.s32 0, %v1133
    %v1135 = vrot.slane %v1130, %v1134
    %v1137 = vpack.i.b16 %v1030, %v1030
    %v1139 = vlaneseq
    %v1140 = vshrl.u32 %v1139, 7
    %v1141 = vsub.s32 0, %v1140
    %v1142 = vrot.slane %v1137, %v1141
    %v1143 = vadd.bf16 %v915, %v1037
    %v1144 = vadd.bf16 %v916, %v1044
    %v1145 = vadd.bf16 %v917, %v1051
    %v1146 = vadd.bf16 %v918, %v1058
    %v1147 = vadd.bf16 %v919, %v1065
    %v1148 = vadd.bf16 %v920, %v1072
    %v1149 = vadd.bf16 %v921, %v1079
    %v1150 = vadd.bf16 %v922, %v1086
    %v1151 = vadd.bf16 %v923, %v1093
    %v1152 = vadd.bf16 %v924, %v1100
    %v1153 = vadd.bf16 %v925, %v1107
    %v1154 = vadd.bf16 %v926, %v1114
    %v1155 = vadd.bf16 %v927, %v1121
    %v1156 = vadd.bf16 %v928, %v1128
    %v1157 = vadd.bf16 %v929, %v1135
    %v1158 = vadd.bf16 %v930, %v1142
    %v1159 = vmul.bf16 %v1143, 1036860877
    %v1160 = vmul.bf16 %v1144, 1036860877
    %v1161 = vmul.bf16 %v1145, 1036860877
    %v1162 = vmul.bf16 %v1146, 1036860877
    %v1163 = vmul.bf16 %v1147, 1036860877
    %v1164 = vmul.bf16 %v1148, 1036860877
    %v1165 = vmul.bf16 %v1149, 1036860877
    %v1166 = vmul.bf16 %v1150, 1036860877
    %v1167 = vmul.bf16 %v1151, 1036860877
    %v1168 = vmul.bf16 %v1152, 1036860877
    %v1169 = vmul.bf16 %v1153, 1036860877
    %v1170 = vmul.bf16 %v1154, 1036860877
    %v1171 = vmul.bf16 %v1155, 1036860877
    %v1172 = vmul.bf16 %v1156, 1036860877
    %v1173 = vmul.bf16 %v1157, 1036860877
    %v1174 = vmul.bf16 %v1158, 1036860877
    %v1175 = vmax.bf16 %v1143, %v1159
    %v1176 = vmax.bf16 %v1144, %v1160
    %v1177 = vmax.bf16 %v1145, %v1161
    %v1178 = vmax.bf16 %v1146, %v1162
    %v1179 = vmax.bf16 %v1147, %v1163
    %v1180 = vmax.bf16 %v1148, %v1164
    %v1181 = vmax.bf16 %v1149, %v1165
    %v1182 = vmax.bf16 %v1150, %v1166
    %v1183 = vmax.bf16 %v1151, %v1167
    %v1184 = vmax.bf16 %v1152, %v1168
    %v1185 = vmax.bf16 %v1153, %v1169
    %v1186 = vmax.bf16 %v1154, %v1170
    %v1187 = vmax.bf16 %v1155, %v1171
    %v1188 = vmax.bf16 %v1156, %v1172
    %v1189 = vmax.bf16 %v1157, %v1173
    %v1190 = vmax.bf16 %v1158, %v1174
    %v1191 = vld [vmem:[#allocation8] sm:$0xff]
    %v1192 = vld [vmem:[#allocation8 + $0x8] sm:$0xff]
    %v1193 = vld [vmem:[#allocation8 + $0x10] sm:$0xff]
    %v1194 = vld [vmem:[#allocation8 + $0x18] sm:$0xff]
    %v1195 = vld [vmem:[#allocation8 + $0x20] sm:$0xff]
    %v1196 = vld [vmem:[#allocation8 + $0x28] sm:$0xff]
    %v1197 = vld [vmem:[#allocation8 + $0x30] sm:$0xff]
    %v1198 = vld [vmem:[#allocation8 + $0x38] sm:$0xff]
    %v1199 = vld [vmem:[#allocation8 + $0x40] sm:$0xff]
    %v1200 = vld [vmem:[#allocation8 + $0x48] sm:$0xff]
    %v1201 = vld [vmem:[#allocation8 + $0x50] sm:$0xff]
    %v1202 = vld [vmem:[#allocation8 + $0x58] sm:$0xff]
    %v1203 = vld [vmem:[#allocation8 + $0x60] sm:$0xff]
    %v1204 = vld [vmem:[#allocation8 + $0x68] sm:$0xff]
    %v1205 = vld [vmem:[#allocation8 + $0x70] sm:$0xff]
    %v1206 = vld [vmem:[#allocation8 + $0x78] sm:$0xff]
    %v1207 = vld [vmem:[#allocation8 + $0x80] sm:$0xff]
    %v1208 = vld [vmem:[#allocation8 + $0x88] sm:$0xff]
    %v1209 = vld [vmem:[#allocation8 + $0x90] sm:$0xff]
    %v1210 = vld [vmem:[#allocation8 + $0x98] sm:$0xff]
    %v1211 = vld [vmem:[#allocation8 + $0xa0] sm:$0xff]
    %v1212 = vld [vmem:[#allocation8 + $0xa8] sm:$0xff]
    %v1213 = vld [vmem:[#allocation8 + $0xb0] sm:$0xff]
    %v1214 = vld [vmem:[#allocation8 + $0xb8] sm:$0xff]
    %v1215 = vld [vmem:[#allocation8 + $0xc0] sm:$0xff]
    %v1216 = vld [vmem:[#allocation8 + $0xc8] sm:$0xff]
    %v1217 = vld [vmem:[#allocation8 + $0xd0] sm:$0xff]
    %v1218 = vld [vmem:[#allocation8 + $0xd8] sm:$0xff]
    %v1219 = vld [vmem:[#allocation8 + $0xe0] sm:$0xff]
    %v1220 = vld [vmem:[#allocation8 + $0xe8] sm:$0xff]
    %v1221 = vld [vmem:[#allocation8 + $0xf0] sm:$0xff]
    %v1222 = vld [vmem:[#allocation8 + $0xf8] sm:$0xff]
    %v1223 = vld [vmem:[#allocation8 + $0x100] sm:$0xff]
    %v1224 = vld [vmem:[#allocation8 + $0x108] sm:$0xff]
    %v1225 = vld [vmem:[#allocation8 + $0x110] sm:$0xff]
    %v1226 = vld [vmem:[#allocation8 + $0x118] sm:$0xff]
    %v1227 = vld [vmem:[#allocation8 + $0x120] sm:$0xff]
    %v1228 = vld [vmem:[#allocation8 + $0x128] sm:$0xff]
    %v1229 = vld [vmem:[#allocation8 + $0x130] sm:$0xff]
    %v1230 = vld [vmem:[#allocation8 + $0x138] sm:$0xff]
    %v1231 = vld [vmem:[#allocation8 + $0x140] sm:$0xff]
    %v1232 = vld [vmem:[#allocation8 + $0x148] sm:$0xff]
    %v1233 = vld [vmem:[#allocation8 + $0x150] sm:$0xff]
    %v1234 = vld [vmem:[#allocation8 + $0x158] sm:$0xff]
    %v1235 = vld [vmem:[#allocation8 + $0x160] sm:$0xff]
    %v1236 = vld [vmem:[#allocation8 + $0x168] sm:$0xff]
    %v1237 = vld [vmem:[#allocation8 + $0x170] sm:$0xff]
    %v1238 = vld [vmem:[#allocation8 + $0x178] sm:$0xff]
    %v1239 = vld [vmem:[#allocation8 + $0x180] sm:$0xff]
    %v1240 = vld [vmem:[#allocation8 + $0x188] sm:$0xff]
    %v1241 = vld [vmem:[#allocation8 + $0x190] sm:$0xff]
    %v1242 = vld [vmem:[#allocation8 + $0x198] sm:$0xff]
    %v1243 = vld [vmem:[#allocation8 + $0x1a0] sm:$0xff]
    %v1244 = vld [vmem:[#allocation8 + $0x1a8] sm:$0xff]
    %v1245 = vld [vmem:[#allocation8 + $0x1b0] sm:$0xff]
    %v1246 = vld [vmem:[#allocation8 + $0x1b8] sm:$0xff]
    %v1247 = vld [vmem:[#allocation8 + $0x1c0] sm:$0xff]
    %v1248 = vld [vmem:[#allocation8 + $0x1c8] sm:$0xff]
    %v1249 = vld [vmem:[#allocation8 + $0x1d0] sm:$0xff]
    %v1250 = vld [vmem:[#allocation8 + $0x1d8] sm:$0xff]
    %v1251 = vld [vmem:[#allocation8 + $0x1e0] sm:$0xff]
    %v1252 = vld [vmem:[#allocation8 + $0x1e8] sm:$0xff]
    %v1253 = vld [vmem:[#allocation8 + $0x1f0] sm:$0xff]
    %v1254 = vld [vmem:[#allocation8 + $0x1f8] sm:$0xff]
    %v1255 = vld [vmem:[#allocation8 + $0x200] sm:$0xff]
    %v1256 = vld [vmem:[#allocation8 + $0x208] sm:$0xff]
    %v1257 = vld [vmem:[#allocation8 + $0x210] sm:$0xff]
    %v1258 = vld [vmem:[#allocation8 + $0x218] sm:$0xff]
    %v1259 = vld [vmem:[#allocation8 + $0x220] sm:$0xff]
    %v1260 = vld [vmem:[#allocation8 + $0x228] sm:$0xff]
    %v1261 = vld [vmem:[#allocation8 + $0x230] sm:$0xff]
    %v1262 = vld [vmem:[#allocation8 + $0x238] sm:$0xff]
    %v1263 = vld [vmem:[#allocation8 + $0x240] sm:$0xff]
    %v1264 = vld [vmem:[#allocation8 + $0x248] sm:$0xff]
    %v1265 = vld [vmem:[#allocation8 + $0x250] sm:$0xff]
    %v1266 = vld [vmem:[#allocation8 + $0x258] sm:$0xff]
    %v1267 = vld [vmem:[#allocation8 + $0x260] sm:$0xff]
    %v1268 = vld [vmem:[#allocation8 + $0x268] sm:$0xff]
    %v1269 = vld [vmem:[#allocation8 + $0x270] sm:$0xff]
    %v1270 = vld [vmem:[#allocation8 + $0x278] sm:$0xff]
    %v1271 = vld [vmem:[#allocation8 + $0x280] sm:$0xff]
    %v1272 = vld [vmem:[#allocation8 + $0x288] sm:$0xff]
    %v1273 = vld [vmem:[#allocation8 + $0x290] sm:$0xff]
    %v1274 = vld [vmem:[#allocation8 + $0x298] sm:$0xff]
    %v1275 = vld [vmem:[#allocation8 + $0x2a0] sm:$0xff]
    %v1276 = vld [vmem:[#allocation8 + $0x2a8] sm:$0xff]
    %v1277 = vld [vmem:[#allocation8 + $0x2b0] sm:$0xff]
    %v1278 = vld [vmem:[#allocation8 + $0x2b8] sm:$0xff]
    %v1279 = vld [vmem:[#allocation8 + $0x2c0] sm:$0xff]
    %v1280 = vld [vmem:[#allocation8 + $0x2c8] sm:$0xff]
    %v1281 = vld [vmem:[#allocation8 + $0x2d0] sm:$0xff]
    %v1282 = vld [vmem:[#allocation8 + $0x2d8] sm:$0xff]
    %v1283 = vld [vmem:[#allocation8 + $0x2e0] sm:$0xff]
    %v1284 = vld [vmem:[#allocation8 + $0x2e8] sm:$0xff]
    %v1285 = vld [vmem:[#allocation8 + $0x2f0] sm:$0xff]
    %v1286 = vld [vmem:[#allocation8 + $0x2f8] sm:$0xff]
    %v1287 = vld [vmem:[#allocation8 + $0x300] sm:$0xff]
    %v1288 = vld [vmem:[#allocation8 + $0x308] sm:$0xff]
    %v1289 = vld [vmem:[#allocation8 + $0x310] sm:$0xff]
    %v1290 = vld [vmem:[#allocation8 + $0x318] sm:$0xff]
    %v1291 = vld [vmem:[#allocation8 + $0x320] sm:$0xff]
    %v1292 = vld [vmem:[#allocation8 + $0x328] sm:$0xff]
    %v1293 = vld [vmem:[#allocation8 + $0x330] sm:$0xff]
    %v1294 = vld [vmem:[#allocation8 + $0x338] sm:$0xff]
    %v1295 = vld [vmem:[#allocation8 + $0x340] sm:$0xff]
    %v1296 = vld [vmem:[#allocation8 + $0x348] sm:$0xff]
    %v1297 = vld [vmem:[#allocation8 + $0x350] sm:$0xff]
    %v1298 = vld [vmem:[#allocation8 + $0x358] sm:$0xff]
    %v1299 = vld [vmem:[#allocation8 + $0x360] sm:$0xff]
    %v1300 = vld [vmem:[#allocation8 + $0x368] sm:$0xff]
    %v1301 = vld [vmem:[#allocation8 + $0x370] sm:$0xff]
    %v1302 = vld [vmem:[#allocation8 + $0x378] sm:$0xff]
    %v1303 = vld [vmem:[#allocation8 + $0x380] sm:$0xff]
    %v1304 = vld [vmem:[#allocation8 + $0x388] sm:$0xff]
    %v1305 = vld [vmem:[#allocation8 + $0x390] sm:$0xff]
    %v1306 = vld [vmem:[#allocation8 + $0x398] sm:$0xff]
    %v1307 = vld [vmem:[#allocation8 + $0x3a0] sm:$0xff]
    %v1308 = vld [vmem:[#allocation8 + $0x3a8] sm:$0xff]
    %v1309 = vld [vmem:[#allocation8 + $0x3b0] sm:$0xff]
    %v1310 = vld [vmem:[#allocation8 + $0x3b8] sm:$0xff]
    %v1311 = vld [vmem:[#allocation8 + $0x3c0] sm:$0xff]
    %v1312 = vld [vmem:[#allocation8 + $0x3c8] sm:$0xff]
    %v1313 = vld [vmem:[#allocation8 + $0x3d0] sm:$0xff]
    %v1314 = vld [vmem:[#allocation8 + $0x3d8] sm:$0xff]
    %v1315 = vld [vmem:[#allocation8 + $0x3e0] sm:$0xff]
    %v1316 = vld [vmem:[#allocation8 + $0x3e8] sm:$0xff]
    %v1317 = vld [vmem:[#allocation8 + $0x3f0] sm:$0xff]
    %v1318 = vld [vmem:[#allocation8 + $0x3f8] sm:$0xff]
    %v1319 = vld [vmem:[#allocation8 + $0x400] sm:$0xff]
    %v1320 = vld [vmem:[#allocation8 + $0x408] sm:$0xff]
    %v1321 = vld [vmem:[#allocation8 + $0x410] sm:$0xff]
    %v1322 = vld [vmem:[#allocation8 + $0x418] sm:$0xff]
    %v1323 = vld [vmem:[#allocation8 + $0x420] sm:$0xff]
    %v1324 = vld [vmem:[#allocation8 + $0x428] sm:$0xff]
    %v1325 = vld [vmem:[#allocation8 + $0x430] sm:$0xff]
    %v1326 = vld [vmem:[#allocation8 + $0x438] sm:$0xff]
    %v1327 = vld [vmem:[#allocation8 + $0x440] sm:$0xff]
    %v1328 = vld [vmem:[#allocation8 + $0x448] sm:$0xff]
    %v1329 = vld [vmem:[#allocation8 + $0x450] sm:$0xff]
    %v1330 = vld [vmem:[#allocation8 + $0x458] sm:$0xff]
    %v1331 = vld [vmem:[#allocation8 + $0x460] sm:$0xff]
    %v1332 = vld [vmem:[#allocation8 + $0x468] sm:$0xff]
    %v1333 = vld [vmem:[#allocation8 + $0x470] sm:$0xff]
    %v1334 = vld [vmem:[#allocation8 + $0x478] sm:$0xff]
    %v1335 = vld [vmem:[#allocation8 + $0x480] sm:$0xff]
    %v1336 = vld [vmem:[#allocation8 + $0x488] sm:$0xff]
    %v1337 = vld [vmem:[#allocation8 + $0x490] sm:$0xff]
    %v1338 = vld [vmem:[#allocation8 + $0x498] sm:$0xff]
    %v1339 = vld [vmem:[#allocation8 + $0x4a0] sm:$0xff]
    %v1340 = vld [vmem:[#allocation8 + $0x4a8] sm:$0xff]
    %v1341 = vld [vmem:[#allocation8 + $0x4b0] sm:$0xff]
    %v1342 = vld [vmem:[#allocation8 + $0x4b8] sm:$0xff]
    %v1343 = vld [vmem:[#allocation8 + $0x4c0] sm:$0xff]
    %v1344 = vld [vmem:[#allocation8 + $0x4c8] sm:$0xff]
    %v1345 = vld [vmem:[#allocation8 + $0x4d0] sm:$0xff]
    %v1346 = vld [vmem:[#allocation8 + $0x4d8] sm:$0xff]
    %v1347 = vld [vmem:[#allocation8 + $0x4e0] sm:$0xff]
    %v1348 = vld [vmem:[#allocation8 + $0x4e8] sm:$0xff]
    %v1349 = vld [vmem:[#allocation8 + $0x4f0] sm:$0xff]
    %v1350 = vld [vmem:[#allocation8 + $0x4f8] sm:$0xff]
    %v1351 = vld [vmem:[#allocation8 + $0x500] sm:$0xff]
    %v1352 = vld [vmem:[#allocation8 + $0x508] sm:$0xff]
    %v1353 = vld [vmem:[#allocation8 + $0x510] sm:$0xff]
    %v1354 = vld [vmem:[#allocation8 + $0x518] sm:$0xff]
    %v1355 = vld [vmem:[#allocation8 + $0x520] sm:$0xff]
    %v1356 = vld [vmem:[#allocation8 + $0x528] sm:$0xff]
    %v1357 = vld [vmem:[#allocation8 + $0x530] sm:$0xff]
    %v1358 = vld [vmem:[#allocation8 + $0x538] sm:$0xff]
    %v1359 = vld [vmem:[#allocation8 + $0x540] sm:$0xff]
    %v1360 = vld [vmem:[#allocation8 + $0x548] sm:$0xff]
    %v1361 = vld [vmem:[#allocation8 + $0x550] sm:$0xff]
    %v1362 = vld [vmem:[#allocation8 + $0x558] sm:$0xff]
    %v1363 = vld [vmem:[#allocation8 + $0x560] sm:$0xff]
    %v1364 = vld [vmem:[#allocation8 + $0x568] sm:$0xff]
    %v1365 = vld [vmem:[#allocation8 + $0x570] sm:$0xff]
    %v1366 = vld [vmem:[#allocation8 + $0x578] sm:$0xff]
    %v1367 = vld [vmem:[#allocation8 + $0x580] sm:$0xff]
    %v1368 = vld [vmem:[#allocation8 + $0x588] sm:$0xff]
    %v1369 = vld [vmem:[#allocation8 + $0x590] sm:$0xff]
    %v1370 = vld [vmem:[#allocation8 + $0x598] sm:$0xff]
    %v1371 = vld [vmem:[#allocation8 + $0x5a0] sm:$0xff]
    %v1372 = vld [vmem:[#allocation8 + $0x5a8] sm:$0xff]
    %v1373 = vld [vmem:[#allocation8 + $0x5b0] sm:$0xff]
    %v1374 = vld [vmem:[#allocation8 + $0x5b8] sm:$0xff]
    %v1375 = vld [vmem:[#allocation8 + $0x5c0] sm:$0xff]
    %v1376 = vld [vmem:[#allocation8 + $0x5c8] sm:$0xff]
    %v1377 = vld [vmem:[#allocation8 + $0x5d0] sm:$0xff]
    %v1378 = vld [vmem:[#allocation8 + $0x5d8] sm:$0xff]
    %v1379 = vld [vmem:[#allocation8 + $0x5e0] sm:$0xff]
    %v1380 = vld [vmem:[#allocation8 + $0x5e8] sm:$0xff]
    %v1381 = vld [vmem:[#allocation8 + $0x5f0] sm:$0xff]
    %v1382 = vld [vmem:[#allocation8 + $0x5f8] sm:$0xff]
    %v1383 = vld [vmem:[#allocation8 + $0x600] sm:$0xff]
    %v1384 = vld [vmem:[#allocation8 + $0x608] sm:$0xff]
    %v1385 = vld [vmem:[#allocation8 + $0x610] sm:$0xff]
    %v1386 = vld [vmem:[#allocation8 + $0x618] sm:$0xff]
    %v1387 = vld [vmem:[#allocation8 + $0x620] sm:$0xff]
    %v1388 = vld [vmem:[#allocation8 + $0x628] sm:$0xff]
    %v1389 = vld [vmem:[#allocation8 + $0x630] sm:$0xff]
    %v1390 = vld [vmem:[#allocation8 + $0x638] sm:$0xff]
    %v1391 = vld [vmem:[#allocation8 + $0x640] sm:$0xff]
    %v1392 = vld [vmem:[#allocation8 + $0x648] sm:$0xff]
    %v1393 = vld [vmem:[#allocation8 + $0x650] sm:$0xff]
    %v1394 = vld [vmem:[#allocation8 + $0x658] sm:$0xff]
    %v1395 = vld [vmem:[#allocation8 + $0x660] sm:$0xff]
    %v1396 = vld [vmem:[#allocation8 + $0x668] sm:$0xff]
    %v1397 = vld [vmem:[#allocation8 + $0x670] sm:$0xff]
    %v1398 = vld [vmem:[#allocation8 + $0x678] sm:$0xff]
    %v1399 = vld [vmem:[#allocation8 + $0x680] sm:$0xff]
    %v1400 = vld [vmem:[#allocation8 + $0x688] sm:$0xff]
    %v1401 = vld [vmem:[#allocation8 + $0x690] sm:$0xff]
    %v1402 = vld [vmem:[#allocation8 + $0x698] sm:$0xff]
    %v1403 = vld [vmem:[#allocation8 + $0x6a0] sm:$0xff]
    %v1404 = vld [vmem:[#allocation8 + $0x6a8] sm:$0xff]
    %v1405 = vld [vmem:[#allocation8 + $0x6b0] sm:$0xff]
    %v1406 = vld [vmem:[#allocation8 + $0x6b8] sm:$0xff]
    %v1407 = vld [vmem:[#allocation8 + $0x6c0] sm:$0xff]
    %v1408 = vld [vmem:[#allocation8 + $0x6c8] sm:$0xff]
    %v1409 = vld [vmem:[#allocation8 + $0x6d0] sm:$0xff]
    %v1410 = vld [vmem:[#allocation8 + $0x6d8] sm:$0xff]
    %v1411 = vld [vmem:[#allocation8 + $0x6e0] sm:$0xff]
    %v1412 = vld [vmem:[#allocation8 + $0x6e8] sm:$0xff]
    %v1413 = vld [vmem:[#allocation8 + $0x6f0] sm:$0xff]
    %v1414 = vld [vmem:[#allocation8 + $0x6f8] sm:$0xff]
    %v1415 = vld [vmem:[#allocation8 + $0x700] sm:$0xff]
    %v1416 = vld [vmem:[#allocation8 + $0x708] sm:$0xff]
    %v1417 = vld [vmem:[#allocation8 + $0x710] sm:$0xff]
    %v1418 = vld [vmem:[#allocation8 + $0x718] sm:$0xff]
    %v1419 = vld [vmem:[#allocation8 + $0x720] sm:$0xff]
    %v1420 = vld [vmem:[#allocation8 + $0x728] sm:$0xff]
    %v1421 = vld [vmem:[#allocation8 + $0x730] sm:$0xff]
    %v1422 = vld [vmem:[#allocation8 + $0x738] sm:$0xff]
    %v1423 = vld [vmem:[#allocation8 + $0x740] sm:$0xff]
    %v1424 = vld [vmem:[#allocation8 + $0x748] sm:$0xff]
    %v1425 = vld [vmem:[#allocation8 + $0x750] sm:$0xff]
    %v1426 = vld [vmem:[#allocation8 + $0x758] sm:$0xff]
    %v1427 = vld [vmem:[#allocation8 + $0x760] sm:$0xff]
    %v1428 = vld [vmem:[#allocation8 + $0x768] sm:$0xff]
    %v1429 = vld [vmem:[#allocation8 + $0x770] sm:$0xff]
    %v1430 = vld [vmem:[#allocation8 + $0x778] sm:$0xff]
    %v1431 = vld [vmem:[#allocation8 + $0x780] sm:$0xff]
    %v1432 = vld [vmem:[#allocation8 + $0x788] sm:$0xff]
    %v1433 = vld [vmem:[#allocation8 + $0x790] sm:$0xff]
    %v1434 = vld [vmem:[#allocation8 + $0x798] sm:$0xff]
    %v1435 = vld [vmem:[#allocation8 + $0x7a0] sm:$0xff]
    %v1436 = vld [vmem:[#allocation8 + $0x7a8] sm:$0xff]
    %v1437 = vld [vmem:[#allocation8 + $0x7b0] sm:$0xff]
    %v1438 = vld [vmem:[#allocation8 + $0x7b8] sm:$0xff]
    %v1439 = vld [vmem:[#allocation8 + $0x7c0] sm:$0xff]
    %v1440 = vld [vmem:[#allocation8 + $0x7c8] sm:$0xff]
    %v1441 = vld [vmem:[#allocation8 + $0x7d0] sm:$0xff]
    %v1442 = vld [vmem:[#allocation8 + $0x7d8] sm:$0xff]
    %v1443 = vld [vmem:[#allocation8 + $0x7e0] sm:$0xff]
    %v1444 = vld [vmem:[#allocation8 + $0x7e8] sm:$0xff]
    %v1445 = vld [vmem:[#allocation8 + $0x7f0] sm:$0xff]
    %v1446 = vld [vmem:[#allocation8 + $0x7f8] sm:$0xff]
    %v1447 = vld [vmem:[#allocation8 + $0x800] sm:$0xff]
    %v1448 = vld [vmem:[#allocation8 + $0x808] sm:$0xff]
    %v1449 = vld [vmem:[#allocation8 + $0x810] sm:$0xff]
    %v1450 = vld [vmem:[#allocation8 + $0x818] sm:$0xff]
    %v1451 = vld [vmem:[#allocation8 + $0x820] sm:$0xff]
    %v1452 = vld [vmem:[#allocation8 + $0x828] sm:$0xff]
    %v1453 = vld [vmem:[#allocation8 + $0x830] sm:$0xff]
    %v1454 = vld [vmem:[#allocation8 + $0x838] sm:$0xff]
    %v1455 = vld [vmem:[#allocation8 + $0x840] sm:$0xff]
    %v1456 = vld [vmem:[#allocation8 + $0x848] sm:$0xff]
    %v1457 = vld [vmem:[#allocation8 + $0x850] sm:$0xff]
    %v1458 = vld [vmem:[#allocation8 + $0x858] sm:$0xff]
    %v1459 = vld [vmem:[#allocation8 + $0x860] sm:$0xff]
    %v1460 = vld [vmem:[#allocation8 + $0x868] sm:$0xff]
    %v1461 = vld [vmem:[#allocation8 + $0x870] sm:$0xff]
    %v1462 = vld [vmem:[#allocation8 + $0x878] sm:$0xff]
    %v1463 = vld [vmem:[#allocation8 + $0x880] sm:$0xff]
    %v1464 = vld [vmem:[#allocation8 + $0x888] sm:$0xff]
    %v1465 = vld [vmem:[#allocation8 + $0x890] sm:$0xff]
    %v1466 = vld [vmem:[#allocation8 + $0x898] sm:$0xff]
    %v1467 = vld [vmem:[#allocation8 + $0x8a0] sm:$0xff]
    %v1468 = vld [vmem:[#allocation8 + $0x8a8] sm:$0xff]
    %v1469 = vld [vmem:[#allocation8 + $0x8b0] sm:$0xff]
    %v1470 = vld [vmem:[#allocation8 + $0x8b8] sm:$0xff]
    %v1471 = vld [vmem:[#allocation8 + $0x8c0] sm:$0xff]
    %v1472 = vld [vmem:[#allocation8 + $0x8c8] sm:$0xff]
    %v1473 = vld [vmem:[#allocation8 + $0x8d0] sm:$0xff]
    %v1474 = vld [vmem:[#allocation8 + $0x8d8] sm:$0xff]
    %v1475 = vld [vmem:[#allocation8 + $0x8e0] sm:$0xff]
    %v1476 = vld [vmem:[#allocation8 + $0x8e8] sm:$0xff]
    %v1477 = vld [vmem:[#allocation8 + $0x8f0] sm:$0xff]
    %v1478 = vld [vmem:[#allocation8 + $0x8f8] sm:$0xff]
    %v1479 = vld [vmem:[#allocation8 + $0x900] sm:$0xff]
    %v1480 = vld [vmem:[#allocation8 + $0x908] sm:$0xff]
    %v1481 = vld [vmem:[#allocation8 + $0x910] sm:$0xff]
    %v1482 = vld [vmem:[#allocation8 + $0x918] sm:$0xff]
    %v1483 = vld [vmem:[#allocation8 + $0x920] sm:$0xff]
    %v1484 = vld [vmem:[#allocation8 + $0x928] sm:$0xff]
    %v1485 = vld [vmem:[#allocation8 + $0x930] sm:$0xff]
    %v1486 = vld [vmem:[#allocation8 + $0x938] sm:$0xff]
    %v1487 = vld [vmem:[#allocation8 + $0x940] sm:$0xff]
    %v1488 = vld [vmem:[#allocation8 + $0x948] sm:$0xff]
    %v1489 = vld [vmem:[#allocation8 + $0x950] sm:$0xff]
    %v1490 = vld [vmem:[#allocation8 + $0x958] sm:$0xff]
    %v1491 = vld [vmem:[#allocation8 + $0x960] sm:$0xff]
    %v1492 = vld [vmem:[#allocation8 + $0x968] sm:$0xff]
    %v1493 = vld [vmem:[#allocation8 + $0x970] sm:$0xff]
    %v1494 = vld [vmem:[#allocation8 + $0x978] sm:$0xff]
    %v1495 = vld [vmem:[#allocation8 + $0x980] sm:$0xff]
    %v1496 = vld [vmem:[#allocation8 + $0x988] sm:$0xff]
    %v1497 = vld [vmem:[#allocation8 + $0x990] sm:$0xff]
    %v1498 = vld [vmem:[#allocation8 + $0x998] sm:$0xff]
    %v1499 = vld [vmem:[#allocation8 + $0x9a0] sm:$0xff]
    %v1500 = vld [vmem:[#allocation8 + $0x9a8] sm:$0xff]
    %v1501 = vld [vmem:[#allocation8 + $0x9b0] sm:$0xff]
    %v1502 = vld [vmem:[#allocation8 + $0x9b8] sm:$0xff]
    %v1503 = vld [vmem:[#allocation8 + $0x9c0] sm:$0xff]
    %v1504 = vld [vmem:[#allocation8 + $0x9c8] sm:$0xff]
    %v1505 = vld [vmem:[#allocation8 + $0x9d0] sm:$0xff]
    %v1506 = vld [vmem:[#allocation8 + $0x9d8] sm:$0xff]
    %v1507 = vld [vmem:[#allocation8 + $0x9e0] sm:$0xff]
    %v1508 = vld [vmem:[#allocation8 + $0x9e8] sm:$0xff]
    %v1509 = vld [vmem:[#allocation8 + $0x9f0] sm:$0xff]
    %v1510 = vld [vmem:[#allocation8 + $0x9f8] sm:$0xff]
    %v1511 = vld [vmem:[#allocation8 + $0xa00] sm:$0xff]
    %v1512 = vld [vmem:[#allocation8 + $0xa08] sm:$0xff]
    %v1513 = vld [vmem:[#allocation8 + $0xa10] sm:$0xff]
    %v1514 = vld [vmem:[#allocation8 + $0xa18] sm:$0xff]
    %v1515 = vld [vmem:[#allocation8 + $0xa20] sm:$0xff]
    %v1516 = vld [vmem:[#allocation8 + $0xa28] sm:$0xff]
    %v1517 = vld [vmem:[#allocation8 + $0xa30] sm:$0xff]
    %v1518 = vld [vmem:[#allocation8 + $0xa38] sm:$0xff]
    %v1519 = vld [vmem:[#allocation8 + $0xa40] sm:$0xff]
    %v1520 = vld [vmem:[#allocation8 + $0xa48] sm:$0xff]
    %v1521 = vld [vmem:[#allocation8 + $0xa50] sm:$0xff]
    %v1522 = vld [vmem:[#allocation8 + $0xa58] sm:$0xff]
    %v1523 = vld [vmem:[#allocation8 + $0xa60] sm:$0xff]
    %v1524 = vld [vmem:[#allocation8 + $0xa68] sm:$0xff]
    %v1525 = vld [vmem:[#allocation8 + $0xa70] sm:$0xff]
    %v1526 = vld [vmem:[#allocation8 + $0xa78] sm:$0xff]
    %v1527 = vld [vmem:[#allocation8 + $0xa80] sm:$0xff]
    %v1528 = vld [vmem:[#allocation8 + $0xa88] sm:$0xff]
    %v1529 = vld [vmem:[#allocation8 + $0xa90] sm:$0xff]
    %v1530 = vld [vmem:[#allocation8 + $0xa98] sm:$0xff]
    %v1531 = vld [vmem:[#allocation8 + $0xaa0] sm:$0xff]
    %v1532 = vld [vmem:[#allocation8 + $0xaa8] sm:$0xff]
    %v1533 = vld [vmem:[#allocation8 + $0xab0] sm:$0xff]
    %v1534 = vld [vmem:[#allocation8 + $0xab8] sm:$0xff]
    %v1535 = vld [vmem:[#allocation8 + $0xac0] sm:$0xff]
    %v1536 = vld [vmem:[#allocation8 + $0xac8] sm:$0xff]
    %v1537 = vld [vmem:[#allocation8 + $0xad0] sm:$0xff]
    %v1538 = vld [vmem:[#allocation8 + $0xad8] sm:$0xff]
    %v1539 = vld [vmem:[#allocation8 + $0xae0] sm:$0xff]
    %v1540 = vld [vmem:[#allocation8 + $0xae8] sm:$0xff]
    %v1541 = vld [vmem:[#allocation8 + $0xaf0] sm:$0xff]
    %v1542 = vld [vmem:[#allocation8 + $0xaf8] sm:$0xff]
    %v1543 = vld [vmem:[#allocation8 + $0xb00] sm:$0xff]
    %v1544 = vld [vmem:[#allocation8 + $0xb08] sm:$0xff]
    %v1545 = vld [vmem:[#allocation8 + $0xb10] sm:$0xff]
    %v1546 = vld [vmem:[#allocation8 + $0xb18] sm:$0xff]
    %v1547 = vld [vmem:[#allocation8 + $0xb20] sm:$0xff]
    %v1548 = vld [vmem:[#allocation8 + $0xb28] sm:$0xff]
    %v1549 = vld [vmem:[#allocation8 + $0xb30] sm:$0xff]
    %v1550 = vld [vmem:[#allocation8 + $0xb38] sm:$0xff]
    %v1551 = vld [vmem:[#allocation8 + $0xb40] sm:$0xff]
    %v1552 = vld [vmem:[#allocation8 + $0xb48] sm:$0xff]
    %v1553 = vld [vmem:[#allocation8 + $0xb50] sm:$0xff]
    %v1554 = vld [vmem:[#allocation8 + $0xb58] sm:$0xff]
    %v1555 = vld [vmem:[#allocation8 + $0xb60] sm:$0xff]
    %v1556 = vld [vmem:[#allocation8 + $0xb68] sm:$0xff]
    %v1557 = vld [vmem:[#allocation8 + $0xb70] sm:$0xff]
    %v1558 = vld [vmem:[#allocation8 + $0xb78] sm:$0xff]
    %v1559 = vld [vmem:[#allocation8 + $0xb80] sm:$0xff]
    %v1560 = vld [vmem:[#allocation8 + $0xb88] sm:$0xff]
    %v1561 = vld [vmem:[#allocation8 + $0xb90] sm:$0xff]
    %v1562 = vld [vmem:[#allocation8 + $0xb98] sm:$0xff]
    %v1563 = vld [vmem:[#allocation8 + $0xba0] sm:$0xff]
    %v1564 = vld [vmem:[#allocation8 + $0xba8] sm:$0xff]
    %v1565 = vld [vmem:[#allocation8 + $0xbb0] sm:$0xff]
    %v1566 = vld [vmem:[#allocation8 + $0xbb8] sm:$0xff]
    %v1567 = vld [vmem:[#allocation8 + $0xbc0] sm:$0xff]
    %v1568 = vld [vmem:[#allocation8 + $0xbc8] sm:$0xff]
    %v1569 = vld [vmem:[#allocation8 + $0xbd0] sm:$0xff]
    %v1570 = vld [vmem:[#allocation8 + $0xbd8] sm:$0xff]
    %v1571 = vld [vmem:[#allocation8 + $0xbe0] sm:$0xff]
    %v1572 = vld [vmem:[#allocation8 + $0xbe8] sm:$0xff]
    %v1573 = vld [vmem:[#allocation8 + $0xbf0] sm:$0xff]
    %v1574 = vld [vmem:[#allocation8 + $0xbf8] sm:$0xff]
    %v1575 = vld [vmem:[#allocation8 + $0xc00] sm:$0xff]
    %v1576 = vld [vmem:[#allocation8 + $0xc08] sm:$0xff]
    %v1577 = vld [vmem:[#allocation8 + $0xc10] sm:$0xff]
    %v1578 = vld [vmem:[#allocation8 + $0xc18] sm:$0xff]
    %v1579 = vld [vmem:[#allocation8 + $0xc20] sm:$0xff]
    %v1580 = vld [vmem:[#allocation8 + $0xc28] sm:$0xff]
    %v1581 = vld [vmem:[#allocation8 + $0xc30] sm:$0xff]
    %v1582 = vld [vmem:[#allocation8 + $0xc38] sm:$0xff]
    %v1583 = vld [vmem:[#allocation8 + $0xc40] sm:$0xff]
    %v1584 = vld [vmem:[#allocation8 + $0xc48] sm:$0xff]
    %v1585 = vld [vmem:[#allocation8 + $0xc50] sm:$0xff]
    %v1586 = vld [vmem:[#allocation8 + $0xc58] sm:$0xff]
    %v1587 = vld [vmem:[#allocation8 + $0xc60] sm:$0xff]
    %v1588 = vld [vmem:[#allocation8 + $0xc68] sm:$0xff]
    %v1589 = vld [vmem:[#allocation8 + $0xc70] sm:$0xff]
    %v1590 = vld [vmem:[#allocation8 + $0xc78] sm:$0xff]
    %v1591 = vld [vmem:[#allocation8 + $0xc80] sm:$0xff]
    %v1592 = vld [vmem:[#allocation8 + $0xc88] sm:$0xff]
    %v1593 = vld [vmem:[#allocation8 + $0xc90] sm:$0xff]
    %v1594 = vld [vmem:[#allocation8 + $0xc98] sm:$0xff]
    %v1595 = vld [vmem:[#allocation8 + $0xca0] sm:$0xff]
    %v1596 = vld [vmem:[#allocation8 + $0xca8] sm:$0xff]
    %v1597 = vld [vmem:[#allocation8 + $0xcb0] sm:$0xff]
    %v1598 = vld [vmem:[#allocation8 + $0xcb8] sm:$0xff]
    %v1599 = vld [vmem:[#allocation8 + $0xcc0] sm:$0xff]
    %v1600 = vld [vmem:[#allocation8 + $0xcc8] sm:$0xff]
    %v1601 = vld [vmem:[#allocation8 + $0xcd0] sm:$0xff]
    %v1602 = vld [vmem:[#allocation8 + $0xcd8] sm:$0xff]
    %v1603 = vld [vmem:[#allocation8 + $0xce0] sm:$0xff]
    %v1604 = vld [vmem:[#allocation8 + $0xce8] sm:$0xff]
    %v1605 = vld [vmem:[#allocation8 + $0xcf0] sm:$0xff]
    %v1606 = vld [vmem:[#allocation8 + $0xcf8] sm:$0xff]
    %v1607 = vld [vmem:[#allocation8 + $0xd00] sm:$0xff]
    %v1608 = vld [vmem:[#allocation8 + $0xd08] sm:$0xff]
    %v1609 = vld [vmem:[#allocation8 + $0xd10] sm:$0xff]
    %v1610 = vld [vmem:[#allocation8 + $0xd18] sm:$0xff]
    %v1611 = vld [vmem:[#allocation8 + $0xd20] sm:$0xff]
    %v1612 = vld [vmem:[#allocation8 + $0xd28] sm:$0xff]
    %v1613 = vld [vmem:[#allocation8 + $0xd30] sm:$0xff]
    %v1614 = vld [vmem:[#allocation8 + $0xd38] sm:$0xff]
    %v1615 = vld [vmem:[#allocation8 + $0xd40] sm:$0xff]
    %v1616 = vld [vmem:[#allocation8 + $0xd48] sm:$0xff]
    %v1617 = vld [vmem:[#allocation8 + $0xd50] sm:$0xff]
    %v1618 = vld [vmem:[#allocation8 + $0xd58] sm:$0xff]
    %v1619 = vld [vmem:[#allocation8 + $0xd60] sm:$0xff]
    %v1620 = vld [vmem:[#allocation8 + $0xd68] sm:$0xff]
    %v1621 = vld [vmem:[#allocation8 + $0xd70] sm:$0xff]
    %v1622 = vld [vmem:[#allocation8 + $0xd78] sm:$0xff]
    %v1623 = vld [vmem:[#allocation8 + $0xd80] sm:$0xff]
    %v1624 = vld [vmem:[#allocation8 + $0xd88] sm:$0xff]
    %v1625 = vld [vmem:[#allocation8 + $0xd90] sm:$0xff]
    %v1626 = vld [vmem:[#allocation8 + $0xd98] sm:$0xff]
    %v1627 = vld [vmem:[#allocation8 + $0xda0] sm:$0xff]
    %v1628 = vld [vmem:[#allocation8 + $0xda8] sm:$0xff]
    %v1629 = vld [vmem:[#allocation8 + $0xdb0] sm:$0xff]
    %v1630 = vld [vmem:[#allocation8 + $0xdb8] sm:$0xff]
    %v1631 = vld [vmem:[#allocation8 + $0xdc0] sm:$0xff]
    %v1632 = vld [vmem:[#allocation8 + $0xdc8] sm:$0xff]
    %v1633 = vld [vmem:[#allocation8 + $0xdd0] sm:$0xff]
    %v1634 = vld [vmem:[#allocation8 + $0xdd8] sm:$0xff]
    %v1635 = vld [vmem:[#allocation8 + $0xde0] sm:$0xff]
    %v1636 = vld [vmem:[#allocation8 + $0xde8] sm:$0xff]
    %v1637 = vld [vmem:[#allocation8 + $0xdf0] sm:$0xff]
    %v1638 = vld [vmem:[#allocation8 + $0xdf8] sm:$0xff]
    %v1639 = vld [vmem:[#allocation8 + $0xe00] sm:$0xff]
    %v1640 = vld [vmem:[#allocation8 + $0xe08] sm:$0xff]
    %v1641 = vld [vmem:[#allocation8 + $0xe10] sm:$0xff]
    %v1642 = vld [vmem:[#allocation8 + $0xe18] sm:$0xff]
    %v1643 = vld [vmem:[#allocation8 + $0xe20] sm:$0xff]
    %v1644 = vld [vmem:[#allocation8 + $0xe28] sm:$0xff]
    %v1645 = vld [vmem:[#allocation8 + $0xe30] sm:$0xff]
    %v1646 = vld [vmem:[#allocation8 + $0xe38] sm:$0xff]
    %v1647 = vld [vmem:[#allocation8 + $0xe40] sm:$0xff]
    %v1648 = vld [vmem:[#allocation8 + $0xe48] sm:$0xff]
    %v1649 = vld [vmem:[#allocation8 + $0xe50] sm:$0xff]
    %v1650 = vld [vmem:[#allocation8 + $0xe58] sm:$0xff]
    %v1651 = vld [vmem:[#allocation8 + $0xe60] sm:$0xff]
    %v1652 = vld [vmem:[#allocation8 + $0xe68] sm:$0xff]
    %v1653 = vld [vmem:[#allocation8 + $0xe70] sm:$0xff]
    %v1654 = vld [vmem:[#allocation8 + $0xe78] sm:$0xff]
    %v1655 = vld [vmem:[#allocation8 + $0xe80] sm:$0xff]
    %v1656 = vld [vmem:[#allocation8 + $0xe88] sm:$0xff]
    %v1657 = vld [vmem:[#allocation8 + $0xe90] sm:$0xff]
    %v1658 = vld [vmem:[#allocation8 + $0xe98] sm:$0xff]
    %v1659 = vld [vmem:[#allocation8 + $0xea0] sm:$0xff]
    %v1660 = vld [vmem:[#allocation8 + $0xea8] sm:$0xff]
    %v1661 = vld [vmem:[#allocation8 + $0xeb0] sm:$0xff]
    %v1662 = vld [vmem:[#allocation8 + $0xeb8] sm:$0xff]
    %v1663 = vld [vmem:[#allocation8 + $0xec0] sm:$0xff]
    %v1664 = vld [vmem:[#allocation8 + $0xec8] sm:$0xff]
    %v1665 = vld [vmem:[#allocation8 + $0xed0] sm:$0xff]
    %v1666 = vld [vmem:[#allocation8 + $0xed8] sm:$0xff]
    %v1667 = vld [vmem:[#allocation8 + $0xee0] sm:$0xff]
    %v1668 = vld [vmem:[#allocation8 + $0xee8] sm:$0xff]
    %v1669 = vld [vmem:[#allocation8 + $0xef0] sm:$0xff]
    %v1670 = vld [vmem:[#allocation8 + $0xef8] sm:$0xff]
    %v1671 = vld [vmem:[#allocation8 + $0xf00] sm:$0xff]
    %v1672 = vld [vmem:[#allocation8 + $0xf08] sm:$0xff]
    %v1673 = vld [vmem:[#allocation8 + $0xf10] sm:$0xff]
    %v1674 = vld [vmem:[#allocation8 + $0xf18] sm:$0xff]
    %v1675 = vld [vmem:[#allocation8 + $0xf20] sm:$0xff]
    %v1676 = vld [vmem:[#allocation8 + $0xf28] sm:$0xff]
    %v1677 = vld [vmem:[#allocation8 + $0xf30] sm:$0xff]
    %v1678 = vld [vmem:[#allocation8 + $0xf38] sm:$0xff]
    %v1679 = vld [vmem:[#allocation8 + $0xf40] sm:$0xff]
    %v1680 = vld [vmem:[#allocation8 + $0xf48] sm:$0xff]
    %v1681 = vld [vmem:[#allocation8 + $0xf50] sm:$0xff]
    %v1682 = vld [vmem:[#allocation8 + $0xf58] sm:$0xff]
    %v1683 = vld [vmem:[#allocation8 + $0xf60] sm:$0xff]
    %v1684 = vld [vmem:[#allocation8 + $0xf68] sm:$0xff]
    %v1685 = vld [vmem:[#allocation8 + $0xf70] sm:$0xff]
    %v1686 = vld [vmem:[#allocation8 + $0xf78] sm:$0xff]
    %v1687 = vld [vmem:[#allocation8 + $0xf80] sm:$0xff]
    %v1688 = vld [vmem:[#allocation8 + $0xf88] sm:$0xff]
    %v1689 = vld [vmem:[#allocation8 + $0xf90] sm:$0xff]
    %v1690 = vld [vmem:[#allocation8 + $0xf98] sm:$0xff]
    %v1691 = vld [vmem:[#allocation8 + $0xfa0] sm:$0xff]
    %v1692 = vld [vmem:[#allocation8 + $0xfa8] sm:$0xff]
    %v1693 = vld [vmem:[#allocation8 + $0xfb0] sm:$0xff]
    %v1694 = vld [vmem:[#allocation8 + $0xfb8] sm:$0xff]
    %v1695 = vld [vmem:[#allocation8 + $0xfc0] sm:$0xff]
    %v1696 = vld [vmem:[#allocation8 + $0xfc8] sm:$0xff]
    %v1697 = vld [vmem:[#allocation8 + $0xfd0] sm:$0xff]
    %v1698 = vld [vmem:[#allocation8 + $0xfd8] sm:$0xff]
    %v1699 = vld [vmem:[#allocation8 + $0xfe0] sm:$0xff]
    %v1700 = vld [vmem:[#allocation8 + $0xfe8] sm:$0xff]
    %v1701 = vld [vmem:[#allocation8 + $0xff0] sm:$0xff]
    %v1702 = vld [vmem:[#allocation8 + $0xff8] sm:$0xff]
    %v2215 = vunpack.c.l.b16 %v1191
    %v2216 = vunpack.c.h.b16 %v1191
    %v2217 = vunpack.c.l.b16 %v1192
    %v2218 = vunpack.c.h.b16 %v1192
    %v2219 = vunpack.c.l.b16 %v1193
    %v2220 = vunpack.c.h.b16 %v1193
    %v2221 = vunpack.c.l.b16 %v1194
    %v2222 = vunpack.c.h.b16 %v1194
    %v2223 = vunpack.c.l.b16 %v1195
    %v2224 = vunpack.c.h.b16 %v1195
    %v2225 = vunpack.c.l.b16 %v1196
    %v2226 = vunpack.c.h.b16 %v1196
    %v2227 = vunpack.c.l.b16 %v1197
    %v2228 = vunpack.c.h.b16 %v1197
    %v2229 = vunpack.c.l.b16 %v1198
    %v2230 = vunpack.c.h.b16 %v1198
    %v2231 = vunpack.c.l.b16 %v1199
    %v2232 = vunpack.c.h.b16 %v1199
    %v2233 = vunpack.c.l.b16 %v1200
    %v2234 = vunpack.c.h.b16 %v1200
    %v2235 = vunpack.c.l.b16 %v1201
    %v2236 = vunpack.c.h.b16 %v1201
    %v2237 = vunpack.c.l.b16 %v1202
    %v2238 = vunpack.c.h.b16 %v1202
    %v2239 = vunpack.c.l.b16 %v1203
    %v2240 = vunpack.c.h.b16 %v1203
    %v2241 = vunpack.c.l.b16 %v1204
    %v2242 = vunpack.c.h.b16 %v1204
    %v2243 = vunpack.c.l.b16 %v1205
    %v2244 = vunpack.c.h.b16 %v1205
    %v2245 = vunpack.c.l.b16 %v1206
    %v2246 = vunpack.c.h.b16 %v1206
    %v2247 = vunpack.c.l.b16 %v1207
    %v2248 = vunpack.c.h.b16 %v1207
    %v2249 = vunpack.c.l.b16 %v1208
    %v2250 = vunpack.c.h.b16 %v1208
    %v2251 = vunpack.c.l.b16 %v1209
    %v2252 = vunpack.c.h.b16 %v1209
    %v2253 = vunpack.c.l.b16 %v1210
    %v2254 = vunpack.c.h.b16 %v1210
    %v2255 = vunpack.c.l.b16 %v1211
    %v2256 = vunpack.c.h.b16 %v1211
    %v2257 = vunpack.c.l.b16 %v1212
    %v2258 = vunpack.c.h.b16 %v1212
    %v2259 = vunpack.c.l.b16 %v1213
    %v2260 = vunpack.c.h.b16 %v1213
    %v2261 = vunpack.c.l.b16 %v1214
    %v2262 = vunpack.c.h.b16 %v1214
    %v2263 = vunpack.c.l.b16 %v1215
    %v2264 = vunpack.c.h.b16 %v1215
    %v2265 = vunpack.c.l.b16 %v1216
    %v2266 = vunpack.c.h.b16 %v1216
    %v2267 = vunpack.c.l.b16 %v1217
    %v2268 = vunpack.c.h.b16 %v1217
    %v2269 = vunpack.c.l.b16 %v1218
    %v2270 = vunpack.c.h.b16 %v1218
    %v2271 = vunpack.c.l.b16 %v1219
    %v2272 = vunpack.c.h.b16 %v1219
    %v2273 = vunpack.c.l.b16 %v1220
    %v2274 = vunpack.c.h.b16 %v1220
    %v2275 = vunpack.c.l.b16 %v1221
    %v2276 = vunpack.c.h.b16 %v1221
    %v2277 = vunpack.c.l.b16 %v1222
    %v2278 = vunpack.c.h.b16 %v1222
    %v2279 = vunpack.c.l.b16 %v1223
    %v2280 = vunpack.c.h.b16 %v1223
    %v2281 = vunpack.c.l.b16 %v1224
    %v2282 = vunpack.c.h.b16 %v1224
    %v2283 = vunpack.c.l.b16 %v1225
    %v2284 = vunpack.c.h.b16 %v1225
    %v2285 = vunpack.c.l.b16 %v1226
    %v2286 = vunpack.c.h.b16 %v1226
    %v2287 = vunpack.c.l.b16 %v1227
    %v2288 = vunpack.c.h.b16 %v1227
    %v2289 = vunpack.c.l.b16 %v1228
    %v2290 = vunpack.c.h.b16 %v1228
    %v2291 = vunpack.c.l.b16 %v1229
    %v2292 = vunpack.c.h.b16 %v1229
    %v2293 = vunpack.c.l.b16 %v1230
    %v2294 = vunpack.c.h.b16 %v1230
    %v2295 = vunpack.c.l.b16 %v1231
    %v2296 = vunpack.c.h.b16 %v1231
    %v2297 = vunpack.c.l.b16 %v1232
    %v2298 = vunpack.c.h.b16 %v1232
    %v2299 = vunpack.c.l.b16 %v1233
    %v2300 = vunpack.c.h.b16 %v1233
    %v2301 = vunpack.c.l.b16 %v1234
    %v2302 = vunpack.c.h.b16 %v1234
    %v2303 = vunpack.c.l.b16 %v1235
    %v2304 = vunpack.c.h.b16 %v1235
    %v2305 = vunpack.c.l.b16 %v1236
    %v2306 = vunpack.c.h.b16 %v1236
    %v2307 = vunpack.c.l.b16 %v1237
    %v2308 = vunpack.c.h.b16 %v1237
    %v2309 = vunpack.c.l.b16 %v1238
    %v2310 = vunpack.c.h.b16 %v1238
    %v2311 = vunpack.c.l.b16 %v1239
    %v2312 = vunpack.c.h.b16 %v1239
    %v2313 = vunpack.c.l.b16 %v1240
    %v2314 = vunpack.c.h.b16 %v1240
    %v2315 = vunpack.c.l.b16 %v1241
    %v2316 = vunpack.c.h.b16 %v1241
    %v2317 = vunpack.c.l.b16 %v1242
    %v2318 = vunpack.c.h.b16 %v1242
    %v2319 = vunpack.c.l.b16 %v1243
    %v2320 = vunpack.c.h.b16 %v1243
    %v2321 = vunpack.c.l.b16 %v1244
    %v2322 = vunpack.c.h.b16 %v1244
    %v2323 = vunpack.c.l.b16 %v1245
    %v2324 = vunpack.c.h.b16 %v1245
    %v2325 = vunpack.c.l.b16 %v1246
    %v2326 = vunpack.c.h.b16 %v1246
    %v2327 = vunpack.c.l.b16 %v1247
    %v2328 = vunpack.c.h.b16 %v1247
    %v2329 = vunpack.c.l.b16 %v1248
    %v2330 = vunpack.c.h.b16 %v1248
    %v2331 = vunpack.c.l.b16 %v1249
    %v2332 = vunpack.c.h.b16 %v1249
    %v2333 = vunpack.c.l.b16 %v1250
    %v2334 = vunpack.c.h.b16 %v1250
    %v2335 = vunpack.c.l.b16 %v1251
    %v2336 = vunpack.c.h.b16 %v1251
    %v2337 = vunpack.c.l.b16 %v1252
    %v2338 = vunpack.c.h.b16 %v1252
    %v2339 = vunpack.c.l.b16 %v1253
    %v2340 = vunpack.c.h.b16 %v1253
    %v2341 = vunpack.c.l.b16 %v1254
    %v2342 = vunpack.c.h.b16 %v1254
    %v2343 = vunpack.c.l.b16 %v1255
    %v2344 = vunpack.c.h.b16 %v1255
    %v2345 = vunpack.c.l.b16 %v1256
    %v2346 = vunpack.c.h.b16 %v1256
    %v2347 = vunpack.c.l.b16 %v1257
    %v2348 = vunpack.c.h.b16 %v1257
    %v2349 = vunpack.c.l.b16 %v1258
    %v2350 = vunpack.c.h.b16 %v1258
    %v2351 = vunpack.c.l.b16 %v1259
    %v2352 = vunpack.c.h.b16 %v1259
    %v2353 = vunpack.c.l.b16 %v1260
    %v2354 = vunpack.c.h.b16 %v1260
    %v2355 = vunpack.c.l.b16 %v1261
    %v2356 = vunpack.c.h.b16 %v1261
    %v2357 = vunpack.c.l.b16 %v1262
    %v2358 = vunpack.c.h.b16 %v1262
    %v2359 = vunpack.c.l.b16 %v1263
    %v2360 = vunpack.c.h.b16 %v1263
    %v2361 = vunpack.c.l.b16 %v1264
    %v2362 = vunpack.c.h.b16 %v1264
    %v2363 = vunpack.c.l.b16 %v1265
    %v2364 = vunpack.c.h.b16 %v1265
    %v2365 = vunpack.c.l.b16 %v1266
    %v2366 = vunpack.c.h.b16 %v1266
    %v2367 = vunpack.c.l.b16 %v1267
    %v2368 = vunpack.c.h.b16 %v1267
    %v2369 = vunpack.c.l.b16 %v1268
    %v2370 = vunpack.c.h.b16 %v1268
    %v2371 = vunpack.c.l.b16 %v1269
    %v2372 = vunpack.c.h.b16 %v1269
    %v2373 = vunpack.c.l.b16 %v1270
    %v2374 = vunpack.c.h.b16 %v1270
    %v2375 = vunpack.c.l.b16 %v1271
    %v2376 = vunpack.c.h.b16 %v1271
    %v2377 = vunpack.c.l.b16 %v1272
    %v2378 = vunpack.c.h.b16 %v1272
    %v2379 = vunpack.c.l.b16 %v1273
    %v2380 = vunpack.c.h.b16 %v1273
    %v2381 = vunpack.c.l.b16 %v1274
    %v2382 = vunpack.c.h.b16 %v1274
    %v2383 = vunpack.c.l.b16 %v1275
    %v2384 = vunpack.c.h.b16 %v1275
    %v2385 = vunpack.c.l.b16 %v1276
    %v2386 = vunpack.c.h.b16 %v1276
    %v2387 = vunpack.c.l.b16 %v1277
    %v2388 = vunpack.c.h.b16 %v1277
    %v2389 = vunpack.c.l.b16 %v1278
    %v2390 = vunpack.c.h.b16 %v1278
    %v2391 = vunpack.c.l.b16 %v1279
    %v2392 = vunpack.c.h.b16 %v1279
    %v2393 = vunpack.c.l.b16 %v1280
    %v2394 = vunpack.c.h.b16 %v1280
    %v2395 = vunpack.c.l.b16 %v1281
    %v2396 = vunpack.c.h.b16 %v1281
    %v2397 = vunpack.c.l.b16 %v1282
    %v2398 = vunpack.c.h.b16 %v1282
    %v2399 = vunpack.c.l.b16 %v1283
    %v2400 = vunpack.c.h.b16 %v1283
    %v2401 = vunpack.c.l.b16 %v1284
    %v2402 = vunpack.c.h.b16 %v1284
    %v2403 = vunpack.c.l.b16 %v1285
    %v2404 = vunpack.c.h.b16 %v1285
    %v2405 = vunpack.c.l.b16 %v1286
    %v2406 = vunpack.c.h.b16 %v1286
    %v2407 = vunpack.c.l.b16 %v1287
    %v2408 = vunpack.c.h.b16 %v1287
    %v2409 = vunpack.c.l.b16 %v1288
    %v2410 = vunpack.c.h.b16 %v1288
    %v2411 = vunpack.c.l.b16 %v1289
    %v2412 = vunpack.c.h.b16 %v1289
    %v2413 = vunpack.c.l.b16 %v1290
    %v2414 = vunpack.c.h.b16 %v1290
    %v2415 = vunpack.c.l.b16 %v1291
    %v2416 = vunpack.c.h.b16 %v1291
    %v2417 = vunpack.c.l.b16 %v1292
    %v2418 = vunpack.c.h.b16 %v1292
    %v2419 = vunpack.c.l.b16 %v1293
    %v2420 = vunpack.c.h.b16 %v1293
    %v2421 = vunpack.c.l.b16 %v1294
    %v2422 = vunpack.c.h.b16 %v1294
    %v2423 = vunpack.c.l.b16 %v1295
    %v2424 = vunpack.c.h.b16 %v1295
    %v2425 = vunpack.c.l.b16 %v1296
    %v2426 = vunpack.c.h.b16 %v1296
    %v2427 = vunpack.c.l.b16 %v1297
    %v2428 = vunpack.c.h.b16 %v1297
    %v2429 = vunpack.c.l.b16 %v1298
    %v2430 = vunpack.c.h.b16 %v1298
    %v2431 = vunpack.c.l.b16 %v1299
    %v2432 = vunpack.c.h.b16 %v1299
    %v2433 = vunpack.c.l.b16 %v1300
    %v2434 = vunpack.c.h.b16 %v1300
    %v2435 = vunpack.c.l.b16 %v1301
    %v2436 = vunpack.c.h.b16 %v1301
    %v2437 = vunpack.c.l.b16 %v1302
    %v2438 = vunpack.c.h.b16 %v1302
    %v2439 = vunpack.c.l.b16 %v1303
    %v2440 = vunpack.c.h.b16 %v1303
    %v2441 = vunpack.c.l.b16 %v1304
    %v2442 = vunpack.c.h.b16 %v1304
    %v2443 = vunpack.c.l.b16 %v1305
    %v2444 = vunpack.c.h.b16 %v1305
    %v2445 = vunpack.c.l.b16 %v1306
    %v2446 = vunpack.c.h.b16 %v1306
    %v2447 = vunpack.c.l.b16 %v1307
    %v2448 = vunpack.c.h.b16 %v1307
    %v2449 = vunpack.c.l.b16 %v1308
    %v2450 = vunpack.c.h.b16 %v1308
    %v2451 = vunpack.c.l.b16 %v1309
    %v2452 = vunpack.c.h.b16 %v1309
    %v2453 = vunpack.c.l.b16 %v1310
    %v2454 = vunpack.c.h.b16 %v1310
    %v2455 = vunpack.c.l.b16 %v1311
    %v2456 = vunpack.c.h.b16 %v1311
    %v2457 = vunpack.c.l.b16 %v1312
    %v2458 = vunpack.c.h.b16 %v1312
    %v2459 = vunpack.c.l.b16 %v1313
    %v2460 = vunpack.c.h.b16 %v1313
    %v2461 = vunpack.c.l.b16 %v1314
    %v2462 = vunpack.c.h.b16 %v1314
    %v2463 = vunpack.c.l.b16 %v1315
    %v2464 = vunpack.c.h.b16 %v1315
    %v2465 = vunpack.c.l.b16 %v1316
    %v2466 = vunpack.c.h.b16 %v1316
    %v2467 = vunpack.c.l.b16 %v1317
    %v2468 = vunpack.c.h.b16 %v1317
    %v2469 = vunpack.c.l.b16 %v1318
    %v2470 = vunpack.c.h.b16 %v1318
    %v2471 = vunpack.c.l.b16 %v1319
    %v2472 = vunpack.c.h.b16 %v1319
    %v2473 = vunpack.c.l.b16 %v1320
    %v2474 = vunpack.c.h.b16 %v1320
    %v2475 = vunpack.c.l.b16 %v1321
    %v2476 = vunpack.c.h.b16 %v1321
    %v2477 = vunpack.c.l.b16 %v1322
    %v2478 = vunpack.c.h.b16 %v1322
    %v2479 = vunpack.c.l.b16 %v1323
    %v2480 = vunpack.c.h.b16 %v1323
    %v2481 = vunpack.c.l.b16 %v1324
    %v2482 = vunpack.c.h.b16 %v1324
    %v2483 = vunpack.c.l.b16 %v1325
    %v2484 = vunpack.c.h.b16 %v1325
    %v2485 = vunpack.c.l.b16 %v1326
    %v2486 = vunpack.c.h.b16 %v1326
    %v2487 = vunpack.c.l.b16 %v1327
    %v2488 = vunpack.c.h.b16 %v1327
    %v2489 = vunpack.c.l.b16 %v1328
    %v2490 = vunpack.c.h.b16 %v1328
    %v2491 = vunpack.c.l.b16 %v1329
    %v2492 = vunpack.c.h.b16 %v1329
    %v2493 = vunpack.c.l.b16 %v1330
    %v2494 = vunpack.c.h.b16 %v1330
    %v2495 = vunpack.c.l.b16 %v1331
    %v2496 = vunpack.c.h.b16 %v1331
    %v2497 = vunpack.c.l.b16 %v1332
    %v2498 = vunpack.c.h.b16 %v1332
    %v2499 = vunpack.c.l.b16 %v1333
    %v2500 = vunpack.c.h.b16 %v1333
    %v2501 = vunpack.c.l.b16 %v1334
    %v2502 = vunpack.c.h.b16 %v1334
    %v2503 = vunpack.c.l.b16 %v1335
    %v2504 = vunpack.c.h.b16 %v1335
    %v2505 = vunpack.c.l.b16 %v1336
    %v2506 = vunpack.c.h.b16 %v1336
    %v2507 = vunpack.c.l.b16 %v1337
    %v2508 = vunpack.c.h.b16 %v1337
    %v2509 = vunpack.c.l.b16 %v1338
    %v2510 = vunpack.c.h.b16 %v1338
    %v2511 = vunpack.c.l.b16 %v1339
    %v2512 = vunpack.c.h.b16 %v1339
    %v2513 = vunpack.c.l.b16 %v1340
    %v2514 = vunpack.c.h.b16 %v1340
    %v2515 = vunpack.c.l.b16 %v1341
    %v2516 = vunpack.c.h.b16 %v1341
    %v2517 = vunpack.c.l.b16 %v1342
    %v2518 = vunpack.c.h.b16 %v1342
    %v2519 = vunpack.c.l.b16 %v1343
    %v2520 = vunpack.c.h.b16 %v1343
    %v2521 = vunpack.c.l.b16 %v1344
    %v2522 = vunpack.c.h.b16 %v1344
    %v2523 = vunpack.c.l.b16 %v1345
    %v2524 = vunpack.c.h.b16 %v1345
    %v2525 = vunpack.c.l.b16 %v1346
    %v2526 = vunpack.c.h.b16 %v1346
    %v2527 = vunpack.c.l.b16 %v1347
    %v2528 = vunpack.c.h.b16 %v1347
    %v2529 = vunpack.c.l.b16 %v1348
    %v2530 = vunpack.c.h.b16 %v1348
    %v2531 = vunpack.c.l.b16 %v1349
    %v2532 = vunpack.c.h.b16 %v1349
    %v2533 = vunpack.c.l.b16 %v1350
    %v2534 = vunpack.c.h.b16 %v1350
    %v2535 = vunpack.c.l.b16 %v1351
    %v2536 = vunpack.c.h.b16 %v1351
    %v2537 = vunpack.c.l.b16 %v1352
    %v2538 = vunpack.c.h.b16 %v1352
    %v2539 = vunpack.c.l.b16 %v1353
    %v2540 = vunpack.c.h.b16 %v1353
    %v2541 = vunpack.c.l.b16 %v1354
    %v2542 = vunpack.c.h.b16 %v1354
    %v2543 = vunpack.c.l.b16 %v1355
    %v2544 = vunpack.c.h.b16 %v1355
    %v2545 = vunpack.c.l.b16 %v1356
    %v2546 = vunpack.c.h.b16 %v1356
    %v2547 = vunpack.c.l.b16 %v1357
    %v2548 = vunpack.c.h.b16 %v1357
    %v2549 = vunpack.c.l.b16 %v1358
    %v2550 = vunpack.c.h.b16 %v1358
    %v2551 = vunpack.c.l.b16 %v1359
    %v2552 = vunpack.c.h.b16 %v1359
    %v2553 = vunpack.c.l.b16 %v1360
    %v2554 = vunpack.c.h.b16 %v1360
    %v2555 = vunpack.c.l.b16 %v1361
    %v2556 = vunpack.c.h.b16 %v1361
    %v2557 = vunpack.c.l.b16 %v1362
    %v2558 = vunpack.c.h.b16 %v1362
    %v2559 = vunpack.c.l.b16 %v1363
    %v2560 = vunpack.c.h.b16 %v1363
    %v2561 = vunpack.c.l.b16 %v1364
    %v2562 = vunpack.c.h.b16 %v1364
    %v2563 = vunpack.c.l.b16 %v1365
    %v2564 = vunpack.c.h.b16 %v1365
    %v2565 = vunpack.c.l.b16 %v1366
    %v2566 = vunpack.c.h.b16 %v1366
    %v2567 = vunpack.c.l.b16 %v1367
    %v2568 = vunpack.c.h.b16 %v1367
    %v2569 = vunpack.c.l.b16 %v1368
    %v2570 = vunpack.c.h.b16 %v1368
    %v2571 = vunpack.c.l.b16 %v1369
    %v2572 = vunpack.c.h.b16 %v1369
    %v2573 = vunpack.c.l.b16 %v1370
    %v2574 = vunpack.c.h.b16 %v1370
    %v2575 = vunpack.c.l.b16 %v1371
    %v2576 = vunpack.c.h.b16 %v1371
    %v2577 = vunpack.c.l.b16 %v1372
    %v2578 = vunpack.c.h.b16 %v1372
    %v2579 = vunpack.c.l.b16 %v1373
    %v2580 = vunpack.c.h.b16 %v1373
    %v2581 = vunpack.c.l.b16 %v1374
    %v2582 = vunpack.c.h.b16 %v1374
    %v2583 = vunpack.c.l.b16 %v1375
    %v2584 = vunpack.c.h.b16 %v1375
    %v2585 = vunpack.c.l.b16 %v1376
    %v2586 = vunpack.c.h.b16 %v1376
    %v2587 = vunpack.c.l.b16 %v1377
    %v2588 = vunpack.c.h.b16 %v1377
    %v2589 = vunpack.c.l.b16 %v1378
    %v2590 = vunpack.c.h.b16 %v1378
    %v2591 = vunpack.c.l.b16 %v1379
    %v2592 = vunpack.c.h.b16 %v1379
    %v2593 = vunpack.c.l.b16 %v1380
    %v2594 = vunpack.c.h.b16 %v1380
    %v2595 = vunpack.c.l.b16 %v1381
    %v2596 = vunpack.c.h.b16 %v1381
    %v2597 = vunpack.c.l.b16 %v1382
    %v2598 = vunpack.c.h.b16 %v1382
    %v2599 = vunpack.c.l.b16 %v1383
    %v2600 = vunpack.c.h.b16 %v1383
    %v2601 = vunpack.c.l.b16 %v1384
    %v2602 = vunpack.c.h.b16 %v1384
    %v2603 = vunpack.c.l.b16 %v1385
    %v2604 = vunpack.c.h.b16 %v1385
    %v2605 = vunpack.c.l.b16 %v1386
    %v2606 = vunpack.c.h.b16 %v1386
    %v2607 = vunpack.c.l.b16 %v1387
    %v2608 = vunpack.c.h.b16 %v1387
    %v2609 = vunpack.c.l.b16 %v1388
    %v2610 = vunpack.c.h.b16 %v1388
    %v2611 = vunpack.c.l.b16 %v1389
    %v2612 = vunpack.c.h.b16 %v1389
    %v2613 = vunpack.c.l.b16 %v1390
    %v2614 = vunpack.c.h.b16 %v1390
    %v2615 = vunpack.c.l.b16 %v1391
    %v2616 = vunpack.c.h.b16 %v1391
    %v2617 = vunpack.c.l.b16 %v1392
    %v2618 = vunpack.c.h.b16 %v1392
    %v2619 = vunpack.c.l.b16 %v1393
    %v2620 = vunpack.c.h.b16 %v1393
    %v2621 = vunpack.c.l.b16 %v1394
    %v2622 = vunpack.c.h.b16 %v1394
    %v2623 = vunpack.c.l.b16 %v1395
    %v2624 = vunpack.c.h.b16 %v1395
    %v2625 = vunpack.c.l.b16 %v1396
    %v2626 = vunpack.c.h.b16 %v1396
    %v2627 = vunpack.c.l.b16 %v1397
    %v2628 = vunpack.c.h.b16 %v1397
    %v2629 = vunpack.c.l.b16 %v1398
    %v2630 = vunpack.c.h.b16 %v1398
    %v2631 = vunpack.c.l.b16 %v1399
    %v2632 = vunpack.c.h.b16 %v1399
    %v2633 = vunpack.c.l.b16 %v1400
    %v2634 = vunpack.c.h.b16 %v1400
    %v2635 = vunpack.c.l.b16 %v1401
    %v2636 = vunpack.c.h.b16 %v1401
    %v2637 = vunpack.c.l.b16 %v1402
    %v2638 = vunpack.c.h.b16 %v1402
    %v2639 = vunpack.c.l.b16 %v1403
    %v2640 = vunpack.c.h.b16 %v1403
    %v2641 = vunpack.c.l.b16 %v1404
    %v2642 = vunpack.c.h.b16 %v1404
    %v2643 = vunpack.c.l.b16 %v1405
    %v2644 = vunpack.c.h.b16 %v1405
    %v2645 = vunpack.c.l.b16 %v1406
    %v2646 = vunpack.c.h.b16 %v1406
    %v2647 = vunpack.c.l.b16 %v1407
    %v2648 = vunpack.c.h.b16 %v1407
    %v2649 = vunpack.c.l.b16 %v1408
    %v2650 = vunpack.c.h.b16 %v1408
    %v2651 = vunpack.c.l.b16 %v1409
    %v2652 = vunpack.c.h.b16 %v1409
    %v2653 = vunpack.c.l.b16 %v1410
    %v2654 = vunpack.c.h.b16 %v1410
    %v2655 = vunpack.c.l.b16 %v1411
    %v2656 = vunpack.c.h.b16 %v1411
    %v2657 = vunpack.c.l.b16 %v1412
    %v2658 = vunpack.c.h.b16 %v1412
    %v2659 = vunpack.c.l.b16 %v1413
    %v2660 = vunpack.c.h.b16 %v1413
    %v2661 = vunpack.c.l.b16 %v1414
    %v2662 = vunpack.c.h.b16 %v1414
    %v2663 = vunpack.c.l.b16 %v1415
    %v2664 = vunpack.c.h.b16 %v1415
    %v2665 = vunpack.c.l.b16 %v1416
    %v2666 = vunpack.c.h.b16 %v1416
    %v2667 = vunpack.c.l.b16 %v1417
    %v2668 = vunpack.c.h.b16 %v1417
    %v2669 = vunpack.c.l.b16 %v1418
    %v2670 = vunpack.c.h.b16 %v1418
    %v2671 = vunpack.c.l.b16 %v1419
    %v2672 = vunpack.c.h.b16 %v1419
    %v2673 = vunpack.c.l.b16 %v1420
    %v2674 = vunpack.c.h.b16 %v1420
    %v2675 = vunpack.c.l.b16 %v1421
    %v2676 = vunpack.c.h.b16 %v1421
    %v2677 = vunpack.c.l.b16 %v1422
    %v2678 = vunpack.c.h.b16 %v1422
    %v2679 = vunpack.c.l.b16 %v1423
    %v2680 = vunpack.c.h.b16 %v1423
    %v2681 = vunpack.c.l.b16 %v1424
    %v2682 = vunpack.c.h.b16 %v1424
    %v2683 = vunpack.c.l.b16 %v1425
    %v2684 = vunpack.c.h.b16 %v1425
    %v2685 = vunpack.c.l.b16 %v1426
    %v2686 = vunpack.c.h.b16 %v1426
    %v2687 = vunpack.c.l.b16 %v1427
    %v2688 = vunpack.c.h.b16 %v1427
    %v2689 = vunpack.c.l.b16 %v1428
    %v2690 = vunpack.c.h.b16 %v1428
    %v2691 = vunpack.c.l.b16 %v1429
    %v2692 = vunpack.c.h.b16 %v1429
    %v2693 = vunpack.c.l.b16 %v1430
    %v2694 = vunpack.c.h.b16 %v1430
    %v2695 = vunpack.c.l.b16 %v1431
    %v2696 = vunpack.c.h.b16 %v1431
    %v2697 = vunpack.c.l.b16 %v1432
    %v2698 = vunpack.c.h.b16 %v1432
    %v2699 = vunpack.c.l.b16 %v1433
    %v2700 = vunpack.c.h.b16 %v1433
    %v2701 = vunpack.c.l.b16 %v1434
    %v2702 = vunpack.c.h.b16 %v1434
    %v2703 = vunpack.c.l.b16 %v1435
    %v2704 = vunpack.c.h.b16 %v1435
    %v2705 = vunpack.c.l.b16 %v1436
    %v2706 = vunpack.c.h.b16 %v1436
    %v2707 = vunpack.c.l.b16 %v1437
    %v2708 = vunpack.c.h.b16 %v1437
    %v2709 = vunpack.c.l.b16 %v1438
    %v2710 = vunpack.c.h.b16 %v1438
    %v2711 = vunpack.c.l.b16 %v1439
    %v2712 = vunpack.c.h.b16 %v1439
    %v2713 = vunpack.c.l.b16 %v1440
    %v2714 = vunpack.c.h.b16 %v1440
    %v2715 = vunpack.c.l.b16 %v1441
    %v2716 = vunpack.c.h.b16 %v1441
    %v2717 = vunpack.c.l.b16 %v1442
    %v2718 = vunpack.c.h.b16 %v1442
    %v2719 = vunpack.c.l.b16 %v1443
    %v2720 = vunpack.c.h.b16 %v1443
    %v2721 = vunpack.c.l.b16 %v1444
    %v2722 = vunpack.c.h.b16 %v1444
    %v2723 = vunpack.c.l.b16 %v1445
    %v2724 = vunpack.c.h.b16 %v1445
    %v2725 = vunpack.c.l.b16 %v1446
    %v2726 = vunpack.c.h.b16 %v1446
    %v2727 = vunpack.c.l.b16 %v1447
    %v2728 = vunpack.c.h.b16 %v1447
    %v2729 = vunpack.c.l.b16 %v1448
    %v2730 = vunpack.c.h.b16 %v1448
    %v2731 = vunpack.c.l.b16 %v1449
    %v2732 = vunpack.c.h.b16 %v1449
    %v2733 = vunpack.c.l.b16 %v1450
    %v2734 = vunpack.c.h.b16 %v1450
    %v2735 = vunpack.c.l.b16 %v1451
    %v2736 = vunpack.c.h.b16 %v1451
    %v2737 = vunpack.c.l.b16 %v1452
    %v2738 = vunpack.c.h.b16 %v1452
    %v2739 = vunpack.c.l.b16 %v1453
    %v2740 = vunpack.c.h.b16 %v1453
    %v2741 = vunpack.c.l.b16 %v1454
    %v2742 = vunpack.c.h.b16 %v1454
    %v2743 = vunpack.c.l.b16 %v1455
    %v2744 = vunpack.c.h.b16 %v1455
    %v2745 = vunpack.c.l.b16 %v1456
    %v2746 = vunpack.c.h.b16 %v1456
    %v2747 = vunpack.c.l.b16 %v1457
    %v2748 = vunpack.c.h.b16 %v1457
    %v2749 = vunpack.c.l.b16 %v1458
    %v2750 = vunpack.c.h.b16 %v1458
    %v2751 = vunpack.c.l.b16 %v1459
    %v2752 = vunpack.c.h.b16 %v1459
    %v2753 = vunpack.c.l.b16 %v1460
    %v2754 = vunpack.c.h.b16 %v1460
    %v2755 = vunpack.c.l.b16 %v1461
    %v2756 = vunpack.c.h.b16 %v1461
    %v2757 = vunpack.c.l.b16 %v1462
    %v2758 = vunpack.c.h.b16 %v1462
    %v2759 = vunpack.c.l.b16 %v1463
    %v2760 = vunpack.c.h.b16 %v1463
    %v2761 = vunpack.c.l.b16 %v1464
    %v2762 = vunpack.c.h.b16 %v1464
    %v2763 = vunpack.c.l.b16 %v1465
    %v2764 = vunpack.c.h.b16 %v1465
    %v2765 = vunpack.c.l.b16 %v1466
    %v2766 = vunpack.c.h.b16 %v1466
    %v2767 = vunpack.c.l.b16 %v1467
    %v2768 = vunpack.c.h.b16 %v1467
    %v2769 = vunpack.c.l.b16 %v1468
    %v2770 = vunpack.c.h.b16 %v1468
    %v2771 = vunpack.c.l.b16 %v1469
    %v2772 = vunpack.c.h.b16 %v1469
    %v2773 = vunpack.c.l.b16 %v1470
    %v2774 = vunpack.c.h.b16 %v1470
    %v2775 = vunpack.c.l.b16 %v1471
    %v2776 = vunpack.c.h.b16 %v1471
    %v2777 = vunpack.c.l.b16 %v1472
    %v2778 = vunpack.c.h.b16 %v1472
    %v2779 = vunpack.c.l.b16 %v1473
    %v2780 = vunpack.c.h.b16 %v1473
    %v2781 = vunpack.c.l.b16 %v1474
    %v2782 = vunpack.c.h.b16 %v1474
    %v2783 = vunpack.c.l.b16 %v1475
    %v2784 = vunpack.c.h.b16 %v1475
    %v2785 = vunpack.c.l.b16 %v1476
    %v2786 = vunpack.c.h.b16 %v1476
    %v2787 = vunpack.c.l.b16 %v1477
    %v2788 = vunpack.c.h.b16 %v1477
    %v2789 = vunpack.c.l.b16 %v1478
    %v2790 = vunpack.c.h.b16 %v1478
    %v2791 = vunpack.c.l.b16 %v1479
    %v2792 = vunpack.c.h.b16 %v1479
    %v2793 = vunpack.c.l.b16 %v1480
    %v2794 = vunpack.c.h.b16 %v1480
    %v2795 = vunpack.c.l.b16 %v1481
    %v2796 = vunpack.c.h.b16 %v1481
    %v2797 = vunpack.c.l.b16 %v1482
    %v2798 = vunpack.c.h.b16 %v1482
    %v2799 = vunpack.c.l.b16 %v1483
    %v2800 = vunpack.c.h.b16 %v1483
    %v2801 = vunpack.c.l.b16 %v1484
    %v2802 = vunpack.c.h.b16 %v1484
    %v2803 = vunpack.c.l.b16 %v1485
    %v2804 = vunpack.c.h.b16 %v1485
    %v2805 = vunpack.c.l.b16 %v1486
    %v2806 = vunpack.c.h.b16 %v1486
    %v2807 = vunpack.c.l.b16 %v1487
    %v2808 = vunpack.c.h.b16 %v1487
    %v2809 = vunpack.c.l.b16 %v1488
    %v2810 = vunpack.c.h.b16 %v1488
    %v2811 = vunpack.c.l.b16 %v1489
    %v2812 = vunpack.c.h.b16 %v1489
    %v2813 = vunpack.c.l.b16 %v1490
    %v2814 = vunpack.c.h.b16 %v1490
    %v2815 = vunpack.c.l.b16 %v1491
    %v2816 = vunpack.c.h.b16 %v1491
    %v2817 = vunpack.c.l.b16 %v1492
    %v2818 = vunpack.c.h.b16 %v1492
    %v2819 = vunpack.c.l.b16 %v1493
    %v2820 = vunpack.c.h.b16 %v1493
    %v2821 = vunpack.c.l.b16 %v1494
    %v2822 = vunpack.c.h.b16 %v1494
    %v2823 = vunpack.c.l.b16 %v1495
    %v2824 = vunpack.c.h.b16 %v1495
    %v2825 = vunpack.c.l.b16 %v1496
    %v2826 = vunpack.c.h.b16 %v1496
    %v2827 = vunpack.c.l.b16 %v1497
    %v2828 = vunpack.c.h.b16 %v1497
    %v2829 = vunpack.c.l.b16 %v1498
    %v2830 = vunpack.c.h.b16 %v1498
    %v2831 = vunpack.c.l.b16 %v1499
    %v2832 = vunpack.c.h.b16 %v1499
    %v2833 = vunpack.c.l.b16 %v1500
    %v2834 = vunpack.c.h.b16 %v1500
    %v2835 = vunpack.c.l.b16 %v1501
    %v2836 = vunpack.c.h.b16 %v1501
    %v2837 = vunpack.c.l.b16 %v1502
    %v2838 = vunpack.c.h.b16 %v1502
    %v2839 = vunpack.c.l.b16 %v1503
    %v2840 = vunpack.c.h.b16 %v1503
    %v2841 = vunpack.c.l.b16 %v1504
    %v2842 = vunpack.c.h.b16 %v1504
    %v2843 = vunpack.c.l.b16 %v1505
    %v2844 = vunpack.c.h.b16 %v1505
    %v2845 = vunpack.c.l.b16 %v1506
    %v2846 = vunpack.c.h.b16 %v1506
    %v2847 = vunpack.c.l.b16 %v1507
    %v2848 = vunpack.c.h.b16 %v1507
    %v2849 = vunpack.c.l.b16 %v1508
    %v2850 = vunpack.c.h.b16 %v1508
    %v2851 = vunpack.c.l.b16 %v1509
    %v2852 = vunpack.c.h.b16 %v1509
    %v2853 = vunpack.c.l.b16 %v1510
    %v2854 = vunpack.c.h.b16 %v1510
    %v2855 = vunpack.c.l.b16 %v1511
    %v2856 = vunpack.c.h.b16 %v1511
    %v2857 = vunpack.c.l.b16 %v1512
    %v2858 = vunpack.c.h.b16 %v1512
    %v2859 = vunpack.c.l.b16 %v1513
    %v2860 = vunpack.c.h.b16 %v1513
    %v2861 = vunpack.c.l.b16 %v1514
    %v2862 = vunpack.c.h.b16 %v1514
    %v2863 = vunpack.c.l.b16 %v1515
    %v2864 = vunpack.c.h.b16 %v1515
    %v2865 = vunpack.c.l.b16 %v1516
    %v2866 = vunpack.c.h.b16 %v1516
    %v2867 = vunpack.c.l.b16 %v1517
    %v2868 = vunpack.c.h.b16 %v1517
    %v2869 = vunpack.c.l.b16 %v1518
    %v2870 = vunpack.c.h.b16 %v1518
    %v2871 = vunpack.c.l.b16 %v1519
    %v2872 = vunpack.c.h.b16 %v1519
    %v2873 = vunpack.c.l.b16 %v1520
    %v2874 = vunpack.c.h.b16 %v1520
    %v2875 = vunpack.c.l.b16 %v1521
    %v2876 = vunpack.c.h.b16 %v1521
    %v2877 = vunpack.c.l.b16 %v1522
    %v2878 = vunpack.c.h.b16 %v1522
    %v2879 = vunpack.c.l.b16 %v1523
    %v2880 = vunpack.c.h.b16 %v1523
    %v2881 = vunpack.c.l.b16 %v1524
    %v2882 = vunpack.c.h.b16 %v1524
    %v2883 = vunpack.c.l.b16 %v1525
    %v2884 = vunpack.c.h.b16 %v1525
    %v2885 = vunpack.c.l.b16 %v1526
    %v2886 = vunpack.c.h.b16 %v1526
    %v2887 = vunpack.c.l.b16 %v1527
    %v2888 = vunpack.c.h.b16 %v1527
    %v2889 = vunpack.c.l.b16 %v1528
    %v2890 = vunpack.c.h.b16 %v1528
    %v2891 = vunpack.c.l.b16 %v1529
    %v2892 = vunpack.c.h.b16 %v1529
    %v2893 = vunpack.c.l.b16 %v1530
    %v2894 = vunpack.c.h.b16 %v1530
    %v2895 = vunpack.c.l.b16 %v1531
    %v2896 = vunpack.c.h.b16 %v1531
    %v2897 = vunpack.c.l.b16 %v1532
    %v2898 = vunpack.c.h.b16 %v1532
    %v2899 = vunpack.c.l.b16 %v1533
    %v2900 = vunpack.c.h.b16 %v1533
    %v2901 = vunpack.c.l.b16 %v1534
    %v2902 = vunpack.c.h.b16 %v1534
    %v2903 = vunpack.c.l.b16 %v1535
    %v2904 = vunpack.c.h.b16 %v1535
    %v2905 = vunpack.c.l.b16 %v1536
    %v2906 = vunpack.c.h.b16 %v1536
    %v2907 = vunpack.c.l.b16 %v1537
    %v2908 = vunpack.c.h.b16 %v1537
    %v2909 = vunpack.c.l.b16 %v1538
    %v2910 = vunpack.c.h.b16 %v1538
    %v2911 = vunpack.c.l.b16 %v1539
    %v2912 = vunpack.c.h.b16 %v1539
    %v2913 = vunpack.c.l.b16 %v1540
    %v2914 = vunpack.c.h.b16 %v1540
    %v2915 = vunpack.c.l.b16 %v1541
    %v2916 = vunpack.c.h.b16 %v1541
    %v2917 = vunpack.c.l.b16 %v1542
    %v2918 = vunpack.c.h.b16 %v1542
    %v2919 = vunpack.c.l.b16 %v1543
    %v2920 = vunpack.c.h.b16 %v1543
    %v2921 = vunpack.c.l.b16 %v1544
    %v2922 = vunpack.c.h.b16 %v1544
    %v2923 = vunpack.c.l.b16 %v1545
    %v2924 = vunpack.c.h.b16 %v1545
    %v2925 = vunpack.c.l.b16 %v1546
    %v2926 = vunpack.c.h.b16 %v1546
    %v2927 = vunpack.c.l.b16 %v1547
    %v2928 = vunpack.c.h.b16 %v1547
    %v2929 = vunpack.c.l.b16 %v1548
    %v2930 = vunpack.c.h.b16 %v1548
    %v2931 = vunpack.c.l.b16 %v1549
    %v2932 = vunpack.c.h.b16 %v1549
    %v2933 = vunpack.c.l.b16 %v1550
    %v2934 = vunpack.c.h.b16 %v1550
    %v2935 = vunpack.c.l.b16 %v1551
    %v2936 = vunpack.c.h.b16 %v1551
    %v2937 = vunpack.c.l.b16 %v1552
    %v2938 = vunpack.c.h.b16 %v1552
    %v2939 = vunpack.c.l.b16 %v1553
    %v2940 = vunpack.c.h.b16 %v1553
    %v2941 = vunpack.c.l.b16 %v1554
    %v2942 = vunpack.c.h.b16 %v1554
    %v2943 = vunpack.c.l.b16 %v1555
    %v2944 = vunpack.c.h.b16 %v1555
    %v2945 = vunpack.c.l.b16 %v1556
    %v2946 = vunpack.c.h.b16 %v1556
    %v2947 = vunpack.c.l.b16 %v1557
    %v2948 = vunpack.c.h.b16 %v1557
    %v2949 = vunpack.c.l.b16 %v1558
    %v2950 = vunpack.c.h.b16 %v1558
    %v2951 = vunpack.c.l.b16 %v1559
    %v2952 = vunpack.c.h.b16 %v1559
    %v2953 = vunpack.c.l.b16 %v1560
    %v2954 = vunpack.c.h.b16 %v1560
    %v2955 = vunpack.c.l.b16 %v1561
    %v2956 = vunpack.c.h.b16 %v1561
    %v2957 = vunpack.c.l.b16 %v1562
    %v2958 = vunpack.c.h.b16 %v1562
    %v2959 = vunpack.c.l.b16 %v1563
    %v2960 = vunpack.c.h.b16 %v1563
    %v2961 = vunpack.c.l.b16 %v1564
    %v2962 = vunpack.c.h.b16 %v1564
    %v2963 = vunpack.c.l.b16 %v1565
    %v2964 = vunpack.c.h.b16 %v1565
    %v2965 = vunpack.c.l.b16 %v1566
    %v2966 = vunpack.c.h.b16 %v1566
    %v2967 = vunpack.c.l.b16 %v1567
    %v2968 = vunpack.c.h.b16 %v1567
    %v2969 = vunpack.c.l.b16 %v1568
    %v2970 = vunpack.c.h.b16 %v1568
    %v2971 = vunpack.c.l.b16 %v1569
    %v2972 = vunpack.c.h.b16 %v1569
    %v2973 = vunpack.c.l.b16 %v1570
    %v2974 = vunpack.c.h.b16 %v1570
    %v2975 = vunpack.c.l.b16 %v1571
    %v2976 = vunpack.c.h.b16 %v1571
    %v2977 = vunpack.c.l.b16 %v1572
    %v2978 = vunpack.c.h.b16 %v1572
    %v2979 = vunpack.c.l.b16 %v1573
    %v2980 = vunpack.c.h.b16 %v1573
    %v2981 = vunpack.c.l.b16 %v1574
    %v2982 = vunpack.c.h.b16 %v1574
    %v2983 = vunpack.c.l.b16 %v1575
    %v2984 = vunpack.c.h.b16 %v1575
    %v2985 = vunpack.c.l.b16 %v1576
    %v2986 = vunpack.c.h.b16 %v1576
    %v2987 = vunpack.c.l.b16 %v1577
    %v2988 = vunpack.c.h.b16 %v1577
    %v2989 = vunpack.c.l.b16 %v1578
    %v2990 = vunpack.c.h.b16 %v1578
    %v2991 = vunpack.c.l.b16 %v1579
    %v2992 = vunpack.c.h.b16 %v1579
    %v2993 = vunpack.c.l.b16 %v1580
    %v2994 = vunpack.c.h.b16 %v1580
    %v2995 = vunpack.c.l.b16 %v1581
    %v2996 = vunpack.c.h.b16 %v1581
    %v2997 = vunpack.c.l.b16 %v1582
    %v2998 = vunpack.c.h.b16 %v1582
    %v2999 = vunpack.c.l.b16 %v1583
    %v3000 = vunpack.c.h.b16 %v1583
    %v3001 = vunpack.c.l.b16 %v1584
    %v3002 = vunpack.c.h.b16 %v1584
    %v3003 = vunpack.c.l.b16 %v1585
    %v3004 = vunpack.c.h.b16 %v1585
    %v3005 = vunpack.c.l.b16 %v1586
    %v3006 = vunpack.c.h.b16 %v1586
    %v3007 = vunpack.c.l.b16 %v1587
    %v3008 = vunpack.c.h.b16 %v1587
    %v3009 = vunpack.c.l.b16 %v1588
    %v3010 = vunpack.c.h.b16 %v1588
    %v3011 = vunpack.c.l.b16 %v1589
    %v3012 = vunpack.c.h.b16 %v1589
    %v3013 = vunpack.c.l.b16 %v1590
    %v3014 = vunpack.c.h.b16 %v1590
    %v3015 = vunpack.c.l.b16 %v1591
    %v3016 = vunpack.c.h.b16 %v1591
    %v3017 = vunpack.c.l.b16 %v1592
    %v3018 = vunpack.c.h.b16 %v1592
    %v3019 = vunpack.c.l.b16 %v1593
    %v3020 = vunpack.c.h.b16 %v1593
    %v3021 = vunpack.c.l.b16 %v1594
    %v3022 = vunpack.c.h.b16 %v1594
    %v3023 = vunpack.c.l.b16 %v1595
    %v3024 = vunpack.c.h.b16 %v1595
    %v3025 = vunpack.c.l.b16 %v1596
    %v3026 = vunpack.c.h.b16 %v1596
    %v3027 = vunpack.c.l.b16 %v1597
    %v3028 = vunpack.c.h.b16 %v1597
    %v3029 = vunpack.c.l.b16 %v1598
    %v3030 = vunpack.c.h.b16 %v1598
    %v3031 = vunpack.c.l.b16 %v1599
    %v3032 = vunpack.c.h.b16 %v1599
    %v3033 = vunpack.c.l.b16 %v1600
    %v3034 = vunpack.c.h.b16 %v1600
    %v3035 = vunpack.c.l.b16 %v1601
    %v3036 = vunpack.c.h.b16 %v1601
    %v3037 = vunpack.c.l.b16 %v1602
    %v3038 = vunpack.c.h.b16 %v1602
    %v3039 = vunpack.c.l.b16 %v1603
    %v3040 = vunpack.c.h.b16 %v1603
    %v3041 = vunpack.c.l.b16 %v1604
    %v3042 = vunpack.c.h.b16 %v1604
    %v3043 = vunpack.c.l.b16 %v1605
    %v3044 = vunpack.c.h.b16 %v1605
    %v3045 = vunpack.c.l.b16 %v1606
    %v3046 = vunpack.c.h.b16 %v1606
    %v3047 = vunpack.c.l.b16 %v1607
    %v3048 = vunpack.c.h.b16 %v1607
    %v3049 = vunpack.c.l.b16 %v1608
    %v3050 = vunpack.c.h.b16 %v1608
    %v3051 = vunpack.c.l.b16 %v1609
    %v3052 = vunpack.c.h.b16 %v1609
    %v3053 = vunpack.c.l.b16 %v1610
    %v3054 = vunpack.c.h.b16 %v1610
    %v3055 = vunpack.c.l.b16 %v1611
    %v3056 = vunpack.c.h.b16 %v1611
    %v3057 = vunpack.c.l.b16 %v1612
    %v3058 = vunpack.c.h.b16 %v1612
    %v3059 = vunpack.c.l.b16 %v1613
    %v3060 = vunpack.c.h.b16 %v1613
    %v3061 = vunpack.c.l.b16 %v1614
    %v3062 = vunpack.c.h.b16 %v1614
    %v3063 = vunpack.c.l.b16 %v1615
    %v3064 = vunpack.c.h.b16 %v1615
    %v3065 = vunpack.c.l.b16 %v1616
    %v3066 = vunpack.c.h.b16 %v1616
    %v3067 = vunpack.c.l.b16 %v1617
    %v3068 = vunpack.c.h.b16 %v1617
    %v3069 = vunpack.c.l.b16 %v1618
    %v3070 = vunpack.c.h.b16 %v1618
    %v3071 = vunpack.c.l.b16 %v1619
    %v3072 = vunpack.c.h.b16 %v1619
    %v3073 = vunpack.c.l.b16 %v1620
    %v3074 = vunpack.c.h.b16 %v1620
    %v3075 = vunpack.c.l.b16 %v1621
    %v3076 = vunpack.c.h.b16 %v1621
    %v3077 = vunpack.c.l.b16 %v1622
    %v3078 = vunpack.c.h.b16 %v1622
    %v3079 = vunpack.c.l.b16 %v1623
    %v3080 = vunpack.c.h.b16 %v1623
    %v3081 = vunpack.c.l.b16 %v1624
    %v3082 = vunpack.c.h.b16 %v1624
    %v3083 = vunpack.c.l.b16 %v1625
    %v3084 = vunpack.c.h.b16 %v1625
    %v3085 = vunpack.c.l.b16 %v1626
    %v3086 = vunpack.c.h.b16 %v1626
    %v3087 = vunpack.c.l.b16 %v1627
    %v3088 = vunpack.c.h.b16 %v1627
    %v3089 = vunpack.c.l.b16 %v1628
    %v3090 = vunpack.c.h.b16 %v1628
    %v3091 = vunpack.c.l.b16 %v1629
    %v3092 = vunpack.c.h.b16 %v1629
    %v3093 = vunpack.c.l.b16 %v1630
    %v3094 = vunpack.c.h.b16 %v1630
    %v3095 = vunpack.c.l.b16 %v1631
    %v3096 = vunpack.c.h.b16 %v1631
    %v3097 = vunpack.c.l.b16 %v1632
    %v3098 = vunpack.c.h.b16 %v1632
    %v3099 = vunpack.c.l.b16 %v1633
    %v3100 = vunpack.c.h.b16 %v1633
    %v3101 = vunpack.c.l.b16 %v1634
    %v3102 = vunpack.c.h.b16 %v1634
    %v3103 = vunpack.c.l.b16 %v1635
    %v3104 = vunpack.c.h.b16 %v1635
    %v3105 = vunpack.c.l.b16 %v1636
    %v3106 = vunpack.c.h.b16 %v1636
    %v3107 = vunpack.c.l.b16 %v1637
    %v3108 = vunpack.c.h.b16 %v1637
    %v3109 = vunpack.c.l.b16 %v1638
    %v3110 = vunpack.c.h.b16 %v1638
    %v3111 = vunpack.c.l.b16 %v1639
    %v3112 = vunpack.c.h.b16 %v1639
    %v3113 = vunpack.c.l.b16 %v1640
    %v3114 = vunpack.c.h.b16 %v1640
    %v3115 = vunpack.c.l.b16 %v1641
    %v3116 = vunpack.c.h.b16 %v1641
    %v3117 = vunpack.c.l.b16 %v1642
    %v3118 = vunpack.c.h.b16 %v1642
    %v3119 = vunpack.c.l.b16 %v1643
    %v3120 = vunpack.c.h.b16 %v1643
    %v3121 = vunpack.c.l.b16 %v1644
    %v3122 = vunpack.c.h.b16 %v1644
    %v3123 = vunpack.c.l.b16 %v1645
    %v3124 = vunpack.c.h.b16 %v1645
    %v3125 = vunpack.c.l.b16 %v1646
    %v3126 = vunpack.c.h.b16 %v1646
    %v3127 = vunpack.c.l.b16 %v1647
    %v3128 = vunpack.c.h.b16 %v1647
    %v3129 = vunpack.c.l.b16 %v1648
    %v3130 = vunpack.c.h.b16 %v1648
    %v3131 = vunpack.c.l.b16 %v1649
    %v3132 = vunpack.c.h.b16 %v1649
    %v3133 = vunpack.c.l.b16 %v1650
    %v3134 = vunpack.c.h.b16 %v1650
    %v3135 = vunpack.c.l.b16 %v1651
    %v3136 = vunpack.c.h.b16 %v1651
    %v3137 = vunpack.c.l.b16 %v1652
    %v3138 = vunpack.c.h.b16 %v1652
    %v3139 = vunpack.c.l.b16 %v1653
    %v3140 = vunpack.c.h.b16 %v1653
    %v3141 = vunpack.c.l.b16 %v1654
    %v3142 = vunpack.c.h.b16 %v1654
    %v3143 = vunpack.c.l.b16 %v1655
    %v3144 = vunpack.c.h.b16 %v1655
    %v3145 = vunpack.c.l.b16 %v1656
    %v3146 = vunpack.c.h.b16 %v1656
    %v3147 = vunpack.c.l.b16 %v1657
    %v3148 = vunpack.c.h.b16 %v1657
    %v3149 = vunpack.c.l.b16 %v1658
    %v3150 = vunpack.c.h.b16 %v1658
    %v3151 = vunpack.c.l.b16 %v1659
    %v3152 = vunpack.c.h.b16 %v1659
    %v3153 = vunpack.c.l.b16 %v1660
    %v3154 = vunpack.c.h.b16 %v1660
    %v3155 = vunpack.c.l.b16 %v1661
    %v3156 = vunpack.c.h.b16 %v1661
    %v3157 = vunpack.c.l.b16 %v1662
    %v3158 = vunpack.c.h.b16 %v1662
    %v3159 = vunpack.c.l.b16 %v1663
    %v3160 = vunpack.c.h.b16 %v1663
    %v3161 = vunpack.c.l.b16 %v1664
    %v3162 = vunpack.c.h.b16 %v1664
    %v3163 = vunpack.c.l.b16 %v1665
    %v3164 = vunpack.c.h.b16 %v1665
    %v3165 = vunpack.c.l.b16 %v1666
    %v3166 = vunpack.c.h.b16 %v1666
    %v3167 = vunpack.c.l.b16 %v1667
    %v3168 = vunpack.c.h.b16 %v1667
    %v3169 = vunpack.c.l.b16 %v1668
    %v3170 = vunpack.c.h.b16 %v1668
    %v3171 = vunpack.c.l.b16 %v1669
    %v3172 = vunpack.c.h.b16 %v1669
    %v3173 = vunpack.c.l.b16 %v1670
    %v3174 = vunpack.c.h.b16 %v1670
    %v3175 = vunpack.c.l.b16 %v1671
    %v3176 = vunpack.c.h.b16 %v1671
    %v3177 = vunpack.c.l.b16 %v1672
    %v3178 = vunpack.c.h.b16 %v1672
    %v3179 = vunpack.c.l.b16 %v1673
    %v3180 = vunpack.c.h.b16 %v1673
    %v3181 = vunpack.c.l.b16 %v1674
    %v3182 = vunpack.c.h.b16 %v1674
    %v3183 = vunpack.c.l.b16 %v1675
    %v3184 = vunpack.c.h.b16 %v1675
    %v3185 = vunpack.c.l.b16 %v1676
    %v3186 = vunpack.c.h.b16 %v1676
    %v3187 = vunpack.c.l.b16 %v1677
    %v3188 = vunpack.c.h.b16 %v1677
    %v3189 = vunpack.c.l.b16 %v1678
    %v3190 = vunpack.c.h.b16 %v1678
    %v3191 = vunpack.c.l.b16 %v1679
    %v3192 = vunpack.c.h.b16 %v1679
    %v3193 = vunpack.c.l.b16 %v1680
    %v3194 = vunpack.c.h.b16 %v1680
    %v3195 = vunpack.c.l.b16 %v1681
    %v3196 = vunpack.c.h.b16 %v1681
    %v3197 = vunpack.c.l.b16 %v1682
    %v3198 = vunpack.c.h.b16 %v1682
    %v3199 = vunpack.c.l.b16 %v1683
    %v3200 = vunpack.c.h.b16 %v1683
    %v3201 = vunpack.c.l.b16 %v1684
    %v3202 = vunpack.c.h.b16 %v1684
    %v3203 = vunpack.c.l.b16 %v1685
    %v3204 = vunpack.c.h.b16 %v1685
    %v3205 = vunpack.c.l.b16 %v1686
    %v3206 = vunpack.c.h.b16 %v1686
    %v3207 = vunpack.c.l.b16 %v1687
    %v3208 = vunpack.c.h.b16 %v1687
    %v3209 = vunpack.c.l.b16 %v1688
    %v3210 = vunpack.c.h.b16 %v1688
    %v3211 = vunpack.c.l.b16 %v1689
    %v3212 = vunpack.c.h.b16 %v1689
    %v3213 = vunpack.c.l.b16 %v1690
    %v3214 = vunpack.c.h.b16 %v1690
    %v3215 = vunpack.c.l.b16 %v1691
    %v3216 = vunpack.c.h.b16 %v1691
    %v3217 = vunpack.c.l.b16 %v1692
    %v3218 = vunpack.c.h.b16 %v1692
    %v3219 = vunpack.c.l.b16 %v1693
    %v3220 = vunpack.c.h.b16 %v1693
    %v3221 = vunpack.c.l.b16 %v1694
    %v3222 = vunpack.c.h.b16 %v1694
    %v3223 = vunpack.c.l.b16 %v1695
    %v3224 = vunpack.c.h.b16 %v1695
    %v3225 = vunpack.c.l.b16 %v1696
    %v3226 = vunpack.c.h.b16 %v1696
    %v3227 = vunpack.c.l.b16 %v1697
    %v3228 = vunpack.c.h.b16 %v1697
    %v3229 = vunpack.c.l.b16 %v1698
    %v3230 = vunpack.c.h.b16 %v1698
    %v3231 = vunpack.c.l.b16 %v1699
    %v3232 = vunpack.c.h.b16 %v1699
    %v3233 = vunpack.c.l.b16 %v1700
    %v3234 = vunpack.c.h.b16 %v1700
    %v3235 = vunpack.c.l.b16 %v1701
    %v3236 = vunpack.c.h.b16 %v1701
    %v3237 = vunpack.c.l.b16 %v1702
    %v3238 = vunpack.c.h.b16 %v1702
    %v3239 = vpack.c.b16 %v2219, %v2215
    %v3240 = vpack.c.b16 %v2220, %v2216
    %v3241 = vpack.c.b16 %v2221, %v2217
    %v3242 = vpack.c.b16 %v2222, %v2218
    %v3243 = vpack.c.b16 %v2227, %v2223
    %v3244 = vpack.c.b16 %v2228, %v2224
    %v3245 = vpack.c.b16 %v2229, %v2225
    %v3246 = vpack.c.b16 %v2230, %v2226
    %v3247 = vpack.c.b16 %v2235, %v2231
    %v3248 = vpack.c.b16 %v2236, %v2232
    %v3249 = vpack.c.b16 %v2237, %v2233
    %v3250 = vpack.c.b16 %v2238, %v2234
    %v3251 = vpack.c.b16 %v2243, %v2239
    %v3252 = vpack.c.b16 %v2244, %v2240
    %v3253 = vpack.c.b16 %v2245, %v2241
    %v3254 = vpack.c.b16 %v2246, %v2242
    %v3255 = vpack.c.b16 %v2251, %v2247
    %v3256 = vpack.c.b16 %v2252, %v2248
    %v3257 = vpack.c.b16 %v2253, %v2249
    %v3258 = vpack.c.b16 %v2254, %v2250
    %v3259 = vpack.c.b16 %v2259, %v2255
    %v3260 = vpack.c.b16 %v2260, %v2256
    %v3261 = vpack.c.b16 %v2261, %v2257
    %v3262 = vpack.c.b16 %v2262, %v2258
    %v3263 = vpack.c.b16 %v2267, %v2263
    %v3264 = vpack.c.b16 %v2268, %v2264
    %v3265 = vpack.c.b16 %v2269, %v2265
    %v3266 = vpack.c.b16 %v2270, %v2266
    %v3267 = vpack.c.b16 %v2275, %v2271
    %v3268 = vpack.c.b16 %v2276, %v2272
    %v3269 = vpack.c.b16 %v2277, %v2273
    %v3270 = vpack.c.b16 %v2278, %v2274
    %v3271 = vpack.c.b16 %v2283, %v2279
    %v3272 = vpack.c.b16 %v2284, %v2280
    %v3273 = vpack.c.b16 %v2285, %v2281
    %v3274 = vpack.c.b16 %v2286, %v2282
    %v3275 = vpack.c.b16 %v2291, %v2287
    %v3276 = vpack.c.b16 %v2292, %v2288
    %v3277 = vpack.c.b16 %v2293, %v2289
    %v3278 = vpack.c.b16 %v2294, %v2290
    %v3279 = vpack.c.b16 %v2299, %v2295
    %v3280 = vpack.c.b16 %v2300, %v2296
    %v3281 = vpack.c.b16 %v2301, %v2297
    %v3282 = vpack.c.b16 %v2302, %v2298
    %v3283 = vpack.c.b16 %v2307, %v2303
    %v3284 = vpack.c.b16 %v2308, %v2304
    %v3285 = vpack.c.b16 %v2309, %v2305
    %v3286 = vpack.c.b16 %v2310, %v2306
    %v3287 = vpack.c.b16 %v2315, %v2311
    %v3288 = vpack.c.b16 %v2316, %v2312
    %v3289 = vpack.c.b16 %v2317, %v2313
    %v3290 = vpack.c.b16 %v2318, %v2314
    %v3291 = vpack.c.b16 %v2323, %v2319
    %v3292 = vpack.c.b16 %v2324, %v2320
    %v3293 = vpack.c.b16 %v2325, %v2321
    %v3294 = vpack.c.b16 %v2326, %v2322
    %v3295 = vpack.c.b16 %v2331, %v2327
    %v3296 = vpack.c.b16 %v2332, %v2328
    %v3297 = vpack.c.b16 %v2333, %v2329
    %v3298 = vpack.c.b16 %v2334, %v2330
    %v3299 = vpack.c.b16 %v2339, %v2335
    %v3300 = vpack.c.b16 %v2340, %v2336
    %v3301 = vpack.c.b16 %v2341, %v2337
    %v3302 = vpack.c.b16 %v2342, %v2338
    %v3303 = vpack.c.b16 %v2347, %v2343
    %v3304 = vpack.c.b16 %v2348, %v2344
    %v3305 = vpack.c.b16 %v2349, %v2345
    %v3306 = vpack.c.b16 %v2350, %v2346
    %v3307 = vpack.c.b16 %v2355, %v2351
    %v3308 = vpack.c.b16 %v2356, %v2352
    %v3309 = vpack.c.b16 %v2357, %v2353
    %v3310 = vpack.c.b16 %v2358, %v2354
    %v3311 = vpack.c.b16 %v2363, %v2359
    %v3312 = vpack.c.b16 %v2364, %v2360
    %v3313 = vpack.c.b16 %v2365, %v2361
    %v3314 = vpack.c.b16 %v2366, %v2362
    %v3315 = vpack.c.b16 %v2371, %v2367
    %v3316 = vpack.c.b16 %v2372, %v2368
    %v3317 = vpack.c.b16 %v2373, %v2369
    %v3318 = vpack.c.b16 %v2374, %v2370
    %v3319 = vpack.c.b16 %v2379, %v2375
    %v3320 = vpack.c.b16 %v2380, %v2376
    %v3321 = vpack.c.b16 %v2381, %v2377
    %v3322 = vpack.c.b16 %v2382, %v2378
    %v3323 = vpack.c.b16 %v2387, %v2383
    %v3324 = vpack.c.b16 %v2388, %v2384
    %v3325 = vpack.c.b16 %v2389, %v2385
    %v3326 = vpack.c.b16 %v2390, %v2386
    %v3327 = vpack.c.b16 %v2395, %v2391
    %v3328 = vpack.c.b16 %v2396, %v2392
    %v3329 = vpack.c.b16 %v2397, %v2393
    %v3330 = vpack.c.b16 %v2398, %v2394
    %v3331 = vpack.c.b16 %v2403, %v2399
    %v3332 = vpack.c.b16 %v2404, %v2400
    %v3333 = vpack.c.b16 %v2405, %v2401
    %v3334 = vpack.c.b16 %v2406, %v2402
    %v3335 = vpack.c.b16 %v2411, %v2407
    %v3336 = vpack.c.b16 %v2412, %v2408
    %v3337 = vpack.c.b16 %v2413, %v2409
    %v3338 = vpack.c.b16 %v2414, %v2410
    %v3339 = vpack.c.b16 %v2419, %v2415
    %v3340 = vpack.c.b16 %v2420, %v2416
    %v3341 = vpack.c.b16 %v2421, %v2417
    %v3342 = vpack.c.b16 %v2422, %v2418
    %v3343 = vpack.c.b16 %v2427, %v2423
    %v3344 = vpack.c.b16 %v2428, %v2424
    %v3345 = vpack.c.b16 %v2429, %v2425
    %v3346 = vpack.c.b16 %v2430, %v2426
    %v3347 = vpack.c.b16 %v2435, %v2431
    %v3348 = vpack.c.b16 %v2436, %v2432
    %v3349 = vpack.c.b16 %v2437, %v2433
    %v3350 = vpack.c.b16 %v2438, %v2434
    %v3351 = vpack.c.b16 %v2443, %v2439
    %v3352 = vpack.c.b16 %v2444, %v2440
    %v3353 = vpack.c.b16 %v2445, %v2441
    %v3354 = vpack.c.b16 %v2446, %v2442
    %v3355 = vpack.c.b16 %v2451, %v2447
    %v3356 = vpack.c.b16 %v2452, %v2448
    %v3357 = vpack.c.b16 %v2453, %v2449
    %v3358 = vpack.c.b16 %v2454, %v2450
    %v3359 = vpack.c.b16 %v2459, %v2455
    %v3360 = vpack.c.b16 %v2460, %v2456
    %v3361 = vpack.c.b16 %v2461, %v2457
    %v3362 = vpack.c.b16 %v2462, %v2458
    %v3363 = vpack.c.b16 %v2467, %v2463
    %v3364 = vpack.c.b16 %v2468, %v2464
    %v3365 = vpack.c.b16 %v2469, %v2465
    %v3366 = vpack.c.b16 %v2470, %v2466
    %v3367 = vpack.c.b16 %v2475, %v2471
    %v3368 = vpack.c.b16 %v2476, %v2472
    %v3369 = vpack.c.b16 %v2477, %v2473
    %v3370 = vpack.c.b16 %v2478, %v2474
    %v3371 = vpack.c.b16 %v2483, %v2479
    %v3372 = vpack.c.b16 %v2484, %v2480
    %v3373 = vpack.c.b16 %v2485, %v2481
    %v3374 = vpack.c.b16 %v2486, %v2482
    %v3375 = vpack.c.b16 %v2491, %v2487
    %v3376 = vpack.c.b16 %v2492, %v2488
    %v3377 = vpack.c.b16 %v2493, %v2489
    %v3378 = vpack.c.b16 %v2494, %v2490
    %v3379 = vpack.c.b16 %v2499, %v2495
    %v3380 = vpack.c.b16 %v2500, %v2496
    %v3381 = vpack.c.b16 %v2501, %v2497
    %v3382 = vpack.c.b16 %v2502, %v2498
    %v3383 = vpack.c.b16 %v2507, %v2503
    %v3384 = vpack.c.b16 %v2508, %v2504
    %v3385 = vpack.c.b16 %v2509, %v2505
    %v3386 = vpack.c.b16 %v2510, %v2506
    %v3387 = vpack.c.b16 %v2515, %v2511
    %v3388 = vpack.c.b16 %v2516, %v2512
    %v3389 = vpack.c.b16 %v2517, %v2513
    %v3390 = vpack.c.b16 %v2518, %v2514
    %v3391 = vpack.c.b16 %v2523, %v2519
    %v3392 = vpack.c.b16 %v2524, %v2520
    %v3393 = vpack.c.b16 %v2525, %v2521
    %v3394 = vpack.c.b16 %v2526, %v2522
    %v3395 = vpack.c.b16 %v2531, %v2527
    %v3396 = vpack.c.b16 %v2532, %v2528
    %v3397 = vpack.c.b16 %v2533, %v2529
    %v3398 = vpack.c.b16 %v2534, %v2530
    %v3399 = vpack.c.b16 %v2539, %v2535
    %v3400 = vpack.c.b16 %v2540, %v2536
    %v3401 = vpack.c.b16 %v2541, %v2537
    %v3402 = vpack.c.b16 %v2542, %v2538
    %v3403 = vpack.c.b16 %v2547, %v2543
    %v3404 = vpack.c.b16 %v2548, %v2544
    %v3405 = vpack.c.b16 %v2549, %v2545
    %v3406 = vpack.c.b16 %v2550, %v2546
    %v3407 = vpack.c.b16 %v2555, %v2551
    %v3408 = vpack.c.b16 %v2556, %v2552
    %v3409 = vpack.c.b16 %v2557, %v2553
    %v3410 = vpack.c.b16 %v2558, %v2554
    %v3411 = vpack.c.b16 %v2563, %v2559
    %v3412 = vpack.c.b16 %v2564, %v2560
    %v3413 = vpack.c.b16 %v2565, %v2561
    %v3414 = vpack.c.b16 %v2566, %v2562
    %v3415 = vpack.c.b16 %v2571, %v2567
    %v3416 = vpack.c.b16 %v2572, %v2568
    %v3417 = vpack.c.b16 %v2573, %v2569
    %v3418 = vpack.c.b16 %v2574, %v2570
    %v3419 = vpack.c.b16 %v2579, %v2575
    %v3420 = vpack.c.b16 %v2580, %v2576
    %v3421 = vpack.c.b16 %v2581, %v2577
    %v3422 = vpack.c.b16 %v2582, %v2578
    %v3423 = vpack.c.b16 %v2587, %v2583
    %v3424 = vpack.c.b16 %v2588, %v2584
    %v3425 = vpack.c.b16 %v2589, %v2585
    %v3426 = vpack.c.b16 %v2590, %v2586
    %v3427 = vpack.c.b16 %v2595, %v2591
    %v3428 = vpack.c.b16 %v2596, %v2592
    %v3429 = vpack.c.b16 %v2597, %v2593
    %v3430 = vpack.c.b16 %v2598, %v2594
    %v3431 = vpack.c.b16 %v2603, %v2599
    %v3432 = vpack.c.b16 %v2604, %v2600
    %v3433 = vpack.c.b16 %v2605, %v2601
    %v3434 = vpack.c.b16 %v2606, %v2602
    %v3435 = vpack.c.b16 %v2611, %v2607
    %v3436 = vpack.c.b16 %v2612, %v2608
    %v3437 = vpack.c.b16 %v2613, %v2609
    %v3438 = vpack.c.b16 %v2614, %v2610
    %v3439 = vpack.c.b16 %v2619, %v2615
    %v3440 = vpack.c.b16 %v2620, %v2616
    %v3441 = vpack.c.b16 %v2621, %v2617
    %v3442 = vpack.c.b16 %v2622, %v2618
    %v3443 = vpack.c.b16 %v2627, %v2623
    %v3444 = vpack.c.b16 %v2628, %v2624
    %v3445 = vpack.c.b16 %v2629, %v2625
    %v3446 = vpack.c.b16 %v2630, %v2626
    %v3447 = vpack.c.b16 %v2635, %v2631
    %v3448 = vpack.c.b16 %v2636, %v2632
    %v3449 = vpack.c.b16 %v2637, %v2633
    %v3450 = vpack.c.b16 %v2638, %v2634
    %v3451 = vpack.c.b16 %v2643, %v2639
    %v3452 = vpack.c.b16 %v2644, %v2640
    %v3453 = vpack.c.b16 %v2645, %v2641
    %v3454 = vpack.c.b16 %v2646, %v2642
    %v3455 = vpack.c.b16 %v2651, %v2647
    %v3456 = vpack.c.b16 %v2652, %v2648
    %v3457 = vpack.c.b16 %v2653, %v2649
    %v3458 = vpack.c.b16 %v2654, %v2650
    %v3459 = vpack.c.b16 %v2659, %v2655
    %v3460 = vpack.c.b16 %v2660, %v2656
    %v3461 = vpack.c.b16 %v2661, %v2657
    %v3462 = vpack.c.b16 %v2662, %v2658
    %v3463 = vpack.c.b16 %v2667, %v2663
    %v3464 = vpack.c.b16 %v2668, %v2664
    %v3465 = vpack.c.b16 %v2669, %v2665
    %v3466 = vpack.c.b16 %v2670, %v2666
    %v3467 = vpack.c.b16 %v2675, %v2671
    %v3468 = vpack.c.b16 %v2676, %v2672
    %v3469 = vpack.c.b16 %v2677, %v2673
    %v3470 = vpack.c.b16 %v2678, %v2674
    %v3471 = vpack.c.b16 %v2683, %v2679
    %v3472 = vpack.c.b16 %v2684, %v2680
    %v3473 = vpack.c.b16 %v2685, %v2681
    %v3474 = vpack.c.b16 %v2686, %v2682
    %v3475 = vpack.c.b16 %v2691, %v2687
    %v3476 = vpack.c.b16 %v2692, %v2688
    %v3477 = vpack.c.b16 %v2693, %v2689
    %v3478 = vpack.c.b16 %v2694, %v2690
    %v3479 = vpack.c.b16 %v2699, %v2695
    %v3480 = vpack.c.b16 %v2700, %v2696
    %v3481 = vpack.c.b16 %v2701, %v2697
    %v3482 = vpack.c.b16 %v2702, %v2698
    %v3483 = vpack.c.b16 %v2707, %v2703
    %v3484 = vpack.c.b16 %v2708, %v2704
    %v3485 = vpack.c.b16 %v2709, %v2705
    %v3486 = vpack.c.b16 %v2710, %v2706
    %v3487 = vpack.c.b16 %v2715, %v2711
    %v3488 = vpack.c.b16 %v2716, %v2712
    %v3489 = vpack.c.b16 %v2717, %v2713
    %v3490 = vpack.c.b16 %v2718, %v2714
    %v3491 = vpack.c.b16 %v2723, %v2719
    %v3492 = vpack.c.b16 %v2724, %v2720
    %v3493 = vpack.c.b16 %v2725, %v2721
    %v3494 = vpack.c.b16 %v2726, %v2722
    %v3495 = vpack.c.b16 %v2731, %v2727
    %v3496 = vpack.c.b16 %v2732, %v2728
    %v3497 = vpack.c.b16 %v2733, %v2729
    %v3498 = vpack.c.b16 %v2734, %v2730
    %v3499 = vpack.c.b16 %v2739, %v2735
    %v3500 = vpack.c.b16 %v2740, %v2736
    %v3501 = vpack.c.b16 %v2741, %v2737
    %v3502 = vpack.c.b16 %v2742, %v2738
    %v3503 = vpack.c.b16 %v2747, %v2743
    %v3504 = vpack.c.b16 %v2748, %v2744
    %v3505 = vpack.c.b16 %v2749, %v2745
    %v3506 = vpack.c.b16 %v2750, %v2746
    %v3507 = vpack.c.b16 %v2755, %v2751
    %v3508 = vpack.c.b16 %v2756, %v2752
    %v3509 = vpack.c.b16 %v2757, %v2753
    %v3510 = vpack.c.b16 %v2758, %v2754
    %v3511 = vpack.c.b16 %v2763, %v2759
    %v3512 = vpack.c.b16 %v2764, %v2760
    %v3513 = vpack.c.b16 %v2765, %v2761
    %v3514 = vpack.c.b16 %v2766, %v2762
    %v3515 = vpack.c.b16 %v2771, %v2767
    %v3516 = vpack.c.b16 %v2772, %v2768
    %v3517 = vpack.c.b16 %v2773, %v2769
    %v3518 = vpack.c.b16 %v2774, %v2770
    %v3519 = vpack.c.b16 %v2779, %v2775
    %v3520 = vpack.c.b16 %v2780, %v2776
    %v3521 = vpack.c.b16 %v2781, %v2777
    %v3522 = vpack.c.b16 %v2782, %v2778
    %v3523 = vpack.c.b16 %v2787, %v2783
    %v3524 = vpack.c.b16 %v2788, %v2784
    %v3525 = vpack.c.b16 %v2789, %v2785
    %v3526 = vpack.c.b16 %v2790, %v2786
    %v3527 = vpack.c.b16 %v2795, %v2791
    %v3528 = vpack.c.b16 %v2796, %v2792
    %v3529 = vpack.c.b16 %v2797, %v2793
    %v3530 = vpack.c.b16 %v2798, %v2794
    %v3531 = vpack.c.b16 %v2803, %v2799
    %v3532 = vpack.c.b16 %v2804, %v2800
    %v3533 = vpack.c.b16 %v2805, %v2801
    %v3534 = vpack.c.b16 %v2806, %v2802
    %v3535 = vpack.c.b16 %v2811, %v2807
    %v3536 = vpack.c.b16 %v2812, %v2808
    %v3537 = vpack.c.b16 %v2813, %v2809
    %v3538 = vpack.c.b16 %v2814, %v2810
    %v3539 = vpack.c.b16 %v2819, %v2815
    %v3540 = vpack.c.b16 %v2820, %v2816
    %v3541 = vpack.c.b16 %v2821, %v2817
    %v3542 = vpack.c.b16 %v2822, %v2818
    %v3543 = vpack.c.b16 %v2827, %v2823
    %v3544 = vpack.c.b16 %v2828, %v2824
    %v3545 = vpack.c.b16 %v2829, %v2825
    %v3546 = vpack.c.b16 %v2830, %v2826
    %v3547 = vpack.c.b16 %v2835, %v2831
    %v3548 = vpack.c.b16 %v2836, %v2832
    %v3549 = vpack.c.b16 %v2837, %v2833
    %v3550 = vpack.c.b16 %v2838, %v2834
    %v3551 = vpack.c.b16 %v2843, %v2839
    %v3552 = vpack.c.b16 %v2844, %v2840
    %v3553 = vpack.c.b16 %v2845, %v2841
    %v3554 = vpack.c.b16 %v2846, %v2842
    %v3555 = vpack.c.b16 %v2851, %v2847
    %v3556 = vpack.c.b16 %v2852, %v2848
    %v3557 = vpack.c.b16 %v2853, %v2849
    %v3558 = vpack.c.b16 %v2854, %v2850
    %v3559 = vpack.c.b16 %v2859, %v2855
    %v3560 = vpack.c.b16 %v2860, %v2856
    %v3561 = vpack.c.b16 %v2861, %v2857
    %v3562 = vpack.c.b16 %v2862, %v2858
    %v3563 = vpack.c.b16 %v2867, %v2863
    %v3564 = vpack.c.b16 %v2868, %v2864
    %v3565 = vpack.c.b16 %v2869, %v2865
    %v3566 = vpack.c.b16 %v2870, %v2866
    %v3567 = vpack.c.b16 %v2875, %v2871
    %v3568 = vpack.c.b16 %v2876, %v2872
    %v3569 = vpack.c.b16 %v2877, %v2873
    %v3570 = vpack.c.b16 %v2878, %v2874
    %v3571 = vpack.c.b16 %v2883, %v2879
    %v3572 = vpack.c.b16 %v2884, %v2880
    %v3573 = vpack.c.b16 %v2885, %v2881
    %v3574 = vpack.c.b16 %v2886, %v2882
    %v3575 = vpack.c.b16 %v2891, %v2887
    %v3576 = vpack.c.b16 %v2892, %v2888
    %v3577 = vpack.c.b16 %v2893, %v2889
    %v3578 = vpack.c.b16 %v2894, %v2890
    %v3579 = vpack.c.b16 %v2899, %v2895
    %v3580 = vpack.c.b16 %v2900, %v2896
    %v3581 = vpack.c.b16 %v2901, %v2897
    %v3582 = vpack.c.b16 %v2902, %v2898
    %v3583 = vpack.c.b16 %v2907, %v2903
    %v3584 = vpack.c.b16 %v2908, %v2904
    %v3585 = vpack.c.b16 %v2909, %v2905
    %v3586 = vpack.c.b16 %v2910, %v2906
    %v3587 = vpack.c.b16 %v2915, %v2911
    %v3588 = vpack.c.b16 %v2916, %v2912
    %v3589 = vpack.c.b16 %v2917, %v2913
    %v3590 = vpack.c.b16 %v2918, %v2914
    %v3591 = vpack.c.b16 %v2923, %v2919
    %v3592 = vpack.c.b16 %v2924, %v2920
    %v3593 = vpack.c.b16 %v2925, %v2921
    %v3594 = vpack.c.b16 %v2926, %v2922
    %v3595 = vpack.c.b16 %v2931, %v2927
    %v3596 = vpack.c.b16 %v2932, %v2928
    %v3597 = vpack.c.b16 %v2933, %v2929
    %v3598 = vpack.c.b16 %v2934, %v2930
    %v3599 = vpack.c.b16 %v2939, %v2935
    %v3600 = vpack.c.b16 %v2940, %v2936
    %v3601 = vpack.c.b16 %v2941, %v2937
    %v3602 = vpack.c.b16 %v2942, %v2938
    %v3603 = vpack.c.b16 %v2947, %v2943
    %v3604 = vpack.c.b16 %v2948, %v2944
    %v3605 = vpack.c.b16 %v2949, %v2945
    %v3606 = vpack.c.b16 %v2950, %v2946
    %v3607 = vpack.c.b16 %v2955, %v2951
    %v3608 = vpack.c.b16 %v2956, %v2952
    %v3609 = vpack.c.b16 %v2957, %v2953
    %v3610 = vpack.c.b16 %v2958, %v2954
    %v3611 = vpack.c.b16 %v2963, %v2959
    %v3612 = vpack.c.b16 %v2964, %v2960
    %v3613 = vpack.c.b16 %v2965, %v2961
    %v3614 = vpack.c.b16 %v2966, %v2962
    %v3615 = vpack.c.b16 %v2971, %v2967
    %v3616 = vpack.c.b16 %v2972, %v2968
    %v3617 = vpack.c.b16 %v2973, %v2969
    %v3618 = vpack.c.b16 %v2974, %v2970
    %v3619 = vpack.c.b16 %v2979, %v2975
    %v3620 = vpack.c.b16 %v2980, %v2976
    %v3621 = vpack.c.b16 %v2981, %v2977
    %v3622 = vpack.c.b16 %v2982, %v2978
    %v3623 = vpack.c.b16 %v2987, %v2983
    %v3624 = vpack.c.b16 %v2988, %v2984
    %v3625 = vpack.c.b16 %v2989, %v2985
    %v3626 = vpack.c.b16 %v2990, %v2986
    %v3627 = vpack.c.b16 %v2995, %v2991
    %v3628 = vpack.c.b16 %v2996, %v2992
    %v3629 = vpack.c.b16 %v2997, %v2993
    %v3630 = vpack.c.b16 %v2998, %v2994
    %v3631 = vpack.c.b16 %v3003, %v2999
    %v3632 = vpack.c.b16 %v3004, %v3000
    %v3633 = vpack.c.b16 %v3005, %v3001
    %v3634 = vpack.c.b16 %v3006, %v3002
    %v3635 = vpack.c.b16 %v3011, %v3007
    %v3636 = vpack.c.b16 %v3012, %v3008
    %v3637 = vpack.c.b16 %v3013, %v3009
    %v3638 = vpack.c.b16 %v3014, %v3010
    %v3639 = vpack.c.b16 %v3019, %v3015
    %v3640 = vpack.c.b16 %v3020, %v3016
    %v3641 = vpack.c.b16 %v3021, %v3017
    %v3642 = vpack.c.b16 %v3022, %v3018
    %v3643 = vpack.c.b16 %v3027, %v3023
    %v3644 = vpack.c.b16 %v3028, %v3024
    %v3645 = vpack.c.b16 %v3029, %v3025
    %v3646 = vpack.c.b16 %v3030, %v3026
    %v3647 = vpack.c.b16 %v3035, %v3031
    %v3648 = vpack.c.b16 %v3036, %v3032
    %v3649 = vpack.c.b16 %v3037, %v3033
    %v3650 = vpack.c.b16 %v3038, %v3034
    %v3651 = vpack.c.b16 %v3043, %v3039
    %v3652 = vpack.c.b16 %v3044, %v3040
    %v3653 = vpack.c.b16 %v3045, %v3041
    %v3654 = vpack.c.b16 %v3046, %v3042
    %v3655 = vpack.c.b16 %v3051, %v3047
    %v3656 = vpack.c.b16 %v3052, %v3048
    %v3657 = vpack.c.b16 %v3053, %v3049
    %v3658 = vpack.c.b16 %v3054, %v3050
    %v3659 = vpack.c.b16 %v3059, %v3055
    %v3660 = vpack.c.b16 %v3060, %v3056
    %v3661 = vpack.c.b16 %v3061, %v3057
    %v3662 = vpack.c.b16 %v3062, %v3058
    %v3663 = vpack.c.b16 %v3067, %v3063
    %v3664 = vpack.c.b16 %v3068, %v3064
    %v3665 = vpack.c.b16 %v3069, %v3065
    %v3666 = vpack.c.b16 %v3070, %v3066
    %v3667 = vpack.c.b16 %v3075, %v3071
    %v3668 = vpack.c.b16 %v3076, %v3072
    %v3669 = vpack.c.b16 %v3077, %v3073
    %v3670 = vpack.c.b16 %v3078, %v3074
    %v3671 = vpack.c.b16 %v3083, %v3079
    %v3672 = vpack.c.b16 %v3084, %v3080
    %v3673 = vpack.c.b16 %v3085, %v3081
    %v3674 = vpack.c.b16 %v3086, %v3082
    %v3675 = vpack.c.b16 %v3091, %v3087
    %v3676 = vpack.c.b16 %v3092, %v3088
    %v3677 = vpack.c.b16 %v3093, %v3089
    %v3678 = vpack.c.b16 %v3094, %v3090
    %v3679 = vpack.c.b16 %v3099, %v3095
    %v3680 = vpack.c.b16 %v3100, %v3096
    %v3681 = vpack.c.b16 %v3101, %v3097
    %v3682 = vpack.c.b16 %v3102, %v3098
    %v3683 = vpack.c.b16 %v3107, %v3103
    %v3684 = vpack.c.b16 %v3108, %v3104
    %v3685 = vpack.c.b16 %v3109, %v3105
    %v3686 = vpack.c.b16 %v3110, %v3106
    %v3687 = vpack.c.b16 %v3115, %v3111
    %v3688 = vpack.c.b16 %v3116, %v3112
    %v3689 = vpack.c.b16 %v3117, %v3113
    %v3690 = vpack.c.b16 %v3118, %v3114
    %v3691 = vpack.c.b16 %v3123, %v3119
    %v3692 = vpack.c.b16 %v3124, %v3120
    %v3693 = vpack.c.b16 %v3125, %v3121
    %v3694 = vpack.c.b16 %v3126, %v3122
    %v3695 = vpack.c.b16 %v3131, %v3127
    %v3696 = vpack.c.b16 %v3132, %v3128
    %v3697 = vpack.c.b16 %v3133, %v3129
    %v3698 = vpack.c.b16 %v3134, %v3130
    %v3699 = vpack.c.b16 %v3139, %v3135
    %v3700 = vpack.c.b16 %v3140, %v3136
    %v3701 = vpack.c.b16 %v3141, %v3137
    %v3702 = vpack.c.b16 %v3142, %v3138
    %v3703 = vpack.c.b16 %v3147, %v3143
    %v3704 = vpack.c.b16 %v3148, %v3144
    %v3705 = vpack.c.b16 %v3149, %v3145
    %v3706 = vpack.c.b16 %v3150, %v3146
    %v3707 = vpack.c.b16 %v3155, %v3151
    %v3708 = vpack.c.b16 %v3156, %v3152
    %v3709 = vpack.c.b16 %v3157, %v3153
    %v3710 = vpack.c.b16 %v3158, %v3154
    %v3711 = vpack.c.b16 %v3163, %v3159
    %v3712 = vpack.c.b16 %v3164, %v3160
    %v3713 = vpack.c.b16 %v3165, %v3161
    %v3714 = vpack.c.b16 %v3166, %v3162
    %v3715 = vpack.c.b16 %v3171, %v3167
    %v3716 = vpack.c.b16 %v3172, %v3168
    %v3717 = vpack.c.b16 %v3173, %v3169
    %v3718 = vpack.c.b16 %v3174, %v3170
    %v3719 = vpack.c.b16 %v3179, %v3175
    %v3720 = vpack.c.b16 %v3180, %v3176
    %v3721 = vpack.c.b16 %v3181, %v3177
    %v3722 = vpack.c.b16 %v3182, %v3178
    %v3723 = vpack.c.b16 %v3187, %v3183
    %v3724 = vpack.c.b16 %v3188, %v3184
    %v3725 = vpack.c.b16 %v3189, %v3185
    %v3726 = vpack.c.b16 %v3190, %v3186
    %v3727 = vpack.c.b16 %v3195, %v3191
    %v3728 = vpack.c.b16 %v3196, %v3192
    %v3729 = vpack.c.b16 %v3197, %v3193
    %v3730 = vpack.c.b16 %v3198, %v3194
    %v3731 = vpack.c.b16 %v3203, %v3199
    %v3732 = vpack.c.b16 %v3204, %v3200
    %v3733 = vpack.c.b16 %v3205, %v3201
    %v3734 = vpack.c.b16 %v3206, %v3202
    %v3735 = vpack.c.b16 %v3211, %v3207
    %v3736 = vpack.c.b16 %v3212, %v3208
    %v3737 = vpack.c.b16 %v3213, %v3209
    %v3738 = vpack.c.b16 %v3214, %v3210
    %v3739 = vpack.c.b16 %v3219, %v3215
    %v3740 = vpack.c.b16 %v3220, %v3216
    %v3741 = vpack.c.b16 %v3221, %v3217
    %v3742 = vpack.c.b16 %v3222, %v3218
    %v3743 = vpack.c.b16 %v3227, %v3223
    %v3744 = vpack.c.b16 %v3228, %v3224
    %v3745 = vpack.c.b16 %v3229, %v3225
    %v3746 = vpack.c.b16 %v3230, %v3226
    %v3747 = vpack.c.b16 %v3235, %v3231
    %v3748 = vpack.c.b16 %v3236, %v3232
    %v3749 = vpack.c.b16 %v3237, %v3233
    %v3750 = vpack.c.b16 %v3238, %v3234
    %4263 = vmatprep.subr.bf16.mxu0 %v3240
    %4264 = vmatpush1.bf16.msra.mxu0 %v3239
    %4265 = vmatprep.subr.bf16.mxu0 %v3244
    %4266 = vmatpush1.bf16.msra.mxu0 %v3243
    %4267 = vmatprep.subr.bf16.mxu0 %v3248
    %4268 = vmatpush1.bf16.msra.mxu0 %v3247
    %4269 = vmatprep.subr.bf16.mxu0 %v3252
    %4270 = vmatpush1.bf16.msra.mxu0 %v3251
    %4271 = vmatprep.subr.bf16.mxu0 %v3256
    %4272 = vmatpush1.bf16.msra.mxu0 %v3255
    %4273 = vmatprep.subr.bf16.mxu0 %v3260
    %4274 = vmatpush1.bf16.msra.mxu0 %v3259
    %4275 = vmatprep.subr.bf16.mxu0 %v3264
    %4276 = vmatpush1.bf16.msra.mxu0 %v3263
    %4277 = vmatprep.subr.bf16.mxu0 %v3268
    %4278 = vmatpush1.bf16.msra.mxu0 %v3267
    %4279 = vmatprep.subr.bf16.mxu0 %v3272
    %4280 = vmatpush1.bf16.msra.mxu0 %v3271
    %4281 = vmatprep.subr.bf16.mxu0 %v3276
    %4282 = vmatpush1.bf16.msra.mxu0 %v3275
    %4283 = vmatprep.subr.bf16.mxu0 %v3280
    %4284 = vmatpush1.bf16.msra.mxu0 %v3279
    %4285 = vmatprep.subr.bf16.mxu0 %v3284
    %4286 = vmatpush1.bf16.msra.mxu0 %v3283
    %4287 = vmatprep.subr.bf16.mxu0 %v3288
    %4288 = vmatpush1.bf16.msra.mxu0 %v3287
    %4289 = vmatprep.subr.bf16.mxu0 %v3292
    %4290 = vmatpush1.bf16.msra.mxu0 %v3291
    %4291 = vmatprep.subr.bf16.mxu0 %v3296
    %4292 = vmatpush1.bf16.msra.mxu0 %v3295
    %4293 = vmatprep.subr.bf16.mxu0 %v3300
    %4294 = vmatpush1.bf16.msra.mxu0 %v3299
    %4295 = vmatprep.mubr.bf16.mxu0 %v1176
    %4296 = vmatmul.mubr.bf16.gmra.mrb[0].mxu0 %v1175
    %v4297 = vpop.f32.mrb[0].mxu0
    %v4298 = vadd.f32 0.0, %v4297
    %v4299 = vpop.f32.mrb[0].mxu0
    %v4300 = vadd.f32 0.0, %v4299
    %v4301 = vpop.f32.mrb[0].mxu0
    %v4302 = vadd.f32 0.0, %v4301
    %v4303 = vpop.f32.mrb[0].mxu0
    %v4304 = vadd.f32 0.0, %v4303
    %4305 = vdwg.mxu0
    %4306 = vmatprep.subr.bf16.mxu0 %v3304
    %4307 = vmatpush1.bf16.msra.mxu0 %v3303
    %4308 = vmatprep.subr.bf16.mxu0 %v3308
    %4309 = vmatpush1.bf16.msra.mxu0 %v3307
    %4310 = vmatprep.subr.bf16.mxu0 %v3312
    %4311 = vmatpush1.bf16.msra.mxu0 %v3311
    %4312 = vmatprep.subr.bf16.mxu0 %v3316
    %4313 = vmatpush1.bf16.msra.mxu0 %v3315
    %4314 = vmatprep.subr.bf16.mxu0 %v3320
    %4315 = vmatpush1.bf16.msra.mxu0 %v3319
    %4316 = vmatprep.subr.bf16.mxu0 %v3324
    %4317 = vmatpush1.bf16.msra.mxu0 %v3323
    %4318 = vmatprep.subr.bf16.mxu0 %v3328
    %4319 = vmatpush1.bf16.msra.mxu0 %v3327
    %4320 = vmatprep.subr.bf16.mxu0 %v3332
    %4321 = vmatpush1.bf16.msra.mxu0 %v3331
    %4322 = vmatprep.subr.bf16.mxu0 %v3336
    %4323 = vmatpush1.bf16.msra.mxu0 %v3335
    %4324 = vmatprep.subr.bf16.mxu0 %v3340
    %4325 = vmatpush1.bf16.msra.mxu0 %v3339
    %4326 = vmatprep.subr.bf16.mxu0 %v3344
    %4327 = vmatpush1.bf16.msra.mxu0 %v3343
    %4328 = vmatprep.subr.bf16.mxu0 %v3348
    %4329 = vmatpush1.bf16.msra.mxu0 %v3347
    %4330 = vmatprep.subr.bf16.mxu0 %v3352
    %4331 = vmatpush1.bf16.msra.mxu0 %v3351
    %4332 = vmatprep.subr.bf16.mxu0 %v3356
    %4333 = vmatpush1.bf16.msra.mxu0 %v3355
    %4334 = vmatprep.subr.bf16.mxu0 %v3360
    %4335 = vmatpush1.bf16.msra.mxu0 %v3359
    %4336 = vmatprep.subr.bf16.mxu0 %v3364
    %4337 = vmatpush1.bf16.msra.mxu0 %v3363
    %4338 = vmatprep.mubr.bf16.mxu0 %v1178
    %4339 = vmatmul.mubr.bf16.gmra.mrb[0].mxu0 %v1177
    %v4340 = vpop.f32.mrb[0].mxu0
    %v4341 = vadd.f32 %v4298, %v4340
    %v4342 = vpop.f32.mrb[0].mxu0
    %v4343 = vadd.f32 %v4300, %v4342
    %v4344 = vpop.f32.mrb[0].mxu0
    %v4345 = vadd.f32 %v4302, %v4344
    %v4346 = vpop.f32.mrb[0].mxu0
    %v4347 = vadd.f32 %v4304, %v4346
    %4348 = vdwg.mxu0
    %4349 = vmatprep.subr.bf16.mxu0 %v3368
    %4350 = vmatpush1.bf16.msra.mxu0 %v3367
    %4351 = vmatprep.subr.bf16.mxu0 %v3372
    %4352 = vmatpush1.bf16.msra.mxu0 %v3371
    %4353 = vmatprep.subr.bf16.mxu0 %v3376
    %4354 = vmatpush1.bf16.msra.mxu0 %v3375
    %4355 = vmatprep.subr.bf16.mxu0 %v3380
    %4356 = vmatpush1.bf16.msra.mxu0 %v3379
    %4357 = vmatprep.subr.bf16.mxu0 %v3384
    %4358 = vmatpush1.bf16.msra.mxu0 %v3383
    %4359 = vmatprep.subr.bf16.mxu0 %v3388
    %4360 = vmatpush1.bf16.msra.mxu0 %v3387
    %4361 = vmatprep.subr.bf16.mxu0 %v3392
    %4362 = vmatpush1.bf16.msra.mxu0 %v3391
    %4363 = vmatprep.subr.bf16.mxu0 %v3396
    %4364 = vmatpush1.bf16.msra.mxu0 %v3395
    %4365 = vmatprep.subr.bf16.mxu0 %v3400
    %4366 = vmatpush1.bf16.msra.mxu0 %v3399
    %4367 = vmatprep.subr.bf16.mxu0 %v3404
    %4368 = vmatpush1.bf16.msra.mxu0 %v3403
    %4369 = vmatprep.subr.bf16.mxu0 %v3408
    %4370 = vmatpush1.bf16.msra.mxu0 %v3407
    %4371 = vmatprep.subr.bf16.mxu0 %v3412
    %4372 = vmatpush1.bf16.msra.mxu0 %v3411
    %4373 = vmatprep.subr.bf16.mxu0 %v3416
    %4374 = vmatpush1.bf16.msra.mxu0 %v3415
    %4375 = vmatprep.subr.bf16.mxu0 %v3420
    %4376 = vmatpush1.bf16.msra.mxu0 %v3419
    %4377 = vmatprep.subr.bf16.mxu0 %v3424
    %4378 = vmatpush1.bf16.msra.mxu0 %v3423
    %4379 = vmatprep.subr.bf16.mxu0 %v3428
    %4380 = vmatpush1.bf16.msra.mxu0 %v3427
    %4381 = vmatprep.mubr.bf16.mxu0 %v1180
    %4382 = vmatmul.mubr.bf16.gmra.mrb[0].mxu0 %v1179
    %v4383 = vpop.f32.mrb[0].mxu0
    %v4384 = vadd.f32 %v4341, %v4383
    %v4385 = vpop.f32.mrb[0].mxu0
    %v4386 = vadd.f32 %v4343, %v4385
    %v4387 = vpop.f32.mrb[0].mxu0
    %v4388 = vadd.f32 %v4345, %v4387
    %v4389 = vpop.f32.mrb[0].mxu0
    %v4390 = vadd.f32 %v4347, %v4389
    %4391 = vdwg.mxu0
    %4392 = vmatprep.subr.bf16.mxu0 %v3432
    %4393 = vmatpush1.bf16.msra.mxu0 %v3431
    %4394 = vmatprep.subr.bf16.mxu0 %v3436
    %4395 = vmatpush1.bf16.msra.mxu0 %v3435
    %4396 = vmatprep.subr.bf16.mxu0 %v3440
    %4397 = vmatpush1.bf16.msra.mxu0 %v3439
    %4398 = vmatprep.subr.bf16.mxu0 %v3444
    %4399 = vmatpush1.bf16.msra.mxu0 %v3443
    %4400 = vmatprep.subr.bf16.mxu0 %v3448
    %4401 = vmatpush1.bf16.msra.mxu0 %v3447
    %4402 = vmatprep.subr.bf16.mxu0 %v3452
    %4403 = vmatpush1.bf16.msra.mxu0 %v3451
    %4404 = vmatprep.subr.bf16.mxu0 %v3456
    %4405 = vmatpush1.bf16.msra.mxu0 %v3455
    %4406 = vmatprep.subr.bf16.mxu0 %v3460
    %4407 = vmatpush1.bf16.msra.mxu0 %v3459
    %4408 = vmatprep.subr.bf16.mxu0 %v3464
    %4409 = vmatpush1.bf16.msra.mxu0 %v3463
    %4410 = vmatprep.subr.bf16.mxu0 %v3468
    %4411 = vmatpush1.bf16.msra.mxu0 %v3467
    %4412 = vmatprep.subr.bf16.mxu0 %v3472
    %4413 = vmatpush1.bf16.msra.mxu0 %v3471
    %4414 = vmatprep.subr.bf16.mxu0 %v3476
    %4415 = vmatpush1.bf16.msra.mxu0 %v3475
    %4416 = vmatprep.subr.bf16.mxu0 %v3480
    %4417 = vmatpush1.bf16.msra.mxu0 %v3479
    %4418 = vmatprep.subr.bf16.mxu0 %v3484
    %4419 = vmatpush1.bf16.msra.mxu0 %v3483
    %4420 = vmatprep.subr.bf16.mxu0 %v3488
    %4421 = vmatpush1.bf16.msra.mxu0 %v3487
    %4422 = vmatprep.subr.bf16.mxu0 %v3492
    %4423 = vmatpush1.bf16.msra.mxu0 %v3491
    %4424 = vmatprep.mubr.bf16.mxu0 %v1182
    %4425 = vmatmul.mubr.bf16.gmra.mrb[0].mxu0 %v1181
    %v4426 = vpop.f32.mrb[0].mxu0
    %v4427 = vadd.f32 %v4384, %v4426
    %v4428 = vpop.f32.mrb[0].mxu0
    %v4429 = vadd.f32 %v4386, %v4428
    %v4430 = vpop.f32.mrb[0].mxu0
    %v4431 = vadd.f32 %v4388, %v4430
    %v4432 = vpop.f32.mrb[0].mxu0
    %v4433 = vadd.f32 %v4390, %v4432
    %4434 = vdwg.mxu0
    %4435 = vmatprep.subr.bf16.mxu0 %v3496
    %4436 = vmatpush1.bf16.msra.mxu0 %v3495
    %4437 = vmatprep.subr.bf16.mxu0 %v3500
    %4438 = vmatpush1.bf16.msra.mxu0 %v3499
    %4439 = vmatprep.subr.bf16.mxu0 %v3504
    %4440 = vmatpush1.bf16.msra.mxu0 %v3503
    %4441 = vmatprep.subr.bf16.mxu0 %v3508
    %4442 = vmatpush1.bf16.msra.mxu0 %v3507
    %4443 = vmatprep.subr.bf16.mxu0 %v3512
    %4444 = vmatpush1.bf16.msra.mxu0 %v3511
    %4445 = vmatprep.subr.bf16.mxu0 %v3516
    %4446 = vmatpush1.bf16.msra.mxu0 %v3515
    %4447 = vmatprep.subr.bf16.mxu0 %v3520
    %4448 = vmatpush1.bf16.msra.mxu0 %v3519
    %4449 = vmatprep.subr.bf16.mxu0 %v3524
    %4450 = vmatpush1.bf16.msra.mxu0 %v3523
    %4451 = vmatprep.subr.bf16.mxu0 %v3528
    %4452 = vmatpush1.bf16.msra.mxu0 %v3527
    %4453 = vmatprep.subr.bf16.mxu0 %v3532
    %4454 = vmatpush1.bf16.msra.mxu0 %v3531
    %4455 = vmatprep.subr.bf16.mxu0 %v3536
    %4456 = vmatpush1.bf16.msra.mxu0 %v3535
    %4457 = vmatprep.subr.bf16.mxu0 %v3540
    %4458 = vmatpush1.bf16.msra.mxu0 %v3539
    %4459 = vmatprep.subr.bf16.mxu0 %v3544
    %4460 = vmatpush1.bf16.msra.mxu0 %v3543
    %4461 = vmatprep.subr.bf16.mxu0 %v3548
    %4462 = vmatpush1.bf16.msra.mxu0 %v3547
    %4463 = vmatprep.subr.bf16.mxu0 %v3552
    %4464 = vmatpush1.bf16.msra.mxu0 %v3551
    %4465 = vmatprep.subr.bf16.mxu0 %v3556
    %4466 = vmatpush1.bf16.msra.mxu0 %v3555
    %4467 = vmatprep.mubr.bf16.mxu0 %v1184
    %4468 = vmatmul.mubr.bf16.gmra.mrb[0].mxu0 %v1183
    %v4469 = vpop.f32.mrb[0].mxu0
    %v4470 = vadd.f32 %v4427, %v4469
    %v4471 = vpop.f32.mrb[0].mxu0
    %v4472 = vadd.f32 %v4429, %v4471
    %v4473 = vpop.f32.mrb[0].mxu0
    %v4474 = vadd.f32 %v4431, %v4473
    %v4475 = vpop.f32.mrb[0].mxu0
    %v4476 = vadd.f32 %v4433, %v4475
    %4477 = vdwg.mxu0
    %4478 = vmatprep.subr.bf16.mxu0 %v3560
    %4479 = vmatpush1.bf16.msra.mxu0 %v3559
    %4480 = vmatprep.subr.bf16.mxu0 %v3564
    %4481 = vmatpush1.bf16.msra.mxu0 %v3563
    %4482 = vmatprep.subr.bf16.mxu0 %v3568
    %4483 = vmatpush1.bf16.msra.mxu0 %v3567
    %4484 = vmatprep.subr.bf16.mxu0 %v3572
    %4485 = vmatpush1.bf16.msra.mxu0 %v3571
    %4486 = vmatprep.subr.bf16.mxu0 %v3576
    %4487 = vmatpush1.bf16.msra.mxu0 %v3575
    %4488 = vmatprep.subr.bf16.mxu0 %v3580
    %4489 = vmatpush1.bf16.msra.mxu0 %v3579
    %4490 = vmatprep.subr.bf16.mxu0 %v3584
    %4491 = vmatpush1.bf16.msra.mxu0 %v3583
    %4492 = vmatprep.subr.bf16.mxu0 %v3588
    %4493 = vmatpush1.bf16.msra.mxu0 %v3587
    %4494 = vmatprep.subr.bf16.mxu0 %v3592
    %4495 = vmatpush1.bf16.msra.mxu0 %v3591
    %4496 = vmatprep.subr.bf16.mxu0 %v3596
    %4497 = vmatpush1.bf16.msra.mxu0 %v3595
    %4498 = vmatprep.subr.bf16.mxu0 %v3600
    %4499 = vmatpush1.bf16.msra.mxu0 %v3599
    %4500 = vmatprep.subr.bf16.mxu0 %v3604
    %4501 = vmatpush1.bf16.msra.mxu0 %v3603
    %4502 = vmatprep.subr.bf16.mxu0 %v3608
    %4503 = vmatpush1.bf16.msra.mxu0 %v3607
    %4504 = vmatprep.subr.bf16.mxu0 %v3612
    %4505 = vmatpush1.bf16.msra.mxu0 %v3611
    %4506 = vmatprep.subr.bf16.mxu0 %v3616
    %4507 = vmatpush1.bf16.msra.mxu0 %v3615
    %4508 = vmatprep.subr.bf16.mxu0 %v3620
    %4509 = vmatpush1.bf16.msra.mxu0 %v3619
    %4510 = vmatprep.mubr.bf16.mxu0 %v1186
    %4511 = vmatmul.mubr.bf16.gmra.mrb[0].mxu0 %v1185
    %v4512 = vpop.f32.mrb[0].mxu0
    %v4513 = vadd.f32 %v4470, %v4512
    %v4514 = vpop.f32.mrb[0].mxu0
    %v4515 = vadd.f32 %v4472, %v4514
    %v4516 = vpop.f32.mrb[0].mxu0
    %v4517 = vadd.f32 %v4474, %v4516
    %v4518 = vpop.f32.mrb[0].mxu0
    %v4519 = vadd.f32 %v4476, %v4518
    %4520 = vdwg.mxu0
    %4521 = vmatprep.subr.bf16.mxu0 %v3624
    %4522 = vmatpush1.bf16.msra.mxu0 %v3623
    %4523 = vmatprep.subr.bf16.mxu0 %v3628
    %4524 = vmatpush1.bf16.msra.mxu0 %v3627
    %4525 = vmatprep.subr.bf16.mxu0 %v3632
    %4526 = vmatpush1.bf16.msra.mxu0 %v3631
    %4527 = vmatprep.subr.bf16.mxu0 %v3636
    %4528 = vmatpush1.bf16.msra.mxu0 %v3635
    %4529 = vmatprep.subr.bf16.mxu0 %v3640
    %4530 = vmatpush1.bf16.msra.mxu0 %v3639
    %4531 = vmatprep.subr.bf16.mxu0 %v3644
    %4532 = vmatpush1.bf16.msra.mxu0 %v3643
    %4533 = vmatprep.subr.bf16.mxu0 %v3648
    %4534 = vmatpush1.bf16.msra.mxu0 %v3647
    %4535 = vmatprep.subr.bf16.mxu0 %v3652
    %4536 = vmatpush1.bf16.msra.mxu0 %v3651
    %4537 = vmatprep.subr.bf16.mxu0 %v3656
    %4538 = vmatpush1.bf16.msra.mxu0 %v3655
    %4539 = vmatprep.subr.bf16.mxu0 %v3660
    %4540 = vmatpush1.bf16.msra.mxu0 %v3659
    %4541 = vmatprep.subr.bf16.mxu0 %v3664
    %4542 = vmatpush1.bf16.msra.mxu0 %v3663
    %4543 = vmatprep.subr.bf16.mxu0 %v3668
    %4544 = vmatpush1.bf16.msra.mxu0 %v3667
    %4545 = vmatprep.subr.bf16.mxu0 %v3672
    %4546 = vmatpush1.bf16.msra.mxu0 %v3671
    %4547 = vmatprep.subr.bf16.mxu0 %v3676
    %4548 = vmatpush1.bf16.msra.mxu0 %v3675
    %4549 = vmatprep.subr.bf16.mxu0 %v3680
    %4550 = vmatpush1.bf16.msra.mxu0 %v3679
    %4551 = vmatprep.subr.bf16.mxu0 %v3684
    %4552 = vmatpush1.bf16.msra.mxu0 %v3683
    %4553 = vmatprep.mubr.bf16.mxu0 %v1188
    %4554 = vmatmul.mubr.bf16.gmra.mrb[0].mxu0 %v1187
    %v4555 = vpop.f32.mrb[0].mxu0
    %v4556 = vadd.f32 %v4513, %v4555
    %v4557 = vpop.f32.mrb[0].mxu0
    %v4558 = vadd.f32 %v4515, %v4557
    %v4559 = vpop.f32.mrb[0].mxu0
    %v4560 = vadd.f32 %v4517, %v4559
    %v4561 = vpop.f32.mrb[0].mxu0
    %v4562 = vadd.f32 %v4519, %v4561
    %4563 = vdwg.mxu0
    %4564 = vmatprep.subr.bf16.mxu0 %v3688
    %4565 = vmatpush1.bf16.msra.mxu0 %v3687
    %4566 = vmatprep.subr.bf16.mxu0 %v3692
    %4567 = vmatpush1.bf16.msra.mxu0 %v3691
    %4568 = vmatprep.subr.bf16.mxu0 %v3696
    %4569 = vmatpush1.bf16.msra.mxu0 %v3695
    %4570 = vmatprep.subr.bf16.mxu0 %v3700
    %4571 = vmatpush1.bf16.msra.mxu0 %v3699
    %4572 = vmatprep.subr.bf16.mxu0 %v3704
    %4573 = vmatpush1.bf16.msra.mxu0 %v3703
    %4574 = vmatprep.subr.bf16.mxu0 %v3708
    %4575 = vmatpush1.bf16.msra.mxu0 %v3707
    %4576 = vmatprep.subr.bf16.mxu0 %v3712
    %4577 = vmatpush1.bf16.msra.mxu0 %v3711
    %4578 = vmatprep.subr.bf16.mxu0 %v3716
    %4579 = vmatpush1.bf16.msra.mxu0 %v3715
    %4580 = vmatprep.subr.bf16.mxu0 %v3720
    %4581 = vmatpush1.bf16.msra.mxu0 %v3719
    %4582 = vmatprep.subr.bf16.mxu0 %v3724
    %4583 = vmatpush1.bf16.msra.mxu0 %v3723
    %4584 = vmatprep.subr.bf16.mxu0 %v3728
    %4585 = vmatpush1.bf16.msra.mxu0 %v3727
    %4586 = vmatprep.subr.bf16.mxu0 %v3732
    %4587 = vmatpush1.bf16.msra.mxu0 %v3731
    %4588 = vmatprep.subr.bf16.mxu0 %v3736
    %4589 = vmatpush1.bf16.msra.mxu0 %v3735
    %4590 = vmatprep.subr.bf16.mxu0 %v3740
    %4591 = vmatpush1.bf16.msra.mxu0 %v3739
    %4592 = vmatprep.subr.bf16.mxu0 %v3744
    %4593 = vmatpush1.bf16.msra.mxu0 %v3743
    %4594 = vmatprep.subr.bf16.mxu0 %v3748
    %4595 = vmatpush1.bf16.msra.mxu0 %v3747
    %4596 = vmatprep.mubr.bf16.mxu0 %v1190
    %4597 = vmatmul.mubr.bf16.gmra.mrb[0].mxu0 %v1189
    %v4598 = vpop.f32.mrb[0].mxu0
    %v4599 = vadd.f32 %v4556, %v4598
    %v4600 = vpop.f32.mrb[0].mxu0
    %v4601 = vadd.f32 %v4558, %v4600
    %v4602 = vpop.f32.mrb[0].mxu0
    %v4603 = vadd.f32 %v4560, %v4602
    %v4604 = vpop.f32.mrb[0].mxu0
    %v4605 = vadd.f32 %v4562, %v4604
    %4606 = vdwg.mxu0
    %4607 = vmatprep.subr.bf16.mxu0 %v3242
    %4608 = vmatpush1.bf16.msra.mxu0 %v3241
    %4609 = vmatprep.subr.bf16.mxu0 %v3246
    %4610 = vmatpush1.bf16.msra.mxu0 %v3245
    %4611 = vmatprep.subr.bf16.mxu0 %v3250
    %4612 = vmatpush1.bf16.msra.mxu0 %v3249
    %4613 = vmatprep.subr.bf16.mxu0 %v3254
    %4614 = vmatpush1.bf16.msra.mxu0 %v3253
    %4615 = vmatprep.subr.bf16.mxu0 %v3258
    %4616 = vmatpush1.bf16.msra.mxu0 %v3257
    %4617 = vmatprep.subr.bf16.mxu0 %v3262
    %4618 = vmatpush1.bf16.msra.mxu0 %v3261
    %4619 = vmatprep.subr.bf16.mxu0 %v3266
    %4620 = vmatpush1.bf16.msra.mxu0 %v3265
    %4621 = vmatprep.subr.bf16.mxu0 %v3270
    %4622 = vmatpush1.bf16.msra.mxu0 %v3269
    %4623 = vmatprep.subr.bf16.mxu0 %v3274
    %4624 = vmatpush1.bf16.msra.mxu0 %v3273
    %4625 = vmatprep.subr.bf16.mxu0 %v3278
    %4626 = vmatpush1.bf16.msra.mxu0 %v3277
    %4627 = vmatprep.subr.bf16.mxu0 %v3282
    %4628 = vmatpush1.bf16.msra.mxu0 %v3281
    %4629 = vmatprep.subr.bf16.mxu0 %v3286
    %4630 = vmatpush1.bf16.msra.mxu0 %v3285
    %4631 = vmatprep.subr.bf16.mxu0 %v3290
    %4632 = vmatpush1.bf16.msra.mxu0 %v3289
    %4633 = vmatprep.subr.bf16.mxu0 %v3294
    %4634 = vmatpush1.bf16.msra.mxu0 %v3293
    %4635 = vmatprep.subr.bf16.mxu0 %v3298
    %4636 = vmatpush1.bf16.msra.mxu0 %v3297
    %4637 = vmatprep.subr.bf16.mxu0 %v3302
    %4638 = vmatpush1.bf16.msra.mxu0 %v3301
    %4639 = vmatprep.mubr.bf16.mxu0 %v1176
    %4640 = vmatmul.mubr.bf16.gmra.mrb[0].mxu0 %v1175
    %v4641 = vpop.f32.mrb[0].mxu0
    %v4642 = vadd.f32 0.0, %v4641
    %v4643 = vpop.f32.mrb[0].mxu0
    %v4644 = vadd.f32 0.0, %v4643
    %v4645 = vpop.f32.mrb[0].mxu0
    %v4646 = vadd.f32 0.0, %v4645
    %v4647 = vpop.f32.mrb[0].mxu0
    %v4648 = vadd.f32 0.0, %v4647
    %4649 = vdwg.mxu0
    %4650 = vmatprep.subr.bf16.mxu0 %v3306
    %4651 = vmatpush1.bf16.msra.mxu0 %v3305
    %4652 = vmatprep.subr.bf16.mxu0 %v3310
    %4653 = vmatpush1.bf16.msra.mxu0 %v3309
    %4654 = vmatprep.subr.bf16.mxu0 %v3314
    %4655 = vmatpush1.bf16.msra.mxu0 %v3313
    %4656 = vmatprep.subr.bf16.mxu0 %v3318
    %4657 = vmatpush1.bf16.msra.mxu0 %v3317
    %4658 = vmatprep.subr.bf16.mxu0 %v3322
    %4659 = vmatpush1.bf16.msra.mxu0 %v3321
    %4660 = vmatprep.subr.bf16.mxu0 %v3326
    %4661 = vmatpush1.bf16.msra.mxu0 %v3325
    %4662 = vmatprep.subr.bf16.mxu0 %v3330
    %4663 = vmatpush1.bf16.msra.mxu0 %v3329
    %4664 = vmatprep.subr.bf16.mxu0 %v3334
    %4665 = vmatpush1.bf16.msra.mxu0 %v3333
    %4666 = vmatprep.subr.bf16.mxu0 %v3338
    %4667 = vmatpush1.bf16.msra.mxu0 %v3337
    %4668 = vmatprep.subr.bf16.mxu0 %v3342
    %4669 = vmatpush1.bf16.msra.mxu0 %v3341
    %4670 = vmatprep.subr.bf16.mxu0 %v3346
    %4671 = vmatpush1.bf16.msra.mxu0 %v3345
    %4672 = vmatprep.subr.bf16.mxu0 %v3350
    %4673 = vmatpush1.bf16.msra.mxu0 %v3349
    %4674 = vmatprep.subr.bf16.mxu0 %v3354
    %4675 = vmatpush1.bf16.msra.mxu0 %v3353
    %4676 = vmatprep.subr.bf16.mxu0 %v3358
    %4677 = vmatpush1.bf16.msra.mxu0 %v3357
    %4678 = vmatprep.subr.bf16.mxu0 %v3362
    %4679 = vmatpush1.bf16.msra.mxu0 %v3361
    %4680 = vmatprep.subr.bf16.mxu0 %v3366
    %4681 = vmatpush1.bf16.msra.mxu0 %v3365
    %4682 = vmatprep.mubr.bf16.mxu0 %v1178
    %4683 = vmatmul.mubr.bf16.gmra.mrb[0].mxu0 %v1177
    %v4684 = vpop.f32.mrb[0].mxu0
    %v4685 = vadd.f32 %v4642, %v4684
    %v4686 = vpop.f32.mrb[0].mxu0
    %v4687 = vadd.f32 %v4644, %v4686
    %v4688 = vpop.f32.mrb[0].mxu0
    %v4689 = vadd.f32 %v4646, %v4688
    %v4690 = vpop.f32.mrb[0].mxu0
    %v4691 = vadd.f32 %v4648, %v4690
    %4692 = vdwg.mxu0
    %4693 = vmatprep.subr.bf16.mxu0 %v3370
    %4694 = vmatpush1.bf16.msra.mxu0 %v3369
    %4695 = vmatprep.subr.bf16.mxu0 %v3374
    %4696 = vmatpush1.bf16.msra.mxu0 %v3373
    %4697 = vmatprep.subr.bf16.mxu0 %v3378
    %4698 = vmatpush1.bf16.msra.mxu0 %v3377
    %4699 = vmatprep.subr.bf16.mxu0 %v3382
    %4700 = vmatpush1.bf16.msra.mxu0 %v3381
    %4701 = vmatprep.subr.bf16.mxu0 %v3386
    %4702 = vmatpush1.bf16.msra.mxu0 %v3385
    %4703 = vmatprep.subr.bf16.mxu0 %v3390
    %4704 = vmatpush1.bf16.msra.mxu0 %v3389
    %4705 = vmatprep.subr.bf16.mxu0 %v3394
    %4706 = vmatpush1.bf16.msra.mxu0 %v3393
    %4707 = vmatprep.subr.bf16.mxu0 %v3398
    %4708 = vmatpush1.bf16.msra.mxu0 %v3397
    %4709 = vmatprep.subr.bf16.mxu0 %v3402
    %4710 = vmatpush1.bf16.msra.mxu0 %v3401
    %4711 = vmatprep.subr.bf16.mxu0 %v3406
    %4712 = vmatpush1.bf16.msra.mxu0 %v3405
    %4713 = vmatprep.subr.bf16.mxu0 %v3410
    %4714 = vmatpush1.bf16.msra.mxu0 %v3409
    %4715 = vmatprep.subr.bf16.mxu0 %v3414
    %4716 = vmatpush1.bf16.msra.mxu0 %v3413
    %4717 = vmatprep.subr.bf16.mxu0 %v3418
    %4718 = vmatpush1.bf16.msra.mxu0 %v3417
    %4719 = vmatprep.subr.bf16.mxu0 %v3422
    %4720 = vmatpush1.bf16.msra.mxu0 %v3421
    %4721 = vmatprep.subr.bf16.mxu0 %v3426
    %4722 = vmatpush1.bf16.msra.mxu0 %v3425
    %4723 = vmatprep.subr.bf16.mxu0 %v3430
    %4724 = vmatpush1.bf16.msra.mxu0 %v3429
    %4725 = vmatprep.mubr.bf16.mxu0 %v1180
    %4726 = vmatmul.mubr.bf16.gmra.mrb[0].mxu0 %v1179
    %v4727 = vpop.f32.mrb[0].mxu0
    %v4728 = vadd.f32 %v4685, %v4727
    %v4729 = vpop.f32.mrb[0].mxu0
    %v4730 = vadd.f32 %v4687, %v4729
    %v4731 = vpop.f32.mrb[0].mxu0
    %v4732 = vadd.f32 %v4689, %v4731
    %v4733 = vpop.f32.mrb[0].mxu0
    %v4734 = vadd.f32 %v4691, %v4733
    %4735 = vdwg.mxu0
    %4736 = vmatprep.subr.bf16.mxu0 %v3434
    %4737 = vmatpush1.bf16.msra.mxu0 %v3433
    %4738 = vmatprep.subr.bf16.mxu0 %v3438
    %4739 = vmatpush1.bf16.msra.mxu0 %v3437
    %4740 = vmatprep.subr.bf16.mxu0 %v3442
    %4741 = vmatpush1.bf16.msra.mxu0 %v3441
    %4742 = vmatprep.subr.bf16.mxu0 %v3446
    %4743 = vmatpush1.bf16.msra.mxu0 %v3445
    %4744 = vmatprep.subr.bf16.mxu0 %v3450
    %4745 = vmatpush1.bf16.msra.mxu0 %v3449
    %4746 = vmatprep.subr.bf16.mxu0 %v3454
    %4747 = vmatpush1.bf16.msra.mxu0 %v3453
    %4748 = vmatprep.subr.bf16.mxu0 %v3458
    %4749 = vmatpush1.bf16.msra.mxu0 %v3457
    %4750 = vmatprep.subr.bf16.mxu0 %v3462
    %4751 = vmatpush1.bf16.msra.mxu0 %v3461
    %4752 = vmatprep.subr.bf16.mxu0 %v3466
    %4753 = vmatpush1.bf16.msra.mxu0 %v3465
    %4754 = vmatprep.subr.bf16.mxu0 %v3470
    %4755 = vmatpush1.bf16.msra.mxu0 %v3469
    %4756 = vmatprep.subr.bf16.mxu0 %v3474
    %4757 = vmatpush1.bf16.msra.mxu0 %v3473
    %4758 = vmatprep.subr.bf16.mxu0 %v3478
    %4759 = vmatpush1.bf16.msra.mxu0 %v3477
    %4760 = vmatprep.subr.bf16.mxu0 %v3482
    %4761 = vmatpush1.bf16.msra.mxu0 %v3481
    %4762 = vmatprep.subr.bf16.mxu0 %v3486
    %4763 = vmatpush1.bf16.msra.mxu0 %v3485
    %4764 = vmatprep.subr.bf16.mxu0 %v3490
    %4765 = vmatpush1.bf16.msra.mxu0 %v3489
    %4766 = vmatprep.subr.bf16.mxu0 %v3494
    %4767 = vmatpush1.bf16.msra.mxu0 %v3493
    %4768 = vmatprep.mubr.bf16.mxu0 %v1182
    %4769 = vmatmul.mubr.bf16.gmra.mrb[0].mxu0 %v1181
    %v4770 = vpop.f32.mrb[0].mxu0
    %v4771 = vadd.f32 %v4728, %v4770
    %v4772 = vpop.f32.mrb[0].mxu0
    %v4773 = vadd.f32 %v4730, %v4772
    %v4774 = vpop.f32.mrb[0].mxu0
    %v4775 = vadd.f32 %v4732, %v4774
    %v4776 = vpop.f32.mrb[0].mxu0
    %v4777 = vadd.f32 %v4734, %v4776
    %4778 = vdwg.mxu0
    %4779 = vmatprep.subr.bf16.mxu0 %v3498
    %4780 = vmatpush1.bf16.msra.mxu0 %v3497
    %4781 = vmatprep.subr.bf16.mxu0 %v3502
    %4782 = vmatpush1.bf16.msra.mxu0 %v3501
    %4783 = vmatprep.subr.bf16.mxu0 %v3506
    %4784 = vmatpush1.bf16.msra.mxu0 %v3505
    %4785 = vmatprep.subr.bf16.mxu0 %v3510
    %4786 = vmatpush1.bf16.msra.mxu0 %v3509
    %4787 = vmatprep.subr.bf16.mxu0 %v3514
    %4788 = vmatpush1.bf16.msra.mxu0 %v3513
    %4789 = vmatprep.subr.bf16.mxu0 %v3518
    %4790 = vmatpush1.bf16.msra.mxu0 %v3517
    %4791 = vmatprep.subr.bf16.mxu0 %v3522
    %4792 = vmatpush1.bf16.msra.mxu0 %v3521
    %4793 = vmatprep.subr.bf16.mxu0 %v3526
    %4794 = vmatpush1.bf16.msra.mxu0 %v3525
    %4795 = vmatprep.subr.bf16.mxu0 %v3530
    %4796 = vmatpush1.bf16.msra.mxu0 %v3529
    %4797 = vmatprep.subr.bf16.mxu0 %v3534
    %4798 = vmatpush1.bf16.msra.mxu0 %v3533
    %4799 = vmatprep.subr.bf16.mxu0 %v3538
    %4800 = vmatpush1.bf16.msra.mxu0 %v3537
    %4801 = vmatprep.subr.bf16.mxu0 %v3542
    %4802 = vmatpush1.bf16.msra.mxu0 %v3541
    %4803 = vmatprep.subr.bf16.mxu0 %v3546
    %4804 = vmatpush1.bf16.msra.mxu0 %v3545
    %4805 = vmatprep.subr.bf16.mxu0 %v3550
    %4806 = vmatpush1.bf16.msra.mxu0 %v3549
    %4807 = vmatprep.subr.bf16.mxu0 %v3554
    %4808 = vmatpush1.bf16.msra.mxu0 %v3553
    %4809 = vmatprep.subr.bf16.mxu0 %v3558
    %4810 = vmatpush1.bf16.msra.mxu0 %v3557
    %4811 = vmatprep.mubr.bf16.mxu0 %v1184
    %4812 = vmatmul.mubr.bf16.gmra.mrb[0].mxu0 %v1183
    %v4813 = vpop.f32.mrb[0].mxu0
    %v4814 = vadd.f32 %v4771, %v4813
    %v4815 = vpop.f32.mrb[0].mxu0
    %v4816 = vadd.f32 %v4773, %v4815
    %v4817 = vpop.f32.mrb[0].mxu0
    %v4818 = vadd.f32 %v4775, %v4817
    %v4819 = vpop.f32.mrb[0].mxu0
    %v4820 = vadd.f32 %v4777, %v4819
    %4821 = vdwg.mxu0
    %4822 = vmatprep.subr.bf16.mxu0 %v3562
    %4823 = vmatpush1.bf16.msra.mxu0 %v3561
    %4824 = vmatprep.subr.bf16.mxu0 %v3566
    %4825 = vmatpush1.bf16.msra.mxu0 %v3565
    %4826 = vmatprep.subr.bf16.mxu0 %v3570
    %4827 = vmatpush1.bf16.msra.mxu0 %v3569
    %4828 = vmatprep.subr.bf16.mxu0 %v3574
    %4829 = vmatpush1.bf16.msra.mxu0 %v3573
    %4830 = vmatprep.subr.bf16.mxu0 %v3578
    %4831 = vmatpush1.bf16.msra.mxu0 %v3577
    %4832 = vmatprep.subr.bf16.mxu0 %v3582
    %4833 = vmatpush1.bf16.msra.mxu0 %v3581
    %4834 = vmatprep.subr.bf16.mxu0 %v3586
    %4835 = vmatpush1.bf16.msra.mxu0 %v3585
    %4836 = vmatprep.subr.bf16.mxu0 %v3590
    %4837 = vmatpush1.bf16.msra.mxu0 %v3589
    %4838 = vmatprep.subr.bf16.mxu0 %v3594
    %4839 = vmatpush1.bf16.msra.mxu0 %v3593
    %4840 = vmatprep.subr.bf16.mxu0 %v3598
    %4841 = vmatpush1.bf16.msra.mxu0 %v3597
    %4842 = vmatprep.subr.bf16.mxu0 %v3602
    %4843 = vmatpush1.bf16.msra.mxu0 %v3601
    %4844 = vmatprep.subr.bf16.mxu0 %v3606
    %4845 = vmatpush1.bf16.msra.mxu0 %v3605
    %4846 = vmatprep.subr.bf16.mxu0 %v3610
    %4847 = vmatpush1.bf16.msra.mxu0 %v3609
    %4848 = vmatprep.subr.bf16.mxu0 %v3614
    %4849 = vmatpush1.bf16.msra.mxu0 %v3613
    %4850 = vmatprep.subr.bf16.mxu0 %v3618
    %4851 = vmatpush1.bf16.msra.mxu0 %v3617
    %4852 = vmatprep.subr.bf16.mxu0 %v3622
    %4853 = vmatpush1.bf16.msra.mxu0 %v3621
    %4854 = vmatprep.mubr.bf16.mxu0 %v1186
    %4855 = vmatmul.mubr.bf16.gmra.mrb[0].mxu0 %v1185
    %v4856 = vpop.f32.mrb[0].mxu0
    %v4857 = vadd.f32 %v4814, %v4856
    %v4858 = vpop.f32.mrb[0].mxu0
    %v4859 = vadd.f32 %v4816, %v4858
    %v4860 = vpop.f32.mrb[0].mxu0
    %v4861 = vadd.f32 %v4818, %v4860
    %v4862 = vpop.f32.mrb[0].mxu0
    %v4863 = vadd.f32 %v4820, %v4862
    %4864 = vdwg.mxu0
    %4865 = vmatprep.subr.bf16.mxu0 %v3626
    %4866 = vmatpush1.bf16.msra.mxu0 %v3625
    %4867 = vmatprep.subr.bf16.mxu0 %v3630
    %4868 = vmatpush1.bf16.msra.mxu0 %v3629
    %4869 = vmatprep.subr.bf16.mxu0 %v3634
    %4870 = vmatpush1.bf16.msra.mxu0 %v3633
    %4871 = vmatprep.subr.bf16.mxu0 %v3638
    %4872 = vmatpush1.bf16.msra.mxu0 %v3637
    %4873 = vmatprep.subr.bf16.mxu0 %v3642
    %4874 = vmatpush1.bf16.msra.mxu0 %v3641
    %4875 = vmatprep.subr.bf16.mxu0 %v3646
    %4876 = vmatpush1.bf16.msra.mxu0 %v3645
    %4877 = vmatprep.subr.bf16.mxu0 %v3650
    %4878 = vmatpush1.bf16.msra.mxu0 %v3649
    %4879 = vmatprep.subr.bf16.mxu0 %v3654
    %4880 = vmatpush1.bf16.msra.mxu0 %v3653
    %4881 = vmatprep.subr.bf16.mxu0 %v3658
    %4882 = vmatpush1.bf16.msra.mxu0 %v3657
    %4883 = vmatprep.subr.bf16.mxu0 %v3662
    %4884 = vmatpush1.bf16.msra.mxu0 %v3661
    %4885 = vmatprep.subr.bf16.mxu0 %v3666
    %4886 = vmatpush1.bf16.msra.mxu0 %v3665
    %4887 = vmatprep.subr.bf16.mxu0 %v3670
    %4888 = vmatpush1.bf16.msra.mxu0 %v3669
    %4889 = vmatprep.subr.bf16.mxu0 %v3674
    %4890 = vmatpush1.bf16.msra.mxu0 %v3673
    %4891 = vmatprep.subr.bf16.mxu0 %v3678
    %4892 = vmatpush1.bf16.msra.mxu0 %v3677
    %4893 = vmatprep.subr.bf16.mxu0 %v3682
    %4894 = vmatpush1.bf16.msra.mxu0 %v3681
    %4895 = vmatprep.subr.bf16.mxu0 %v3686
    %4896 = vmatpush1.bf16.msra.mxu0 %v3685
    %4897 = vmatprep.mubr.bf16.mxu0 %v1188
    %4898 = vmatmul.mubr.bf16.gmra.mrb[0].mxu0 %v1187
    %v4899 = vpop.f32.mrb[0].mxu0
    %v4900 = vadd.f32 %v4857, %v4899
    %v4901 = vpop.f32.mrb[0].mxu0
    %v4902 = vadd.f32 %v4859, %v4901
    %v4903 = vpop.f32.mrb[0].mxu0
    %v4904 = vadd.f32 %v4861, %v4903
    %v4905 = vpop.f32.mrb[0].mxu0
    %v4906 = vadd.f32 %v4863, %v4905
    %4907 = vdwg.mxu0
    %4908 = vmatprep.subr.bf16.mxu0 %v3690
    %4909 = vmatpush1.bf16.msra.mxu0 %v3689
    %4910 = vmatprep.subr.bf16.mxu0 %v3694
    %4911 = vmatpush1.bf16.msra.mxu0 %v3693
    %4912 = vmatprep.subr.bf16.mxu0 %v3698
    %4913 = vmatpush1.bf16.msra.mxu0 %v3697
    %4914 = vmatprep.subr.bf16.mxu0 %v3702
    %4915 = vmatpush1.bf16.msra.mxu0 %v3701
    %4916 = vmatprep.subr.bf16.mxu0 %v3706
    %4917 = vmatpush1.bf16.msra.mxu0 %v3705
    %4918 = vmatprep.subr.bf16.mxu0 %v3710
    %4919 = vmatpush1.bf16.msra.mxu0 %v3709
    %4920 = vmatprep.subr.bf16.mxu0 %v3714
    %4921 = vmatpush1.bf16.msra.mxu0 %v3713
    %4922 = vmatprep.subr.bf16.mxu0 %v3718
    %4923 = vmatpush1.bf16.msra.mxu0 %v3717
    %4924 = vmatprep.subr.bf16.mxu0 %v3722
    %4925 = vmatpush1.bf16.msra.mxu0 %v3721
    %4926 = vmatprep.subr.bf16.mxu0 %v3726
    %4927 = vmatpush1.bf16.msra.mxu0 %v3725
    %4928 = vmatprep.subr.bf16.mxu0 %v3730
    %4929 = vmatpush1.bf16.msra.mxu0 %v3729
    %4930 = vmatprep.subr.bf16.mxu0 %v3734
    %4931 = vmatpush1.bf16.msra.mxu0 %v3733
    %4932 = vmatprep.subr.bf16.mxu0 %v3738
    %4933 = vmatpush1.bf16.msra.mxu0 %v3737
    %4934 = vmatprep.subr.bf16.mxu0 %v3742
    %4935 = vmatpush1.bf16.msra.mxu0 %v3741
    %4936 = vmatprep.subr.bf16.mxu0 %v3746
    %4937 = vmatpush1.bf16.msra.mxu0 %v3745
    %4938 = vmatprep.subr.bf16.mxu0 %v3750
    %4939 = vmatpush1.bf16.msra.mxu0 %v3749
    %4940 = vmatprep.mubr.bf16.mxu0 %v1190
    %4941 = vmatmul.mubr.bf16.gmra.mrb[0].mxu0 %v1189
    %v4942 = vpop.f32.mrb[0].mxu0
    %v4943 = vadd.f32 %v4900, %v4942
    %v4944 = vpop.f32.mrb[0].mxu0
    %v4945 = vadd.f32 %v4902, %v4944
    %v4946 = vpop.f32.mrb[0].mxu0
    %v4947 = vadd.f32 %v4904, %v4946
    %v4948 = vpop.f32.mrb[0].mxu0
    %v4949 = vadd.f32 %v4906, %v4948
    %4950 = vdwg.mxu0
    %v4951 = vpack.c.bf16 %v4603, %v4599
    %v4952 = vpack.c.bf16 %v4605, %v4601
    %v4953 = vpack.c.bf16 %v4947, %v4943
    %v4954 = vpack.c.bf16 %v4949, %v4945
    %v4955 = vld [vmem:[#allocation10] sm:$0xf]
    %v4957 = vlaneseq
    %v4958 = vshrl.u32 %v4957, 7
    %v4959 = vsub.s32 0, %v4958
    %v4960 = vrot.slane %v4955, %v4959
    %v4961 = vlaneseq
    %v4962 = vshrl.u32 %v4961, 7
    %v4963 = vsub.s32 1, %v4962
    %v4964 = vrot.slane %v4955, %v4963
    %v4965 = vlaneseq
    %v4966 = vshrl.u32 %v4965, 7
    %v4967 = vsub.s32 2, %v4966
    %v4968 = vrot.slane %v4955, %v4967
    %v4969 = vlaneseq
    %v4970 = vshrl.u32 %v4969, 7
    %v4971 = vsub.s32 3, %v4970
    %v4972 = vrot.slane %v4955, %v4971
    %v4977 = vpack.c.bf16 %v4960, %v4960
    %v4978 = vpack.c.bf16 %v4964, %v4964
    %v4979 = vpack.c.bf16 %v4968, %v4968
    %v4980 = vpack.c.bf16 %v4972, %v4972
    %v4982 = vpack.i.b16 %v4977, %v4977
    %v4984 = vlaneseq
    %v4985 = vshrl.u32 %v4984, 7
    %v4986 = vsub.s32 0, %v4985
    %v4987 = vrot.slane %v4982, %v4986
    %v4989 = vpack.i.b16 %v4978, %v4978
    %v4991 = vlaneseq
    %v4992 = vshrl.u32 %v4991, 7
    %v4993 = vsub.s32 0, %v4992
    %v4994 = vrot.slane %v4989, %v4993
    %v4996 = vpack.i.b16 %v4979, %v4979
    %v4998 = vlaneseq
    %v4999 = vshrl.u32 %v4998, 7
    %v5000 = vsub.s32 0, %v4999
    %v5001 = vrot.slane %v4996, %v5000
    %v5003 = vpack.i.b16 %v4980, %v4980
    %v5005 = vlaneseq
    %v5006 = vshrl.u32 %v5005, 7
    %v5007 = vsub.s32 0, %v5006
    %v5008 = vrot.slane %v5003, %v5007
    %v5009 = vadd.bf16 %v4951, %v4987
    %v5010 = vadd.bf16 %v4952, %v4994
    %v5011 = vadd.bf16 %v4953, %v5001
    %v5012 = vadd.bf16 %v4954, %v5008
    %v5013 = vmul.bf16 %v5009, 1036860877
    %v5014 = vmul.bf16 %v5010, 1036860877
    %v5015 = vmul.bf16 %v5011, 1036860877
    %v5016 = vmul.bf16 %v5012, 1036860877
    %v5017 = vmax.bf16 %v5009, %v5013
    %v5018 = vmax.bf16 %v5010, %v5014
    %v5019 = vmax.bf16 %v5011, %v5015
    %v5020 = vmax.bf16 %v5012, %v5016
    %v5021 = vld [vmem:[#allocation11] sm:$0xf]
    %v5022 = vld [vmem:[#allocation11 + $0x4] sm:$0xf]
    %v5023 = vld [vmem:[#allocation11 + $0x8] sm:$0xf]
    %v5024 = vld [vmem:[#allocation11 + $0xc] sm:$0xf]
    %v5025 = vld [vmem:[#allocation11 + $0x10] sm:$0xf]
    %v5026 = vld [vmem:[#allocation11 + $0x14] sm:$0xf]
    %v5027 = vld [vmem:[#allocation11 + $0x18] sm:$0xf]
    %v5028 = vld [vmem:[#allocation11 + $0x1c] sm:$0xf]
    %v5029 = vld [vmem:[#allocation11 + $0x20] sm:$0xf]
    %v5030 = vld [vmem:[#allocation11 + $0x24] sm:$0xf]
    %v5031 = vld [vmem:[#allocation11 + $0x28] sm:$0xf]
    %v5032 = vld [vmem:[#allocation11 + $0x2c] sm:$0xf]
    %v5033 = vld [vmem:[#allocation11 + $0x30] sm:$0xf]
    %v5034 = vld [vmem:[#allocation11 + $0x34] sm:$0xf]
    %v5035 = vld [vmem:[#allocation11 + $0x38] sm:$0xf]
    %v5036 = vld [vmem:[#allocation11 + $0x3c] sm:$0xf]
    %v5037 = vld [vmem:[#allocation11 + $0x40] sm:$0xf]
    %v5038 = vld [vmem:[#allocation11 + $0x44] sm:$0xf]
    %v5039 = vld [vmem:[#allocation11 + $0x48] sm:$0xf]
    %v5040 = vld [vmem:[#allocation11 + $0x4c] sm:$0xf]
    %v5041 = vld [vmem:[#allocation11 + $0x50] sm:$0xf]
    %v5042 = vld [vmem:[#allocation11 + $0x54] sm:$0xf]
    %v5043 = vld [vmem:[#allocation11 + $0x58] sm:$0xf]
    %v5044 = vld [vmem:[#allocation11 + $0x5c] sm:$0xf]
    %v5045 = vld [vmem:[#allocation11 + $0x60] sm:$0xf]
    %v5046 = vld [vmem:[#allocation11 + $0x64] sm:$0xf]
    %v5047 = vld [vmem:[#allocation11 + $0x68] sm:$0xf]
    %v5048 = vld [vmem:[#allocation11 + $0x6c] sm:$0xf]
    %v5049 = vld [vmem:[#allocation11 + $0x70] sm:$0xf]
    %v5050 = vld [vmem:[#allocation11 + $0x74] sm:$0xf]
    %v5051 = vld [vmem:[#allocation11 + $0x78] sm:$0xf]
    %v5052 = vld [vmem:[#allocation11 + $0x7c] sm:$0xf]
    %v5053 = vld [vmem:[#allocation11 + $0x80] sm:$0xf]
    %v5054 = vld [vmem:[#allocation11 + $0x84] sm:$0xf]
    %v5055 = vld [vmem:[#allocation11 + $0x88] sm:$0xf]
    %v5056 = vld [vmem:[#allocation11 + $0x8c] sm:$0xf]
    %v5057 = vld [vmem:[#allocation11 + $0x90] sm:$0xf]
    %v5058 = vld [vmem:[#allocation11 + $0x94] sm:$0xf]
    %v5059 = vld [vmem:[#allocation11 + $0x98] sm:$0xf]
    %v5060 = vld [vmem:[#allocation11 + $0x9c] sm:$0xf]
    %v5061 = vld [vmem:[#allocation11 + $0xa0] sm:$0xf]
    %v5062 = vld [vmem:[#allocation11 + $0xa4] sm:$0xf]
    %v5063 = vld [vmem:[#allocation11 + $0xa8] sm:$0xf]
    %v5064 = vld [vmem:[#allocation11 + $0xac] sm:$0xf]
    %v5065 = vld [vmem:[#allocation11 + $0xb0] sm:$0xf]
    %v5066 = vld [vmem:[#allocation11 + $0xb4] sm:$0xf]
    %v5067 = vld [vmem:[#allocation11 + $0xb8] sm:$0xf]
    %v5068 = vld [vmem:[#allocation11 + $0xbc] sm:$0xf]
    %v5069 = vld [vmem:[#allocation11 + $0xc0] sm:$0xf]
    %v5070 = vld [vmem:[#allocation11 + $0xc4] sm:$0xf]
    %v5071 = vld [vmem:[#allocation11 + $0xc8] sm:$0xf]
    %v5072 = vld [vmem:[#allocation11 + $0xcc] sm:$0xf]
    %v5073 = vld [vmem:[#allocation11 + $0xd0] sm:$0xf]
    %v5074 = vld [vmem:[#allocation11 + $0xd4] sm:$0xf]
    %v5075 = vld [vmem:[#allocation11 + $0xd8] sm:$0xf]
    %v5076 = vld [vmem:[#allocation11 + $0xdc] sm:$0xf]
    %v5077 = vld [vmem:[#allocation11 + $0xe0] sm:$0xf]
    %v5078 = vld [vmem:[#allocation11 + $0xe4] sm:$0xf]
    %v5079 = vld [vmem:[#allocation11 + $0xe8] sm:$0xf]
    %v5080 = vld [vmem:[#allocation11 + $0xec] sm:$0xf]
    %v5081 = vld [vmem:[#allocation11 + $0xf0] sm:$0xf]
    %v5082 = vld [vmem:[#allocation11 + $0xf4] sm:$0xf]
    %v5083 = vld [vmem:[#allocation11 + $0xf8] sm:$0xf]
    %v5084 = vld [vmem:[#allocation11 + $0xfc] sm:$0xf]
    %v5149 = vunpack.c.l.b16 %v5021
    %v5150 = vunpack.c.l.b16 %v5022
    %v5151 = vunpack.c.l.b16 %v5023
    %v5152 = vunpack.c.l.b16 %v5024
    %v5153 = vunpack.c.l.b16 %v5025
    %v5154 = vunpack.c.l.b16 %v5026
    %v5155 = vunpack.c.l.b16 %v5027
    %v5156 = vunpack.c.l.b16 %v5028
    %v5157 = vunpack.c.l.b16 %v5029
    %v5158 = vunpack.c.l.b16 %v5030
    %v5159 = vunpack.c.l.b16 %v5031
    %v5160 = vunpack.c.l.b16 %v5032
    %v5161 = vunpack.c.l.b16 %v5033
    %v5162 = vunpack.c.l.b16 %v5034
    %v5163 = vunpack.c.l.b16 %v5035
    %v5164 = vunpack.c.l.b16 %v5036
    %v5165 = vunpack.c.l.b16 %v5037
    %v5166 = vunpack.c.l.b16 %v5038
    %v5167 = vunpack.c.l.b16 %v5039
    %v5168 = vunpack.c.l.b16 %v5040
    %v5169 = vunpack.c.l.b16 %v5041
    %v5170 = vunpack.c.l.b16 %v5042
    %v5171 = vunpack.c.l.b16 %v5043
    %v5172 = vunpack.c.l.b16 %v5044
    %v5173 = vunpack.c.l.b16 %v5045
    %v5174 = vunpack.c.l.b16 %v5046
    %v5175 = vunpack.c.l.b16 %v5047
    %v5176 = vunpack.c.l.b16 %v5048
    %v5177 = vunpack.c.l.b16 %v5049
    %v5178 = vunpack.c.l.b16 %v5050
    %v5179 = vunpack.c.l.b16 %v5051
    %v5180 = vunpack.c.l.b16 %v5052
    %v5181 = vunpack.c.l.b16 %v5053
    %v5182 = vunpack.c.l.b16 %v5054
    %v5183 = vunpack.c.l.b16 %v5055
    %v5184 = vunpack.c.l.b16 %v5056
    %v5185 = vunpack.c.l.b16 %v5057
    %v5186 = vunpack.c.l.b16 %v5058
    %v5187 = vunpack.c.l.b16 %v5059
    %v5188 = vunpack.c.l.b16 %v5060
    %v5189 = vunpack.c.l.b16 %v5061
    %v5190 = vunpack.c.l.b16 %v5062
    %v5191 = vunpack.c.l.b16 %v5063
    %v5192 = vunpack.c.l.b16 %v5064
    %v5193 = vunpack.c.l.b16 %v5065
    %v5194 = vunpack.c.l.b16 %v5066
    %v5195 = vunpack.c.l.b16 %v5067
    %v5196 = vunpack.c.l.b16 %v5068
    %v5197 = vunpack.c.l.b16 %v5069
    %v5198 = vunpack.c.l.b16 %v5070
    %v5199 = vunpack.c.l.b16 %v5071
    %v5200 = vunpack.c.l.b16 %v5072
    %v5201 = vunpack.c.l.b16 %v5073
    %v5202 = vunpack.c.l.b16 %v5074
    %v5203 = vunpack.c.l.b16 %v5075
    %v5204 = vunpack.c.l.b16 %v5076
    %v5205 = vunpack.c.l.b16 %v5077
    %v5206 = vunpack.c.l.b16 %v5078
    %v5207 = vunpack.c.l.b16 %v5079
    %v5208 = vunpack.c.l.b16 %v5080
    %v5209 = vunpack.c.l.b16 %v5081
    %v5210 = vunpack.c.l.b16 %v5082
    %v5211 = vunpack.c.l.b16 %v5083
    %v5212 = vunpack.c.l.b16 %v5084
    %v5213 = vpack.c.b16 %v5150, %v5149
    %v5214 = vpack.c.b16 %v5152, %v5151
    %v5215 = vpack.c.b16 %v5154, %v5153
    %v5216 = vpack.c.b16 %v5156, %v5155
    %v5217 = vpack.c.b16 %v5158, %v5157
    %v5218 = vpack.c.b16 %v5160, %v5159
    %v5219 = vpack.c.b16 %v5162, %v5161
    %v5220 = vpack.c.b16 %v5164, %v5163
    %v5221 = vpack.c.b16 %v5166, %v5165
    %v5222 = vpack.c.b16 %v5168, %v5167
    %v5223 = vpack.c.b16 %v5170, %v5169
    %v5224 = vpack.c.b16 %v5172, %v5171
    %v5225 = vpack.c.b16 %v5174, %v5173
    %v5226 = vpack.c.b16 %v5176, %v5175
    %v5227 = vpack.c.b16 %v5178, %v5177
    %v5228 = vpack.c.b16 %v5180, %v5179
    %v5229 = vpack.c.b16 %v5182, %v5181
    %v5230 = vpack.c.b16 %v5184, %v5183
    %v5231 = vpack.c.b16 %v5186, %v5185
    %v5232 = vpack.c.b16 %v5188, %v5187
    %v5233 = vpack.c.b16 %v5190, %v5189
    %v5234 = vpack.c.b16 %v5192, %v5191
    %v5235 = vpack.c.b16 %v5194, %v5193
    %v5236 = vpack.c.b16 %v5196, %v5195
    %v5237 = vpack.c.b16 %v5198, %v5197
    %v5238 = vpack.c.b16 %v5200, %v5199
    %v5239 = vpack.c.b16 %v5202, %v5201
    %v5240 = vpack.c.b16 %v5204, %v5203
    %v5241 = vpack.c.b16 %v5206, %v5205
    %v5242 = vpack.c.b16 %v5208, %v5207
    %v5243 = vpack.c.b16 %v5210, %v5209
    %v5244 = vpack.c.b16 %v5212, %v5211
    %5277 = vmatprep.subr.bf16.mxu0 0
    %5278 = vmatpush1.bf16.msra.mxu0 %v5213
    %5279 = vmatprep.subr.bf16.mxu0 0
    %5280 = vmatpush1.bf16.msra.mxu0 %v5214
    %5281 = vmatprep.subr.bf16.mxu0 0
    %5282 = vmatpush1.bf16.msra.mxu0 %v5215
    %5283 = vmatprep.subr.bf16.mxu0 0
    %5284 = vmatpush1.bf16.msra.mxu0 %v5216
    %5285 = vmatprep.subr.bf16.mxu0 0
    %5286 = vmatpush1.bf16.msra.mxu0 %v5217
    %5287 = vmatprep.subr.bf16.mxu0 0
    %5288 = vmatpush1.bf16.msra.mxu0 %v5218
    %5289 = vmatprep.subr.bf16.mxu0 0
    %5290 = vmatpush1.bf16.msra.mxu0 %v5219
    %5291 = vmatprep.subr.bf16.mxu0 0
    %5292 = vmatpush1.bf16.msra.mxu0 %v5220
    %5293 = vmatprep.subr.bf16.mxu0 0
    %5294 = vmatpush1.bf16.msra.mxu0 %v5221
    %5295 = vmatprep.subr.bf16.mxu0 0
    %5296 = vmatpush1.bf16.msra.mxu0 %v5222
    %5297 = vmatprep.subr.bf16.mxu0 0
    %5298 = vmatpush1.bf16.msra.mxu0 %v5223
    %5299 = vmatprep.subr.bf16.mxu0 0
    %5300 = vmatpush1.bf16.msra.mxu0 %v5224
    %5301 = vmatprep.subr.bf16.mxu0 0
    %5302 = vmatpush1.bf16.msra.mxu0 %v5225
    %5303 = vmatprep.subr.bf16.mxu0 0
    %5304 = vmatpush1.bf16.msra.mxu0 %v5226
    %5305 = vmatprep.subr.bf16.mxu0 0
    %5306 = vmatpush1.bf16.msra.mxu0 %v5227
    %5307 = vmatprep.subr.bf16.mxu0 0
    %5308 = vmatpush1.bf16.msra.mxu0 %v5228
    %5309 = vmatprep.mubr.bf16.mxu0 %v5018
    %5310 = vmatmul.mubr.bf16.gmra.mrb[0].mxu0 %v5017
    %v5311 = vpop.f32.mrb[0].mxu0
    %v5312 = vadd.f32 0.0, %v5311
    %v5313 = vpop.f32.mrb[0].mxu0
    %v5314 = vpop.f32.mrb[0].mxu0
    %v5315 = vadd.f32 0.0, %v5314
    %v5316 = vpop.f32.mrb[0].mxu0
    %5317 = vdwg.mxu0
    %5318 = vmatprep.subr.bf16.mxu0 0
    %5319 = vmatpush1.bf16.msra.mxu0 %v5229
    %5320 = vmatprep.subr.bf16.mxu0 0
    %5321 = vmatpush1.bf16.msra.mxu0 %v5230
    %5322 = vmatprep.subr.bf16.mxu0 0
    %5323 = vmatpush1.bf16.msra.mxu0 %v5231
    %5324 = vmatprep.subr.bf16.mxu0 0
    %5325 = vmatpush1.bf16.msra.mxu0 %v5232
    %5326 = vmatprep.subr.bf16.mxu0 0
    %5327 = vmatpush1.bf16.msra.mxu0 %v5233
    %5328 = vmatprep.subr.bf16.mxu0 0
    %5329 = vmatpush1.bf16.msra.mxu0 %v5234
    %5330 = vmatprep.subr.bf16.mxu0 0
    %5331 = vmatpush1.bf16.msra.mxu0 %v5235
    %5332 = vmatprep.subr.bf16.mxu0 0
    %5333 = vmatpush1.bf16.msra.mxu0 %v5236
    %5334 = vmatprep.subr.bf16.mxu0 0
    %5335 = vmatpush1.bf16.msra.mxu0 %v5237
    %5336 = vmatprep.subr.bf16.mxu0 0
    %5337 = vmatpush1.bf16.msra.mxu0 %v5238
    %5338 = vmatprep.subr.bf16.mxu0 0
    %5339 = vmatpush1.bf16.msra.mxu0 %v5239
    %5340 = vmatprep.subr.bf16.mxu0 0
    %5341 = vmatpush1.bf16.msra.mxu0 %v5240
    %5342 = vmatprep.subr.bf16.mxu0 0
    %5343 = vmatpush1.bf16.msra.mxu0 %v5241
    %5344 = vmatprep.subr.bf16.mxu0 0
    %5345 = vmatpush1.bf16.msra.mxu0 %v5242
    %5346 = vmatprep.subr.bf16.mxu0 0
    %5347 = vmatpush1.bf16.msra.mxu0 %v5243
    %5348 = vmatprep.subr.bf16.mxu0 0
    %5349 = vmatpush1.bf16.msra.mxu0 %v5244
    %5350 = vmatprep.mubr.bf16.mxu0 %v5020
    %5351 = vmatmul.mubr.bf16.gmra.mrb[0].mxu0 %v5019
    %v5352 = vpop.f32.mrb[0].mxu0
    %v5353 = vadd.f32 %v5312, %v5352
    %v5354 = vpop.f32.mrb[0].mxu0
    %v5355 = vpop.f32.mrb[0].mxu0
    %v5356 = vadd.f32 %v5315, %v5355
    %v5357 = vpop.f32.mrb[0].mxu0
    %5358 = vdwg.mxu0
    %v5359 = vpack.c.bf16 %v5356, %v5353
    %v5360 = vld [vmem:[#allocation13] sm:$0x1]
    %v5361 = vpack.c.bf16 %v5360, %v5360
    %v5363 = vpack.i.b16 %v5361, %v5361
    %v5365 = vlaneseq
    %v5366 = vshrl.u32 %v5365, 7
    %v5367 = vsub.s32 0, %v5366
    %v5368 = vrot.slane %v5363, %v5367
    %v5369 = vadd.bf16 %v5359, %v5368
    %v5370 = vmul.bf16 %v5369, 1036860877
    %v5371 = vmax.bf16 %v5369, %v5370
    %v5372 = vld [vmem:[#allocation14] sm:$0xf]
    %v5373 = vld [vmem:[#allocation14 + $0x4] sm:$0xf]
    %v5374 = vld [vmem:[#allocation14 + $0x8] sm:$0xf]
    %v5375 = vld [vmem:[#allocation14 + $0xc] sm:$0xf]
    %v5376 = vld [vmem:[#allocation14 + $0x10] sm:$0xf]
    %v5377 = vld [vmem:[#allocation14 + $0x14] sm:$0xf]
    %v5378 = vld [vmem:[#allocation14 + $0x18] sm:$0xf]
    %v5379 = vld [vmem:[#allocation14 + $0x1c] sm:$0xf]
    %v5380 = vld [vmem:[#allocation14 + $0x20] sm:$0xf]
    %v5381 = vld [vmem:[#allocation14 + $0x24] sm:$0xf]
    %v5382 = vld [vmem:[#allocation14 + $0x28] sm:$0xf]
    %v5383 = vld [vmem:[#allocation14 + $0x2c] sm:$0xf]
    %v5384 = vld [vmem:[#allocation14 + $0x30] sm:$0xf]
    %v5385 = vld [vmem:[#allocation14 + $0x34] sm:$0xf]
    %v5386 = vld [vmem:[#allocation14 + $0x38] sm:$0xf]
    %v5387 = vld [vmem:[#allocation14 + $0x3c] sm:$0xf]
    %v5404 = vunpack.c.l.b16 %v5372
    %v5405 = vunpack.c.l.b16 %v5373
    %v5406 = vunpack.c.l.b16 %v5374
    %v5407 = vunpack.c.l.b16 %v5375
    %v5408 = vunpack.c.l.b16 %v5376
    %v5409 = vunpack.c.l.b16 %v5377
    %v5410 = vunpack.c.l.b16 %v5378
    %v5411 = vunpack.c.l.b16 %v5379
    %v5412 = vunpack.c.l.b16 %v5380
    %v5413 = vunpack.c.l.b16 %v5381
    %v5414 = vunpack.c.l.b16 %v5382
    %v5415 = vunpack.c.l.b16 %v5383
    %v5416 = vunpack.c.l.b16 %v5384
    %v5417 = vunpack.c.l.b16 %v5385
    %v5418 = vunpack.c.l.b16 %v5386
    %v5419 = vunpack.c.l.b16 %v5387
    %v5420 = vpack.c.b16 %v5405, %v5404
    %v5421 = vpack.c.b16 %v5407, %v5406
    %v5422 = vpack.c.b16 %v5409, %v5408
    %v5423 = vpack.c.b16 %v5411, %v5410
    %v5424 = vpack.c.b16 %v5413, %v5412
    %v5425 = vpack.c.b16 %v5415, %v5414
    %v5426 = vpack.c.b16 %v5417, %v5416
    %v5427 = vpack.c.b16 %v5419, %v5418
    %5436 = vmatprep.subr.bf16.mxu0 0
    %5437 = vmatpush1.bf16.msra.mxu0 %v5420
    %5438 = vmatprep.subr.bf16.mxu0 0
    %5439 = vmatpush1.bf16.msra.mxu0 %v5421
    %5440 = vmatprep.subr.bf16.mxu0 0
    %5441 = vmatpush1.bf16.msra.mxu0 %v5422
    %5442 = vmatprep.subr.bf16.mxu0 0
    %5443 = vmatpush1.bf16.msra.mxu0 %v5423
    %5444 = vmatprep.subr.bf16.mxu0 0
    %5445 = vmatpush1.bf16.msra.mxu0 %v5424
    %5446 = vmatprep.subr.bf16.mxu0 0
    %5447 = vmatpush1.bf16.msra.mxu0 %v5425
    %5448 = vmatprep.subr.bf16.mxu0 0
    %5449 = vmatpush1.bf16.msra.mxu0 %v5426
    %5450 = vmatprep.subr.bf16.mxu0 0
    %5451 = vmatpush1.bf16.msra.mxu0 %v5427
    %5452 = vmatprep.subr.bf16.mxu0 0
    %5453 = vmatpush1.bf16.msra.mxu0 0
    %5454 = vmatprep.subr.bf16.mxu0 0
    %5455 = vmatpush1.bf16.msra.mxu0 0
    %5456 = vmatprep.subr.bf16.mxu0 0
    %5457 = vmatpush1.bf16.msra.mxu0 0
    %5458 = vmatprep.subr.bf16.mxu0 0
    %5459 = vmatpush1.bf16.msra.mxu0 0
    %5460 = vmatprep.subr.bf16.mxu0 0
    %5461 = vmatpush1.bf16.msra.mxu0 0
    %5462 = vmatprep.subr.bf16.mxu0 0
    %5463 = vmatpush1.bf16.msra.mxu0 0
    %5464 = vmatprep.subr.bf16.mxu0 0
    %5465 = vmatpush1.bf16.msra.mxu0 0
    %5466 = vmatprep.subr.bf16.mxu0 0
    %5467 = vmatpush1.bf16.msra.mxu0 0
    %5468 = vmatprep.mubr.bf16.mxu0 0
    %5469 = vmatmul.mubr.bf16.gmra.mrb[0].mxu0 %v5371
    %v5470 = vpop.f32.mrb[0].mxu0
    %v5471 = vadd.f32 0.0, %v5470
    %v5472 = vpop.f32.mrb[0].mxu0
    %v5473 = vpop.f32.mrb[0].mxu0
    %v5474 = vadd.f32 0.0, %v5473
    %v5475 = vpop.f32.mrb[0].mxu0
    %5476 = vdwg.mxu0
    %v5477 = vpack.c.bf16 %v5474, %v5471
    %v5478 = vld [vmem:[#allocation16] sm:$0x1]
    %v5479 = vpack.c.bf16 %v5478, %v5478
    %v5481 = vpack.i.b16 %v5479, %v5479
    %v5483 = vlaneseq
    %v5484 = vshrl.u32 %v5483, 7
    %v5485 = vsub.s32 0, %v5484
    %v5486 = vrot.slane %v5481, %v5485
    %v5487 = vadd.bf16 %v5477, %v5486
    %v5488 = vmul.bf16 %v5487, 1036860877
    %v5489 = vmax.bf16 %v5487, %v5488
    %v5490 = vld [vmem:[#allocation17] sm:$0xf]
    %v5491 = vld [vmem:[#allocation17 + $0x4] sm:$0xf]
    %v5492 = vld [vmem:[#allocation17 + $0x8] sm:$0xf]
    %v5493 = vld [vmem:[#allocation17 + $0xc] sm:$0xf]
    %v5494 = vld [vmem:[#allocation17 + $0x10] sm:$0xf]
    %v5495 = vld [vmem:[#allocation17 + $0x14] sm:$0xf]
    %v5496 = vld [vmem:[#allocation17 + $0x18] sm:$0xf]
    %v5497 = vld [vmem:[#allocation17 + $0x1c] sm:$0xf]
    %v5498 = vld [vmem:[#allocation17 + $0x20] sm:$0xf]
    %v5499 = vld [vmem:[#allocation17 + $0x24] sm:$0xf]
    %v5500 = vld [vmem:[#allocation17 + $0x28] sm:$0xf]
    %v5501 = vld [vmem:[#allocation17 + $0x2c] sm:$0xf]
    %v5502 = vld [vmem:[#allocation17 + $0x30] sm:$0xf]
    %v5503 = vld [vmem:[#allocation17 + $0x34] sm:$0xf]
    %v5504 = vld [vmem:[#allocation17 + $0x38] sm:$0xf]
    %v5505 = vld [vmem:[#allocation17 + $0x3c] sm:$0xf]
    %v5522 = vunpack.c.l.b16 %v5490
    %v5523 = vunpack.c.l.b16 %v5491
    %v5524 = vunpack.c.l.b16 %v5492
    %v5525 = vunpack.c.l.b16 %v5493
    %v5526 = vunpack.c.l.b16 %v5494
    %v5527 = vunpack.c.l.b16 %v5495
    %v5528 = vunpack.c.l.b16 %v5496
    %v5529 = vunpack.c.l.b16 %v5497
    %v5530 = vunpack.c.l.b16 %v5498
    %v5531 = vunpack.c.l.b16 %v5499
    %v5532 = vunpack.c.l.b16 %v5500
    %v5533 = vunpack.c.l.b16 %v5501
    %v5534 = vunpack.c.l.b16 %v5502
    %v5535 = vunpack.c.l.b16 %v5503
    %v5536 = vunpack.c.l.b16 %v5504
    %v5537 = vunpack.c.l.b16 %v5505
    %v5538 = vpack.c.b16 %v5523, %v5522
    %v5539 = vpack.c.b16 %v5525, %v5524
    %v5540 = vpack.c.b16 %v5527, %v5526
    %v5541 = vpack.c.b16 %v5529, %v5528
    %v5542 = vpack.c.b16 %v5531, %v5530
    %v5543 = vpack.c.b16 %v5533, %v5532
    %v5544 = vpack.c.b16 %v5535, %v5534
    %v5545 = vpack.c.b16 %v5537, %v5536
    %5554 = vmatprep.subr.bf16.mxu0 0
    %5555 = vmatpush1.bf16.msra.mxu0 %v5538
    %5556 = vmatprep.subr.bf16.mxu0 0
    %5557 = vmatpush1.bf16.msra.mxu0 %v5539
    %5558 = vmatprep.subr.bf16.mxu0 0
    %5559 = vmatpush1.bf16.msra.mxu0 %v5540
    %5560 = vmatprep.subr.bf16.mxu0 0
    %5561 = vmatpush1.bf16.msra.mxu0 %v5541
    %5562 = vmatprep.subr.bf16.mxu0 0
    %5563 = vmatpush1.bf16.msra.mxu0 %v5542
    %5564 = vmatprep.subr.bf16.mxu0 0
    %5565 = vmatpush1.bf16.msra.mxu0 %v5543
    %5566 = vmatprep.subr.bf16.mxu0 0
    %5567 = vmatpush1.bf16.msra.mxu0 %v5544
    %5568 = vmatprep.subr.bf16.mxu0 0
    %5569 = vmatpush1.bf16.msra.mxu0 %v5545
    %5570 = vmatprep.subr.bf16.mxu0 0
    %5571 = vmatpush1.bf16.msra.mxu0 0
    %5572 = vmatprep.subr.bf16.mxu0 0
    %5573 = vmatpush1.bf16.msra.mxu0 0
    %5574 = vmatprep.subr.bf16.mxu0 0
    %5575 = vmatpush1.bf16.msra.mxu0 0
    %5576 = vmatprep.subr.bf16.mxu0 0
    %5577 = vmatpush1.bf16.msra.mxu0 0
    %5578 = vmatprep.subr.bf16.mxu0 0
    %5579 = vmatpush1.bf16.msra.mxu0 0
    %5580 = vmatprep.subr.bf16.mxu0 0
    %5581 = vmatpush1.bf16.msra.mxu0 0
    %5582 = vmatprep.subr.bf16.mxu0 0
    %5583 = vmatpush1.bf16.msra.mxu0 0
    %5584 = vmatprep.subr.bf16.mxu0 0
    %5585 = vmatpush1.bf16.msra.mxu0 0
    %5586 = vmatprep.mubr.bf16.mxu0 0
    %5587 = vmatmul.mubr.bf16.gmra.mrb[0].mxu0 %v5489
    %v5588 = vpop.f32.mrb[0].mxu0
    %v5589 = vadd.f32 0.0, %v5588
    %v5590 = vpop.f32.mrb[0].mxu0
    %v5591 = vpop.f32.mrb[0].mxu0
    %v5592 = vadd.f32 0.0, %v5591
    %v5593 = vpop.f32.mrb[0].mxu0
    %5594 = vdwg.mxu0
    %v5595 = vpack.c.bf16 %v5592, %v5589
    %v5596 = vld [vmem:[#allocation19] sm:$0x1]
    %v5597 = vpack.c.bf16 %v5596, %v5596
    %v5599 = vpack.i.b16 %v5597, %v5597
    %v5601 = vlaneseq
    %v5602 = vshrl.u32 %v5601, 7
    %v5603 = vsub.s32 0, %v5602
    %v5604 = vrot.slane %v5599, %v5603
    %v5605 = vadd.bf16 %v5595, %v5604
    %v5607 = vunpack.c.l.b16 %v5605
    %v5608 = vunpack.c.h.b16 %v5605
    %v5609 = vpack.c.b16 %v5607, %v5607
    %v5610 = vpack.c.b16 %v5608, %v5608
    %5613 = vst [vmem:[#allocation20] sm:$0xf] %v5609
    %5614 = vst [vmem:[#allocation20 + $0x4] sm:$0xf] %v5610
    // Predicated region
    $region90: #{tpu_custom_call.1} parent=1 // pred_check
      _
    $region91: #{tpu_custom_call.1} parent=1 // pred_check_branch
      %5616 = sbr.rel (0) target = $region93
    $region92: #{tpu_custom_call.1} parent=1 // pred_region
      %s5618 = ssub.s32 128, 128
      %5619 = vsyncadd [#allocation4], %s5618
      %s5620 = sshll.u32 [#allocation20], 4
      %s5621 = int_to_ptr.vmem [resolvable:$true] %s5620
      %5626 = dma.vmem_to_hbm [thread:$0]  %s5621, 128, %s11, [#allocation4], 64, 64, 4
    $region93: #{tpu_custom_call.1} parent=1 // pred_fallthru
      _
    // Predicated region
    $region94: #{tpu_custom_call.1} parent=1 // pred_check
      _
    $region95: #{tpu_custom_call.1} parent=1 // pred_check_branch
      %5628 = sbr.rel (0) target = $region97
    $region96: #{tpu_custom_call.1} parent=1 // pred_region
      %5629 = dma.done [#allocation4], 128
    $region97: #{tpu_custom_call.1} parent=1 // pred_fallthru
      _
    %5630 = vsyncpa [#allocation3], 1
    %5631 = vsyncpa [#allocation6], 1
    %5632 = vsyncpa [#allocation9], 1
    %5633 = vsyncpa [#allocation12], 1
    %5634 = vsyncpa [#allocation15], 1
    %5635 = vsyncpa [#allocation18], 1
    %5636 = vsyncpa [#allocation4], 1

</llo_original>
